<compile_context>
chip_gen: v5e
topology: v5e:2x2
jax: 0.10.0
libtpu: 0.0.40
codegen_flags: <defaults>
</compile_context>

<pallas_src>
import math

import numpy as np
import jax
import jax.numpy as jnp
from jax.experimental import pallas as pl
from jax.experimental.pallas import tpu as pltpu

# ---------------------------------------------------------------------------
# Scaled-down ViT config (real model: 224 / 16 / 768 / 12 layers / 12 heads)
# ---------------------------------------------------------------------------
IMG_SIZE = 32
PATCH = 8
HIDDEN = 64
NUM_LAYERS = 2
NUM_HEADS = 4
HEAD_DIM = HIDDEN // NUM_HEADS
MLP_DIM = 4 * HIDDEN
NUM_PATCHES = (IMG_SIZE // PATCH) ** 2
SEQ_LEN = NUM_PATCHES + 1              # +CLS
PATCH_FEAT = PATCH * PATCH             # 3-channel repeat folded into the weight
VECTOR_DIM = 2
NUM_CLASSES = 1
MLP_HEAD_DIM = 64
VIT_LN_EPS = 1e-12                     # HF ViT layer_norm_eps
TORCH_LN_EPS = 1e-5                    # nn.LayerNorm default in the heads

_N_LAYER_ARGS = 16                     # weight refs per transformer layer


# ---------------------------------------------------------------------------
# In-kernel helpers
# ---------------------------------------------------------------------------
def _ln(x, g, b, eps):
    mean = jnp.mean(x, axis=-1, keepdims=True)
    d = x - mean
    var = jnp.mean(d * d, axis=-1, keepdims=True)          # biased, like torch
    return d * jax.lax.rsqrt(var + eps) * g + b


def _gelu_exact(y):                                          # exact (erf) GELU, as in HF ViT
    return 0.5 * y * (1.0 + jax.lax.erf(y * (1.0 / math.sqrt(2.0))))


def _const_spec(shape):
    nd = len(shape)
    return pl.BlockSpec(shape, lambda i, _nd=nd: (0,) * _nd)


# ---------------------------------------------------------------------------
# Kernel 1: whole ViT trunk — patch embed + CLS + pos-emb + all encoder blocks
#           (grid over batch; only the CLS row is written back)
# ---------------------------------------------------------------------------
def _encoder_layer(x, ln1g, ln1b, wq, bq, wk, bk, wv, bv, wo, bo,
                   ln2g, ln2b, w1, b1, w2, b2):
    """One pre-LN transformer block on a (T, D) value; args are per-layer weight refs."""
    xn = _ln(x, ln1g[...], ln1b[...], VIT_LN_EPS)

    # attention: per-head weights stacked on the leading axis; 1/sqrt(Dh) folded into wq/bq
    attn = None
    for h in range(NUM_HEADS):
        q = jnp.dot(xn, wq[h], preferred_element_type=jnp.float32) + bq[h]   # (T, Dh)
        k = jnp.dot(xn, wk[h], preferred_element_type=jnp.float32) + bk[h]
        v = jnp.dot(xn, wv[h], preferred_element_type=jnp.float32) + bv[h]
        s = jnp.dot(q, k.T, preferred_element_type=jnp.float32)              # (T, T)
        s = s - jnp.max(s, axis=-1, keepdims=True)
        p = jnp.exp(s)
        p = p * pl.reciprocal(jnp.sum(p, axis=-1, keepdims=True), approx=True)
        ctx = jnp.dot(p, v, preferred_element_type=jnp.float32)              # (T, Dh)
        contrib = jnp.dot(ctx, wo[h], preferred_element_type=jnp.float32)    # (T, D)
        attn = contrib if attn is None else attn + contrib

    h1 = x + attn + bo[...]                                  # residual + O-proj bias

    hn2 = _ln(h1, ln2g[...], ln2b[...], VIT_LN_EPS)
    m = _gelu_exact(jnp.dot(hn2, w1[...], preferred_element_type=jnp.float32) + b1[...])
    m2 = jnp.dot(m, w2[...], preferred_element_type=jnp.float32) + b2[...]
    return h1 + m2                                           # second residual


def _encoder_kernel(*refs):
    p_ref, pw_ref, pb_ref, cls_ref, pos_ref = refs[:5]
    layer_refs = refs[5:5 + NUM_LAYERS * _N_LAYER_ARGS]
    o_ref = refs[5 + NUM_LAYERS * _N_LAYER_ARGS]
    x_scr = refs[6 + NUM_LAYERS * _N_LAYER_ARGS]

    # patch embed + CLS prepend + positional embedding, assembled in VMEM scratch
    emb = jnp.dot(p_ref[0], pw_ref[...], preferred_element_type=jnp.float32) + pb_ref[...]
    x_scr[0:1, :] = cls_ref[...] + pos_ref[0:1, :]
    x_scr[1:SEQ_LEN, :] = emb + pos_ref[1:SEQ_LEN, :]
    x = x_scr[...]                                            # (T, D)

    for l in range(NUM_LAYERS):
        x = _encoder_layer(x, *layer_refs[l * _N_LAYER_ARGS:(l + 1) * _N_LAYER_ARGS])

    o_ref[0, 0:1, :] = x[0:1, :]                              # only the CLS row leaves VMEM


def _layer_weight_list(lyr):
    scale = 1.0 / math.sqrt(HEAD_DIM)
    # per-head stacked weights (head-major column split, matching HF's head reshape)
    wq = (lyr["q_w"] * scale).reshape(HIDDEN, NUM_HEADS, HEAD_DIM).transpose(1, 0, 2)
    bq = (lyr["q_b"] * scale).reshape(NUM_HEADS, 1, HEAD_DIM)
    wk = lyr["k_w"].reshape(HIDDEN, NUM_HEADS, HEAD_DIM).transpose(1, 0, 2)
    bk = lyr["k_b"].reshape(NUM_HEADS, 1, HEAD_DIM)
    wv = lyr["v_w"].reshape(HIDDEN, NUM_HEADS, HEAD_DIM).transpose(1, 0, 2)
    bv = lyr["v_b"].reshape(NUM_HEADS, 1, HEAD_DIM)
    wo = lyr["o_w"].reshape(NUM_HEADS, HEAD_DIM, HIDDEN)
    return [
        lyr["ln1_g"].reshape(1, HIDDEN), lyr["ln1_b"].reshape(1, HIDDEN),
        wq, bq, wk, bk, wv, bv, wo, lyr["o_b"].reshape(1, HIDDEN),
        lyr["ln2_g"].reshape(1, HIDDEN), lyr["ln2_b"].reshape(1, HIDDEN),
        lyr["fc1_w"], lyr["fc1_b"].reshape(1, MLP_DIM),
        lyr["fc2_w"], lyr["fc2_b"].reshape(1, HIDDEN),
    ]


def pallas_vit_encoder(patches, params):
    B = patches.shape[0]
    # exact fold of the 3-channel repeat: sum the per-channel weight blocks once
    patch_w_eff = params["patch_w"].reshape(3, PATCH_FEAT, HIDDEN).sum(0)
    weights = [patch_w_eff, params["patch_b"].reshape(1, HIDDEN),
               params["cls_token"].reshape(1, HIDDEN),
               params["pos_emb"].reshape(SEQ_LEN, HIDDEN)]
    for lyr in params["layers"]:
        weights += _layer_weight_list(lyr)

    in_specs = [pl.BlockSpec((1, NUM_PATCHES, PATCH_FEAT), lambda i: (i, 0, 0))]
    in_specs += [_const_spec(w.shape) for w in weights]
    return pl.pallas_call(
        _encoder_kernel,
        grid=(B,),
        in_specs=in_specs,
        out_specs=pl.BlockSpec((1, 1, HIDDEN), lambda i: (i, 0, 0)),
        out_shape=jax.ShapeDtypeStruct((B, 1, HIDDEN), jnp.float32),
        scratch_shapes=[pltpu.VMEM((SEQ_LEN, HIDDEN), jnp.float32)],
        compiler_params=pltpu.CompilerParams(dimension_semantics=("parallel",)),
    )(patches, *weights)


# ---------------------------------------------------------------------------
# Kernel 2: whole post-encoder head, fused (final LN -> mlp -> concat -> classifier)
#           operates on the full batch at once
# ---------------------------------------------------------------------------
def _head_kernel(cls_ref, vec_ref, lnfg, lnfb, mlng, mlnb, mw, mb,
                 c1g_z, c1g_v, c1b_z, c1b_v, w1_z, w1_v, b1,
                 c2g, c2b, w2, b2, c3g, c3b, w3, b3, o_ref):
    # final ViT LayerNorm (applied only to the CLS row — identical to LN(all)[:,0])
    cls = cls_ref[...].reshape(cls_ref.shape[0], HIDDEN)      # (B, D)
    x = _ln(cls, lnfg[...], lnfb[...], VIT_LN_EPS)

    # self.mlp: LayerNorm -> Linear(D, 64) -> ReLU
    z = _ln(x, mlng[...], mlnb[...], TORCH_LN_EPS)
    z = jnp.maximum(jnp.dot(z, mw[...], preferred_element_type=jnp.float32) + mb[...], 0.0)

    # LayerNorm over the virtual concat [z | vector] (width 66) without materializing it
    v = vec_ref[...]                                          # (B, VECTOR_DIM)
    n = float(MLP_HEAD_DIM + VECTOR_DIM)
    mean = (jnp.sum(z, axis=-1, keepdims=True) + jnp.sum(v, axis=-1, keepdims=True)) / n
    dz = z - mean
    dv = v - mean
    var = (jnp.sum(dz * dz, axis=-1, keepdims=True)
           + jnp.sum(dv * dv, axis=-1, keepdims=True)) / n
    inv = jax.lax.rsqrt(var + TORCH_LN_EPS)
    zn = dz * inv * c1g_z[...] + c1b_z[...]
    vn = dv * inv * c1g_v[...] + c1b_v[...]

    # Linear(66, 64) as split matmul
    z = (jnp.dot(zn, w1_z[...], preferred_element_type=jnp.float32)
         + jnp.dot(vn, w1_v[...], preferred_element_type=jnp.float32) + b1[...])
    z = jnp.maximum(_ln(z, c2g[...], c2b[...], TORCH_LN_EPS), 0.0)
    z = jnp.dot(z, w2[...], preferred_element_type=jnp.float32) + b2[...]
    z = jnp.maximum(_ln(z, c3g[...], c3b[...], TORCH_LN_EPS), 0.0)
    logits = jnp.dot(z, w3[...], preferred_element_type=jnp.float32) + b3[...]
    o_ref[...] = jax.nn.sigmoid(logits)


def pallas_head(params, cls3, vector):
    B = cls3.shape[0]
    r = lambda a: a.reshape(1, -1)
    args = [
        cls3, vector,
        r(params["ln_f_g"]), r(params["ln_f_b"]),
        r(params["mlp_ln_g"]), r(params["mlp_ln_b"]),
        params["mlp_w"], r(params["mlp_b"]),
        r(params["c_ln1_g"][:MLP_HEAD_DIM]), r(params["c_ln1_g"][MLP_HEAD_DIM:]),
        r(params["c_ln1_b"][:MLP_HEAD_DIM]), r(params["c_ln1_b"][MLP_HEAD_DIM:]),
        params["c_w1"][:MLP_HEAD_DIM], params["c_w1"][MLP_HEAD_DIM:],
        r(params["c_b1"]),
        r(params["c_ln2_g"]), r(params["c_ln2_b"]), params["c_w2"], r(params["c_b2"]),
        r(params["c_ln3_g"]), r(params["c_ln3_b"]), params["c_w3"], r(params["c_b3"]),
    ]
    return pl.pallas_call(
        _head_kernel,
        out_shape=jax.ShapeDtypeStruct((B, NUM_CLASSES), jnp.float32),
    )(*args)


# ---------------------------------------------------------------------------
# Preprocessing glue (bilinear resize matches torch interpolate align_corners=False)
# ---------------------------------------------------------------------------
def _bilinear_matrix(out_size, in_size):
    i = np.arange(out_size, dtype=np.float64)
    src = (i + 0.5) * (in_size / out_size) - 0.5
    src = np.maximum(src, 0.0)                 # torch clamps negative source coords to 0
    x0 = np.floor(src).astype(np.int64)
    x0 = np.clip(x0, 0, in_size - 1)
    x1 = np.minimum(x0 + 1, in_size - 1)
    w1 = src - x0
    w0 = 1.0 - w1
    m = np.zeros((out_size, in_size), np.float64)
    m[np.arange(out_size), x0] += w0
    m[np.arange(out_size), x1] += w1
    return jnp.asarray(m, jnp.float32)


def preprocess_patches(img):
    # img: (B, 1, h, w) NCHW. The 3-channel repeat is folded into the patch-embed weight.
    B, _, h, w = img.shape
    wh = _bilinear_matrix(IMG_SIZE, h)
    ww = _bilinear_matrix(IMG_SIZE, w)
    # TODO(synk): bilinear resize + patch extraction stay as XLA glue (weighted-gather
    # resampling / strided patchify have no clean rectangular-tile Pallas formulation here).
    x = jnp.einsum("oh,bhw,pw->bop", wh, img[:, 0], ww)       # (B, IMG, IMG)
    x = 2.0 * x - 1.0                                         # Normalize(mean=0.5, std=0.5)
    hp = IMG_SIZE // PATCH
    patches = x.reshape(B, hp, PATCH, hp, PATCH).transpose(0, 1, 3, 2, 4)
    return patches.reshape(B, hp * hp, PATCH * PATCH)         # (B, NUM_PATCHES, P*P)


# ---------------------------------------------------------------------------
# Deterministic parameter init (synthetic weights; shapes follow the module)
# ---------------------------------------------------------------------------
def init_params(key):
    keys = iter(jax.random.split(key, 128))

    def nrm(shape, scale=0.02):
        return scale * jax.random.normal(next(keys), shape, jnp.float32)

    params = dict(
        cls_token=nrm((1, 1, HIDDEN)),
        pos_emb=nrm((1, SEQ_LEN, HIDDEN)),
        # Conv2d(3, HIDDEN, kernel=PATCH, stride=PATCH) stored flattened as (3*P*P, HIDDEN)
        patch_w=nrm((3 * PATCH * PATCH, HIDDEN)),
        patch_b=jnp.zeros((HIDDEN,), jnp.float32),
        ln_f_g=jnp.ones((HIDDEN,), jnp.float32),
        ln_f_b=jnp.zeros((HIDDEN,), jnp.float32),
        mlp_ln_g=jnp.ones((HIDDEN,), jnp.float32),
        mlp_ln_b=jnp.zeros((HIDDEN,), jnp.float32),
        mlp_w=nrm((HIDDEN, MLP_HEAD_DIM)),
        mlp_b=jnp.zeros((MLP_HEAD_DIM,), jnp.float32),
        c_ln1_g=jnp.ones((MLP_HEAD_DIM + VECTOR_DIM,), jnp.float32),
        c_ln1_b=jnp.zeros((MLP_HEAD_DIM + VECTOR_DIM,), jnp.float32),
        c_w1=nrm((MLP_HEAD_DIM + VECTOR_DIM, 64)),
        c_b1=jnp.zeros((64,), jnp.float32),
        c_ln2_g=jnp.ones((64,), jnp.float32),
        c_ln2_b=jnp.zeros((64,), jnp.float32),
        c_w2=nrm((64, 64)),
        c_b2=jnp.zeros((64,), jnp.float32),
        c_ln3_g=jnp.ones((64,), jnp.float32),
        c_ln3_b=jnp.zeros((64,), jnp.float32),
        c_w3=nrm((64, NUM_CLASSES)),
        c_b3=jnp.zeros((NUM_CLASSES,), jnp.float32),
    )
    layers = []
    for _ in range(NUM_LAYERS):
        layers.append(dict(
            ln1_g=jnp.ones((HIDDEN,), jnp.float32), ln1_b=jnp.zeros((HIDDEN,), jnp.float32),
            q_w=nrm((HIDDEN, HIDDEN)), q_b=jnp.zeros((HIDDEN,), jnp.float32),
            k_w=nrm((HIDDEN, HIDDEN)), k_b=jnp.zeros((HIDDEN,), jnp.float32),
            v_w=nrm((HIDDEN, HIDDEN)), v_b=jnp.zeros((HIDDEN,), jnp.float32),
            o_w=nrm((HIDDEN, HIDDEN)), o_b=jnp.zeros((HIDDEN,), jnp.float32),
            ln2_g=jnp.ones((HIDDEN,), jnp.float32), ln2_b=jnp.zeros((HIDDEN,), jnp.float32),
            fc1_w=nrm((HIDDEN, MLP_DIM)), fc1_b=jnp.zeros((MLP_DIM,), jnp.float32),
            fc2_w=nrm((MLP_DIM, HIDDEN)), fc2_b=jnp.zeros((HIDDEN,), jnp.float32),
        ))
    params["layers"] = layers
    return params


# ---------------------------------------------------------------------------
# Forward pass (structure mirrors ViTHugging.forward)
# ---------------------------------------------------------------------------
def vit_hugging_forward(params, img, vector):
    # --- self._preprocess_tensor (resize + normalize; channel repeat folded into weight) ---
    patches = preprocess_patches(img)                          # (B, NUM_PATCHES, P*P)

    # --- whole ViT trunk in one fused kernel; returns only the CLS row per sample ---
    cls3 = pallas_vit_encoder(patches, params)                 # (B, 1, D)

    # --- fused head kernel (final LN + mlp + concat + classifier + sigmoid) ---
    logits = pallas_head(params, cls3, vector)                 # (B, NUM_CLASSES)
    return logits


# ---------------------------------------------------------------------------
if __name__ == "__main__":
    key = jax.random.PRNGKey(0)
    k_param, k_img, k_vec = jax.random.split(key, 3)

    params = init_params(k_param)
    img = jax.random.uniform(k_img, (2, 1, 16, 16), jnp.float32)       # NCHW, 1 channel
    vector = jax.random.normal(k_vec, (2, VECTOR_DIM), jnp.float32)

    fwd = jax.jit(vit_hugging_forward)
    logits = fwd(params, img, vector)
    jax.block_until_ready(logits)
    assert logits.shape == (2, NUM_CLASSES)
    assert bool(jnp.all((logits >= 0.0) & (logits <= 1.0)))            # sigmoid output
    print("KERNEL_OK")
</pallas_src>

<mosaic_0001>
module attributes {stable_mosaic.version = 11 : i64} {
  func.func @_head_kernel(%arg0: memref<2x1x64xf32, #tpu.memory_space<vmem>>, %arg1: memref<2x2xf32, #tpu.memory_space<vmem>>, %arg2: memref<1x64xf32, #tpu.memory_space<vmem>>, %arg3: memref<1x64xf32, #tpu.memory_space<vmem>>, %arg4: memref<1x64xf32, #tpu.memory_space<vmem>>, %arg5: memref<1x64xf32, #tpu.memory_space<vmem>>, %arg6: memref<64x64xf32, #tpu.memory_space<vmem>>, %arg7: memref<1x64xf32, #tpu.memory_space<vmem>>, %arg8: memref<1x64xf32, #tpu.memory_space<vmem>>, %arg9: memref<1x2xf32, #tpu.memory_space<vmem>>, %arg10: memref<1x64xf32, #tpu.memory_space<vmem>>, %arg11: memref<1x2xf32, #tpu.memory_space<vmem>>, %arg12: memref<64x64xf32, #tpu.memory_space<vmem>>, %arg13: memref<2x64xf32, #tpu.memory_space<vmem>>, %arg14: memref<1x64xf32, #tpu.memory_space<vmem>>, %arg15: memref<1x64xf32, #tpu.memory_space<vmem>>, %arg16: memref<1x64xf32, #tpu.memory_space<vmem>>, %arg17: memref<64x64xf32, #tpu.memory_space<vmem>>, %arg18: memref<1x64xf32, #tpu.memory_space<vmem>>, %arg19: memref<1x64xf32, #tpu.memory_space<vmem>>, %arg20: memref<1x64xf32, #tpu.memory_space<vmem>>, %arg21: memref<64x1xf32, #tpu.memory_space<vmem>>, %arg22: memref<1x1xf32, #tpu.memory_space<vmem>>, %arg23: memref<2x1xf32, #tpu.memory_space<vmem>>) attributes {dimension_semantics = [], scalar_prefetch = 0 : i64, scratch_operands = 0 : i64, tpu.core_type = #tpu.core_type<tc>} {
    %c0 = arith.constant 0 : index
    %c0_0 = arith.constant 0 : index
    %c0_1 = arith.constant 0 : index
    %0 = vector.load %arg0[%c0, %c0_0, %c0_1] : memref<2x1x64xf32, #tpu.memory_space<vmem>>, vector<2x1x64xf32>
    %1 = vector.shape_cast %0 : vector<2x1x64xf32> to vector<2x64xf32>
    %c0_2 = arith.constant 0 : index
    %c0_3 = arith.constant 0 : index
    %2 = vector.load %arg2[%c0_2, %c0_3] : memref<1x64xf32, #tpu.memory_space<vmem>>, vector<1x64xf32>
    %c0_4 = arith.constant 0 : index
    %c0_5 = arith.constant 0 : index
    %3 = vector.load %arg3[%c0_4, %c0_5] : memref<1x64xf32, #tpu.memory_space<vmem>>, vector<1x64xf32>
    %cst = arith.constant dense<0.000000e+00> : vector<2xf32>
    %4 = vector.multi_reduction <add>, %1, %cst [1] : vector<2x64xf32> to vector<2xf32>
    %5 = vector.shape_cast %4 : vector<2xf32> to vector<2x1xf32>
    %cst_6 = arith.constant 6.400000e+01 : f32
    %6 = vector.broadcast %cst_6 : f32 to vector<2x1xf32>
    %7 = arith.divf %5, %6 : vector<2x1xf32>
    %8 = vector.broadcast %7 : vector<2x1xf32> to vector<2x64xf32>
    %9 = arith.subf %1, %8 : vector<2x64xf32>
    %10 = arith.mulf %9, %9 : vector<2x64xf32>
    %cst_7 = arith.constant dense<0.000000e+00> : vector<2xf32>
    %11 = vector.multi_reduction <add>, %10, %cst_7 [1] : vector<2x64xf32> to vector<2xf32>
    %12 = vector.shape_cast %11 : vector<2xf32> to vector<2x1xf32>
    %cst_8 = arith.constant 6.400000e+01 : f32
    %13 = vector.broadcast %cst_8 : f32 to vector<2x1xf32>
    %14 = arith.divf %12, %13 : vector<2x1xf32>
    %cst_9 = arith.constant 9.99999996E-13 : f32
    %15 = vector.broadcast %cst_9 : f32 to vector<2x1xf32>
    %16 = arith.addf %14, %15 : vector<2x1xf32>
    %17 = math.rsqrt %16 : vector<2x1xf32>
    %18 = vector.broadcast %17 : vector<2x1xf32> to vector<2x64xf32>
    %19 = arith.mulf %9, %18 : vector<2x64xf32>
    %20 = vector.broadcast %2 : vector<1x64xf32> to vector<2x64xf32>
    %21 = arith.mulf %19, %20 : vector<2x64xf32>
    %22 = vector.broadcast %3 : vector<1x64xf32> to vector<2x64xf32>
    %23 = arith.addf %21, %22 : vector<2x64xf32>
    %c0_10 = arith.constant 0 : index
    %c0_11 = arith.constant 0 : index
    %24 = vector.load %arg4[%c0_10, %c0_11] : memref<1x64xf32, #tpu.memory_space<vmem>>, vector<1x64xf32>
    %c0_12 = arith.constant 0 : index
    %c0_13 = arith.constant 0 : index
    %25 = vector.load %arg5[%c0_12, %c0_13] : memref<1x64xf32, #tpu.memory_space<vmem>>, vector<1x64xf32>
    %cst_14 = arith.constant dense<0.000000e+00> : vector<2xf32>
    %26 = vector.multi_reduction <add>, %23, %cst_14 [1] : vector<2x64xf32> to vector<2xf32>
    %27 = vector.shape_cast %26 : vector<2xf32> to vector<2x1xf32>
    %cst_15 = arith.constant 6.400000e+01 : f32
    %28 = vector.broadcast %cst_15 : f32 to vector<2x1xf32>
    %29 = arith.divf %27, %28 : vector<2x1xf32>
    %30 = vector.broadcast %29 : vector<2x1xf32> to vector<2x64xf32>
    %31 = arith.subf %23, %30 : vector<2x64xf32>
    %32 = arith.mulf %31, %31 : vector<2x64xf32>
    %cst_16 = arith.constant dense<0.000000e+00> : vector<2xf32>
    %33 = vector.multi_reduction <add>, %32, %cst_16 [1] : vector<2x64xf32> to vector<2xf32>
    %34 = vector.shape_cast %33 : vector<2xf32> to vector<2x1xf32>
    %cst_17 = arith.constant 6.400000e+01 : f32
    %35 = vector.broadcast %cst_17 : f32 to vector<2x1xf32>
    %36 = arith.divf %34, %35 : vector<2x1xf32>
    %cst_18 = arith.constant 9.99999974E-6 : f32
    %37 = vector.broadcast %cst_18 : f32 to vector<2x1xf32>
    %38 = arith.addf %36, %37 : vector<2x1xf32>
    %39 = math.rsqrt %38 : vector<2x1xf32>
    %40 = vector.broadcast %39 : vector<2x1xf32> to vector<2x64xf32>
    %41 = arith.mulf %31, %40 : vector<2x64xf32>
    %42 = vector.broadcast %24 : vector<1x64xf32> to vector<2x64xf32>
    %43 = arith.mulf %41, %42 : vector<2x64xf32>
    %44 = vector.broadcast %25 : vector<1x64xf32> to vector<2x64xf32>
    %45 = arith.addf %43, %44 : vector<2x64xf32>
    %c0_19 = arith.constant 0 : index
    %c0_20 = arith.constant 0 : index
    %46 = vector.load %arg6[%c0_19, %c0_20] : memref<64x64xf32, #tpu.memory_space<vmem>>, vector<64x64xf32>
    %cst_21 = arith.constant dense<0.000000e+00> : vector<2x64xf32>
    %47 = tpu.matmul %45, %46, %cst_21 {dimension_numbers = #tpu.dot_dimension_numbers<[1], [0], [0], [1], [0, 0, 1, 1], [], []>} : vector<2x64xf32>, vector<64x64xf32>, vector<2x64xf32> -> vector<2x64xf32>
    %c0_22 = arith.constant 0 : index
    %c0_23 = arith.constant 0 : index
    %48 = vector.load %arg7[%c0_22, %c0_23] : memref<1x64xf32, #tpu.memory_space<vmem>>, vector<1x64xf32>
    %49 = vector.broadcast %48 : vector<1x64xf32> to vector<2x64xf32>
    %50 = arith.addf %47, %49 : vector<2x64xf32>
    %cst_24 = arith.constant 0.000000e+00 : f32
    %51 = vector.broadcast %cst_24 : f32 to vector<2x64xf32>
    %52 = arith.maximumf %50, %51 : vector<2x64xf32>
    %c0_25 = arith.constant 0 : index
    %c0_26 = arith.constant 0 : index
    %53 = vector.load %arg1[%c0_25, %c0_26] : memref<2x2xf32, #tpu.memory_space<vmem>>, vector<2x2xf32>
    %cst_27 = arith.constant dense<0.000000e+00> : vector<2xf32>
    %54 = vector.multi_reduction <add>, %52, %cst_27 [1] : vector<2x64xf32> to vector<2xf32>
    %55 = vector.shape_cast %54 : vector<2xf32> to vector<2x1xf32>
    %cst_28 = arith.constant dense<0.000000e+00> : vector<2xf32>
    %56 = vector.multi_reduction <add>, %53, %cst_28 [1] : vector<2x2xf32> to vector<2xf32>
    %57 = vector.shape_cast %56 : vector<2xf32> to vector<2x1xf32>
    %58 = arith.addf %55, %57 : vector<2x1xf32>
    %cst_29 = arith.constant 6.600000e+01 : f32
    %59 = vector.broadcast %cst_29 : f32 to vector<2x1xf32>
    %60 = arith.divf %58, %59 : vector<2x1xf32>
    %61 = vector.broadcast %60 : vector<2x1xf32> to vector<2x64xf32>
    %62 = arith.subf %52, %61 : vector<2x64xf32>
    %63 = vector.broadcast %60 : vector<2x1xf32> to vector<2x2xf32>
    %64 = arith.subf %53, %63 : vector<2x2xf32>
    %65 = arith.mulf %62, %62 : vector<2x64xf32>
    %cst_30 = arith.constant dense<0.000000e+00> : vector<2xf32>
    %66 = vector.multi_reduction <add>, %65, %cst_30 [1] : vector<2x64xf32> to vector<2xf32>
    %67 = vector.shape_cast %66 : vector<2xf32> to vector<2x1xf32>
    %68 = arith.mulf %64, %64 : vector<2x2xf32>
    %cst_31 = arith.constant dense<0.000000e+00> : vector<2xf32>
    %69 = vector.multi_reduction <add>, %68, %cst_31 [1] : vector<2x2xf32> to vector<2xf32>
    %70 = vector.shape_cast %69 : vector<2xf32> to vector<2x1xf32>
    %71 = arith.addf %67, %70 : vector<2x1xf32>
    %cst_32 = arith.constant 6.600000e+01 : f32
    %72 = vector.broadcast %cst_32 : f32 to vector<2x1xf32>
    %73 = arith.divf %71, %72 : vector<2x1xf32>
    %cst_33 = arith.constant 9.99999974E-6 : f32
    %74 = vector.broadcast %cst_33 : f32 to vector<2x1xf32>
    %75 = arith.addf %73, %74 : vector<2x1xf32>
    %76 = math.rsqrt %75 : vector<2x1xf32>
    %77 = vector.broadcast %76 : vector<2x1xf32> to vector<2x64xf32>
    %78 = arith.mulf %62, %77 : vector<2x64xf32>
    %c0_34 = arith.constant 0 : index
    %c0_35 = arith.constant 0 : index
    %79 = vector.load %arg8[%c0_34, %c0_35] : memref<1x64xf32, #tpu.memory_space<vmem>>, vector<1x64xf32>
    %80 = vector.broadcast %79 : vector<1x64xf32> to vector<2x64xf32>
    %81 = arith.mulf %78, %80 : vector<2x64xf32>
    %c0_36 = arith.constant 0 : index
    %c0_37 = arith.constant 0 : index
    %82 = vector.load %arg10[%c0_36, %c0_37] : memref<1x64xf32, #tpu.memory_space<vmem>>, vector<1x64xf32>
    %83 = vector.broadcast %82 : vector<1x64xf32> to vector<2x64xf32>
    %84 = arith.addf %81, %83 : vector<2x64xf32>
    %85 = vector.broadcast %76 : vector<2x1xf32> to vector<2x2xf32>
    %86 = arith.mulf %64, %85 : vector<2x2xf32>
    %c0_38 = arith.constant 0 : index
    %c0_39 = arith.constant 0 : index
    %87 = vector.load %arg9[%c0_38, %c0_39] : memref<1x2xf32, #tpu.memory_space<vmem>>, vector<1x2xf32>
    %88 = vector.broadcast %87 : vector<1x2xf32> to vector<2x2xf32>
    %89 = arith.mulf %86, %88 : vector<2x2xf32>
    %c0_40 = arith.constant 0 : index
    %c0_41 = arith.constant 0 : index
    %90 = vector.load %arg11[%c0_40, %c0_41] : memref<1x2xf32, #tpu.memory_space<vmem>>, vector<1x2xf32>
    %91 = vector.broadcast %90 : vector<1x2xf32> to vector<2x2xf32>
    %92 = arith.addf %89, %91 : vector<2x2xf32>
    %c0_42 = arith.constant 0 : index
    %c0_43 = arith.constant 0 : index
    %93 = vector.load %arg12[%c0_42, %c0_43] : memref<64x64xf32, #tpu.memory_space<vmem>>, vector<64x64xf32>
    %cst_44 = arith.constant dense<0.000000e+00> : vector<2x64xf32>
    %94 = tpu.matmul %84, %93, %cst_44 {dimension_numbers = #tpu.dot_dimension_numbers<[1], [0], [0], [1], [0, 0, 1, 1], [], []>} : vector<2x64xf32>, vector<64x64xf32>, vector<2x64xf32> -> vector<2x64xf32>
    %c0_45 = arith.constant 0 : index
    %c0_46 = arith.constant 0 : index
    %95 = vector.load %arg13[%c0_45, %c0_46] : memref<2x64xf32, #tpu.memory_space<vmem>>, vector<2x64xf32>
    %cst_47 = arith.constant dense<0.000000e+00> : vector<2x64xf32>
    %96 = tpu.matmul %92, %95, %cst_47 {dimension_numbers = #tpu.dot_dimension_numbers<[1], [0], [0], [1], [0, 0, 1, 1], [], []>} : vector<2x2xf32>, vector<2x64xf32>, vector<2x64xf32> -> vector<2x64xf32>
    %97 = arith.addf %94, %96 : vector<2x64xf32>
    %c0_48 = arith.constant 0 : index
    %c0_49 = arith.constant 0 : index
    %98 = vector.load %arg14[%c0_48, %c0_49] : memref<1x64xf32, #tpu.memory_space<vmem>>, vector<1x64xf32>
    %99 = vector.broadcast %98 : vector<1x64xf32> to vector<2x64xf32>
    %100 = arith.addf %97, %99 : vector<2x64xf32>
    %c0_50 = arith.constant 0 : index
    %c0_51 = arith.constant 0 : index
    %101 = vector.load %arg15[%c0_50, %c0_51] : memref<1x64xf32, #tpu.memory_space<vmem>>, vector<1x64xf32>
    %c0_52 = arith.constant 0 : index
    %c0_53 = arith.constant 0 : index
    %102 = vector.load %arg16[%c0_52, %c0_53] : memref<1x64xf32, #tpu.memory_space<vmem>>, vector<1x64xf32>
    %cst_54 = arith.constant dense<0.000000e+00> : vector<2xf32>
    %103 = vector.multi_reduction <add>, %100, %cst_54 [1] : vector<2x64xf32> to vector<2xf32>
    %104 = vector.shape_cast %103 : vector<2xf32> to vector<2x1xf32>
    %cst_55 = arith.constant 6.400000e+01 : f32
    %105 = vector.broadcast %cst_55 : f32 to vector<2x1xf32>
    %106 = arith.divf %104, %105 : vector<2x1xf32>
    %107 = vector.broadcast %106 : vector<2x1xf32> to vector<2x64xf32>
    %108 = arith.subf %100, %107 : vector<2x64xf32>
    %109 = arith.mulf %108, %108 : vector<2x64xf32>
    %cst_56 = arith.constant dense<0.000000e+00> : vector<2xf32>
    %110 = vector.multi_reduction <add>, %109, %cst_56 [1] : vector<2x64xf32> to vector<2xf32>
    %111 = vector.shape_cast %110 : vector<2xf32> to vector<2x1xf32>
    %cst_57 = arith.constant 6.400000e+01 : f32
    %112 = vector.broadcast %cst_57 : f32 to vector<2x1xf32>
    %113 = arith.divf %111, %112 : vector<2x1xf32>
    %cst_58 = arith.constant 9.99999974E-6 : f32
    %114 = vector.broadcast %cst_58 : f32 to vector<2x1xf32>
    %115 = arith.addf %113, %114 : vector<2x1xf32>
    %116 = math.rsqrt %115 : vector<2x1xf32>
    %117 = vector.broadcast %116 : vector<2x1xf32> to vector<2x64xf32>
    %118 = arith.mulf %108, %117 : vector<2x64xf32>
    %119 = vector.broadcast %101 : vector<1x64xf32> to vector<2x64xf32>
    %120 = arith.mulf %118, %119 : vector<2x64xf32>
    %121 = vector.broadcast %102 : vector<1x64xf32> to vector<2x64xf32>
    %122 = arith.addf %120, %121 : vector<2x64xf32>
    %cst_59 = arith.constant 0.000000e+00 : f32
    %123 = vector.broadcast %cst_59 : f32 to vector<2x64xf32>
    %124 = arith.maximumf %122, %123 : vector<2x64xf32>
    %c0_60 = arith.constant 0 : index
    %c0_61 = arith.constant 0 : index
    %125 = vector.load %arg17[%c0_60, %c0_61] : memref<64x64xf32, #tpu.memory_space<vmem>>, vector<64x64xf32>
    %cst_62 = arith.constant dense<0.000000e+00> : vector<2x64xf32>
    %126 = tpu.matmul %124, %125, %cst_62 {dimension_numbers = #tpu.dot_dimension_numbers<[1], [0], [0], [1], [0, 0, 1, 1], [], []>} : vector<2x64xf32>, vector<64x64xf32>, vector<2x64xf32> -> vector<2x64xf32>
    %c0_63 = arith.constant 0 : index
    %c0_64 = arith.constant 0 : index
    %127 = vector.load %arg18[%c0_63, %c0_64] : memref<1x64xf32, #tpu.memory_space<vmem>>, vector<1x64xf32>
    %128 = vector.broadcast %127 : vector<1x64xf32> to vector<2x64xf32>
    %129 = arith.addf %126, %128 : vector<2x64xf32>
    %c0_65 = arith.constant 0 : index
    %c0_66 = arith.constant 0 : index
    %130 = vector.load %arg19[%c0_65, %c0_66] : memref<1x64xf32, #tpu.memory_space<vmem>>, vector<1x64xf32>
    %c0_67 = arith.constant 0 : index
    %c0_68 = arith.constant 0 : index
    %131 = vector.load %arg20[%c0_67, %c0_68] : memref<1x64xf32, #tpu.memory_space<vmem>>, vector<1x64xf32>
    %cst_69 = arith.constant dense<0.000000e+00> : vector<2xf32>
    %132 = vector.multi_reduction <add>, %129, %cst_69 [1] : vector<2x64xf32> to vector<2xf32>
    %133 = vector.shape_cast %132 : vector<2xf32> to vector<2x1xf32>
    %cst_70 = arith.constant 6.400000e+01 : f32
    %134 = vector.broadcast %cst_70 : f32 to vector<2x1xf32>
    %135 = arith.divf %133, %134 : vector<2x1xf32>
    %136 = vector.broadcast %135 : vector<2x1xf32> to vector<2x64xf32>
    %137 = arith.subf %129, %136 : vector<2x64xf32>
    %138 = arith.mulf %137, %137 : vector<2x64xf32>
    %cst_71 = arith.constant dense<0.000000e+00> : vector<2xf32>
    %139 = vector.multi_reduction <add>, %138, %cst_71 [1] : vector<2x64xf32> to vector<2xf32>
    %140 = vector.shape_cast %139 : vector<2xf32> to vector<2x1xf32>
    %cst_72 = arith.constant 6.400000e+01 : f32
    %141 = vector.broadcast %cst_72 : f32 to vector<2x1xf32>
    %142 = arith.divf %140, %141 : vector<2x1xf32>
    %cst_73 = arith.constant 9.99999974E-6 : f32
    %143 = vector.broadcast %cst_73 : f32 to vector<2x1xf32>
    %144 = arith.addf %142, %143 : vector<2x1xf32>
    %145 = math.rsqrt %144 : vector<2x1xf32>
    %146 = vector.broadcast %145 : vector<2x1xf32> to vector<2x64xf32>
    %147 = arith.mulf %137, %146 : vector<2x64xf32>
    %148 = vector.broadcast %130 : vector<1x64xf32> to vector<2x64xf32>
    %149 = arith.mulf %147, %148 : vector<2x64xf32>
    %150 = vector.broadcast %131 : vector<1x64xf32> to vector<2x64xf32>
    %151 = arith.addf %149, %150 : vector<2x64xf32>
    %cst_74 = arith.constant 0.000000e+00 : f32
    %152 = vector.broadcast %cst_74 : f32 to vector<2x64xf32>
    %153 = arith.maximumf %151, %152 : vector<2x64xf32>
    %c0_75 = arith.constant 0 : index
    %c0_76 = arith.constant 0 : index
    %154 = vector.load %arg21[%c0_75, %c0_76] : memref<64x1xf32, #tpu.memory_space<vmem>>, vector<64x1xf32>
    %cst_77 = arith.constant dense<0.000000e+00> : vector<2x1xf32>
    %155 = tpu.matmul %153, %154, %cst_77 {dimension_numbers = #tpu.dot_dimension_numbers<[1], [0], [0], [1], [0, 0, 1, 1], [], []>} : vector<2x64xf32>, vector<64x1xf32>, vector<2x1xf32> -> vector<2x1xf32>
    %c0_78 = arith.constant 0 : index
    %c0_79 = arith.constant 0 : index
    %156 = vector.load %arg22[%c0_78, %c0_79] : memref<1x1xf32, #tpu.memory_space<vmem>>, vector<1x1xf32>
    %157 = vector.broadcast %156 : vector<1x1xf32> to vector<2x1xf32>
    %158 = arith.addf %155, %157 : vector<2x1xf32>
    %159 = arith.negf %158 : vector<2x1xf32>
    %160 = math.exp %159 : vector<2x1xf32>
    %cst_80 = arith.constant 1.000000e+00 : f32
    %161 = vector.broadcast %cst_80 : f32 to vector<2x1xf32>
    %162 = arith.addf %161, %160 : vector<2x1xf32>
    %163 = arith.divf %161, %162 : vector<2x1xf32>
    %c0_81 = arith.constant 0 : index
    %c0_82 = arith.constant 0 : index
    %164 = vector.load %arg23[%c0_81, %c0_82] : memref<2x1xf32, #tpu.memory_space<vmem>>, vector<2x1xf32>
    tpu.vector_store %arg23[%c0_81, %c0_82], %163 {strides = array<i32>} : memref<2x1xf32, #tpu.memory_space<vmem>>, vector<2x1xf32>,
    return
  }
}

module attributes {stable_mosaic.version = 11 : i64} {
  func.func @_encoder_kernel(%arg0: i32, %arg1: memref<1x16x64xf32, #tpu.memory_space<vmem>>, %arg2: memref<64x64xf32, #tpu.memory_space<vmem>>, %arg3: memref<1x64xf32, #tpu.memory_space<vmem>>, %arg4: memref<1x64xf32, #tpu.memory_space<vmem>>, %arg5: memref<17x64xf32, #tpu.memory_space<vmem>>, %arg6: memref<1x64xf32, #tpu.memory_space<vmem>>, %arg7: memref<1x64xf32, #tpu.memory_space<vmem>>, %arg8: memref<4x64x16xf32, #tpu.memory_space<vmem>>, %arg9: memref<4x1x16xf32, #tpu.memory_space<vmem>>, %arg10: memref<4x64x16xf32, #tpu.memory_space<vmem>>, %arg11: memref<4x1x16xf32, #tpu.memory_space<vmem>>, %arg12: memref<4x64x16xf32, #tpu.memory_space<vmem>>, %arg13: memref<4x1x16xf32, #tpu.memory_space<vmem>>, %arg14: memref<4x16x64xf32, #tpu.memory_space<vmem>>, %arg15: memref<1x64xf32, #tpu.memory_space<vmem>>, %arg16: memref<1x64xf32, #tpu.memory_space<vmem>>, %arg17: memref<1x64xf32, #tpu.memory_space<vmem>>, %arg18: memref<64x256xf32, #tpu.memory_space<vmem>>, %arg19: memref<1x256xf32, #tpu.memory_space<vmem>>, %arg20: memref<256x64xf32, #tpu.memory_space<vmem>>, %arg21: memref<1x64xf32, #tpu.memory_space<vmem>>, %arg22: memref<1x64xf32, #tpu.memory_space<vmem>>, %arg23: memref<1x64xf32, #tpu.memory_space<vmem>>, %arg24: memref<4x64x16xf32, #tpu.memory_space<vmem>>, %arg25: memref<4x1x16xf32, #tpu.memory_space<vmem>>, %arg26: memref<4x64x16xf32, #tpu.memory_space<vmem>>, %arg27: memref<4x1x16xf32, #tpu.memory_space<vmem>>, %arg28: memref<4x64x16xf32, #tpu.memory_space<vmem>>, %arg29: memref<4x1x16xf32, #tpu.memory_space<vmem>>, %arg30: memref<4x16x64xf32, #tpu.memory_space<vmem>>, %arg31: memref<1x64xf32, #tpu.memory_space<vmem>>, %arg32: memref<1x64xf32, #tpu.memory_space<vmem>>, %arg33: memref<1x64xf32, #tpu.memory_space<vmem>>, %arg34: memref<64x256xf32, #tpu.memory_space<vmem>>, %arg35: memref<1x256xf32, #tpu.memory_space<vmem>>, %arg36: memref<256x64xf32, #tpu.memory_space<vmem>>, %arg37: memref<1x64xf32, #tpu.memory_space<vmem>>, %arg38: memref<1x1x64xf32, #tpu.memory_space<vmem>>, %arg39: memref<17x64xf32, #tpu.memory_space<vmem>>) attributes {dimension_semantics = [#tpu.dimension_semantics<parallel>], iteration_bounds = array<i64: 2>, scalar_prefetch = 0 : i64, scratch_operands = 1 : i64, tpu.core_type = #tpu.core_type<tc>, window_params = [{transform_indices = @transform_0, window_bounds = array<i64: 1, 16, 64>}, {pipeline_mode = #tpu.pipeline_mode<synchronous>, transform_indices = @transform_1, window_bounds = array<i64: 64, 64>}, {pipeline_mode = #tpu.pipeline_mode<synchronous>, transform_indices = @transform_2, window_bounds = array<i64: 1, 64>}, {pipeline_mode = #tpu.pipeline_mode<synchronous>, transform_indices = @transform_3, window_bounds = array<i64: 1, 64>}, {pipeline_mode = #tpu.pipeline_mode<synchronous>, transform_indices = @transform_4, window_bounds = array<i64: 17, 64>}, {pipeline_mode = #tpu.pipeline_mode<synchronous>, transform_indices = @transform_5, window_bounds = array<i64: 1, 64>}, {pipeline_mode = #tpu.pipeline_mode<synchronous>, transform_indices = @transform_6, window_bounds = array<i64: 1, 64>}, {pipeline_mode = #tpu.pipeline_mode<synchronous>, transform_indices = @transform_7, window_bounds = array<i64: 4, 64, 16>}, {pipeline_mode = #tpu.pipeline_mode<synchronous>, transform_indices = @transform_8, window_bounds = array<i64: 4, 1, 16>}, {pipeline_mode = #tpu.pipeline_mode<synchronous>, transform_indices = @transform_9, window_bounds = array<i64: 4, 64, 16>}, {pipeline_mode = #tpu.pipeline_mode<synchronous>, transform_indices = @transform_10, window_bounds = array<i64: 4, 1, 16>}, {pipeline_mode = #tpu.pipeline_mode<synchronous>, transform_indices = @transform_11, window_bounds = array<i64: 4, 64, 16>}, {pipeline_mode = #tpu.pipeline_mode<synchronous>, transform_indices = @transform_12, window_bounds = array<i64: 4, 1, 16>}, {pipeline_mode = #tpu.pipeline_mode<synchronous>, transform_indices = @transform_13, window_bounds = array<i64: 4, 16, 64>}, {pipeline_mode = #tpu.pipeline_mode<synchronous>, transform_indices = @transform_14, window_bounds = array<i64: 1, 64>}, {pipeline_mode = #tpu.pipeline_mode<synchronous>, transform_indices = @transform_15, window_bounds = array<i64: 1, 64>}, {pipeline_mode = #tpu.pipeline_mode<synchronous>, transform_indices = @transform_16, window_bounds = array<i64: 1, 64>}, {pipeline_mode = #tpu.pipeline_mode<synchronous>, transform_indices = @transform_17, window_bounds = array<i64: 64, 256>}, {pipeline_mode = #tpu.pipeline_mode<synchronous>, transform_indices = @transform_18, window_bounds = array<i64: 1, 256>}, {pipeline_mode = #tpu.pipeline_mode<synchronous>, transform_indices = @transform_19, window_bounds = array<i64: 256, 64>}, {pipeline_mode = #tpu.pipeline_mode<synchronous>, transform_indices = @transform_20, window_bounds = array<i64: 1, 64>}, {pipeline_mode = #tpu.pipeline_mode<synchronous>, transform_indices = @transform_21, window_bounds = array<i64: 1, 64>}, {pipeline_mode = #tpu.pipeline_mode<synchronous>, transform_indices = @transform_22, window_bounds = array<i64: 1, 64>}, {pipeline_mode = #tpu.pipeline_mode<synchronous>, transform_indices = @transform_23, window_bounds = array<i64: 4, 64, 16>}, {pipeline_mode = #tpu.pipeline_mode<synchronous>, transform_indices = @transform_24, window_bounds = array<i64: 4, 1, 16>}, {pipeline_mode = #tpu.pipeline_mode<synchronous>, transform_indices = @transform_25, window_bounds = array<i64: 4, 64, 16>}, {pipeline_mode = #tpu.pipeline_mode<synchronous>, transform_indices = @transform_26, window_bounds = array<i64: 4, 1, 16>}, {pipeline_mode = #tpu.pipeline_mode<synchronous>, transform_indices = @transform_27, window_bounds = array<i64: 4, 64, 16>}, {pipeline_mode = #tpu.pipeline_mode<synchronous>, transform_indices = @transform_28, window_bounds = array<i64: 4, 1, 16>}, {pipeline_mode = #tpu.pipeline_mode<synchronous>, transform_indices = @transform_29, window_bounds = array<i64: 4, 16, 64>}, {pipeline_mode = #tpu.pipeline_mode<synchronous>, transform_indices = @transform_30, window_bounds = array<i64: 1, 64>}, {pipeline_mode = #tpu.pipeline_mode<synchronous>, transform_indices = @transform_31, window_bounds = array<i64: 1, 64>}, {pipeline_mode = #tpu.pipeline_mode<synchronous>, transform_indices = @transform_32, window_bounds = array<i64: 1, 64>}, {pipeline_mode = #tpu.pipeline_mode<synchronous>, transform_indices = @transform_33, window_bounds = array<i64: 64, 256>}, {pipeline_mode = #tpu.pipeline_mode<synchronous>, transform_indices = @transform_34, window_bounds = array<i64: 1, 256>}, {pipeline_mode = #tpu.pipeline_mode<synchronous>, transform_indices = @transform_35, window_bounds = array<i64: 256, 64>}, {pipeline_mode = #tpu.pipeline_mode<synchronous>, transform_indices = @transform_36, window_bounds = array<i64: 1, 64>}, {transform_indices = @transform_37, window_bounds = array<i64: 1, 1, 64>}]} {
    %c0 = arith.constant 0 : index
    %c0_0 = arith.constant 0 : index
    %c0_1 = arith.constant 0 : index
    %0 = vector.load %arg1[%c0, %c0_0, %c0_1] : memref<1x16x64xf32, #tpu.memory_space<vmem>>, vector<1x16x64xf32>
    %1 = vector.shape_cast %0 : vector<1x16x64xf32> to vector<16x64xf32>
    %c0_2 = arith.constant 0 : index
    %c0_3 = arith.constant 0 : index
    %2 = vector.load %arg2[%c0_2, %c0_3] : memref<64x64xf32, #tpu.memory_space<vmem>>, vector<64x64xf32>
    %cst = arith.constant dense<0.000000e+00> : vector<16x64xf32>
    %3 = tpu.matmul %1, %2, %cst {dimension_numbers = #tpu.dot_dimension_numbers<[1], [0], [0], [1], [0, 0, 1, 1], [], []>} : vector<16x64xf32>, vector<64x64xf32>, vector<16x64xf32> -> vector<16x64xf32>
    %c0_4 = arith.constant 0 : index
    %c0_5 = arith.constant 0 : index
    %4 = vector.load %arg3[%c0_4, %c0_5] : memref<1x64xf32, #tpu.memory_space<vmem>>, vector<1x64xf32>
    %5 = vector.broadcast %4 : vector<1x64xf32> to vector<16x64xf32>
    %6 = arith.addf %3, %5 : vector<16x64xf32>
    %c0_6 = arith.constant 0 : index
    %c0_7 = arith.constant 0 : index
    %7 = vector.load %arg4[%c0_6, %c0_7] : memref<1x64xf32, #tpu.memory_space<vmem>>, vector<1x64xf32>
    %c0_8 = arith.constant 0 : index
    %c0_9 = arith.constant 0 : index
    %8 = vector.load %arg5[%c0_8, %c0_9] : memref<17x64xf32, #tpu.memory_space<vmem>>, vector<1x64xf32>
    %9 = arith.addf %7, %8 : vector<1x64xf32>
    %c0_10 = arith.constant 0 : index
    %c0_11 = arith.constant 0 : index
    %10 = vector.load %arg39[%c0_10, %c0_11] : memref<17x64xf32, #tpu.memory_space<vmem>>, vector<1x64xf32>
    tpu.vector_store %arg39[%c0_10, %c0_11], %9 {strides = array<i32>} : memref<17x64xf32, #tpu.memory_space<vmem>>, vector<1x64xf32>,
    %c1 = arith.constant 1 : index
    %c0_12 = arith.constant 0 : index
    %11 = vector.load %arg5[%c1, %c0_12] : memref<17x64xf32, #tpu.memory_space<vmem>>, vector<16x64xf32>
    %12 = arith.addf %6, %11 : vector<16x64xf32>
    %c1_13 = arith.constant 1 : index
    %c0_14 = arith.constant 0 : index
    %13 = vector.load %arg39[%c1_13, %c0_14] : memref<17x64xf32, #tpu.memory_space<vmem>>, vector<16x64xf32>
    tpu.vector_store %arg39[%c1_13, %c0_14], %12 {strides = array<i32>} : memref<17x64xf32, #tpu.memory_space<vmem>>, vector<16x64xf32>,
    %c0_15 = arith.constant 0 : index
    %c0_16 = arith.constant 0 : index
    %14 = vector.load %arg39[%c0_15, %c0_16] : memref<17x64xf32, #tpu.memory_space<vmem>>, vector<17x64xf32>
    %c0_17 = arith.constant 0 : index
    %c0_18 = arith.constant 0 : index
    %15 = vector.load %arg6[%c0_17, %c0_18] : memref<1x64xf32, #tpu.memory_space<vmem>>, vector<1x64xf32>
    %c0_19 = arith.constant 0 : index
    %c0_20 = arith.constant 0 : index
    %16 = vector.load %arg7[%c0_19, %c0_20] : memref<1x64xf32, #tpu.memory_space<vmem>>, vector<1x64xf32>
    %cst_21 = arith.constant dense<0.000000e+00> : vector<17xf32>
    %17 = vector.multi_reduction <add>, %14, %cst_21 [1] : vector<17x64xf32> to vector<17xf32>
    %18 = vector.shape_cast %17 : vector<17xf32> to vector<17x1xf32>
    %cst_22 = arith.constant 6.400000e+01 : f32
    %19 = vector.broadcast %cst_22 : f32 to vector<17x1xf32>
    %20 = arith.divf %18, %19 : vector<17x1xf32>
    %21 = vector.broadcast %20 : vector<17x1xf32> to vector<17x64xf32>
    %22 = arith.subf %14, %21 : vector<17x64xf32>
    %23 = arith.mulf %22, %22 : vector<17x64xf32>
    %cst_23 = arith.constant dense<0.000000e+00> : vector<17xf32>
    %24 = vector.multi_reduction <add>, %23, %cst_23 [1] : vector<17x64xf32> to vector<17xf32>
    %25 = vector.shape_cast %24 : vector<17xf32> to vector<17x1xf32>
    %cst_24 = arith.constant 6.400000e+01 : f32
    %26 = vector.broadcast %cst_24 : f32 to vector<17x1xf32>
    %27 = arith.divf %25, %26 : vector<17x1xf32>
    %cst_25 = arith.constant 9.99999996E-13 : f32
    %28 = vector.broadcast %cst_25 : f32 to vector<17x1xf32>
    %29 = arith.addf %27, %28 : vector<17x1xf32>
    %30 = math.rsqrt %29 : vector<17x1xf32>
    %31 = vector.broadcast %30 : vector<17x1xf32> to vector<17x64xf32>
    %32 = arith.mulf %22, %31 : vector<17x64xf32>
    %33 = vector.broadcast %15 : vector<1x64xf32> to vector<17x64xf32>
    %34 = arith.mulf %32, %33 : vector<17x64xf32>
    %35 = vector.broadcast %16 : vector<1x64xf32> to vector<17x64xf32>
    %36 = arith.addf %34, %35 : vector<17x64xf32>
    %c0_26 = arith.constant 0 : index
    %c0_27 = arith.constant 0 : index
    %c0_28 = arith.constant 0 : index
    %37 = vector.load %arg8[%c0_26, %c0_27, %c0_28] : memref<4x64x16xf32, #tpu.memory_space<vmem>>, vector<1x64x16xf32>
    %38 = vector.shape_cast %37 : vector<1x64x16xf32> to vector<64x16xf32>
    %cst_29 = arith.constant dense<0.000000e+00> : vector<17x16xf32>
    %39 = tpu.matmul %36, %38, %cst_29 {dimension_numbers = #tpu.dot_dimension_numbers<[1], [0], [0], [1], [0, 0, 1, 1], [], []>} : vector<17x64xf32>, vector<64x16xf32>, vector<17x16xf32> -> vector<17x16xf32>
    %c0_30 = arith.constant 0 : index
    %c0_31 = arith.constant 0 : index
    %c0_32 = arith.constant 0 : index
    %40 = vector.load %arg9[%c0_30, %c0_31, %c0_32] : memref<4x1x16xf32, #tpu.memory_space<vmem>>, vector<1x1x16xf32>
    %41 = vector.shape_cast %40 : vector<1x1x16xf32> to vector<1x16xf32>
    %42 = vector.broadcast %41 : vector<1x16xf32> to vector<17x16xf32>
    %43 = arith.addf %39, %42 : vector<17x16xf32>
    %c0_33 = arith.constant 0 : index
    %c0_34 = arith.constant 0 : index
    %c0_35 = arith.constant 0 : index
    %44 = vector.load %arg10[%c0_33, %c0_34, %c0_35] : memref<4x64x16xf32, #tpu.memory_space<vmem>>, vector<1x64x16xf32>
    %45 = vector.shape_cast %44 : vector<1x64x16xf32> to vector<64x16xf32>
    %cst_36 = arith.constant dense<0.000000e+00> : vector<17x16xf32>
    %46 = tpu.matmul %36, %45, %cst_36 {dimension_numbers = #tpu.dot_dimension_numbers<[1], [0], [0], [1], [0, 0, 1, 1], [], []>} : vector<17x64xf32>, vector<64x16xf32>, vector<17x16xf32> -> vector<17x16xf32>
    %c0_37 = arith.constant 0 : index
    %c0_38 = arith.constant 0 : index
    %c0_39 = arith.constant 0 : index
    %47 = vector.load %arg11[%c0_37, %c0_38, %c0_39] : memref<4x1x16xf32, #tpu.memory_space<vmem>>, vector<1x1x16xf32>
    %48 = vector.shape_cast %47 : vector<1x1x16xf32> to vector<1x16xf32>
    %49 = vector.broadcast %48 : vector<1x16xf32> to vector<17x16xf32>
    %50 = arith.addf %46, %49 : vector<17x16xf32>
    %c0_40 = arith.constant 0 : index
    %c0_41 = arith.constant 0 : index
    %c0_42 = arith.constant 0 : index
    %51 = vector.load %arg12[%c0_40, %c0_41, %c0_42] : memref<4x64x16xf32, #tpu.memory_space<vmem>>, vector<1x64x16xf32>
    %52 = vector.shape_cast %51 : vector<1x64x16xf32> to vector<64x16xf32>
    %cst_43 = arith.constant dense<0.000000e+00> : vector<17x16xf32>
    %53 = tpu.matmul %36, %52, %cst_43 {dimension_numbers = #tpu.dot_dimension_numbers<[1], [0], [0], [1], [0, 0, 1, 1], [], []>} : vector<17x64xf32>, vector<64x16xf32>, vector<17x16xf32> -> vector<17x16xf32>
    %c0_44 = arith.constant 0 : index
    %c0_45 = arith.constant 0 : index
    %c0_46 = arith.constant 0 : index
    %54 = vector.load %arg13[%c0_44, %c0_45, %c0_46] : memref<4x1x16xf32, #tpu.memory_space<vmem>>, vector<1x1x16xf32>
    %55 = vector.shape_cast %54 : vector<1x1x16xf32> to vector<1x16xf32>
    %56 = vector.broadcast %55 : vector<1x16xf32> to vector<17x16xf32>
    %57 = arith.addf %53, %56 : vector<17x16xf32>
    %58 = tpu.transpose %50, [1, 0] : vector<17x16xf32> -> vector<16x17xf32>
    %cst_47 = arith.constant dense<0.000000e+00> : vector<17x17xf32>
    %59 = tpu.matmul %43, %58, %cst_47 {dimension_numbers = #tpu.dot_dimension_numbers<[1], [0], [0], [1], [0, 0, 1, 1], [], []>} : vector<17x16xf32>, vector<16x17xf32>, vector<17x17xf32> -> vector<17x17xf32>
    %cst_48 = arith.constant dense<0xFF800000> : vector<17xf32>
    %60 = vector.multi_reduction <maximumf>, %59, %cst_48 [1] : vector<17x17xf32> to vector<17xf32>
    %61 = vector.shape_cast %60 : vector<17xf32> to vector<17x1xf32>
    %62 = vector.broadcast %61 : vector<17x1xf32> to vector<17x17xf32>
    %63 = arith.subf %59, %62 : vector<17x17xf32>
    %64 = math.exp %63 : vector<17x17xf32>
    %cst_49 = arith.constant dense<0.000000e+00> : vector<17xf32>
    %65 = vector.multi_reduction <add>, %64, %cst_49 [1] : vector<17x17xf32> to vector<17xf32>
    %66 = vector.shape_cast %65 : vector<17xf32> to vector<17x1xf32>
    %67 = tpu.reciprocal %66 {approx = true} : vector<17x1xf32> -> vector<17x1xf32>
    %68 = vector.broadcast %67 : vector<17x1xf32> to vector<17x17xf32>
    %69 = arith.mulf %64, %68 : vector<17x17xf32>
    %cst_50 = arith.constant dense<0.000000e+00> : vector<17x16xf32>
    %70 = tpu.matmul %69, %57, %cst_50 {dimension_numbers = #tpu.dot_dimension_numbers<[1], [0], [0], [1], [0, 0, 1, 1], [], []>} : vector<17x17xf32>, vector<17x16xf32>, vector<17x16xf32> -> vector<17x16xf32>
    %c0_51 = arith.constant 0 : index
    %c0_52 = arith.constant 0 : index
    %c0_53 = arith.constant 0 : index
    %71 = vector.load %arg14[%c0_51, %c0_52, %c0_53] : memref<4x16x64xf32, #tpu.memory_space<vmem>>, vector<1x16x64xf32>
    %72 = vector.shape_cast %71 : vector<1x16x64xf32> to vector<16x64xf32>
    %cst_54 = arith.constant dense<0.000000e+00> : vector<17x64xf32>
    %73 = tpu.matmul %70, %72, %cst_54 {dimension_numbers = #tpu.dot_dimension_numbers<[1], [0], [0], [1], [0, 0, 1, 1], [], []>} : vector<17x16xf32>, vector<16x64xf32>, vector<17x64xf32> -> vector<17x64xf32>
    %c1_55 = arith.constant 1 : index
    %c0_56 = arith.constant 0 : index
    %c0_57 = arith.constant 0 : index
    %74 = vector.load %arg8[%c1_55, %c0_56, %c0_57] : memref<4x64x16xf32, #tpu.memory_space<vmem>>, vector<1x64x16xf32>
    %75 = vector.shape_cast %74 : vector<1x64x16xf32> to vector<64x16xf32>
    %cst_58 = arith.constant dense<0.000000e+00> : vector<17x16xf32>
    %76 = tpu.matmul %36, %75, %cst_58 {dimension_numbers = #tpu.dot_dimension_numbers<[1], [0], [0], [1], [0, 0, 1, 1], [], []>} : vector<17x64xf32>, vector<64x16xf32>, vector<17x16xf32> -> vector<17x16xf32>
    %c1_59 = arith.constant 1 : index
    %c0_60 = arith.constant 0 : index
    %c0_61 = arith.constant 0 : index
    %77 = vector.load %arg9[%c1_59, %c0_60, %c0_61] : memref<4x1x16xf32, #tpu.memory_space<vmem>>, vector<1x1x16xf32>
    %78 = vector.shape_cast %77 : vector<1x1x16xf32> to vector<1x16xf32>
    %79 = vector.broadcast %78 : vector<1x16xf32> to vector<17x16xf32>
    %80 = arith.addf %76, %79 : vector<17x16xf32>
    %c1_62 = arith.constant 1 : index
    %c0_63 = arith.constant 0 : index
    %c0_64 = arith.constant 0 : index
    %81 = vector.load %arg10[%c1_62, %c0_63, %c0_64] : memref<4x64x16xf32, #tpu.memory_space<vmem>>, vector<1x64x16xf32>
    %82 = vector.shape_cast %81 : vector<1x64x16xf32> to vector<64x16xf32>
    %cst_65 = arith.constant dense<0.000000e+00> : vector<17x16xf32>
    %83 = tpu.matmul %36, %82, %cst_65 {dimension_numbers = #tpu.dot_dimension_numbers<[1], [0], [0], [1], [0, 0, 1, 1], [], []>} : vector<17x64xf32>, vector<64x16xf32>, vector<17x16xf32> -> vector<17x16xf32>
    %c1_66 = arith.constant 1 : index
    %c0_67 = arith.constant 0 : index
    %c0_68 = arith.constant 0 : index
    %84 = vector.load %arg11[%c1_66, %c0_67, %c0_68] : memref<4x1x16xf32, #tpu.memory_space<vmem>>, vector<1x1x16xf32>
    %85 = vector.shape_cast %84 : vector<1x1x16xf32> to vector<1x16xf32>
    %86 = vector.broadcast %85 : vector<1x16xf32> to vector<17x16xf32>
    %87 = arith.addf %83, %86 : vector<17x16xf32>
    %c1_69 = arith.constant 1 : index
    %c0_70 = arith.constant 0 : index
    %c0_71 = arith.constant 0 : index
    %88 = vector.load %arg12[%c1_69, %c0_70, %c0_71] : memref<4x64x16xf32, #tpu.memory_space<vmem>>, vector<1x64x16xf32>
    %89 = vector.shape_cast %88 : vector<1x64x16xf32> to vector<64x16xf32>
    %cst_72 = arith.constant dense<0.000000e+00> : vector<17x16xf32>
    %90 = tpu.matmul %36, %89, %cst_72 {dimension_numbers = #tpu.dot_dimension_numbers<[1], [0], [0], [1], [0, 0, 1, 1], [], []>} : vector<17x64xf32>, vector<64x16xf32>, vector<17x16xf32> -> vector<17x16xf32>
    %c1_73 = arith.constant 1 : index
    %c0_74 = arith.constant 0 : index
    %c0_75 = arith.constant 0 : index
    %91 = vector.load %arg13[%c1_73, %c0_74, %c0_75] : memref<4x1x16xf32, #tpu.memory_space<vmem>>, vector<1x1x16xf32>
    %92 = vector.shape_cast %91 : vector<1x1x16xf32> to vector<1x16xf32>
    %93 = vector.broadcast %92 : vector<1x16xf32> to vector<17x16xf32>
    %94 = arith.addf %90, %93 : vector<17x16xf32>
    %95 = tpu.transpose %87, [1, 0] : vector<17x16xf32> -> vector<16x17xf32>
    %cst_76 = arith.constant dense<0.000000e+00> : vector<17x17xf32>
    %96 = tpu.matmul %80, %95, %cst_76 {dimension_numbers = #tpu.dot_dimension_numbers<[1], [0], [0], [1], [0, 0, 1, 1], [], []>} : vector<17x16xf32>, vector<16x17xf32>, vector<17x17xf32> -> vector<17x17xf32>
    %cst_77 = arith.constant dense<0xFF800000> : vector<17xf32>
    %97 = vector.multi_reduction <maximumf>, %96, %cst_77 [1] : vector<17x17xf32> to vector<17xf32>
    %98 = vector.shape_cast %97 : vector<17xf32> to vector<17x1xf32>
    %99 = vector.broadcast %98 : vector<17x1xf32> to vector<17x17xf32>
    %100 = arith.subf %96, %99 : vector<17x17xf32>
    %101 = math.exp %100 : vector<17x17xf32>
    %cst_78 = arith.constant dense<0.000000e+00> : vector<17xf32>
    %102 = vector.multi_reduction <add>, %101, %cst_78 [1] : vector<17x17xf32> to vector<17xf32>
    %103 = vector.shape_cast %102 : vector<17xf32> to vector<17x1xf32>
    %104 = tpu.reciprocal %103 {approx = true} : vector<17x1xf32> -> vector<17x1xf32>
    %105 = vector.broadcast %104 : vector<17x1xf32> to vector<17x17xf32>
    %106 = arith.mulf %101, %105 : vector<17x17xf32>
    %cst_79 = arith.constant dense<0.000000e+00> : vector<17x16xf32>
    %107 = tpu.matmul %106, %94, %cst_79 {dimension_numbers = #tpu.dot_dimension_numbers<[1], [0], [0], [1], [0, 0, 1, 1], [], []>} : vector<17x17xf32>, vector<17x16xf32>, vector<17x16xf32> -> vector<17x16xf32>
    %c1_80 = arith.constant 1 : index
    %c0_81 = arith.constant 0 : index
    %c0_82 = arith.constant 0 : index
    %108 = vector.load %arg14[%c1_80, %c0_81, %c0_82] : memref<4x16x64xf32, #tpu.memory_space<vmem>>, vector<1x16x64xf32>
    %109 = vector.shape_cast %108 : vector<1x16x64xf32> to vector<16x64xf32>
    %cst_83 = arith.constant dense<0.000000e+00> : vector<17x64xf32>
    %110 = tpu.matmul %107, %109, %cst_83 {dimension_numbers = #tpu.dot_dimension_numbers<[1], [0], [0], [1], [0, 0, 1, 1], [], []>} : vector<17x16xf32>, vector<16x64xf32>, vector<17x64xf32> -> vector<17x64xf32>
    %111 = arith.addf %73, %110 : vector<17x64xf32>
    %c2 = arith.constant 2 : index
    %c0_84 = arith.constant 0 : index
    %c0_85 = arith.constant 0 : index
    %112 = vector.load %arg8[%c2, %c0_84, %c0_85] : memref<4x64x16xf32, #tpu.memory_space<vmem>>, vector<1x64x16xf32>
    %113 = vector.shape_cast %112 : vector<1x64x16xf32> to vector<64x16xf32>
    %cst_86 = arith.constant dense<0.000000e+00> : vector<17x16xf32>
    %114 = tpu.matmul %36, %113, %cst_86 {dimension_numbers = #tpu.dot_dimension_numbers<[1], [0], [0], [1], [0, 0, 1, 1], [], []>} : vector<17x64xf32>, vector<64x16xf32>, vector<17x16xf32> -> vector<17x16xf32>
    %c2_87 = arith.constant 2 : index
    %c0_88 = arith.constant 0 : index
    %c0_89 = arith.constant 0 : index
    %115 = vector.load %arg9[%c2_87, %c0_88, %c0_89] : memref<4x1x16xf32, #tpu.memory_space<vmem>>, vector<1x1x16xf32>
    %116 = vector.shape_cast %115 : vector<1x1x16xf32> to vector<1x16xf32>
    %117 = vector.broadcast %116 : vector<1x16xf32> to vector<17x16xf32>
    %118 = arith.addf %114, %117 : vector<17x16xf32>
    %c2_90 = arith.constant 2 : index
    %c0_91 = arith.constant 0 : index
    %c0_92 = arith.constant 0 : index
    %119 = vector.load %arg10[%c2_90, %c0_91, %c0_92] : memref<4x64x16xf32, #tpu.memory_space<vmem>>, vector<1x64x16xf32>
    %120 = vector.shape_cast %119 : vector<1x64x16xf32> to vector<64x16xf32>
    %cst_93 = arith.constant dense<0.000000e+00> : vector<17x16xf32>
    %121 = tpu.matmul %36, %120, %cst_93 {dimension_numbers = #tpu.dot_dimension_numbers<[1], [0], [0], [1], [0, 0, 1, 1], [], []>} : vector<17x64xf32>, vector<64x16xf32>, vector<17x16xf32> -> vector<17x16xf32>
    %c2_94 = arith.constant 2 : index
    %c0_95 = arith.constant 0 : index
    %c0_96 = arith.constant 0 : index
    %122 = vector.load %arg11[%c2_94, %c0_95, %c0_96] : memref<4x1x16xf32, #tpu.memory_space<vmem>>, vector<1x1x16xf32>
    %123 = vector.shape_cast %122 : vector<1x1x16xf32> to vector<1x16xf32>
    %124 = vector.broadcast %123 : vector<1x16xf32> to vector<17x16xf32>
    %125 = arith.addf %121, %124 : vector<17x16xf32>
    %c2_97 = arith.constant 2 : index
    %c0_98 = arith.constant 0 : index
    %c0_99 = arith.constant 0 : index
    %126 = vector.load %arg12[%c2_97, %c0_98, %c0_99] : memref<4x64x16xf32, #tpu.memory_space<vmem>>, vector<1x64x16xf32>
    %127 = vector.shape_cast %126 : vector<1x64x16xf32> to vector<64x16xf32>
    %cst_100 = arith.constant dense<0.000000e+00> : vector<17x16xf32>
    %128 = tpu.matmul %36, %127, %cst_100 {dimension_numbers = #tpu.dot_dimension_numbers<[1], [0], [0], [1], [0, 0, 1, 1], [], []>} : vector<17x64xf32>, vector<64x16xf32>, vector<17x16xf32> -> vector<17x16xf32>
    %c2_101 = arith.constant 2 : index
    %c0_102 = arith.constant 0 : index
    %c0_103 = arith.constant 0 : index
    %129 = vector.load %arg13[%c2_101, %c0_102, %c0_103] : memref<4x1x16xf32, #tpu.memory_space<vmem>>, vector<1x1x16xf32>
    %130 = vector.shape_cast %129 : vector<1x1x16xf32> to vector<1x16xf32>
    %131 = vector.broadcast %130 : vector<1x16xf32> to vector<17x16xf32>
    %132 = arith.addf %128, %131 : vector<17x16xf32>
    %133 = tpu.transpose %125, [1, 0] : vector<17x16xf32> -> vector<16x17xf32>
    %cst_104 = arith.constant dense<0.000000e+00> : vector<17x17xf32>
    %134 = tpu.matmul %118, %133, %cst_104 {dimension_numbers = #tpu.dot_dimension_numbers<[1], [0], [0], [1], [0, 0, 1, 1], [], []>} : vector<17x16xf32>, vector<16x17xf32>, vector<17x17xf32> -> vector<17x17xf32>
    %cst_105 = arith.constant dense<0xFF800000> : vector<17xf32>
    %135 = vector.multi_reduction <maximumf>, %134, %cst_105 [1] : vector<17x17xf32> to vector<17xf32>
    %136 = vector.shape_cast %135 : vector<17xf32> to vector<17x1xf32>
    %137 = vector.broadcast %136 : vector<17x1xf32> to vector<17x17xf32>
    %138 = arith.subf %134, %137 : vector<17x17xf32>
    %139 = math.exp %138 : vector<17x17xf32>
    %cst_106 = arith.constant dense<0.000000e+00> : vector<17xf32>
    %140 = vector.multi_reduction <add>, %139, %cst_106 [1] : vector<17x17xf32> to vector<17xf32>
    %141 = vector.shape_cast %140 : vector<17xf32> to vector<17x1xf32>
    %142 = tpu.reciprocal %141 {approx = true} : vector<17x1xf32> -> vector<17x1xf32>
    %143 = vector.broadcast %142 : vector<17x1xf32> to vector<17x17xf32>
    %144 = arith.mulf %139, %143 : vector<17x17xf32>
    %cst_107 = arith.constant dense<0.000000e+00> : vector<17x16xf32>
    %145 = tpu.matmul %144, %132, %cst_107 {dimension_numbers = #tpu.dot_dimension_numbers<[1], [0], [0], [1], [0, 0, 1, 1], [], []>} : vector<17x17xf32>, vector<17x16xf32>, vector<17x16xf32> -> vector<17x16xf32>
    %c2_108 = arith.constant 2 : index
    %c0_109 = arith.constant 0 : index
    %c0_110 = arith.constant 0 : index
    %146 = vector.load %arg14[%c2_108, %c0_109, %c0_110] : memref<4x16x64xf32, #tpu.memory_space<vmem>>, vector<1x16x64xf32>
    %147 = vector.shape_cast %146 : vector<1x16x64xf32> to vector<16x64xf32>
    %cst_111 = arith.constant dense<0.000000e+00> : vector<17x64xf32>
    %148 = tpu.matmul %145, %147, %cst_111 {dimension_numbers = #tpu.dot_dimension_numbers<[1], [0], [0], [1], [0, 0, 1, 1], [], []>} : vector<17x16xf32>, vector<16x64xf32>, vector<17x64xf32> -> vector<17x64xf32>
    %149 = arith.addf %111, %148 : vector<17x64xf32>
    %c3 = arith.constant 3 : index
    %c0_112 = arith.constant 0 : index
    %c0_113 = arith.constant 0 : index
    %150 = vector.load %arg8[%c3, %c0_112, %c0_113] : memref<4x64x16xf32, #tpu.memory_space<vmem>>, vector<1x64x16xf32>
    %151 = vector.shape_cast %150 : vector<1x64x16xf32> to vector<64x16xf32>
    %cst_114 = arith.constant dense<0.000000e+00> : vector<17x16xf32>
    %152 = tpu.matmul %36, %151, %cst_114 {dimension_numbers = #tpu.dot_dimension_numbers<[1], [0], [0], [1], [0, 0, 1, 1], [], []>} : vector<17x64xf32>, vector<64x16xf32>, vector<17x16xf32> -> vector<17x16xf32>
    %c3_115 = arith.constant 3 : index
    %c0_116 = arith.constant 0 : index
    %c0_117 = arith.constant 0 : index
    %153 = vector.load %arg9[%c3_115, %c0_116, %c0_117] : memref<4x1x16xf32, #tpu.memory_space<vmem>>, vector<1x1x16xf32>
    %154 = vector.shape_cast %153 : vector<1x1x16xf32> to vector<1x16xf32>
    %155 = vector.broadcast %154 : vector<1x16xf32> to vector<17x16xf32>
    %156 = arith.addf %152, %155 : vector<17x16xf32>
    %c3_118 = arith.constant 3 : index
    %c0_119 = arith.constant 0 : index
    %c0_120 = arith.constant 0 : index
    %157 = vector.load %arg10[%c3_118, %c0_119, %c0_120] : memref<4x64x16xf32, #tpu.memory_space<vmem>>, vector<1x64x16xf32>
    %158 = vector.shape_cast %157 : vector<1x64x16xf32> to vector<64x16xf32>
    %cst_121 = arith.constant dense<0.000000e+00> : vector<17x16xf32>
    %159 = tpu.matmul %36, %158, %cst_121 {dimension_numbers = #tpu.dot_dimension_numbers<[1], [0], [0], [1], [0, 0, 1, 1], [], []>} : vector<17x64xf32>, vector<64x16xf32>, vector<17x16xf32> -> vector<17x16xf32>
    %c3_122 = arith.constant 3 : index
    %c0_123 = arith.constant 0 : index
    %c0_124 = arith.constant 0 : index
    %160 = vector.load %arg11[%c3_122, %c0_123, %c0_124] : memref<4x1x16xf32, #tpu.memory_space<vmem>>, vector<1x1x16xf32>
    %161 = vector.shape_cast %160 : vector<1x1x16xf32> to vector<1x16xf32>
    %162 = vector.broadcast %161 : vector<1x16xf32> to vector<17x16xf32>
    %163 = arith.addf %159, %162 : vector<17x16xf32>
    %c3_125 = arith.constant 3 : index
    %c0_126 = arith.constant 0 : index
    %c0_127 = arith.constant 0 : index
    %164 = vector.load %arg12[%c3_125, %c0_126, %c0_127] : memref<4x64x16xf32, #tpu.memory_space<vmem>>, vector<1x64x16xf32>
    %165 = vector.shape_cast %164 : vector<1x64x16xf32> to vector<64x16xf32>
    %cst_128 = arith.constant dense<0.000000e+00> : vector<17x16xf32>
    %166 = tpu.matmul %36, %165, %cst_128 {dimension_numbers = #tpu.dot_dimension_numbers<[1], [0], [0], [1], [0, 0, 1, 1], [], []>} : vector<17x64xf32>, vector<64x16xf32>, vector<17x16xf32> -> vector<17x16xf32>
    %c3_129 = arith.constant 3 : index
    %c0_130 = arith.constant 0 : index
    %c0_131 = arith.constant 0 : index
    %167 = vector.load %arg13[%c3_129, %c0_130, %c0_131] : memref<4x1x16xf32, #tpu.memory_space<vmem>>, vector<1x1x16xf32>
    %168 = vector.shape_cast %167 : vector<1x1x16xf32> to vector<1x16xf32>
    %169 = vector.broadcast %168 : vector<1x16xf32> to vector<17x16xf32>
    %170 = arith.addf %166, %169 : vector<17x16xf32>
    %171 = tpu.transpose %163, [1, 0] : vector<17x16xf32> -> vector<16x17xf32>
    %cst_132 = arith.constant dense<0.000000e+00> : vector<17x17xf32>
    %172 = tpu.matmul %156, %171, %cst_132 {dimension_numbers = #tpu.dot_dimension_numbers<[1], [0], [0], [1], [0, 0, 1, 1], [], []>} : vector<17x16xf32>, vector<16x17xf32>, vector<17x17xf32> -> vector<17x17xf32>
    %cst_133 = arith.constant dense<0xFF800000> : vector<17xf32>
    %173 = vector.multi_reduction <maximumf>, %172, %cst_133 [1] : vector<17x17xf32> to vector<17xf32>
    %174 = vector.shape_cast %173 : vector<17xf32> to vector<17x1xf32>
    %175 = vector.broadcast %174 : vector<17x1xf32> to vector<17x17xf32>
    %176 = arith.subf %172, %175 : vector<17x17xf32>
    %177 = math.exp %176 : vector<17x17xf32>
    %cst_134 = arith.constant dense<0.000000e+00> : vector<17xf32>
    %178 = vector.multi_reduction <add>, %177, %cst_134 [1] : vector<17x17xf32> to vector<17xf32>
    %179 = vector.shape_cast %178 : vector<17xf32> to vector<17x1xf32>
    %180 = tpu.reciprocal %179 {approx = true} : vector<17x1xf32> -> vector<17x1xf32>
    %181 = vector.broadcast %180 : vector<17x1xf32> to vector<17x17xf32>
    %182 = arith.mulf %177, %181 : vector<17x17xf32>
    %cst_135 = arith.constant dense<0.000000e+00> : vector<17x16xf32>
    %183 = tpu.matmul %182, %170, %cst_135 {dimension_numbers = #tpu.dot_dimension_numbers<[1], [0], [0], [1], [0, 0, 1, 1], [], []>} : vector<17x17xf32>, vector<17x16xf32>, vector<17x16xf32> -> vector<17x16xf32>
    %c3_136 = arith.constant 3 : index
    %c0_137 = arith.constant 0 : index
    %c0_138 = arith.constant 0 : index
    %184 = vector.load %arg14[%c3_136, %c0_137, %c0_138] : memref<4x16x64xf32, #tpu.memory_space<vmem>>, vector<1x16x64xf32>
    %185 = vector.shape_cast %184 : vector<1x16x64xf32> to vector<16x64xf32>
    %cst_139 = arith.constant dense<0.000000e+00> : vector<17x64xf32>
    %186 = tpu.matmul %183, %185, %cst_139 {dimension_numbers = #tpu.dot_dimension_numbers<[1], [0], [0], [1], [0, 0, 1, 1], [], []>} : vector<17x16xf32>, vector<16x64xf32>, vector<17x64xf32> -> vector<17x64xf32>
    %187 = arith.addf %149, %186 : vector<17x64xf32>
    %188 = arith.addf %14, %187 : vector<17x64xf32>
    %c0_140 = arith.constant 0 : index
    %c0_141 = arith.constant 0 : index
    %189 = vector.load %arg15[%c0_140, %c0_141] : memref<1x64xf32, #tpu.memory_space<vmem>>, vector<1x64xf32>
    %190 = vector.broadcast %189 : vector<1x64xf32> to vector<17x64xf32>
    %191 = arith.addf %188, %190 : vector<17x64xf32>
    %c0_142 = arith.constant 0 : index
    %c0_143 = arith.constant 0 : index
    %192 = vector.load %arg16[%c0_142, %c0_143] : memref<1x64xf32, #tpu.memory_space<vmem>>, vector<1x64xf32>
    %c0_144 = arith.constant 0 : index
    %c0_145 = arith.constant 0 : index
    %193 = vector.load %arg17[%c0_144, %c0_145] : memref<1x64xf32, #tpu.memory_space<vmem>>, vector<1x64xf32>
    %cst_146 = arith.constant dense<0.000000e+00> : vector<17xf32>
    %194 = vector.multi_reduction <add>, %191, %cst_146 [1] : vector<17x64xf32> to vector<17xf32>
    %195 = vector.shape_cast %194 : vector<17xf32> to vector<17x1xf32>
    %cst_147 = arith.constant 6.400000e+01 : f32
    %196 = vector.broadcast %cst_147 : f32 to vector<17x1xf32>
    %197 = arith.divf %195, %196 : vector<17x1xf32>
    %198 = vector.broadcast %197 : vector<17x1xf32> to vector<17x64xf32>
    %199 = arith.subf %191, %198 : vector<17x64xf32>
    %200 = arith.mulf %199, %199 : vector<17x64xf32>
    %cst_148 = arith.constant dense<0.000000e+00> : vector<17xf32>
    %201 = vector.multi_reduction <add>, %200, %cst_148 [1] : vector<17x64xf32> to vector<17xf32>
    %202 = vector.shape_cast %201 : vector<17xf32> to vector<17x1xf32>
    %cst_149 = arith.constant 6.400000e+01 : f32
    %203 = vector.broadcast %cst_149 : f32 to vector<17x1xf32>
    %204 = arith.divf %202, %203 : vector<17x1xf32>
    %cst_150 = arith.constant 9.99999996E-13 : f32
    %205 = vector.broadcast %cst_150 : f32 to vector<17x1xf32>
    %206 = arith.addf %204, %205 : vector<17x1xf32>
    %207 = math.rsqrt %206 : vector<17x1xf32>
    %208 = vector.broadcast %207 : vector<17x1xf32> to vector<17x64xf32>
    %209 = arith.mulf %199, %208 : vector<17x64xf32>
    %210 = vector.broadcast %192 : vector<1x64xf32> to vector<17x64xf32>
    %211 = arith.mulf %209, %210 : vector<17x64xf32>
    %212 = vector.broadcast %193 : vector<1x64xf32> to vector<17x64xf32>
    %213 = arith.addf %211, %212 : vector<17x64xf32>
    %c0_151 = arith.constant 0 : index
    %c0_152 = arith.constant 0 : index
    %214 = vector.load %arg18[%c0_151, %c0_152] : memref<64x256xf32, #tpu.memory_space<vmem>>, vector<64x256xf32>
    %cst_153 = arith.constant dense<0.000000e+00> : vector<17x256xf32>
    %215 = tpu.matmul %213, %214, %cst_153 {dimension_numbers = #tpu.dot_dimension_numbers<[1], [0], [0], [1], [0, 0, 1, 1], [], []>} : vector<17x64xf32>, vector<64x256xf32>, vector<17x256xf32> -> vector<17x256xf32>
    %c0_154 = arith.constant 0 : index
    %c0_155 = arith.constant 0 : index
    %216 = vector.load %arg19[%c0_154, %c0_155] : memref<1x256xf32, #tpu.memory_space<vmem>>, vector<1x256xf32>
    %217 = vector.broadcast %216 : vector<1x256xf32> to vector<17x256xf32>
    %218 = arith.addf %215, %217 : vector<17x256xf32>
    %cst_156 = arith.constant 5.000000e-01 : f32
    %219 = vector.broadcast %cst_156 : f32 to vector<17x256xf32>
    %220 = arith.mulf %219, %218 : vector<17x256xf32>
    %cst_157 = arith.constant 0.707106769 : f32
    %221 = vector.broadcast %cst_157 : f32 to vector<17x256xf32>
    %222 = arith.mulf %218, %221 : vector<17x256xf32>
    %223 = math.erf %222 : vector<17x256xf32>
    %cst_158 = arith.constant 1.000000e+00 : f32
    %224 = vector.broadcast %cst_158 : f32 to vector<17x256xf32>
    %225 = arith.addf %224, %223 : vector<17x256xf32>
    %226 = arith.mulf %220, %225 : vector<17x256xf32>
    %c0_159 = arith.constant 0 : index
    %c0_160 = arith.constant 0 : index
    %227 = vector.load %arg20[%c0_159, %c0_160] : memref<256x64xf32, #tpu.memory_space<vmem>>, vector<256x64xf32>
    %cst_161 = arith.constant dense<0.000000e+00> : vector<17x64xf32>
    %228 = tpu.matmul %226, %227, %cst_161 {dimension_numbers = #tpu.dot_dimension_numbers<[1], [0], [0], [1], [0, 0, 1, 1], [], []>} : vector<17x256xf32>, vector<256x64xf32>, vector<17x64xf32> -> vector<17x64xf32>
    %c0_162 = arith.constant 0 : index
    %c0_163 = arith.constant 0 : index
    %229 = vector.load %arg21[%c0_162, %c0_163] : memref<1x64xf32, #tpu.memory_space<vmem>>, vector<1x64xf32>
    %230 = vector.broadcast %229 : vector<1x64xf32> to vector<17x64xf32>
    %231 = arith.addf %228, %230 : vector<17x64xf32>
    %232 = arith.addf %191, %231 : vector<17x64xf32>
    %c0_164 = arith.constant 0 : index
    %c0_165 = arith.constant 0 : index
    %233 = vector.load %arg22[%c0_164, %c0_165] : memref<1x64xf32, #tpu.memory_space<vmem>>, vector<1x64xf32>
    %c0_166 = arith.constant 0 : index
    %c0_167 = arith.constant 0 : index
    %234 = vector.load %arg23[%c0_166, %c0_167] : memref<1x64xf32, #tpu.memory_space<vmem>>, vector<1x64xf32>
    %cst_168 = arith.constant dense<0.000000e+00> : vector<17xf32>
    %235 = vector.multi_reduction <add>, %232, %cst_168 [1] : vector<17x64xf32> to vector<17xf32>
    %236 = vector.shape_cast %235 : vector<17xf32> to vector<17x1xf32>
    %cst_169 = arith.constant 6.400000e+01 : f32
    %237 = vector.broadcast %cst_169 : f32 to vector<17x1xf32>
    %238 = arith.divf %236, %237 : vector<17x1xf32>
    %239 = vector.broadcast %238 : vector<17x1xf32> to vector<17x64xf32>
    %240 = arith.subf %232, %239 : vector<17x64xf32>
    %241 = arith.mulf %240, %240 : vector<17x64xf32>
    %cst_170 = arith.constant dense<0.000000e+00> : vector<17xf32>
    %242 = vector.multi_reduction <add>, %241, %cst_170 [1] : vector<17x64xf32> to vector<17xf32>
    %243 = vector.shape_cast %242 : vector<17xf32> to vector<17x1xf32>
    %cst_171 = arith.constant 6.400000e+01 : f32
    %244 = vector.broadcast %cst_171 : f32 to vector<17x1xf32>
    %245 = arith.divf %243, %244 : vector<17x1xf32>
    %cst_172 = arith.constant 9.99999996E-13 : f32
    %246 = vector.broadcast %cst_172 : f32 to vector<17x1xf32>
    %247 = arith.addf %245, %246 : vector<17x1xf32>
    %248 = math.rsqrt %247 : vector<17x1xf32>
    %249 = vector.broadcast %248 : vector<17x1xf32> to vector<17x64xf32>
    %250 = arith.mulf %240, %249 : vector<17x64xf32>
    %251 = vector.broadcast %233 : vector<1x64xf32> to vector<17x64xf32>
    %252 = arith.mulf %250, %251 : vector<17x64xf32>
    %253 = vector.broadcast %234 : vector<1x64xf32> to vector<17x64xf32>
    %254 = arith.addf %252, %253 : vector<17x64xf32>
    %c0_173 = arith.constant 0 : index
    %c0_174 = arith.constant 0 : index
    %c0_175 = arith.constant 0 : index
    %255 = vector.load %arg24[%c0_173, %c0_174, %c0_175] : memref<4x64x16xf32, #tpu.memory_space<vmem>>, vector<1x64x16xf32>
    %256 = vector.shape_cast %255 : vector<1x64x16xf32> to vector<64x16xf32>
    %cst_176 = arith.constant dense<0.000000e+00> : vector<17x16xf32>
    %257 = tpu.matmul %254, %256, %cst_176 {dimension_numbers = #tpu.dot_dimension_numbers<[1], [0], [0], [1], [0, 0, 1, 1], [], []>} : vector<17x64xf32>, vector<64x16xf32>, vector<17x16xf32> -> vector<17x16xf32>
    %c0_177 = arith.constant 0 : index
    %c0_178 = arith.constant 0 : index
    %c0_179 = arith.constant 0 : index
    %258 = vector.load %arg25[%c0_177, %c0_178, %c0_179] : memref<4x1x16xf32, #tpu.memory_space<vmem>>, vector<1x1x16xf32>
    %259 = vector.shape_cast %258 : vector<1x1x16xf32> to vector<1x16xf32>
    %260 = vector.broadcast %259 : vector<1x16xf32> to vector<17x16xf32>
    %261 = arith.addf %257, %260 : vector<17x16xf32>
    %c0_180 = arith.constant 0 : index
    %c0_181 = arith.constant 0 : index
    %c0_182 = arith.constant 0 : index
    %262 = vector.load %arg26[%c0_180, %c0_181, %c0_182] : memref<4x64x16xf32, #tpu.memory_space<vmem>>, vector<1x64x16xf32>
    %263 = vector.shape_cast %262 : vector<1x64x16xf32> to vector<64x16xf32>
    %cst_183 = arith.constant dense<0.000000e+00> : vector<17x16xf32>
    %264 = tpu.matmul %254, %263, %cst_183 {dimension_numbers = #tpu.dot_dimension_numbers<[1], [0], [0], [1], [0, 0, 1, 1], [], []>} : vector<17x64xf32>, vector<64x16xf32>, vector<17x16xf32> -> vector<17x16xf32>
    %c0_184 = arith.constant 0 : index
    %c0_185 = arith.constant 0 : index
    %c0_186 = arith.constant 0 : index
    %265 = vector.load %arg27[%c0_184, %c0_185, %c0_186] : memref<4x1x16xf32, #tpu.memory_space<vmem>>, vector<1x1x16xf32>
    %266 = vector.shape_cast %265 : vector<1x1x16xf32> to vector<1x16xf32>
    %267 = vector.broadcast %266 : vector<1x16xf32> to vector<17x16xf32>
    %268 = arith.addf %264, %267 : vector<17x16xf32>
    %c0_187 = arith.constant 0 : index
    %c0_188 = arith.constant 0 : index
    %c0_189 = arith.constant 0 : index
    %269 = vector.load %arg28[%c0_187, %c0_188, %c0_189] : memref<4x64x16xf32, #tpu.memory_space<vmem>>, vector<1x64x16xf32>
    %270 = vector.shape_cast %269 : vector<1x64x16xf32> to vector<64x16xf32>
    %cst_190 = arith.constant dense<0.000000e+00> : vector<17x16xf32>
    %271 = tpu.matmul %254, %270, %cst_190 {dimension_numbers = #tpu.dot_dimension_numbers<[1], [0], [0], [1], [0, 0, 1, 1], [], []>} : vector<17x64xf32>, vector<64x16xf32>, vector<17x16xf32> -> vector<17x16xf32>
    %c0_191 = arith.constant 0 : index
    %c0_192 = arith.constant 0 : index
    %c0_193 = arith.constant 0 : index
    %272 = vector.load %arg29[%c0_191, %c0_192, %c0_193] : memref<4x1x16xf32, #tpu.memory_space<vmem>>, vector<1x1x16xf32>
    %273 = vector.shape_cast %272 : vector<1x1x16xf32> to vector<1x16xf32>
    %274 = vector.broadcast %273 : vector<1x16xf32> to vector<17x16xf32>
    %275 = arith.addf %271, %274 : vector<17x16xf32>
    %276 = tpu.transpose %268, [1, 0] : vector<17x16xf32> -> vector<16x17xf32>
    %cst_194 = arith.constant dense<0.000000e+00> : vector<17x17xf32>
    %277 = tpu.matmul %261, %276, %cst_194 {dimension_numbers = #tpu.dot_dimension_numbers<[1], [0], [0], [1], [0, 0, 1, 1], [], []>} : vector<17x16xf32>, vector<16x17xf32>, vector<17x17xf32> -> vector<17x17xf32>
    %cst_195 = arith.constant dense<0xFF800000> : vector<17xf32>
    %278 = vector.multi_reduction <maximumf>, %277, %cst_195 [1] : vector<17x17xf32> to vector<17xf32>
    %279 = vector.shape_cast %278 : vector<17xf32> to vector<17x1xf32>
    %280 = vector.broadcast %279 : vector<17x1xf32> to vector<17x17xf32>
    %281 = arith.subf %277, %280 : vector<17x17xf32>
    %282 = math.exp %281 : vector<17x17xf32>
    %cst_196 = arith.constant dense<0.000000e+00> : vector<17xf32>
    %283 = vector.multi_reduction <add>, %282, %cst_196 [1] : vector<17x17xf32> to vector<17xf32>
    %284 = vector.shape_cast %283 : vector<17xf32> to vector<17x1xf32>
    %285 = tpu.reciprocal %284 {approx = true} : vector<17x1xf32> -> vector<17x1xf32>
    %286 = vector.broadcast %285 : vector<17x1xf32> to vector<17x17xf32>
    %287 = arith.mulf %282, %286 : vector<17x17xf32>
    %cst_197 = arith.constant dense<0.000000e+00> : vector<17x16xf32>
    %288 = tpu.matmul %287, %275, %cst_197 {dimension_numbers = #tpu.dot_dimension_numbers<[1], [0], [0], [1], [0, 0, 1, 1], [], []>} : vector<17x17xf32>, vector<17x16xf32>, vector<17x16xf32> -> vector<17x16xf32>
    %c0_198 = arith.constant 0 : index
    %c0_199 = arith.constant 0 : index
    %c0_200 = arith.constant 0 : index
    %289 = vector.load %arg30[%c0_198, %c0_199, %c0_200] : memref<4x16x64xf32, #tpu.memory_space<vmem>>, vector<1x16x64xf32>
    %290 = vector.shape_cast %289 : vector<1x16x64xf32> to vector<16x64xf32>
    %cst_201 = arith.constant dense<0.000000e+00> : vector<17x64xf32>
    %291 = tpu.matmul %288, %290, %cst_201 {dimension_numbers = #tpu.dot_dimension_numbers<[1], [0], [0], [1], [0, 0, 1, 1], [], []>} : vector<17x16xf32>, vector<16x64xf32>, vector<17x64xf32> -> vector<17x64xf32>
    %c1_202 = arith.constant 1 : index
    %c0_203 = arith.constant 0 : index
    %c0_204 = arith.constant 0 : index
    %292 = vector.load %arg24[%c1_202, %c0_203, %c0_204] : memref<4x64x16xf32, #tpu.memory_space<vmem>>, vector<1x64x16xf32>
    %293 = vector.shape_cast %292 : vector<1x64x16xf32> to vector<64x16xf32>
    %cst_205 = arith.constant dense<0.000000e+00> : vector<17x16xf32>
    %294 = tpu.matmul %254, %293, %cst_205 {dimension_numbers = #tpu.dot_dimension_numbers<[1], [0], [0], [1], [0, 0, 1, 1], [], []>} : vector<17x64xf32>, vector<64x16xf32>, vector<17x16xf32> -> vector<17x16xf32>
    %c1_206 = arith.constant 1 : index
    %c0_207 = arith.constant 0 : index
    %c0_208 = arith.constant 0 : index
    %295 = vector.load %arg25[%c1_206, %c0_207, %c0_208] : memref<4x1x16xf32, #tpu.memory_space<vmem>>, vector<1x1x16xf32>
    %296 = vector.shape_cast %295 : vector<1x1x16xf32> to vector<1x16xf32>
    %297 = vector.broadcast %296 : vector<1x16xf32> to vector<17x16xf32>
    %298 = arith.addf %294, %297 : vector<17x16xf32>
    %c1_209 = arith.constant 1 : index
    %c0_210 = arith.constant 0 : index
    %c0_211 = arith.constant 0 : index
    %299 = vector.load %arg26[%c1_209, %c0_210, %c0_211] : memref<4x64x16xf32, #tpu.memory_space<vmem>>, vector<1x64x16xf32>
    %300 = vector.shape_cast %299 : vector<1x64x16xf32> to vector<64x16xf32>
    %cst_212 = arith.constant dense<0.000000e+00> : vector<17x16xf32>
    %301 = tpu.matmul %254, %300, %cst_212 {dimension_numbers = #tpu.dot_dimension_numbers<[1], [0], [0], [1], [0, 0, 1, 1], [], []>} : vector<17x64xf32>, vector<64x16xf32>, vector<17x16xf32> -> vector<17x16xf32>
    %c1_213 = arith.constant 1 : index
    %c0_214 = arith.constant 0 : index
    %c0_215 = arith.constant 0 : index
    %302 = vector.load %arg27[%c1_213, %c0_214, %c0_215] : memref<4x1x16xf32, #tpu.memory_space<vmem>>, vector<1x1x16xf32>
    %303 = vector.shape_cast %302 : vector<1x1x16xf32> to vector<1x16xf32>
    %304 = vector.broadcast %303 : vector<1x16xf32> to vector<17x16xf32>
    %305 = arith.addf %301, %304 : vector<17x16xf32>
    %c1_216 = arith.constant 1 : index
    %c0_217 = arith.constant 0 : index
    %c0_218 = arith.constant 0 : index
    %306 = vector.load %arg28[%c1_216, %c0_217, %c0_218] : memref<4x64x16xf32, #tpu.memory_space<vmem>>, vector<1x64x16xf32>
    %307 = vector.shape_cast %306 : vector<1x64x16xf32> to vector<64x16xf32>
    %cst_219 = arith.constant dense<0.000000e+00> : vector<17x16xf32>
    %308 = tpu.matmul %254, %307, %cst_219 {dimension_numbers = #tpu.dot_dimension_numbers<[1], [0], [0], [1], [0, 0, 1, 1], [], []>} : vector<17x64xf32>, vector<64x16xf32>, vector<17x16xf32> -> vector<17x16xf32>
    %c1_220 = arith.constant 1 : index
    %c0_221 = arith.constant 0 : index
    %c0_222 = arith.constant 0 : index
    %309 = vector.load %arg29[%c1_220, %c0_221, %c0_222] : memref<4x1x16xf32, #tpu.memory_space<vmem>>, vector<1x1x16xf32>
    %310 = vector.shape_cast %309 : vector<1x1x16xf32> to vector<1x16xf32>
    %311 = vector.broadcast %310 : vector<1x16xf32> to vector<17x16xf32>
    %312 = arith.addf %308, %311 : vector<17x16xf32>
    %313 = tpu.transpose %305, [1, 0] : vector<17x16xf32> -> vector<16x17xf32>
    %cst_223 = arith.constant dense<0.000000e+00> : vector<17x17xf32>
    %314 = tpu.matmul %298, %313, %cst_223 {dimension_numbers = #tpu.dot_dimension_numbers<[1], [0], [0], [1], [0, 0, 1, 1], [], []>} : vector<17x16xf32>, vector<16x17xf32>, vector<17x17xf32> -> vector<17x17xf32>
    %cst_224 = arith.constant dense<0xFF800000> : vector<17xf32>
    %315 = vector.multi_reduction <maximumf>, %314, %cst_224 [1] : vector<17x17xf32> to vector<17xf32>
    %316 = vector.shape_cast %315 : vector<17xf32> to vector<17x1xf32>
    %317 = vector.broadcast %316 : vector<17x1xf32> to vector<17x17xf32>
    %318 = arith.subf %314, %317 : vector<17x17xf32>
    %319 = math.exp %318 : vector<17x17xf32>
    %cst_225 = arith.constant dense<0.000000e+00> : vector<17xf32>
    %320 = vector.multi_reduction <add>, %319, %cst_225 [1] : vector<17x17xf32> to vector<17xf32>
    %321 = vector.shape_cast %320 : vector<17xf32> to vector<17x1xf32>
    %322 = tpu.reciprocal %321 {approx = true} : vector<17x1xf32> -> vector<17x1xf32>
    %323 = vector.broadcast %322 : vector<17x1xf32> to vector<17x17xf32>
    %324 = arith.mulf %319, %323 : vector<17x17xf32>
    %cst_226 = arith.constant dense<0.000000e+00> : vector<17x16xf32>
    %325 = tpu.matmul %324, %312, %cst_226 {dimension_numbers = #tpu.dot_dimension_numbers<[1], [0], [0], [1], [0, 0, 1, 1], [], []>} : vector<17x17xf32>, vector<17x16xf32>, vector<17x16xf32> -> vector<17x16xf32>
    %c1_227 = arith.constant 1 : index
    %c0_228 = arith.constant 0 : index
    %c0_229 = arith.constant 0 : index
    %326 = vector.load %arg30[%c1_227, %c0_228, %c0_229] : memref<4x16x64xf32, #tpu.memory_space<vmem>>, vector<1x16x64xf32>
    %327 = vector.shape_cast %326 : vector<1x16x64xf32> to vector<16x64xf32>
    %cst_230 = arith.constant dense<0.000000e+00> : vector<17x64xf32>
    %328 = tpu.matmul %325, %327, %cst_230 {dimension_numbers = #tpu.dot_dimension_numbers<[1], [0], [0], [1], [0, 0, 1, 1], [], []>} : vector<17x16xf32>, vector<16x64xf32>, vector<17x64xf32> -> vector<17x64xf32>
    %329 = arith.addf %291, %328 : vector<17x64xf32>
    %c2_231 = arith.constant 2 : index
    %c0_232 = arith.constant 0 : index
    %c0_233 = arith.constant 0 : index
    %330 = vector.load %arg24[%c2_231, %c0_232, %c0_233] : memref<4x64x16xf32, #tpu.memory_space<vmem>>, vector<1x64x16xf32>
    %331 = vector.shape_cast %330 : vector<1x64x16xf32> to vector<64x16xf32>
    %cst_234 = arith.constant dense<0.000000e+00> : vector<17x16xf32>
    %332 = tpu.matmul %254, %331, %cst_234 {dimension_numbers = #tpu.dot_dimension_numbers<[1], [0], [0], [1], [0, 0, 1, 1], [], []>} : vector<17x64xf32>, vector<64x16xf32>, vector<17x16xf32> -> vector<17x16xf32>
    %c2_235 = arith.constant 2 : index
    %c0_236 = arith.constant 0 : index
    %c0_237 = arith.constant 0 : index
    %333 = vector.load %arg25[%c2_235, %c0_236, %c0_237] : memref<4x1x16xf32, #tpu.memory_space<vmem>>, vector<1x1x16xf32>
    %334 = vector.shape_cast %333 : vector<1x1x16xf32> to vector<1x16xf32>
    %335 = vector.broadcast %334 : vector<1x16xf32> to vector<17x16xf32>
    %336 = arith.addf %332, %335 : vector<17x16xf32>
    %c2_238 = arith.constant 2 : index
    %c0_239 = arith.constant 0 : index
    %c0_240 = arith.constant 0 : index
    %337 = vector.load %arg26[%c2_238, %c0_239, %c0_240] : memref<4x64x16xf32, #tpu.memory_space<vmem>>, vector<1x64x16xf32>
    %338 = vector.shape_cast %337 : vector<1x64x16xf32> to vector<64x16xf32>
    %cst_241 = arith.constant dense<0.000000e+00> : vector<17x16xf32>
    %339 = tpu.matmul %254, %338, %cst_241 {dimension_numbers = #tpu.dot_dimension_numbers<[1], [0], [0], [1], [0, 0, 1, 1], [], []>} : vector<17x64xf32>, vector<64x16xf32>, vector<17x16xf32> -> vector<17x16xf32>
    %c2_242 = arith.constant 2 : index
    %c0_243 = arith.constant 0 : index
    %c0_244 = arith.constant 0 : index
    %340 = vector.load %arg27[%c2_242, %c0_243, %c0_244] : memref<4x1x16xf32, #tpu.memory_space<vmem>>, vector<1x1x16xf32>
    %341 = vector.shape_cast %340 : vector<1x1x16xf32> to vector<1x16xf32>
    %342 = vector.broadcast %341 : vector<1x16xf32> to vector<17x16xf32>
    %343 = arith.addf %339, %342 : vector<17x16xf32>
    %c2_245 = arith.constant 2 : index
    %c0_246 = arith.constant 0 : index
    %c0_247 = arith.constant 0 : index
    %344 = vector.load %arg28[%c2_245, %c0_246, %c0_247] : memref<4x64x16xf32, #tpu.memory_space<vmem>>, vector<1x64x16xf32>
    %345 = vector.shape_cast %344 : vector<1x64x16xf32> to vector<64x16xf32>
    %cst_248 = arith.constant dense<0.000000e+00> : vector<17x16xf32>
    %346 = tpu.matmul %254, %345, %cst_248 {dimension_numbers = #tpu.dot_dimension_numbers<[1], [0], [0], [1], [0, 0, 1, 1], [], []>} : vector<17x64xf32>, vector<64x16xf32>, vector<17x16xf32> -> vector<17x16xf32>
    %c2_249 = arith.constant 2 : index
    %c0_250 = arith.constant 0 : index
    %c0_251 = arith.constant 0 : index
    %347 = vector.load %arg29[%c2_249, %c0_250, %c0_251] : memref<4x1x16xf32, #tpu.memory_space<vmem>>, vector<1x1x16xf32>
    %348 = vector.shape_cast %347 : vector<1x1x16xf32> to vector<1x16xf32>
    %349 = vector.broadcast %348 : vector<1x16xf32> to vector<17x16xf32>
    %350 = arith.addf %346, %349 : vector<17x16xf32>
    %351 = tpu.transpose %343, [1, 0] : vector<17x16xf32> -> vector<16x17xf32>
    %cst_252 = arith.constant dense<0.000000e+00> : vector<17x17xf32>
    %352 = tpu.matmul %336, %351, %cst_252 {dimension_numbers = #tpu.dot_dimension_numbers<[1], [0], [0], [1], [0, 0, 1, 1], [], []>} : vector<17x16xf32>, vector<16x17xf32>, vector<17x17xf32> -> vector<17x17xf32>
    %cst_253 = arith.constant dense<0xFF800000> : vector<17xf32>
    %353 = vector.multi_reduction <maximumf>, %352, %cst_253 [1] : vector<17x17xf32> to vector<17xf32>
    %354 = vector.shape_cast %353 : vector<17xf32> to vector<17x1xf32>
    %355 = vector.broadcast %354 : vector<17x1xf32> to vector<17x17xf32>
    %356 = arith.subf %352, %355 : vector<17x17xf32>
    %357 = math.exp %356 : vector<17x17xf32>
    %cst_254 = arith.constant dense<0.000000e+00> : vector<17xf32>
    %358 = vector.multi_reduction <add>, %357, %cst_254 [1] : vector<17x17xf32> to vector<17xf32>
    %359 = vector.shape_cast %358 : vector<17xf32> to vector<17x1xf32>
    %360 = tpu.reciprocal %359 {approx = true} : vector<17x1xf32> -> vector<17x1xf32>
    %361 = vector.broadcast %360 : vector<17x1xf32> to vector<17x17xf32>
    %362 = arith.mulf %357, %361 : vector<17x17xf32>
    %cst_255 = arith.constant dense<0.000000e+00> : vector<17x16xf32>
    %363 = tpu.matmul %362, %350, %cst_255 {dimension_numbers = #tpu.dot_dimension_numbers<[1], [0], [0], [1], [0, 0, 1, 1], [], []>} : vector<17x17xf32>, vector<17x16xf32>, vector<17x16xf32> -> vector<17x16xf32>
    %c2_256 = arith.constant 2 : index
    %c0_257 = arith.constant 0 : index
    %c0_258 = arith.constant 0 : index
    %364 = vector.load %arg30[%c2_256, %c0_257, %c0_258] : memref<4x16x64xf32, #tpu.memory_space<vmem>>, vector<1x16x64xf32>
    %365 = vector.shape_cast %364 : vector<1x16x64xf32> to vector<16x64xf32>
    %cst_259 = arith.constant dense<0.000000e+00> : vector<17x64xf32>
    %366 = tpu.matmul %363, %365, %cst_259 {dimension_numbers = #tpu.dot_dimension_numbers<[1], [0], [0], [1], [0, 0, 1, 1], [], []>} : vector<17x16xf32>, vector<16x64xf32>, vector<17x64xf32> -> vector<17x64xf32>
    %367 = arith.addf %329, %366 : vector<17x64xf32>
    %c3_260 = arith.constant 3 : index
    %c0_261 = arith.constant 0 : index
    %c0_262 = arith.constant 0 : index
    %368 = vector.load %arg24[%c3_260, %c0_261, %c0_262] : memref<4x64x16xf32, #tpu.memory_space<vmem>>, vector<1x64x16xf32>
    %369 = vector.shape_cast %368 : vector<1x64x16xf32> to vector<64x16xf32>
    %cst_263 = arith.constant dense<0.000000e+00> : vector<17x16xf32>
    %370 = tpu.matmul %254, %369, %cst_263 {dimension_numbers = #tpu.dot_dimension_numbers<[1], [0], [0], [1], [0, 0, 1, 1], [], []>} : vector<17x64xf32>, vector<64x16xf32>, vector<17x16xf32> -> vector<17x16xf32>
    %c3_264 = arith.constant 3 : index
    %c0_265 = arith.constant 0 : index
    %c0_266 = arith.constant 0 : index
    %371 = vector.load %arg25[%c3_264, %c0_265, %c0_266] : memref<4x1x16xf32, #tpu.memory_space<vmem>>, vector<1x1x16xf32>
    %372 = vector.shape_cast %371 : vector<1x1x16xf32> to vector<1x16xf32>
    %373 = vector.broadcast %372 : vector<1x16xf32> to vector<17x16xf32>
    %374 = arith.addf %370, %373 : vector<17x16xf32>
    %c3_267 = arith.constant 3 : index
    %c0_268 = arith.constant 0 : index
    %c0_269 = arith.constant 0 : index
    %375 = vector.load %arg26[%c3_267, %c0_268, %c0_269] : memref<4x64x16xf32, #tpu.memory_space<vmem>>, vector<1x64x16xf32>
    %376 = vector.shape_cast %375 : vector<1x64x16xf32> to vector<64x16xf32>
    %cst_270 = arith.constant dense<0.000000e+00> : vector<17x16xf32>
    %377 = tpu.matmul %254, %376, %cst_270 {dimension_numbers = #tpu.dot_dimension_numbers<[1], [0], [0], [1], [0, 0, 1, 1], [], []>} : vector<17x64xf32>, vector<64x16xf32>, vector<17x16xf32> -> vector<17x16xf32>
    %c3_271 = arith.constant 3 : index
    %c0_272 = arith.constant 0 : index
    %c0_273 = arith.constant 0 : index
    %378 = vector.load %arg27[%c3_271, %c0_272, %c0_273] : memref<4x1x16xf32, #tpu.memory_space<vmem>>, vector<1x1x16xf32>
    %379 = vector.shape_cast %378 : vector<1x1x16xf32> to vector<1x16xf32>
    %380 = vector.broadcast %379 : vector<1x16xf32> to vector<17x16xf32>
    %381 = arith.addf %377, %380 : vector<17x16xf32>
    %c3_274 = arith.constant 3 : index
    %c0_275 = arith.constant 0 : index
    %c0_276 = arith.constant 0 : index
    %382 = vector.load %arg28[%c3_274, %c0_275, %c0_276] : memref<4x64x16xf32, #tpu.memory_space<vmem>>, vector<1x64x16xf32>
    %383 = vector.shape_cast %382 : vector<1x64x16xf32> to vector<64x16xf32>
    %cst_277 = arith.constant dense<0.000000e+00> : vector<17x16xf32>
    %384 = tpu.matmul %254, %383, %cst_277 {dimension_numbers = #tpu.dot_dimension_numbers<[1], [0], [0], [1], [0, 0, 1, 1], [], []>} : vector<17x64xf32>, vector<64x16xf32>, vector<17x16xf32> -> vector<17x16xf32>
    %c3_278 = arith.constant 3 : index
    %c0_279 = arith.constant 0 : index
    %c0_280 = arith.constant 0 : index
    %385 = vector.load %arg29[%c3_278, %c0_279, %c0_280] : memref<4x1x16xf32, #tpu.memory_space<vmem>>, vector<1x1x16xf32>
    %386 = vector.shape_cast %385 : vector<1x1x16xf32> to vector<1x16xf32>
    %387 = vector.broadcast %386 : vector<1x16xf32> to vector<17x16xf32>
    %388 = arith.addf %384, %387 : vector<17x16xf32>
    %389 = tpu.transpose %381, [1, 0] : vector<17x16xf32> -> vector<16x17xf32>
    %cst_281 = arith.constant dense<0.000000e+00> : vector<17x17xf32>
    %390 = tpu.matmul %374, %389, %cst_281 {dimension_numbers = #tpu.dot_dimension_numbers<[1], [0], [0], [1], [0, 0, 1, 1], [], []>} : vector<17x16xf32>, vector<16x17xf32>, vector<17x17xf32> -> vector<17x17xf32>
    %cst_282 = arith.constant dense<0xFF800000> : vector<17xf32>
    %391 = vector.multi_reduction <maximumf>, %390, %cst_282 [1] : vector<17x17xf32> to vector<17xf32>
    %392 = vector.shape_cast %391 : vector<17xf32> to vector<17x1xf32>
    %393 = vector.broadcast %392 : vector<17x1xf32> to vector<17x17xf32>
    %394 = arith.subf %390, %393 : vector<17x17xf32>
    %395 = math.exp %394 : vector<17x17xf32>
    %cst_283 = arith.constant dense<0.000000e+00> : vector<17xf32>
    %396 = vector.multi_reduction <add>, %395, %cst_283 [1] : vector<17x17xf32> to vector<17xf32>
    %397 = vector.shape_cast %396 : vector<17xf32> to vector<17x1xf32>
    %398 = tpu.reciprocal %397 {approx = true} : vector<17x1xf32> -> vector<17x1xf32>
    %399 = vector.broadcast %398 : vector<17x1xf32> to vector<17x17xf32>
    %400 = arith.mulf %395, %399 : vector<17x17xf32>
    %cst_284 = arith.constant dense<0.000000e+00> : vector<17x16xf32>
    %401 = tpu.matmul %400, %388, %cst_284 {dimension_numbers = #tpu.dot_dimension_numbers<[1], [0], [0], [1], [0, 0, 1, 1], [], []>} : vector<17x17xf32>, vector<17x16xf32>, vector<17x16xf32> -> vector<17x16xf32>
    %c3_285 = arith.constant 3 : index
    %c0_286 = arith.constant 0 : index
    %c0_287 = arith.constant 0 : index
    %402 = vector.load %arg30[%c3_285, %c0_286, %c0_287] : memref<4x16x64xf32, #tpu.memory_space<vmem>>, vector<1x16x64xf32>
    %403 = vector.shape_cast %402 : vector<1x16x64xf32> to vector<16x64xf32>
    %cst_288 = arith.constant dense<0.000000e+00> : vector<17x64xf32>
    %404 = tpu.matmul %401, %403, %cst_288 {dimension_numbers = #tpu.dot_dimension_numbers<[1], [0], [0], [1], [0, 0, 1, 1], [], []>} : vector<17x16xf32>, vector<16x64xf32>, vector<17x64xf32> -> vector<17x64xf32>
    %405 = arith.addf %367, %404 : vector<17x64xf32>
    %406 = arith.addf %232, %405 : vector<17x64xf32>
    %c0_289 = arith.constant 0 : index
    %c0_290 = arith.constant 0 : index
    %407 = vector.load %arg31[%c0_289, %c0_290] : memref<1x64xf32, #tpu.memory_space<vmem>>, vector<1x64xf32>
    %408 = vector.broadcast %407 : vector<1x64xf32> to vector<17x64xf32>
    %409 = arith.addf %406, %408 : vector<17x64xf32>
    %c0_291 = arith.constant 0 : index
    %c0_292 = arith.constant 0 : index
    %410 = vector.load %arg32[%c0_291, %c0_292] : memref<1x64xf32, #tpu.memory_space<vmem>>, vector<1x64xf32>
    %c0_293 = arith.constant 0 : index
    %c0_294 = arith.constant 0 : index
    %411 = vector.load %arg33[%c0_293, %c0_294] : memref<1x64xf32, #tpu.memory_space<vmem>>, vector<1x64xf32>
    %cst_295 = arith.constant dense<0.000000e+00> : vector<17xf32>
    %412 = vector.multi_reduction <add>, %409, %cst_295 [1] : vector<17x64xf32> to vector<17xf32>
    %413 = vector.shape_cast %412 : vector<17xf32> to vector<17x1xf32>
    %cst_296 = arith.constant 6.400000e+01 : f32
    %414 = vector.broadcast %cst_296 : f32 to vector<17x1xf32>
    %415 = arith.divf %413, %414 : vector<17x1xf32>
    %416 = vector.broadcast %415 : vector<17x1xf32> to vector<17x64xf32>
    %417 = arith.subf %409, %416 : vector<17x64xf32>
    %418 = arith.mulf %417, %417 : vector<17x64xf32>
    %cst_297 = arith.constant dense<0.000000e+00> : vector<17xf32>
    %419 = vector.multi_reduction <add>, %418, %cst_297 [1] : vector<17x64xf32> to vector<17xf32>
    %420 = vector.shape_cast %419 : vector<17xf32> to vector<17x1xf32>
    %cst_298 = arith.constant 6.400000e+01 : f32
    %421 = vector.broadcast %cst_298 : f32 to vector<17x1xf32>
    %422 = arith.divf %420, %421 : vector<17x1xf32>
    %cst_299 = arith.constant 9.99999996E-13 : f32
    %423 = vector.broadcast %cst_299 : f32 to vector<17x1xf32>
    %424 = arith.addf %422, %423 : vector<17x1xf32>
    %425 = math.rsqrt %424 : vector<17x1xf32>
    %426 = vector.broadcast %425 : vector<17x1xf32> to vector<17x64xf32>
    %427 = arith.mulf %417, %426 : vector<17x64xf32>
    %428 = vector.broadcast %410 : vector<1x64xf32> to vector<17x64xf32>
    %429 = arith.mulf %427, %428 : vector<17x64xf32>
    %430 = vector.broadcast %411 : vector<1x64xf32> to vector<17x64xf32>
    %431 = arith.addf %429, %430 : vector<17x64xf32>
    %c0_300 = arith.constant 0 : index
    %c0_301 = arith.constant 0 : index
    %432 = vector.load %arg34[%c0_300, %c0_301] : memref<64x256xf32, #tpu.memory_space<vmem>>, vector<64x256xf32>
    %cst_302 = arith.constant dense<0.000000e+00> : vector<17x256xf32>
    %433 = tpu.matmul %431, %432, %cst_302 {dimension_numbers = #tpu.dot_dimension_numbers<[1], [0], [0], [1], [0, 0, 1, 1], [], []>} : vector<17x64xf32>, vector<64x256xf32>, vector<17x256xf32> -> vector<17x256xf32>
    %c0_303 = arith.constant 0 : index
    %c0_304 = arith.constant 0 : index
    %434 = vector.load %arg35[%c0_303, %c0_304] : memref<1x256xf32, #tpu.memory_space<vmem>>, vector<1x256xf32>
    %435 = vector.broadcast %434 : vector<1x256xf32> to vector<17x256xf32>
    %436 = arith.addf %433, %435 : vector<17x256xf32>
    %cst_305 = arith.constant 5.000000e-01 : f32
    %437 = vector.broadcast %cst_305 : f32 to vector<17x256xf32>
    %438 = arith.mulf %437, %436 : vector<17x256xf32>
    %cst_306 = arith.constant 0.707106769 : f32
    %439 = vector.broadcast %cst_306 : f32 to vector<17x256xf32>
    %440 = arith.mulf %436, %439 : vector<17x256xf32>
    %441 = math.erf %440 : vector<17x256xf32>
    %cst_307 = arith.constant 1.000000e+00 : f32
    %442 = vector.broadcast %cst_307 : f32 to vector<17x256xf32>
    %443 = arith.addf %442, %441 : vector<17x256xf32>
    %444 = arith.mulf %438, %443 : vector<17x256xf32>
    %c0_308 = arith.constant 0 : index
    %c0_309 = arith.constant 0 : index
    %445 = vector.load %arg36[%c0_308, %c0_309] : memref<256x64xf32, #tpu.memory_space<vmem>>, vector<256x64xf32>
    %cst_310 = arith.constant dense<0.000000e+00> : vector<17x64xf32>
    %446 = tpu.matmul %444, %445, %cst_310 {dimension_numbers = #tpu.dot_dimension_numbers<[1], [0], [0], [1], [0, 0, 1, 1], [], []>} : vector<17x256xf32>, vector<256x64xf32>, vector<17x64xf32> -> vector<17x64xf32>
    %c0_311 = arith.constant 0 : index
    %c0_312 = arith.constant 0 : index
    %447 = vector.load %arg37[%c0_311, %c0_312] : memref<1x64xf32, #tpu.memory_space<vmem>>, vector<1x64xf32>
    %448 = vector.broadcast %447 : vector<1x64xf32> to vector<17x64xf32>
    %449 = arith.addf %446, %448 : vector<17x64xf32>
    %450 = arith.addf %409, %449 : vector<17x64xf32>
    %451 = vector.extract_strided_slice %450 {offsets = [0, 0], sizes = [1, 64], strides = [1, 1]} : vector<17x64xf32> to vector<1x64xf32>
    %c0_313 = arith.constant 0 : index
    %c0_314 = arith.constant 0 : index
    %c0_315 = arith.constant 0 : index
    %452 = vector.load %arg38[%c0_313, %c0_314, %c0_315] : memref<1x1x64xf32, #tpu.memory_space<vmem>>, vector<1x1x64xf32>
    %453 = vector.shape_cast %452 : vector<1x1x64xf32> to vector<1x64xf32>
    %454 = vector.shape_cast %451 : vector<1x64xf32> to vector<1x1x64xf32>
    tpu.vector_store %arg38[%c0_313, %c0_314, %c0_315], %454 {strides = array<i32>} : memref<1x1x64xf32, #tpu.memory_space<vmem>>, vector<1x1x64xf32>,
    return
  }
  func.func @transform_0(%arg0: i32) -> (i32, i32, i32) {
    %c0_i32 = arith.constant 0 : i32
    %c0_i32_0 = arith.constant 0 : i32
    %c0_i32_1 = arith.constant 0 : i32
    return %arg0, %c0_i32, %c0_i32_0 : i32, i32, i32
  }
  func.func @transform_1(%arg0: i32) -> (i32, i32) {
    %c0_i32 = arith.constant 0 : i32
    %c0_i32_0 = arith.constant 0 : i32
    %c0_i32_1 = arith.constant 0 : i32
    return %c0_i32, %c0_i32_0 : i32, i32
  }
  func.func @transform_2(%arg0: i32) -> (i32, i32) {
    %c0_i32 = arith.constant 0 : i32
    %c0_i32_0 = arith.constant 0 : i32
    %c0_i32_1 = arith.constant 0 : i32
    return %c0_i32, %c0_i32_0 : i32, i32
  }
  func.func @transform_3(%arg0: i32) -> (i32, i32) {
    %c0_i32 = arith.constant 0 : i32
    %c0_i32_0 = arith.constant 0 : i32
    %c0_i32_1 = arith.constant 0 : i32
    return %c0_i32, %c0_i32_0 : i32, i32
  }
  func.func @transform_4(%arg0: i32) -> (i32, i32) {
    %c0_i32 = arith.constant 0 : i32
    %c0_i32_0 = arith.constant 0 : i32
    %c0_i32_1 = arith.constant 0 : i32
    return %c0_i32, %c0_i32_0 : i32, i32
  }
  func.func @transform_5(%arg0: i32) -> (i32, i32) {
    %c0_i32 = arith.constant 0 : i32
    %c0_i32_0 = arith.constant 0 : i32
    %c0_i32_1 = arith.constant 0 : i32
    return %c0_i32, %c0_i32_0 : i32, i32
  }
  func.func @transform_6(%arg0: i32) -> (i32, i32) {
    %c0_i32 = arith.constant 0 : i32
    %c0_i32_0 = arith.constant 0 : i32
    %c0_i32_1 = arith.constant 0 : i32
    return %c0_i32, %c0_i32_0 : i32, i32
  }
  func.func @transform_7(%arg0: i32) -> (i32, i32, i32) {
    %c0_i32 = arith.constant 0 : i32
    %c0_i32_0 = arith.constant 0 : i32
    %c0_i32_1 = arith.constant 0 : i32
    %c0_i32_2 = arith.constant 0 : i32
    return %c0_i32, %c0_i32_0, %c0_i32_1 : i32, i32, i32
  }
  func.func @transform_8(%arg0: i32) -> (i32, i32, i32) {
    %c0_i32 = arith.constant 0 : i32
    %c0_i32_0 = arith.constant 0 : i32
    %c0_i32_1 = arith.constant 0 : i32
    %c0_i32_2 = arith.constant 0 : i32
    return %c0_i32, %c0_i32_0, %c0_i32_1 : i32, i32, i32
  }
  func.func @transform_9(%arg0: i32) -> (i32, i32, i32) {
    %c0_i32 = arith.constant 0 : i32
    %c0_i32_0 = arith.constant 0 : i32
    %c0_i32_1 = arith.constant 0 : i32
    %c0_i32_2 = arith.constant 0 : i32
    return %c0_i32, %c0_i32_0, %c0_i32_1 : i32, i32, i32
  }
  func.func @transform_10(%arg0: i32) -> (i32, i32, i32) {
    %c0_i32 = arith.constant 0 : i32
    %c0_i32_0 = arith.constant 0 : i32
    %c0_i32_1 = arith.constant 0 : i32
    %c0_i32_2 = arith.constant 0 : i32
    return %c0_i32, %c0_i32_0, %c0_i32_1 : i32, i32, i32
  }
  func.func @transform_11(%arg0: i32) -> (i32, i32, i32) {
    %c0_i32 = arith.constant 0 : i32
    %c0_i32_0 = arith.constant 0 : i32
    %c0_i32_1 = arith.constant 0 : i32
    %c0_i32_2 = arith.constant 0 : i32
    return %c0_i32, %c0_i32_0, %c0_i32_1 : i32, i32, i32
  }
  func.func @transform_12(%arg0: i32) -> (i32, i32, i32) {
    %c0_i32 = arith.constant 0 : i32
    %c0_i32_0 = arith.constant 0 : i32
    %c0_i32_1 = arith.constant 0 : i32
    %c0_i32_2 = arith.constant 0 : i32
    return %c0_i32, %c0_i32_0, %c0_i32_1 : i32, i32, i32
  }
  func.func @transform_13(%arg0: i32) -> (i32, i32, i32) {
    %c0_i32 = arith.constant 0 : i32
    %c0_i32_0 = arith.constant 0 : i32
    %c0_i32_1 = arith.constant 0 : i32
    %c0_i32_2 = arith.constant 0 : i32
    return %c0_i32, %c0_i32_0, %c0_i32_1 : i32, i32, i32
  }
  func.func @transform_14(%arg0: i32) -> (i32, i32) {
    %c0_i32 = arith.constant 0 : i32
    %c0_i32_0 = arith.constant 0 : i32
    %c0_i32_1 = arith.constant 0 : i32
    return %c0_i32, %c0_i32_0 : i32, i32
  }
  func.func @transform_15(%arg0: i32) -> (i32, i32) {
    %c0_i32 = arith.constant 0 : i32
    %c0_i32_0 = arith.constant 0 : i32
    %c0_i32_1 = arith.constant 0 : i32
    return %c0_i32, %c0_i32_0 : i32, i32
  }
  func.func @transform_16(%arg0: i32) -> (i32, i32) {
    %c0_i32 = arith.constant 0 : i32
    %c0_i32_0 = arith.constant 0 : i32
    %c0_i32_1 = arith.constant 0 : i32
    return %c0_i32, %c0_i32_0 : i32, i32
  }
  func.func @transform_17(%arg0: i32) -> (i32, i32) {
    %c0_i32 = arith.constant 0 : i32
    %c0_i32_0 = arith.constant 0 : i32
    %c0_i32_1 = arith.constant 0 : i32
    return %c0_i32, %c0_i32_0 : i32, i32
  }
  func.func @transform_18(%arg0: i32) -> (i32, i32) {
    %c0_i32 = arith.constant 0 : i32
    %c0_i32_0 = arith.constant 0 : i32
    %c0_i32_1 = arith.constant 0 : i32
    return %c0_i32, %c0_i32_0 : i32, i32
  }
  func.func @transform_19(%arg0: i32) -> (i32, i32) {
    %c0_i32 = arith.constant 0 : i32
    %c0_i32_0 = arith.constant 0 : i32
    %c0_i32_1 = arith.constant 0 : i32
    return %c0_i32, %c0_i32_0 : i32, i32
  }
  func.func @transform_20(%arg0: i32) -> (i32, i32) {
    %c0_i32 = arith.constant 0 : i32
    %c0_i32_0 = arith.constant 0 : i32
    %c0_i32_1 = arith.constant 0 : i32
    return %c0_i32, %c0_i32_0 : i32, i32
  }
  func.func @transform_21(%arg0: i32) -> (i32, i32) {
    %c0_i32 = arith.constant 0 : i32
    %c0_i32_0 = arith.constant 0 : i32
    %c0_i32_1 = arith.constant 0 : i32
    return %c0_i32, %c0_i32_0 : i32, i32
  }
  func.func @transform_22(%arg0: i32) -> (i32, i32) {
    %c0_i32 = arith.constant 0 : i32
    %c0_i32_0 = arith.constant 0 : i32
    %c0_i32_1 = arith.constant 0 : i32
    return %c0_i32, %c0_i32_0 : i32, i32
  }
  func.func @transform_23(%arg0: i32) -> (i32, i32, i32) {
    %c0_i32 = arith.constant 0 : i32
    %c0_i32_0 = arith.constant 0 : i32
    %c0_i32_1 = arith.constant 0 : i32
    %c0_i32_2 = arith.constant 0 : i32
    return %c0_i32, %c0_i32_0, %c0_i32_1 : i32, i32, i32
  }
  func.func @transform_24(%arg0: i32) -> (i32, i32, i32) {
    %c0_i32 = arith.constant 0 : i32
    %c0_i32_0 = arith.constant 0 : i32
    %c0_i32_1 = arith.constant 0 : i32
    %c0_i32_2 = arith.constant 0 : i32
    return %c0_i32, %c0_i32_0, %c0_i32_1 : i32, i32, i32
  }
  func.func @transform_25(%arg0: i32) -> (i32, i32, i32) {
    %c0_i32 = arith.constant 0 : i32
    %c0_i32_0 = arith.constant 0 : i32
    %c0_i32_1 = arith.constant 0 : i32
    %c0_i32_2 = arith.constant 0 : i32
    return %c0_i32, %c0_i32_0, %c0_i32_1 : i32, i32, i32
  }
  func.func @transform_26(%arg0: i32) -> (i32, i32, i32) {
    %c0_i32 = arith.constant 0 : i32
    %c0_i32_0 = arith.constant 0 : i32
    %c0_i32_1 = arith.constant 0 : i32
    %c0_i32_2 = arith.constant 0 : i32
    return %c0_i32, %c0_i32_0, %c0_i32_1 : i32, i32, i32
  }
  func.func @transform_27(%arg0: i32) -> (i32, i32, i32) {
    %c0_i32 = arith.constant 0 : i32
    %c0_i32_0 = arith.constant 0 : i32
    %c0_i32_1 = arith.constant 0 : i32
    %c0_i32_2 = arith.constant 0 : i32
    return %c0_i32, %c0_i32_0, %c0_i32_1 : i32, i32, i32
  }
  func.func @transform_28(%arg0: i32) -> (i32, i32, i32) {
    %c0_i32 = arith.constant 0 : i32
    %c0_i32_0 = arith.constant 0 : i32
    %c0_i32_1 = arith.constant 0 : i32
    %c0_i32_2 = arith.constant 0 : i32
    return %c0_i32, %c0_i32_0, %c0_i32_1 : i32, i32, i32
  }
  func.func @transform_29(%arg0: i32) -> (i32, i32, i32) {
    %c0_i32 = arith.constant 0 : i32
    %c0_i32_0 = arith.constant 0 : i32
    %c0_i32_1 = arith.constant 0 : i32
    %c0_i32_2 = arith.constant 0 : i32
    return %c0_i32, %c0_i32_0, %c0_i32_1 : i32, i32, i32
  }
  func.func @transform_30(%arg0: i32) -> (i32, i32) {
    %c0_i32 = arith.constant 0 : i32
    %c0_i32_0 = arith.constant 0 : i32
    %c0_i32_1 = arith.constant 0 : i32
    return %c0_i32, %c0_i32_0 : i32, i32
  }
  func.func @transform_31(%arg0: i32) -> (i32, i32) {
    %c0_i32 = arith.constant 0 : i32
    %c0_i32_0 = arith.constant 0 : i32
    %c0_i32_1 = arith.constant 0 : i32
    return %c0_i32, %c0_i32_0 : i32, i32
  }
  func.func @transform_32(%arg0: i32) -> (i32, i32) {
    %c0_i32 = arith.constant 0 : i32
    %c0_i32_0 = arith.constant 0 : i32
    %c0_i32_1 = arith.constant 0 : i32
    return %c0_i32, %c0_i32_0 : i32, i32
  }
  func.func @transform_33(%arg0: i32) -> (i32, i32) {
    %c0_i32 = arith.constant 0 : i32
    %c0_i32_0 = arith.constant 0 : i32
    %c0_i32_1 = arith.constant 0 : i32
    return %c0_i32, %c0_i32_0 : i32, i32
  }
  func.func @transform_34(%arg0: i32) -> (i32, i32) {
    %c0_i32 = arith.constant 0 : i32
    %c0_i32_0 = arith.constant 0 : i32
    %c0_i32_1 = arith.constant 0 : i32
    return %c0_i32, %c0_i32_0 : i32, i32
  }
  func.func @transform_35(%arg0: i32) -> (i32, i32) {
    %c0_i32 = arith.constant 0 : i32
    %c0_i32_0 = arith.constant 0 : i32
    %c0_i32_1 = arith.constant 0 : i32
    return %c0_i32, %c0_i32_0 : i32, i32
  }
  func.func @transform_36(%arg0: i32) -> (i32, i32) {
    %c0_i32 = arith.constant 0 : i32
    %c0_i32_0 = arith.constant 0 : i32
    %c0_i32_1 = arith.constant 0 : i32
    return %c0_i32, %c0_i32_0 : i32, i32
  }
  func.func @transform_37(%arg0: i32) -> (i32, i32, i32) {
    %c0_i32 = arith.constant 0 : i32
    %c0_i32_0 = arith.constant 0 : i32
    %c0_i32_1 = arith.constant 0 : i32
    return %arg0, %c0_i32, %c0_i32_0 : i32, i32, i32
  }
}

</mosaic_0001>

<llo_original>
// kernel: vit_hugging_forward.3
$region0: #{vit_hugging_forward.3}
  #allocation0 [shape = 'u32[]', space=smem, size = 0x4, offset = 0x4, fixed_abs, tag = 'smem constant byte address 0x4 - core index']
  #allocation1 [shape = 'u32[72,128]{1,0:T(1,128)}', space=vmem, size = 0x9000, scoped, tag = 'internal scratch']
  #allocation2 [shape = 'f32[1,1]{1,0:T(1,128)S(1)}', space=vmem, size = 0x200, scoped, tag = 'scoped memory for vit_hugging_forward.3']
  %s0 = inlined_call_operand.vmem [shape: f32[2,1,64], index: 0, kind: input, shape index: {}]
  %s1 = inlined_call_operand.vmem [shape: f32[2,2], index: 1, kind: input, shape index: {}]
  %s2 = inlined_call_operand.vmem [shape: f32[1,64], index: 2, kind: input, shape index: {}]
  %s3 = inlined_call_operand.vmem [shape: f32[1,64], index: 3, kind: input, shape index: {}]
  %s4 = inlined_call_operand.vmem [shape: f32[1,64], index: 4, kind: input, shape index: {}]
  %s5 = inlined_call_operand.vmem [shape: f32[1,64], index: 5, kind: input, shape index: {}]
  %s6 = inlined_call_operand.vmem [shape: f32[64,64], index: 6, kind: input, shape index: {}]
  %s7 = inlined_call_operand.vmem [shape: f32[1,64], index: 7, kind: input, shape index: {}]
  %s8 = inlined_call_operand.vmem [shape: f32[1,64], index: 8, kind: input, shape index: {}]
  %s9 = inlined_call_operand.vmem [shape: f32[1,2], index: 9, kind: input, shape index: {}]
  %s10 = inlined_call_operand.vmem [shape: f32[1,64], index: 10, kind: input, shape index: {}]
  %s11 = inlined_call_operand.vmem [shape: f32[1,2], index: 11, kind: input, shape index: {}]
  %s12 = inlined_call_operand.vmem [shape: f32[64,64], index: 12, kind: input, shape index: {}]
  %s13 = inlined_call_operand.vmem [shape: f32[2,64], index: 13, kind: input, shape index: {}]
  %s14 = inlined_call_operand.vmem [shape: f32[1,64], index: 14, kind: input, shape index: {}]
  %s15 = inlined_call_operand.vmem [shape: f32[1,64], index: 15, kind: input, shape index: {}]
  %s16 = inlined_call_operand.vmem [shape: f32[1,64], index: 16, kind: input, shape index: {}]
  %s17 = inlined_call_operand.vmem [shape: f32[64,64], index: 17, kind: input, shape index: {}]
  %s18 = inlined_call_operand.vmem [shape: f32[1,64], index: 18, kind: input, shape index: {}]
  %s19 = inlined_call_operand.vmem [shape: f32[1,64], index: 19, kind: input, shape index: {}]
  %s20 = inlined_call_operand.vmem [shape: f32[1,64], index: 20, kind: input, shape index: {}]
  %s21 = inlined_call_operand.vmem [shape: f32[64,1], index: 21, kind: input, shape index: {}]
  %s22 = inlined_call_operand.<no memory space> [shape: f32[1,1], index: 22, kind: input, shape index: {}]
  %s23 = inlined_call_operand.vmem [shape: f32[2,1], index: 23, kind: output, shape index: {}]
  %s24 = sld [smem:[#allocation0]]
  $region102: #{vit_hugging_forward.3} parent=0
    _
  %s26 = ssub.s32 1, %s24
  %s27 = scalar_select 0, %s26, %s24
  %v28 = vstv %s22
  %29 = vst [vmem:[#allocation2] sm:$0x1] %v28
  // Predicated region
  $region2: #{vit_hugging_forward.3} parent=0 // pred_check
    _
  $region3: #{vit_hugging_forward.3} parent=0 // pred_check_branch
    %31 = sbr.rel (0) target = $region5
  $region4: #{vit_hugging_forward.3} parent=0 // pred_region
    _
  $region5: #{vit_hugging_forward.3} parent=0 // pred_fallthru
    _
  // Predicated region
  $region6: #{vit_hugging_forward.3} parent=0 // pred_check
    _
  $region7: #{vit_hugging_forward.3} parent=0 // pred_check_branch
    %33 = sbr.rel (0) target = $region9
  $region8: #{vit_hugging_forward.3} parent=0 // pred_region
    _
  $region9: #{vit_hugging_forward.3} parent=0 // pred_fallthru
    _
  // Predicated region
  $region10: #{vit_hugging_forward.3} parent=0 // pred_check
    _
  $region11: #{vit_hugging_forward.3} parent=0 // pred_check_branch
    %35 = sbr.rel (0) target = $region13
  $region12: #{vit_hugging_forward.3} parent=0 // pred_region
    _
  $region13: #{vit_hugging_forward.3} parent=0 // pred_fallthru
    _
  // Predicated region
  $region14: #{vit_hugging_forward.3} parent=0 // pred_check
    _
  $region15: #{vit_hugging_forward.3} parent=0 // pred_check_branch
    %37 = sbr.rel (0) target = $region17
  $region16: #{vit_hugging_forward.3} parent=0 // pred_region
    _
  $region17: #{vit_hugging_forward.3} parent=0 // pred_fallthru
    _
  // Predicated region
  $region18: #{vit_hugging_forward.3} parent=0 // pred_check
    _
  $region19: #{vit_hugging_forward.3} parent=0 // pred_check_branch
    %39 = sbr.rel (0) target = $region21
  $region20: #{vit_hugging_forward.3} parent=0 // pred_region
    _
  $region21: #{vit_hugging_forward.3} parent=0 // pred_fallthru
    _
  // Predicated region
  $region22: #{vit_hugging_forward.3} parent=0 // pred_check
    _
  $region23: #{vit_hugging_forward.3} parent=0 // pred_check_branch
    %41 = sbr.rel (0) target = $region25
  $region24: #{vit_hugging_forward.3} parent=0 // pred_region
    _
  $region25: #{vit_hugging_forward.3} parent=0 // pred_fallthru
    _
  // Predicated region
  $region26: #{vit_hugging_forward.3} parent=0 // pred_check
    _
  $region27: #{vit_hugging_forward.3} parent=0 // pred_check_branch
    %43 = sbr.rel (0) target = $region29
  $region28: #{vit_hugging_forward.3} parent=0 // pred_region
    _
  $region29: #{vit_hugging_forward.3} parent=0 // pred_fallthru
    _
  // Predicated region
  $region30: #{vit_hugging_forward.3} parent=0 // pred_check
    _
  $region31: #{vit_hugging_forward.3} parent=0 // pred_check_branch
    %45 = sbr.rel (0) target = $region33
  $region32: #{vit_hugging_forward.3} parent=0 // pred_region
    _
  $region33: #{vit_hugging_forward.3} parent=0 // pred_fallthru
    _
  // Predicated region
  $region34: #{vit_hugging_forward.3} parent=0 // pred_check
    _
  $region35: #{vit_hugging_forward.3} parent=0 // pred_check_branch
    %47 = sbr.rel (0) target = $region37
  $region36: #{vit_hugging_forward.3} parent=0 // pred_region
    _
  $region37: #{vit_hugging_forward.3} parent=0 // pred_fallthru
    _
  // Predicated region
  $region38: #{vit_hugging_forward.3} parent=0 // pred_check
    _
  $region39: #{vit_hugging_forward.3} parent=0 // pred_check_branch
    %49 = sbr.rel (0) target = $region41
  $region40: #{vit_hugging_forward.3} parent=0 // pred_region
    _
  $region41: #{vit_hugging_forward.3} parent=0 // pred_fallthru
    _
  // Predicated region
  $region42: #{vit_hugging_forward.3} parent=0 // pred_check
    _
  $region43: #{vit_hugging_forward.3} parent=0 // pred_check_branch
    %51 = sbr.rel (0) target = $region45
  $region44: #{vit_hugging_forward.3} parent=0 // pred_region
    _
  $region45: #{vit_hugging_forward.3} parent=0 // pred_fallthru
    _
  // Predicated region
  $region46: #{vit_hugging_forward.3} parent=0 // pred_check
    _
  $region47: #{vit_hugging_forward.3} parent=0 // pred_check_branch
    %53 = sbr.rel (0) target = $region49
  $region48: #{vit_hugging_forward.3} parent=0 // pred_region
    _
  $region49: #{vit_hugging_forward.3} parent=0 // pred_fallthru
    _
  // Predicated region
  $region50: #{vit_hugging_forward.3} parent=0 // pred_check
    _
  $region51: #{vit_hugging_forward.3} parent=0 // pred_check_branch
    %55 = sbr.rel (0) target = $region53
  $region52: #{vit_hugging_forward.3} parent=0 // pred_region
    _
  $region53: #{vit_hugging_forward.3} parent=0 // pred_fallthru
    _
  // Predicated region
  $region54: #{vit_hugging_forward.3} parent=0 // pred_check
    _
  $region55: #{vit_hugging_forward.3} parent=0 // pred_check_branch
    %57 = sbr.rel (0) target = $region57
  $region56: #{vit_hugging_forward.3} parent=0 // pred_region
    _
  $region57: #{vit_hugging_forward.3} parent=0 // pred_fallthru
    _
  // Predicated region
  $region58: #{vit_hugging_forward.3} parent=0 // pred_check
    _
  $region59: #{vit_hugging_forward.3} parent=0 // pred_check_branch
    %59 = sbr.rel (0) target = $region61
  $region60: #{vit_hugging_forward.3} parent=0 // pred_region
    _
  $region61: #{vit_hugging_forward.3} parent=0 // pred_fallthru
    _
  // Predicated region
  $region62: #{vit_hugging_forward.3} parent=0 // pred_check
    _
  $region63: #{vit_hugging_forward.3} parent=0 // pred_check_branch
    %61 = sbr.rel (0) target = $region65
  $region64: #{vit_hugging_forward.3} parent=0 // pred_region
    _
  $region65: #{vit_hugging_forward.3} parent=0 // pred_fallthru
    _
  // Predicated region
  $region66: #{vit_hugging_forward.3} parent=0 // pred_check
    _
  $region67: #{vit_hugging_forward.3} parent=0 // pred_check_branch
    %63 = sbr.rel (0) target = $region69
  $region68: #{vit_hugging_forward.3} parent=0 // pred_region
    _
  $region69: #{vit_hugging_forward.3} parent=0 // pred_fallthru
    _
  // Predicated region
  $region70: #{vit_hugging_forward.3} parent=0 // pred_check
    _
  $region71: #{vit_hugging_forward.3} parent=0 // pred_check_branch
    %65 = sbr.rel (0) target = $region73
  $region72: #{vit_hugging_forward.3} parent=0 // pred_region
    _
  $region73: #{vit_hugging_forward.3} parent=0 // pred_fallthru
    _
  // Predicated region
  $region74: #{vit_hugging_forward.3} parent=0 // pred_check
    _
  $region75: #{vit_hugging_forward.3} parent=0 // pred_check_branch
    %67 = sbr.rel (0) target = $region77
  $region76: #{vit_hugging_forward.3} parent=0 // pred_region
    _
  $region77: #{vit_hugging_forward.3} parent=0 // pred_fallthru
    _
  // Predicated region
  $region78: #{vit_hugging_forward.3} parent=0 // pred_check
    _
  $region79: #{vit_hugging_forward.3} parent=0 // pred_check_branch
    %69 = sbr.rel (0) target = $region81
  $region80: #{vit_hugging_forward.3} parent=0 // pred_region
    _
  $region81: #{vit_hugging_forward.3} parent=0 // pred_fallthru
    _
  // Predicated region
  $region82: #{vit_hugging_forward.3} parent=0 // pred_check
    _
  $region83: #{vit_hugging_forward.3} parent=0 // pred_check_branch
    %71 = sbr.rel (0) target = $region85
  $region84: #{vit_hugging_forward.3} parent=0 // pred_region
    _
  $region85: #{vit_hugging_forward.3} parent=0 // pred_fallthru
    _
  // Predicated region
  $region86: #{vit_hugging_forward.3} parent=0 // pred_check
    _
  $region87: #{vit_hugging_forward.3} parent=0 // pred_check_branch
    %73 = sbr.rel (0) target = $region89
  $region88: #{vit_hugging_forward.3} parent=0 // pred_region
    _
  $region89: #{vit_hugging_forward.3} parent=0 // pred_fallthru
    _
  // Predicated region
  $region90: #{vit_hugging_forward.3} parent=0 // pred_check
    _
  $region91: #{vit_hugging_forward.3} parent=0 // pred_check_branch
    %75 = sbr.rel (0) target = $region93
  $region92: #{vit_hugging_forward.3} parent=0 // pred_region
    _
  $region93: #{vit_hugging_forward.3} parent=0 // pred_fallthru
    _
  %v76 = vld [vmem:[%s0] sm:$0x1]
  %v77 = vld [vmem:[%s0 + $0x1] sm:$0x1]
  %v78 = vld [vmem:[%s2] sm:$0x1]
  %v79 = vld [vmem:[%s3] sm:$0x1]
  %82 = vst [vmem:[#allocation1] ss:$9 sm:$0xff] %v76
  %s83 = scalar_lea.vmem [#allocation1], 1
  %84 = vst [vmem:[%s83] ss:$9 sm:$0xff] %v77
  %v85 = vld [vmem:[#allocation1] sm:$0xff]
  %vm87 = vcmask 517120
  %v88 = vsel %vm87, %v85, 0.0
  %89 = vadd.xlane.f32.xlu0 %v88
  %v90 = vpop.xlane.xlu0 %89
  %v91 = vrcp.pop 64.0
  %v92 = vmul.f32 64.0, %v91
  %v93 = vsub.f32 1.0, %v92
  %v94 = vmul.f32 %v91, %v93
  %v95 = vadd.f32 %v91, %v94
  %vm96 = vweird.f32 %v91
  %v97 = vsel %vm96, %v91, %v95
  %v98 = vmul.f32 %v90, %v97
  %v100 = vperm.slane %v98, 0
  %v101 = vperm.slane %v98, 1
  %v104 = vsub.f32 %v76, %v100
  %v105 = vsub.f32 %v77, %v101
  %v106 = vmul.f32 %v104, %v104
  %v107 = vmul.f32 %v105, %v105
  %110 = vst [vmem:[#allocation1] ss:$9 sm:$0xff] %v106
  %s111 = scalar_lea.vmem [#allocation1], 1
  %112 = vst [vmem:[%s111] ss:$9 sm:$0xff] %v107
  %v113 = vld [vmem:[#allocation1] sm:$0xff]
  %v115 = vsel %vm87, %v113, 0.0
  %116 = vadd.xlane.f32.xlu0 %v115
  %v117 = vpop.xlane.xlu0 %116
  %v118 = vmul.f32 %v117, %v97
  %v119 = vadd.f32 %v118, 1e-12
  %v120 = vrsqrt.pop %v119
  %v121 = vmul.f32 %v120, %v119
  %v122 = vmul.f32 %v121, %v120
  %v123 = vmul.f32 0.5, %v122
  %v124 = vsub.f32 1.5, %v123
  %v125 = vmul.f32 %v120, %v124
  %vm126 = vweird.f32 %v119
  %vm127 = vweird.f32 %v120
  %vm128 = vmor %vm126, %vm127
  %v129 = vsel %vm128, %v120, %v125
  %v131 = vperm.slane %v129, 0
  %v132 = vperm.slane %v129, 1
  %v135 = vmul.f32 %v104, %v131
  %v136 = vmul.f32 %v105, %v132
  %v138 = vperm.slane %v78, 0
  %v140 = vrot.slane %v138, 1
  %v142 = vmul.f32 %v135, %v138
  %v143 = vmul.f32 %v136, %v140
  %v145 = vperm.slane %v79, 0
  %v147 = vrot.slane %v145, 1
  %v149 = vadd.f32 %v142, %v145
  %v150 = vadd.f32 %v143, %v147
  %v151 = vld [vmem:[%s4] sm:$0x1]
  %v152 = vld [vmem:[%s5] sm:$0x1]
  %155 = vst [vmem:[#allocation1] ss:$9 sm:$0xff] %v149
  %s156 = scalar_lea.vmem [#allocation1], 1
  %157 = vst [vmem:[%s156] ss:$9 sm:$0xff] %v150
  %v158 = vld [vmem:[#allocation1] sm:$0xff]
  %v160 = vsel %vm87, %v158, 0.0
  %161 = vadd.xlane.f32.xlu0 %v160
  %v162 = vpop.xlane.xlu0 %161
  %v163 = vmul.f32 %v162, %v97
  %v165 = vperm.slane %v163, 0
  %v166 = vperm.slane %v163, 1
  %v169 = vsub.f32 %v149, %v165
  %v170 = vsub.f32 %v150, %v166
  %v171 = vmul.f32 %v169, %v169
  %v172 = vmul.f32 %v170, %v170
  %175 = vst [vmem:[#allocation1] ss:$9 sm:$0xff] %v171
  %s176 = scalar_lea.vmem [#allocation1], 1
  %177 = vst [vmem:[%s176] ss:$9 sm:$0xff] %v172
  %v178 = vld [vmem:[#allocation1] sm:$0xff]
  %v180 = vsel %vm87, %v178, 0.0
  %181 = vadd.xlane.f32.xlu0 %v180
  %v182 = vpop.xlane.xlu0 %181
  %v183 = vmul.f32 %v182, %v97
  %v184 = vadd.f32 %v183, 1e-05
  %v185 = vrsqrt.pop %v184
  %v186 = vmul.f32 %v185, %v184
  %v187 = vmul.f32 %v186, %v185
  %v188 = vmul.f32 0.5, %v187
  %v189 = vsub.f32 1.5, %v188
  %v190 = vmul.f32 %v185, %v189
  %vm191 = vweird.f32 %v184
  %vm192 = vweird.f32 %v185
  %vm193 = vmor %vm191, %vm192
  %v194 = vsel %vm193, %v185, %v190
  %v196 = vperm.slane %v194, 0
  %v197 = vperm.slane %v194, 1
  %v200 = vmul.f32 %v169, %v196
  %v201 = vmul.f32 %v170, %v197
  %v203 = vperm.slane %v151, 0
  %v205 = vrot.slane %v203, 1
  %v207 = vmul.f32 %v200, %v203
  %v208 = vmul.f32 %v201, %v205
  %v210 = vperm.slane %v152, 0
  %v212 = vrot.slane %v210, 1
  %v214 = vadd.f32 %v207, %v210
  %v215 = vadd.f32 %v208, %v212
  %v216 = vld [vmem:[%s6] sm:$0xff]
  %v217 = vld [vmem:[%s6 + $0x8] sm:$0xff]
  %v218 = vld [vmem:[%s6 + $0x10] sm:$0xff]
  %v219 = vld [vmem:[%s6 + $0x18] sm:$0xff]
  %v220 = vld [vmem:[%s6 + $0x20] sm:$0xff]
  %v221 = vld [vmem:[%s6 + $0x28] sm:$0xff]
  %v222 = vld [vmem:[%s6 + $0x30] sm:$0xff]
  %v223 = vld [vmem:[%s6 + $0x38] sm:$0xff]
  %v224 = vld [vmem:[%s7] sm:$0x1]
  %v226 = vperm.slane %v224, 0
  %230 = vst [vmem:[#allocation1] ss:$9 sm:$0xff] %v214
  %s231 = scalar_lea.vmem [#allocation1], 1
  %232 = vst [vmem:[%s231] ss:$9 sm:$0xff] %v215
  %v233 = vld [vmem:[#allocation1] sm:$0xff]
  %vm234 = vcmask 523264
  %v235 = vsel %vm234, %v233, 0
  %237 = vmatpush.msra.mxu0 0.0
  %238 = vmatpush.msra.mxu0 0.0
  %239 = vmatpush.msra.mxu0 0.0
  %240 = vmatpush.msra.mxu0 0.0
  %241 = vmatpush.msra.mxu0 0.0
  %242 = vmatpush.msra.mxu0 0.0
  %243 = vmatpush.msra.mxu0 0.0
  %244 = vmatpush.msra.mxu0 0.0
  %245 = vmatpush.msra.mxu0 %v223
  %246 = vmatpush.msra.mxu0 %v222
  %247 = vmatpush.msra.mxu0 %v221
  %248 = vmatpush.msra.mxu0 %v220
  %249 = vmatpush.msra.mxu0 %v219
  %250 = vmatpush.msra.mxu0 %v218
  %251 = vmatpush.msra.mxu0 %v217
  %252 = vmatpush.msra.mxu0 %v216
  %253 = vmatmul.f32.gmra.mxu0 %v235
  %v254 = vpop.f32.mrf.mxu0
  %v255 = vadd.f32 %v226, %v254
  %256 = vdwg.mxu0
  %v257 = vmax.f32 %v255, 0.0
  %v258 = vld [vmem:[%s1] sm:$0x3]
  %v259 = vsel %vm87, %v257, 0.0
  %260 = vadd.xlane.f32.xlu0 %v259
  %v261 = vpop.xlane.xlu0 %260
  %vm262 = vcmask 9216
  %v263 = vsel %vm262, %v258, 0.0
  %264 = vadd.xlane.f32.xlu0 %v263
  %v265 = vpop.xlane.xlu0 %264
  %v266 = vadd.f32 %v261, %v265
  %v267 = vrcp.pop 66.0
  %v268 = vmul.f32 66.0, %v267
  %v269 = vsub.f32 1.0, %v268
  %v270 = vmul.f32 %v267, %v269
  %v271 = vadd.f32 %v267, %v270
  %vm272 = vweird.f32 %v267
  %v273 = vsel %vm272, %v267, %v271
  %v274 = vmul.f32 %v266, %v273
  %v275 = vsub.f32 %v257, %v274
  %v276 = vsub.f32 %v258, %v274
  %v277 = vmul.f32 %v275, %v275
  %v278 = vsel %vm87, %v277, 0.0
  %279 = vadd.xlane.f32.xlu0 %v278
  %v280 = vpop.xlane.xlu0 %279
  %v281 = vmul.f32 %v276, %v276
  %v282 = vsel %vm262, %v281, 0.0
  %283 = vadd.xlane.f32.xlu0 %v282
  %v284 = vpop.xlane.xlu0 %283
  %v285 = vadd.f32 %v280, %v284
  %v286 = vmul.f32 %v285, %v273
  %v287 = vadd.f32 %v286, 1e-05
  %v288 = vrsqrt.pop %v287
  %v289 = vmul.f32 %v288, %v287
  %v290 = vmul.f32 %v289, %v288
  %v291 = vmul.f32 0.5, %v290
  %v292 = vsub.f32 1.5, %v291
  %v293 = vmul.f32 %v288, %v292
  %vm294 = vweird.f32 %v287
  %vm295 = vweird.f32 %v288
  %vm296 = vmor %vm294, %vm295
  %v297 = vsel %vm296, %v288, %v293
  %v298 = vmul.f32 %v275, %v297
  %v299 = vld [vmem:[%s8] sm:$0x1]
  %v301 = vperm.slane %v299, 0
  %v303 = vmul.f32 %v298, %v301
  %v304 = vld [vmem:[%s10] sm:$0x1]
  %v306 = vperm.slane %v304, 0
  %v308 = vadd.f32 %v303, %v306
  %v309 = vmul.f32 %v276, %v297
  %v310 = vld [vmem:[%s9] sm:$0x1]
  %v312 = vperm.slane %v310, 0
  %v314 = vmul.f32 %v309, %v312
  %v315 = vld [vmem:[%s11] sm:$0x1]
  %v317 = vperm.slane %v315, 0
  %v319 = vadd.f32 %v314, %v317
  %v320 = vld [vmem:[%s12] sm:$0xff]
  %v321 = vld [vmem:[%s12 + $0x8] sm:$0xff]
  %v322 = vld [vmem:[%s12 + $0x10] sm:$0xff]
  %v323 = vld [vmem:[%s12 + $0x18] sm:$0xff]
  %v324 = vld [vmem:[%s12 + $0x20] sm:$0xff]
  %v325 = vld [vmem:[%s12 + $0x28] sm:$0xff]
  %v326 = vld [vmem:[%s12 + $0x30] sm:$0xff]
  %v327 = vld [vmem:[%s12 + $0x38] sm:$0xff]
  %v328 = vld [vmem:[%s13] sm:$0x3]
  %vm329 = vcmask 15360
  %v331 = vsel %vm329, %v319, 0
  %vm333 = vcmask 1041408
  %v335 = vsel %vm333, %v328, 0
  %337 = vmatpush.msra.mxu0 0.0
  %338 = vmatpush.msra.mxu0 0.0
  %339 = vmatpush.msra.mxu0 0.0
  %340 = vmatpush.msra.mxu0 0.0
  %341 = vmatpush.msra.mxu0 0.0
  %342 = vmatpush.msra.mxu0 0.0
  %343 = vmatpush.msra.mxu0 0.0
  %344 = vmatpush.msra.mxu0 0.0
  %345 = vmatpush.msra.mxu0 0.0
  %346 = vmatpush.msra.mxu0 0.0
  %347 = vmatpush.msra.mxu0 0.0
  %348 = vmatpush.msra.mxu0 0.0
  %349 = vmatpush.msra.mxu0 0.0
  %350 = vmatpush.msra.mxu0 0.0
  %351 = vmatpush.msra.mxu0 0.0
  %352 = vmatpush.msra.mxu0 %v335
  %353 = vmatmul.f32.gmra.mxu0 %v331
  %v354 = vpop.f32.mrf.mxu0
  %v355 = vadd.f32 0.0, %v354
  %356 = vdwg.mxu0
  %v358 = vsel %vm234, %v308, 0
  %360 = vmatpush.msra.mxu0 0.0
  %361 = vmatpush.msra.mxu0 0.0
  %362 = vmatpush.msra.mxu0 0.0
  %363 = vmatpush.msra.mxu0 0.0
  %364 = vmatpush.msra.mxu0 0.0
  %365 = vmatpush.msra.mxu0 0.0
  %366 = vmatpush.msra.mxu0 0.0
  %367 = vmatpush.msra.mxu0 0.0
  %368 = vmatpush.msra.mxu0 %v327
  %369 = vmatpush.msra.mxu0 %v326
  %370 = vmatpush.msra.mxu0 %v325
  %371 = vmatpush.msra.mxu0 %v324
  %372 = vmatpush.msra.mxu0 %v323
  %373 = vmatpush.msra.mxu0 %v322
  %374 = vmatpush.msra.mxu0 %v321
  %375 = vmatpush.msra.mxu0 %v320
  %376 = vmatmul.f32.gmra.mxu0 %v358
  %v377 = vpop.f32.mrf.mxu0
  %v378 = vadd.f32 %v355, %v377
  %379 = vdwg.mxu0
  %v380 = vld [vmem:[%s14] sm:$0x1]
  %v382 = vperm.slane %v380, 0
  %v384 = vadd.f32 %v378, %v382
  %v385 = vld [vmem:[%s15] sm:$0x1]
  %v386 = vld [vmem:[%s16] sm:$0x1]
  %v387 = vsel %vm87, %v384, 0.0
  %388 = vadd.xlane.f32.xlu0 %v387
  %v389 = vpop.xlane.xlu0 %388
  %v390 = vmul.f32 %v389, %v97
  %v391 = vsub.f32 %v384, %v390
  %v392 = vmul.f32 %v391, %v391
  %v393 = vsel %vm87, %v392, 0.0
  %394 = vadd.xlane.f32.xlu0 %v393
  %v395 = vpop.xlane.xlu0 %394
  %v396 = vmul.f32 %v395, %v97
  %v397 = vadd.f32 %v396, 1e-05
  %v398 = vrsqrt.pop %v397
  %v399 = vmul.f32 %v398, %v397
  %v400 = vmul.f32 %v399, %v398
  %v401 = vmul.f32 0.5, %v400
  %v402 = vsub.f32 1.5, %v401
  %v403 = vmul.f32 %v398, %v402
  %vm404 = vweird.f32 %v397
  %vm405 = vweird.f32 %v398
  %vm406 = vmor %vm404, %vm405
  %v407 = vsel %vm406, %v398, %v403
  %v408 = vmul.f32 %v391, %v407
  %v410 = vperm.slane %v385, 0
  %v412 = vmul.f32 %v408, %v410
  %v414 = vperm.slane %v386, 0
  %v416 = vadd.f32 %v412, %v414
  %v417 = vmax.f32 %v416, 0.0
  %v418 = vld [vmem:[%s17] sm:$0xff]
  %v419 = vld [vmem:[%s17 + $0x8] sm:$0xff]
  %v420 = vld [vmem:[%s17 + $0x10] sm:$0xff]
  %v421 = vld [vmem:[%s17 + $0x18] sm:$0xff]
  %v422 = vld [vmem:[%s17 + $0x20] sm:$0xff]
  %v423 = vld [vmem:[%s17 + $0x28] sm:$0xff]
  %v424 = vld [vmem:[%s17 + $0x30] sm:$0xff]
  %v425 = vld [vmem:[%s17 + $0x38] sm:$0xff]
  %v426 = vld [vmem:[%s18] sm:$0x1]
  %v428 = vperm.slane %v426, 0
  %v431 = vsel %vm234, %v417, 0
  %433 = vmatpush.msra.mxu0 0.0
  %434 = vmatpush.msra.mxu0 0.0
  %435 = vmatpush.msra.mxu0 0.0
  %436 = vmatpush.msra.mxu0 0.0
  %437 = vmatpush.msra.mxu0 0.0
  %438 = vmatpush.msra.mxu0 0.0
  %439 = vmatpush.msra.mxu0 0.0
  %440 = vmatpush.msra.mxu0 0.0
  %441 = vmatpush.msra.mxu0 %v425
  %442 = vmatpush.msra.mxu0 %v424
  %443 = vmatpush.msra.mxu0 %v423
  %444 = vmatpush.msra.mxu0 %v422
  %445 = vmatpush.msra.mxu0 %v421
  %446 = vmatpush.msra.mxu0 %v420
  %447 = vmatpush.msra.mxu0 %v419
  %448 = vmatpush.msra.mxu0 %v418
  %449 = vmatmul.f32.gmra.mxu0 %v431
  %v450 = vpop.f32.mrf.mxu0
  %v451 = vadd.f32 %v428, %v450
  %452 = vdwg.mxu0
  %v453 = vld [vmem:[%s19] sm:$0x1]
  %v454 = vld [vmem:[%s20] sm:$0x1]
  %v455 = vsel %vm87, %v451, 0.0
  %456 = vadd.xlane.f32.xlu0 %v455
  %v457 = vpop.xlane.xlu0 %456
  %v458 = vmul.f32 %v457, %v97
  %v459 = vsub.f32 %v451, %v458
  %v460 = vmul.f32 %v459, %v459
  %v461 = vsel %vm87, %v460, 0.0
  %462 = vadd.xlane.f32.xlu0 %v461
  %v463 = vpop.xlane.xlu0 %462
  %v464 = vmul.f32 %v463, %v97
  %v465 = vadd.f32 %v464, 1e-05
  %v466 = vrsqrt.pop %v465
  %v467 = vmul.f32 %v466, %v465
  %v468 = vmul.f32 %v467, %v466
  %v469 = vmul.f32 0.5, %v468
  %v470 = vsub.f32 1.5, %v469
  %v471 = vmul.f32 %v466, %v470
  %vm472 = vweird.f32 %v465
  %vm473 = vweird.f32 %v466
  %vm474 = vmor %vm472, %vm473
  %v475 = vsel %vm474, %v466, %v471
  %v476 = vmul.f32 %v459, %v475
  %v478 = vperm.slane %v453, 0
  %v480 = vmul.f32 %v476, %v478
  %v482 = vperm.slane %v454, 0
  %v484 = vadd.f32 %v480, %v482
  %v485 = vmax.f32 %v484, 0.0
  %v486 = vld [vmem:[%s21] sm:$0xff]
  %v487 = vld [vmem:[%s21 + $0x8] sm:$0xff]
  %v488 = vld [vmem:[%s21 + $0x10] sm:$0xff]
  %v489 = vld [vmem:[%s21 + $0x18] sm:$0xff]
  %v490 = vld [vmem:[%s21 + $0x20] sm:$0xff]
  %v491 = vld [vmem:[%s21 + $0x28] sm:$0xff]
  %v492 = vld [vmem:[%s21 + $0x30] sm:$0xff]
  %v493 = vld [vmem:[%s21 + $0x38] sm:$0xff]
  %v494 = vld [vmem:[#allocation2] sm:$0x1]
  %v496 = vperm.slane %v494, 0
  %v499 = vsel %vm234, %v485, 0
  %501 = vmatpush.msra.mxu0 0.0
  %502 = vmatpush.msra.mxu0 0.0
  %503 = vmatpush.msra.mxu0 0.0
  %504 = vmatpush.msra.mxu0 0.0
  %505 = vmatpush.msra.mxu0 0.0
  %506 = vmatpush.msra.mxu0 0.0
  %507 = vmatpush.msra.mxu0 0.0
  %508 = vmatpush.msra.mxu0 0.0
  %509 = vmatpush.msra.mxu0 %v493
  %510 = vmatpush.msra.mxu0 %v492
  %511 = vmatpush.msra.mxu0 %v491
  %512 = vmatpush.msra.mxu0 %v490
  %513 = vmatpush.msra.mxu0 %v489
  %514 = vmatpush.msra.mxu0 %v488
  %515 = vmatpush.msra.mxu0 %v487
  %516 = vmatpush.msra.mxu0 %v486
  %517 = vmatmul.f32.gmra.mxu0 %v499
  %v518 = vpop.f32.mrf.mxu0
  %v519 = vadd.f32 %v496, %v518
  %520 = vdwg.mxu0
  %v521 = vxor.u32 %v519, 2147483648
  %v522 = vmul.f32 %v521, 1.442695
  %v523 = vpow.pop %v522
  %v524 = vadd.f32 %v523, 1.0
  %v525 = vrcp.pop %v524
  %v526 = vmul.f32 %v524, %v525
  %v527 = vsub.f32 1.0, %v526
  %v528 = vmul.f32 %v525, %v527
  %v529 = vadd.f32 %v525, %v528
  %vm530 = vweird.f32 %v524
  %vm531 = vweird.f32 %v525
  %vm532 = vmor %vm530, %vm531
  %v533 = vsel %vm532, %v525, %v529
  %v534 = vand.u32 2147483647, %v524
  %vm535 = vcmp.eq.f32.partialorder %v534, 8.507059e+37
  %v536 = vand.u32 %v524, 2147483648
  %v537 = vor.u32 1.1754944e-38, %v536
  %v538 = vsel %vm535, %v537, %v533
  %v539 = vmul.f32 1.0, %v538
  %vm540 = vcmask 1024
  %541 = vst.msk [vmem:[%s23] sm:$0x3] %vm540, %v539
  // Predicated region
  $region94: #{vit_hugging_forward.3} parent=0 // pred_check
    _
  $region95: #{vit_hugging_forward.3} parent=0 // pred_check_branch
    %543 = sbr.rel (0) target = $region97
  $region96: #{vit_hugging_forward.3} parent=0 // pred_region
    _
  $region97: #{vit_hugging_forward.3} parent=0 // pred_fallthru
    _
  // Predicated region
  $region98: #{vit_hugging_forward.3} parent=0 // pred_check
    _
  $region99: #{vit_hugging_forward.3} parent=0 // pred_check_branch
    %545 = sbr.rel (0) target = $region101
  $region100: #{vit_hugging_forward.3} parent=0 // pred_region
    _
  $region101: #{vit_hugging_forward.3} parent=0 // pred_fallthru
    _

// kernel: vit_hugging_forward.2
$region0: #{vit_hugging_forward.2}
  #allocation0 [shape = 'u32[]', space=smem, size = 0x4, offset = 0x4, fixed_abs, tag = 'smem constant byte address 0x4 - core index']
  #allocation1 [shape = 'u32[72,128]{1,0:T(1,128)}', space=vmem, size = 0x9000, scoped, tag = 'internal scratch']
  #allocation2 [shape = 'f32[17,64]{1,0:T(8,128)}', space=vmem, size = 0x3000, scoped, tag = 'scratch operand']
  %s0 = inlined_call_operand.smem [shape: u32[38], index: -1, kind: input, shape index: {}]
  %s1 = sld [smem:[%s0]]
  %s2 = scalar_lea.smem %s0, 1
  %s3 = sld [smem:[%s2]]
  %s4 = scalar_lea.smem %s0, 2
  %s5 = sld [smem:[%s4]]
  %s6 = scalar_lea.smem %s0, 3
  %s7 = sld [smem:[%s6]]
  %s8 = scalar_lea.smem %s0, 4
  %s9 = sld [smem:[%s8]]
  %s10 = scalar_lea.smem %s0, 5
  %s11 = sld [smem:[%s10]]
  %s12 = scalar_lea.smem %s0, 6
  %s13 = sld [smem:[%s12]]
  %s14 = scalar_lea.smem %s0, 7
  %s15 = sld [smem:[%s14]]
  %s16 = scalar_lea.smem %s0, 8
  %s17 = sld [smem:[%s16]]
  %s18 = scalar_lea.smem %s0, 9
  %s19 = sld [smem:[%s18]]
  %s20 = scalar_lea.smem %s0, 10
  %s21 = sld [smem:[%s20]]
  %s22 = scalar_lea.smem %s0, 11
  %s23 = sld [smem:[%s22]]
  %s24 = scalar_lea.smem %s0, 12
  %s25 = sld [smem:[%s24]]
  %s26 = scalar_lea.smem %s0, 13
  %s27 = sld [smem:[%s26]]
  %s28 = scalar_lea.smem %s0, 14
  %s29 = sld [smem:[%s28]]
  %s30 = scalar_lea.smem %s0, 15
  %s31 = sld [smem:[%s30]]
  %s32 = scalar_lea.smem %s0, 16
  %s33 = sld [smem:[%s32]]
  %s34 = scalar_lea.smem %s0, 17
  %s35 = sld [smem:[%s34]]
  %s36 = scalar_lea.smem %s0, 18
  %s37 = sld [smem:[%s36]]
  %s38 = scalar_lea.smem %s0, 19
  %s39 = sld [smem:[%s38]]
  %s40 = scalar_lea.smem %s0, 20
  %s41 = sld [smem:[%s40]]
  %s42 = scalar_lea.smem %s0, 21
  %s43 = sld [smem:[%s42]]
  %s44 = scalar_lea.smem %s0, 22
  %s45 = sld [smem:[%s44]]
  %s46 = scalar_lea.smem %s0, 23
  %s47 = sld [smem:[%s46]]
  %s48 = scalar_lea.smem %s0, 24
  %s49 = sld [smem:[%s48]]
  %s50 = scalar_lea.smem %s0, 25
  %s51 = sld [smem:[%s50]]
  %s52 = scalar_lea.smem %s0, 26
  %s53 = sld [smem:[%s52]]
  %s54 = scalar_lea.smem %s0, 27
  %s55 = sld [smem:[%s54]]
  %s56 = scalar_lea.smem %s0, 28
  %s57 = sld [smem:[%s56]]
  %s58 = scalar_lea.smem %s0, 29
  %s59 = sld [smem:[%s58]]
  %s60 = scalar_lea.smem %s0, 30
  %s61 = sld [smem:[%s60]]
  %s62 = scalar_lea.smem %s0, 31
  %s63 = sld [smem:[%s62]]
  %s64 = scalar_lea.smem %s0, 32
  %s65 = sld [smem:[%s64]]
  %s66 = scalar_lea.smem %s0, 33
  %s67 = sld [smem:[%s66]]
  %s68 = scalar_lea.smem %s0, 34
  %s69 = sld [smem:[%s68]]
  %s70 = scalar_lea.smem %s0, 35
  %s71 = sld [smem:[%s70]]
  %s72 = scalar_lea.smem %s0, 36
  %s73 = sld [smem:[%s72]]
  %s74 = scalar_lea.smem %s0, 37
  %s75 = sld [smem:[%s74]]
  %s76 = sld [smem:[#allocation0]]
  $region181: #{vit_hugging_forward.2} parent=0
    _
  %s78 = ssub.s32 1, %s76
  %s79 = scalar_select 0, %s78, %s76
  loop: start=0, step=1, limit=4
  $region2: #{vit_hugging_forward.2} parent=0 // loop_pre_header
    _
  $region3: #{vit_hugging_forward.2} parent=0 // loop_header
    %s81 = sphi 0, %s85
    %p82 = scmp.ge.s32.totalorder %s81, 4
    %s91 = sphi 0, %s93
    %s94 = sphi 0, %s91
    %s95 = sphi 0, %s94
    %s111 = sphi 0, %s95
    %s115 = sphi 0, %s115
    %s117 = sphi 0, %s115
    %s118 = sphi 0, %s117
    %s132 = sphi 0, %s118
    %s136 = sphi 0, %s136
    %s138 = sphi 0, %s136
    %s139 = sphi 0, %s138
    %s153 = sphi 0, %s139
    %s157 = sphi 0, %s157
    %s159 = sphi 0, %s157
    %s160 = sphi 0, %s159
    %s174 = sphi 0, %s160
    %s178 = sphi 0, %s178
    %s180 = sphi 0, %s178
    %s181 = sphi 0, %s180
    %s195 = sphi 0, %s181
    %s199 = sphi 0, %s199
    %s201 = sphi 0, %s199
    %s202 = sphi 0, %s201
    %s216 = sphi 0, %s202
    %s220 = sphi 0, %s220
    %s222 = sphi 0, %s220
    %s223 = sphi 0, %s222
    %s237 = sphi 0, %s223
    %s241 = sphi 0, %s241
    %s243 = sphi 0, %s241
    %s244 = sphi 0, %s243
    %s258 = sphi 0, %s244
    %s262 = sphi 0, %s262
    %s264 = sphi 0, %s262
    %s265 = sphi 0, %s264
    %s279 = sphi 0, %s265
    %s283 = sphi 0, %s283
    %s285 = sphi 0, %s283
    %s286 = sphi 0, %s285
    %s300 = sphi 0, %s286
    %s304 = sphi 0, %s304
    %s306 = sphi 0, %s304
    %s307 = sphi 0, %s306
    %s321 = sphi 0, %s307
    %s325 = sphi 0, %s325
    %s327 = sphi 0, %s325
    %s328 = sphi 0, %s327
    %s342 = sphi 0, %s328
    %s346 = sphi 0, %s346
    %s348 = sphi 0, %s346
    %s349 = sphi 0, %s348
    %s363 = sphi 0, %s349
    %s367 = sphi 0, %s367
    %s369 = sphi 0, %s367
    %s370 = sphi 0, %s369
    %s384 = sphi 0, %s370
    %s388 = sphi 0, %s388
    %s390 = sphi 0, %s388
    %s391 = sphi 0, %s390
    %s405 = sphi 0, %s391
    %s409 = sphi 0, %s409
    %s411 = sphi 0, %s409
    %s412 = sphi 0, %s411
    %s426 = sphi 0, %s412
    %s430 = sphi 0, %s430
    %s432 = sphi 0, %s430
    %s433 = sphi 0, %s432
    %s447 = sphi 0, %s433
    %s451 = sphi 0, %s451
    %s453 = sphi 0, %s451
    %s454 = sphi 0, %s453
    %s468 = sphi 0, %s454
    %s472 = sphi 0, %s472
    %s474 = sphi 0, %s472
    %s475 = sphi 0, %s474
    %s489 = sphi 0, %s475
    %s493 = sphi 0, %s493
    %s495 = sphi 0, %s493
    %s496 = sphi 0, %s495
    %s510 = sphi 0, %s496
    %s514 = sphi 0, %s514
    %s516 = sphi 0, %s514
    %s517 = sphi 0, %s516
    %s531 = sphi 0, %s517
    %s535 = sphi 0, %s535
    %s537 = sphi 0, %s535
    %s538 = sphi 0, %s537
    %s552 = sphi 0, %s538
    %s556 = sphi 0, %s556
    %s558 = sphi 0, %s556
    %s559 = sphi 0, %s558
    %s573 = sphi 0, %s559
    %s577 = sphi 0, %s577
    %s579 = sphi 0, %s577
    %s580 = sphi 0, %s579
    %s594 = sphi 0, %s580
    %s598 = sphi 0, %s598
    %s600 = sphi 0, %s598
    %s601 = sphi 0, %s600
    %s615 = sphi 0, %s601
    %s619 = sphi 0, %s619
    %s621 = sphi 0, %s619
    %s622 = sphi 0, %s621
    %s636 = sphi 0, %s622
    %s640 = sphi 0, %s640
    %s642 = sphi 0, %s640
    %s643 = sphi 0, %s642
    %s657 = sphi 0, %s643
    %s661 = sphi 0, %s661
    %s663 = sphi 0, %s661
    %s664 = sphi 0, %s663
    %s678 = sphi 0, %s664
    %s682 = sphi 0, %s682
    %s684 = sphi 0, %s682
    %s685 = sphi 0, %s684
    %s699 = sphi 0, %s685
    %s703 = sphi 0, %s703
    %s705 = sphi 0, %s703
    %s706 = sphi 0, %s705
    %s720 = sphi 0, %s706
    %s724 = sphi 0, %s724
    %s726 = sphi 0, %s724
    %s727 = sphi 0, %s726
    %s741 = sphi 0, %s727
    %s745 = sphi 0, %s745
    %s747 = sphi 0, %s745
    %s748 = sphi 0, %s747
    %s762 = sphi 0, %s748
    %s766 = sphi 0, %s766
    %s768 = sphi 0, %s766
    %s769 = sphi 0, %s768
    %s783 = sphi 0, %s769
    %s787 = sphi 0, %s787
    %s789 = sphi 0, %s787
    %s790 = sphi 0, %s789
    %s804 = sphi 0, %s790
    %s808 = sphi 0, %s808
    %s810 = sphi 0, %s808
    %s811 = sphi 0, %s810
    %s825 = sphi 0, %s811
    %s829 = sphi 0, %s829
    %s831 = sphi 0, %s829
    %s832 = sphi 0, %s831
    %s846 = sphi 0, %s832
    %s850 = sphi 0, %s850
    %s852 = sphi 0, %s850
    %s853 = sphi 0, %s852
    %s867 = sphi 0, %s853
    %s873 = sphi 0, %s875
    %s876 = sphi 0, %s873
    %s877 = sphi 0, %s876
    %s893 = sphi 0, %s877
  $region4: #{vit_hugging_forward.2} parent=0 // loop_header_branch
    %84 = sbr.rel (%p82) target = $region8
  $region5: #{vit_hugging_forward.2} parent=0 // loop_body
    %s86 = ssub.s32 %s81, 1
    %s87 = ssub.s32 %s81, 2
    %s88 = sadd.s32 %s81, 1
    %s89 = ssub.s32 %s81, %s88
    %p90 = scmp.eq.s32.totalorder %s89, 0
    %s92 = sadd.s32 %s91, 1
    %s93 = scalar_select %p90, %s91, %s92
    %p96 = pneg %p90
    %p97 = scmp.eq.s32.totalorder %s81, 1
    %p98 = por %p96, %p97
    %p99 = scmp.ne.s32.totalorder %s91, %s94
    %p100 = scmp.eq.s32.totalorder %s81, 0
    %p101 = por %p99, %p100
    %p102 = scmp.ne.s32.totalorder %s91, %s94
    %p103 = scmp.eq.s32.totalorder %s86, 1
    %p104 = por %p102, %p103
    %p105 = scmp.ne.s32.totalorder %s94, %s95
    %p106 = scmp.eq.s32.totalorder %s86, 0
    %p107 = por %p105, %p106
    %p108 = scmp.ne.s32.totalorder %s94, %s95
    %p109 = scmp.eq.s32.totalorder %s87, 1
    %p110 = por %p108, %p109
    %p112 = scmp.ne.s32.totalorder %s95, %s111
    %p113 = scmp.eq.s32.totalorder %s87, 0
    %p114 = por %p112, %p113
    %s116 = sadd.s32 %s115, 1
    %p119 = scmp.eq.s32.totalorder %s81, 1
    %p120 = scmp.ne.s32.totalorder %s115, %s117
    %p121 = scmp.eq.s32.totalorder %s81, 0
    %p122 = por %p120, %p121
    %p123 = scmp.ne.s32.totalorder %s115, %s117
    %p124 = scmp.eq.s32.totalorder %s86, 1
    %p125 = por %p123, %p124
    %p126 = scmp.ne.s32.totalorder %s117, %s118
    %p127 = scmp.eq.s32.totalorder %s86, 0
    %p128 = por %p126, %p127
    %p129 = scmp.ne.s32.totalorder %s117, %s118
    %p130 = scmp.eq.s32.totalorder %s87, 1
    %p131 = por %p129, %p130
    %p133 = scmp.ne.s32.totalorder %s118, %s132
    %p134 = scmp.eq.s32.totalorder %s87, 0
    %p135 = por %p133, %p134
    %s137 = sadd.s32 %s136, 1
    %p140 = scmp.eq.s32.totalorder %s81, 1
    %p141 = scmp.ne.s32.totalorder %s136, %s138
    %p142 = scmp.eq.s32.totalorder %s81, 0
    %p143 = por %p141, %p142
    %p144 = scmp.ne.s32.totalorder %s136, %s138
    %p145 = scmp.eq.s32.totalorder %s86, 1
    %p146 = por %p144, %p145
    %p147 = scmp.ne.s32.totalorder %s138, %s139
    %p148 = scmp.eq.s32.totalorder %s86, 0
    %p149 = por %p147, %p148
    %p150 = scmp.ne.s32.totalorder %s138, %s139
    %p151 = scmp.eq.s32.totalorder %s87, 1
    %p152 = por %p150, %p151
    %p154 = scmp.ne.s32.totalorder %s139, %s153
    %p155 = scmp.eq.s32.totalorder %s87, 0
    %p156 = por %p154, %p155
    %s158 = sadd.s32 %s157, 1
    %p161 = scmp.eq.s32.totalorder %s81, 1
    %p162 = scmp.ne.s32.totalorder %s157, %s159
    %p163 = scmp.eq.s32.totalorder %s81, 0
    %p164 = por %p162, %p163
    %p165 = scmp.ne.s32.totalorder %s157, %s159
    %p166 = scmp.eq.s32.totalorder %s86, 1
    %p167 = por %p165, %p166
    %p168 = scmp.ne.s32.totalorder %s159, %s160
    %p169 = scmp.eq.s32.totalorder %s86, 0
    %p170 = por %p168, %p169
    %p171 = scmp.ne.s32.totalorder %s159, %s160
    %p172 = scmp.eq.s32.totalorder %s87, 1
    %p173 = por %p171, %p172
    %p175 = scmp.ne.s32.totalorder %s160, %s174
    %p176 = scmp.eq.s32.totalorder %s87, 0
    %p177 = por %p175, %p176
    %s179 = sadd.s32 %s178, 1
    %p182 = scmp.eq.s32.totalorder %s81, 1
    %p183 = scmp.ne.s32.totalorder %s178, %s180
    %p184 = scmp.eq.s32.totalorder %s81, 0
    %p185 = por %p183, %p184
    %p186 = scmp.ne.s32.totalorder %s178, %s180
    %p187 = scmp.eq.s32.totalorder %s86, 1
    %p188 = por %p186, %p187
    %p189 = scmp.ne.s32.totalorder %s180, %s181
    %p190 = scmp.eq.s32.totalorder %s86, 0
    %p191 = por %p189, %p190
    %p192 = scmp.ne.s32.totalorder %s180, %s181
    %p193 = scmp.eq.s32.totalorder %s87, 1
    %p194 = por %p192, %p193
    %p196 = scmp.ne.s32.totalorder %s181, %s195
    %p197 = scmp.eq.s32.totalorder %s87, 0
    %p198 = por %p196, %p197
    %s200 = sadd.s32 %s199, 1
    %p203 = scmp.eq.s32.totalorder %s81, 1
    %p204 = scmp.ne.s32.totalorder %s199, %s201
    %p205 = scmp.eq.s32.totalorder %s81, 0
    %p206 = por %p204, %p205
    %p207 = scmp.ne.s32.totalorder %s199, %s201
    %p208 = scmp.eq.s32.totalorder %s86, 1
    %p209 = por %p207, %p208
    %p210 = scmp.ne.s32.totalorder %s201, %s202
    %p211 = scmp.eq.s32.totalorder %s86, 0
    %p212 = por %p210, %p211
    %p213 = scmp.ne.s32.totalorder %s201, %s202
    %p214 = scmp.eq.s32.totalorder %s87, 1
    %p215 = por %p213, %p214
    %p217 = scmp.ne.s32.totalorder %s202, %s216
    %p218 = scmp.eq.s32.totalorder %s87, 0
    %p219 = por %p217, %p218
    %s221 = sadd.s32 %s220, 1
    %p224 = scmp.eq.s32.totalorder %s81, 1
    %p225 = scmp.ne.s32.totalorder %s220, %s222
    %p226 = scmp.eq.s32.totalorder %s81, 0
    %p227 = por %p225, %p226
    %p228 = scmp.ne.s32.totalorder %s220, %s222
    %p229 = scmp.eq.s32.totalorder %s86, 1
    %p230 = por %p228, %p229
    %p231 = scmp.ne.s32.totalorder %s222, %s223
    %p232 = scmp.eq.s32.totalorder %s86, 0
    %p233 = por %p231, %p232
    %p234 = scmp.ne.s32.totalorder %s222, %s223
    %p235 = scmp.eq.s32.totalorder %s87, 1
    %p236 = por %p234, %p235
    %p238 = scmp.ne.s32.totalorder %s223, %s237
    %p239 = scmp.eq.s32.totalorder %s87, 0
    %p240 = por %p238, %p239
    %s242 = sadd.s32 %s241, 1
    %p245 = scmp.eq.s32.totalorder %s81, 1
    %p246 = scmp.ne.s32.totalorder %s241, %s243
    %p247 = scmp.eq.s32.totalorder %s81, 0
    %p248 = por %p246, %p247
    %p249 = scmp.ne.s32.totalorder %s241, %s243
    %p250 = scmp.eq.s32.totalorder %s86, 1
    %p251 = por %p249, %p250
    %p252 = scmp.ne.s32.totalorder %s243, %s244
    %p253 = scmp.eq.s32.totalorder %s86, 0
    %p254 = por %p252, %p253
    %p255 = scmp.ne.s32.totalorder %s243, %s244
    %p256 = scmp.eq.s32.totalorder %s87, 1
    %p257 = por %p255, %p256
    %p259 = scmp.ne.s32.totalorder %s244, %s258
    %p260 = scmp.eq.s32.totalorder %s87, 0
    %p261 = por %p259, %p260
    %s263 = sadd.s32 %s262, 1
    %p266 = scmp.eq.s32.totalorder %s81, 1
    %p267 = scmp.ne.s32.totalorder %s262, %s264
    %p268 = scmp.eq.s32.totalorder %s81, 0
    %p269 = por %p267, %p268
    %p270 = scmp.ne.s32.totalorder %s262, %s264
    %p271 = scmp.eq.s32.totalorder %s86, 1
    %p272 = por %p270, %p271
    %p273 = scmp.ne.s32.totalorder %s264, %s265
    %p274 = scmp.eq.s32.totalorder %s86, 0
    %p275 = por %p273, %p274
    %p276 = scmp.ne.s32.totalorder %s264, %s265
    %p277 = scmp.eq.s32.totalorder %s87, 1
    %p278 = por %p276, %p277
    %p280 = scmp.ne.s32.totalorder %s265, %s279
    %p281 = scmp.eq.s32.totalorder %s87, 0
    %p282 = por %p280, %p281
    %s284 = sadd.s32 %s283, 1
    %p287 = scmp.eq.s32.totalorder %s81, 1
    %p288 = scmp.ne.s32.totalorder %s283, %s285
    %p289 = scmp.eq.s32.totalorder %s81, 0
    %p290 = por %p288, %p289
    %p291 = scmp.ne.s32.totalorder %s283, %s285
    %p292 = scmp.eq.s32.totalorder %s86, 1
    %p293 = por %p291, %p292
    %p294 = scmp.ne.s32.totalorder %s285, %s286
    %p295 = scmp.eq.s32.totalorder %s86, 0
    %p296 = por %p294, %p295
    %p297 = scmp.ne.s32.totalorder %s285, %s286
    %p298 = scmp.eq.s32.totalorder %s87, 1
    %p299 = por %p297, %p298
    %p301 = scmp.ne.s32.totalorder %s286, %s300
    %p302 = scmp.eq.s32.totalorder %s87, 0
    %p303 = por %p301, %p302
    %s305 = sadd.s32 %s304, 1
    %p308 = scmp.eq.s32.totalorder %s81, 1
    %p309 = scmp.ne.s32.totalorder %s304, %s306
    %p310 = scmp.eq.s32.totalorder %s81, 0
    %p311 = por %p309, %p310
    %p312 = scmp.ne.s32.totalorder %s304, %s306
    %p313 = scmp.eq.s32.totalorder %s86, 1
    %p314 = por %p312, %p313
    %p315 = scmp.ne.s32.totalorder %s306, %s307
    %p316 = scmp.eq.s32.totalorder %s86, 0
    %p317 = por %p315, %p316
    %p318 = scmp.ne.s32.totalorder %s306, %s307
    %p319 = scmp.eq.s32.totalorder %s87, 1
    %p320 = por %p318, %p319
    %p322 = scmp.ne.s32.totalorder %s307, %s321
    %p323 = scmp.eq.s32.totalorder %s87, 0
    %p324 = por %p322, %p323
    %s326 = sadd.s32 %s325, 1
    %p329 = scmp.eq.s32.totalorder %s81, 1
    %p330 = scmp.ne.s32.totalorder %s325, %s327
    %p331 = scmp.eq.s32.totalorder %s81, 0
    %p332 = por %p330, %p331
    %p333 = scmp.ne.s32.totalorder %s325, %s327
    %p334 = scmp.eq.s32.totalorder %s86, 1
    %p335 = por %p333, %p334
    %p336 = scmp.ne.s32.totalorder %s327, %s328
    %p337 = scmp.eq.s32.totalorder %s86, 0
    %p338 = por %p336, %p337
    %p339 = scmp.ne.s32.totalorder %s327, %s328
    %p340 = scmp.eq.s32.totalorder %s87, 1
    %p341 = por %p339, %p340
    %p343 = scmp.ne.s32.totalorder %s328, %s342
    %p344 = scmp.eq.s32.totalorder %s87, 0
    %p345 = por %p343, %p344
    %s347 = sadd.s32 %s346, 1
    %p350 = scmp.eq.s32.totalorder %s81, 1
    %p351 = scmp.ne.s32.totalorder %s346, %s348
    %p352 = scmp.eq.s32.totalorder %s81, 0
    %p353 = por %p351, %p352
    %p354 = scmp.ne.s32.totalorder %s346, %s348
    %p355 = scmp.eq.s32.totalorder %s86, 1
    %p356 = por %p354, %p355
    %p357 = scmp.ne.s32.totalorder %s348, %s349
    %p358 = scmp.eq.s32.totalorder %s86, 0
    %p359 = por %p357, %p358
    %p360 = scmp.ne.s32.totalorder %s348, %s349
    %p361 = scmp.eq.s32.totalorder %s87, 1
    %p362 = por %p360, %p361
    %p364 = scmp.ne.s32.totalorder %s349, %s363
    %p365 = scmp.eq.s32.totalorder %s87, 0
    %p366 = por %p364, %p365
    %s368 = sadd.s32 %s367, 1
    %p371 = scmp.eq.s32.totalorder %s81, 1
    %p372 = scmp.ne.s32.totalorder %s367, %s369
    %p373 = scmp.eq.s32.totalorder %s81, 0
    %p374 = por %p372, %p373
    %p375 = scmp.ne.s32.totalorder %s367, %s369
    %p376 = scmp.eq.s32.totalorder %s86, 1
    %p377 = por %p375, %p376
    %p378 = scmp.ne.s32.totalorder %s369, %s370
    %p379 = scmp.eq.s32.totalorder %s86, 0
    %p380 = por %p378, %p379
    %p381 = scmp.ne.s32.totalorder %s369, %s370
    %p382 = scmp.eq.s32.totalorder %s87, 1
    %p383 = por %p381, %p382
    %p385 = scmp.ne.s32.totalorder %s370, %s384
    %p386 = scmp.eq.s32.totalorder %s87, 0
    %p387 = por %p385, %p386
    %s389 = sadd.s32 %s388, 1
    %p392 = scmp.eq.s32.totalorder %s81, 1
    %p393 = scmp.ne.s32.totalorder %s388, %s390
    %p394 = scmp.eq.s32.totalorder %s81, 0
    %p395 = por %p393, %p394
    %p396 = scmp.ne.s32.totalorder %s388, %s390
    %p397 = scmp.eq.s32.totalorder %s86, 1
    %p398 = por %p396, %p397
    %p399 = scmp.ne.s32.totalorder %s390, %s391
    %p400 = scmp.eq.s32.totalorder %s86, 0
    %p401 = por %p399, %p400
    %p402 = scmp.ne.s32.totalorder %s390, %s391
    %p403 = scmp.eq.s32.totalorder %s87, 1
    %p404 = por %p402, %p403
    %p406 = scmp.ne.s32.totalorder %s391, %s405
    %p407 = scmp.eq.s32.totalorder %s87, 0
    %p408 = por %p406, %p407
    %s410 = sadd.s32 %s409, 1
    %p413 = scmp.eq.s32.totalorder %s81, 1
    %p414 = scmp.ne.s32.totalorder %s409, %s411
    %p415 = scmp.eq.s32.totalorder %s81, 0
    %p416 = por %p414, %p415
    %p417 = scmp.ne.s32.totalorder %s409, %s411
    %p418 = scmp.eq.s32.totalorder %s86, 1
    %p419 = por %p417, %p418
    %p420 = scmp.ne.s32.totalorder %s411, %s412
    %p421 = scmp.eq.s32.totalorder %s86, 0
    %p422 = por %p420, %p421
    %p423 = scmp.ne.s32.totalorder %s411, %s412
    %p424 = scmp.eq.s32.totalorder %s87, 1
    %p425 = por %p423, %p424
    %p427 = scmp.ne.s32.totalorder %s412, %s426
    %p428 = scmp.eq.s32.totalorder %s87, 0
    %p429 = por %p427, %p428
    %s431 = sadd.s32 %s430, 1
    %p434 = scmp.eq.s32.totalorder %s81, 1
    %p435 = scmp.ne.s32.totalorder %s430, %s432
    %p436 = scmp.eq.s32.totalorder %s81, 0
    %p437 = por %p435, %p436
    %p438 = scmp.ne.s32.totalorder %s430, %s432
    %p439 = scmp.eq.s32.totalorder %s86, 1
    %p440 = por %p438, %p439
    %p441 = scmp.ne.s32.totalorder %s432, %s433
    %p442 = scmp.eq.s32.totalorder %s86, 0
    %p443 = por %p441, %p442
    %p444 = scmp.ne.s32.totalorder %s432, %s433
    %p445 = scmp.eq.s32.totalorder %s87, 1
    %p446 = por %p444, %p445
    %p448 = scmp.ne.s32.totalorder %s433, %s447
    %p449 = scmp.eq.s32.totalorder %s87, 0
    %p450 = por %p448, %p449
    %s452 = sadd.s32 %s451, 1
    %p455 = scmp.eq.s32.totalorder %s81, 1
    %p456 = scmp.ne.s32.totalorder %s451, %s453
    %p457 = scmp.eq.s32.totalorder %s81, 0
    %p458 = por %p456, %p457
    %p459 = scmp.ne.s32.totalorder %s451, %s453
    %p460 = scmp.eq.s32.totalorder %s86, 1
    %p461 = por %p459, %p460
    %p462 = scmp.ne.s32.totalorder %s453, %s454
    %p463 = scmp.eq.s32.totalorder %s86, 0
    %p464 = por %p462, %p463
    %p465 = scmp.ne.s32.totalorder %s453, %s454
    %p466 = scmp.eq.s32.totalorder %s87, 1
    %p467 = por %p465, %p466
    %p469 = scmp.ne.s32.totalorder %s454, %s468
    %p470 = scmp.eq.s32.totalorder %s87, 0
    %p471 = por %p469, %p470
    %s473 = sadd.s32 %s472, 1
    %p476 = scmp.eq.s32.totalorder %s81, 1
    %p477 = scmp.ne.s32.totalorder %s472, %s474
    %p478 = scmp.eq.s32.totalorder %s81, 0
    %p479 = por %p477, %p478
    %p480 = scmp.ne.s32.totalorder %s472, %s474
    %p481 = scmp.eq.s32.totalorder %s86, 1
    %p482 = por %p480, %p481
    %p483 = scmp.ne.s32.totalorder %s474, %s475
    %p484 = scmp.eq.s32.totalorder %s86, 0
    %p485 = por %p483, %p484
    %p486 = scmp.ne.s32.totalorder %s474, %s475
    %p487 = scmp.eq.s32.totalorder %s87, 1
    %p488 = por %p486, %p487
    %p490 = scmp.ne.s32.totalorder %s475, %s489
    %p491 = scmp.eq.s32.totalorder %s87, 0
    %p492 = por %p490, %p491
    %s494 = sadd.s32 %s493, 1
    %p497 = scmp.eq.s32.totalorder %s81, 1
    %p498 = scmp.ne.s32.totalorder %s493, %s495
    %p499 = scmp.eq.s32.totalorder %s81, 0
    %p500 = por %p498, %p499
    %p501 = scmp.ne.s32.totalorder %s493, %s495
    %p502 = scmp.eq.s32.totalorder %s86, 1
    %p503 = por %p501, %p502
    %p504 = scmp.ne.s32.totalorder %s495, %s496
    %p505 = scmp.eq.s32.totalorder %s86, 0
    %p506 = por %p504, %p505
    %p507 = scmp.ne.s32.totalorder %s495, %s496
    %p508 = scmp.eq.s32.totalorder %s87, 1
    %p509 = por %p507, %p508
    %p511 = scmp.ne.s32.totalorder %s496, %s510
    %p512 = scmp.eq.s32.totalorder %s87, 0
    %p513 = por %p511, %p512
    %s515 = sadd.s32 %s514, 1
    %p518 = scmp.eq.s32.totalorder %s81, 1
    %p519 = scmp.ne.s32.totalorder %s514, %s516
    %p520 = scmp.eq.s32.totalorder %s81, 0
    %p521 = por %p519, %p520
    %p522 = scmp.ne.s32.totalorder %s514, %s516
    %p523 = scmp.eq.s32.totalorder %s86, 1
    %p524 = por %p522, %p523
    %p525 = scmp.ne.s32.totalorder %s516, %s517
    %p526 = scmp.eq.s32.totalorder %s86, 0
    %p527 = por %p525, %p526
    %p528 = scmp.ne.s32.totalorder %s516, %s517
    %p529 = scmp.eq.s32.totalorder %s87, 1
    %p530 = por %p528, %p529
    %p532 = scmp.ne.s32.totalorder %s517, %s531
    %p533 = scmp.eq.s32.totalorder %s87, 0
    %p534 = por %p532, %p533
    %s536 = sadd.s32 %s535, 1
    %p539 = scmp.eq.s32.totalorder %s81, 1
    %p540 = scmp.ne.s32.totalorder %s535, %s537
    %p541 = scmp.eq.s32.totalorder %s81, 0
    %p542 = por %p540, %p541
    %p543 = scmp.ne.s32.totalorder %s535, %s537
    %p544 = scmp.eq.s32.totalorder %s86, 1
    %p545 = por %p543, %p544
    %p546 = scmp.ne.s32.totalorder %s537, %s538
    %p547 = scmp.eq.s32.totalorder %s86, 0
    %p548 = por %p546, %p547
    %p549 = scmp.ne.s32.totalorder %s537, %s538
    %p550 = scmp.eq.s32.totalorder %s87, 1
    %p551 = por %p549, %p550
    %p553 = scmp.ne.s32.totalorder %s538, %s552
    %p554 = scmp.eq.s32.totalorder %s87, 0
    %p555 = por %p553, %p554
    %s557 = sadd.s32 %s556, 1
    %p560 = scmp.eq.s32.totalorder %s81, 1
    %p561 = scmp.ne.s32.totalorder %s556, %s558
    %p562 = scmp.eq.s32.totalorder %s81, 0
    %p563 = por %p561, %p562
    %p564 = scmp.ne.s32.totalorder %s556, %s558
    %p565 = scmp.eq.s32.totalorder %s86, 1
    %p566 = por %p564, %p565
    %p567 = scmp.ne.s32.totalorder %s558, %s559
    %p568 = scmp.eq.s32.totalorder %s86, 0
    %p569 = por %p567, %p568
    %p570 = scmp.ne.s32.totalorder %s558, %s559
    %p571 = scmp.eq.s32.totalorder %s87, 1
    %p572 = por %p570, %p571
    %p574 = scmp.ne.s32.totalorder %s559, %s573
    %p575 = scmp.eq.s32.totalorder %s87, 0
    %p576 = por %p574, %p575
    %s578 = sadd.s32 %s577, 1
    %p581 = scmp.eq.s32.totalorder %s81, 1
    %p582 = scmp.ne.s32.totalorder %s577, %s579
    %p583 = scmp.eq.s32.totalorder %s81, 0
    %p584 = por %p582, %p583
    %p585 = scmp.ne.s32.totalorder %s577, %s579
    %p586 = scmp.eq.s32.totalorder %s86, 1
    %p587 = por %p585, %p586
    %p588 = scmp.ne.s32.totalorder %s579, %s580
    %p589 = scmp.eq.s32.totalorder %s86, 0
    %p590 = por %p588, %p589
    %p591 = scmp.ne.s32.totalorder %s579, %s580
    %p592 = scmp.eq.s32.totalorder %s87, 1
    %p593 = por %p591, %p592
    %p595 = scmp.ne.s32.totalorder %s580, %s594
    %p596 = scmp.eq.s32.totalorder %s87, 0
    %p597 = por %p595, %p596
    %s599 = sadd.s32 %s598, 1
    %p602 = scmp.eq.s32.totalorder %s81, 1
    %p603 = scmp.ne.s32.totalorder %s598, %s600
    %p604 = scmp.eq.s32.totalorder %s81, 0
    %p605 = por %p603, %p604
    %p606 = scmp.ne.s32.totalorder %s598, %s600
    %p607 = scmp.eq.s32.totalorder %s86, 1
    %p608 = por %p606, %p607
    %p609 = scmp.ne.s32.totalorder %s600, %s601
    %p610 = scmp.eq.s32.totalorder %s86, 0
    %p611 = por %p609, %p610
    %p612 = scmp.ne.s32.totalorder %s600, %s601
    %p613 = scmp.eq.s32.totalorder %s87, 1
    %p614 = por %p612, %p613
    %p616 = scmp.ne.s32.totalorder %s601, %s615
    %p617 = scmp.eq.s32.totalorder %s87, 0
    %p618 = por %p616, %p617
    %s620 = sadd.s32 %s619, 1
    %p623 = scmp.eq.s32.totalorder %s81, 1
    %p624 = scmp.ne.s32.totalorder %s619, %s621
    %p625 = scmp.eq.s32.totalorder %s81, 0
    %p626 = por %p624, %p625
    %p627 = scmp.ne.s32.totalorder %s619, %s621
    %p628 = scmp.eq.s32.totalorder %s86, 1
    %p629 = por %p627, %p628
    %p630 = scmp.ne.s32.totalorder %s621, %s622
    %p631 = scmp.eq.s32.totalorder %s86, 0
    %p632 = por %p630, %p631
    %p633 = scmp.ne.s32.totalorder %s621, %s622
    %p634 = scmp.eq.s32.totalorder %s87, 1
    %p635 = por %p633, %p634
    %p637 = scmp.ne.s32.totalorder %s622, %s636
    %p638 = scmp.eq.s32.totalorder %s87, 0
    %p639 = por %p637, %p638
    %s641 = sadd.s32 %s640, 1
    %p644 = scmp.eq.s32.totalorder %s81, 1
    %p645 = scmp.ne.s32.totalorder %s640, %s642
    %p646 = scmp.eq.s32.totalorder %s81, 0
    %p647 = por %p645, %p646
    %p648 = scmp.ne.s32.totalorder %s640, %s642
    %p649 = scmp.eq.s32.totalorder %s86, 1
    %p650 = por %p648, %p649
    %p651 = scmp.ne.s32.totalorder %s642, %s643
    %p652 = scmp.eq.s32.totalorder %s86, 0
    %p653 = por %p651, %p652
    %p654 = scmp.ne.s32.totalorder %s642, %s643
    %p655 = scmp.eq.s32.totalorder %s87, 1
    %p656 = por %p654, %p655
    %p658 = scmp.ne.s32.totalorder %s643, %s657
    %p659 = scmp.eq.s32.totalorder %s87, 0
    %p660 = por %p658, %p659
    %s662 = sadd.s32 %s661, 1
    %p665 = scmp.eq.s32.totalorder %s81, 1
    %p666 = scmp.ne.s32.totalorder %s661, %s663
    %p667 = scmp.eq.s32.totalorder %s81, 0
    %p668 = por %p666, %p667
    %p669 = scmp.ne.s32.totalorder %s661, %s663
    %p670 = scmp.eq.s32.totalorder %s86, 1
    %p671 = por %p669, %p670
    %p672 = scmp.ne.s32.totalorder %s663, %s664
    %p673 = scmp.eq.s32.totalorder %s86, 0
    %p674 = por %p672, %p673
    %p675 = scmp.ne.s32.totalorder %s663, %s664
    %p676 = scmp.eq.s32.totalorder %s87, 1
    %p677 = por %p675, %p676
    %p679 = scmp.ne.s32.totalorder %s664, %s678
    %p680 = scmp.eq.s32.totalorder %s87, 0
    %p681 = por %p679, %p680
    %s683 = sadd.s32 %s682, 1
    %p686 = scmp.eq.s32.totalorder %s81, 1
    %p687 = scmp.ne.s32.totalorder %s682, %s684
    %p688 = scmp.eq.s32.totalorder %s81, 0
    %p689 = por %p687, %p688
    %p690 = scmp.ne.s32.totalorder %s682, %s684
    %p691 = scmp.eq.s32.totalorder %s86, 1
    %p692 = por %p690, %p691
    %p693 = scmp.ne.s32.totalorder %s684, %s685
    %p694 = scmp.eq.s32.totalorder %s86, 0
    %p695 = por %p693, %p694
    %p696 = scmp.ne.s32.totalorder %s684, %s685
    %p697 = scmp.eq.s32.totalorder %s87, 1
    %p698 = por %p696, %p697
    %p700 = scmp.ne.s32.totalorder %s685, %s699
    %p701 = scmp.eq.s32.totalorder %s87, 0
    %p702 = por %p700, %p701
    %s704 = sadd.s32 %s703, 1
    %p707 = scmp.eq.s32.totalorder %s81, 1
    %p708 = scmp.ne.s32.totalorder %s703, %s705
    %p709 = scmp.eq.s32.totalorder %s81, 0
    %p710 = por %p708, %p709
    %p711 = scmp.ne.s32.totalorder %s703, %s705
    %p712 = scmp.eq.s32.totalorder %s86, 1
    %p713 = por %p711, %p712
    %p714 = scmp.ne.s32.totalorder %s705, %s706
    %p715 = scmp.eq.s32.totalorder %s86, 0
    %p716 = por %p714, %p715
    %p717 = scmp.ne.s32.totalorder %s705, %s706
    %p718 = scmp.eq.s32.totalorder %s87, 1
    %p719 = por %p717, %p718
    %p721 = scmp.ne.s32.totalorder %s706, %s720
    %p722 = scmp.eq.s32.totalorder %s87, 0
    %p723 = por %p721, %p722
    %s725 = sadd.s32 %s724, 1
    %p728 = scmp.eq.s32.totalorder %s81, 1
    %p729 = scmp.ne.s32.totalorder %s724, %s726
    %p730 = scmp.eq.s32.totalorder %s81, 0
    %p731 = por %p729, %p730
    %p732 = scmp.ne.s32.totalorder %s724, %s726
    %p733 = scmp.eq.s32.totalorder %s86, 1
    %p734 = por %p732, %p733
    %p735 = scmp.ne.s32.totalorder %s726, %s727
    %p736 = scmp.eq.s32.totalorder %s86, 0
    %p737 = por %p735, %p736
    %p738 = scmp.ne.s32.totalorder %s726, %s727
    %p739 = scmp.eq.s32.totalorder %s87, 1
    %p740 = por %p738, %p739
    %p742 = scmp.ne.s32.totalorder %s727, %s741
    %p743 = scmp.eq.s32.totalorder %s87, 0
    %p744 = por %p742, %p743
    %s746 = sadd.s32 %s745, 1
    %p749 = scmp.eq.s32.totalorder %s81, 1
    %p750 = scmp.ne.s32.totalorder %s745, %s747
    %p751 = scmp.eq.s32.totalorder %s81, 0
    %p752 = por %p750, %p751
    %p753 = scmp.ne.s32.totalorder %s745, %s747
    %p754 = scmp.eq.s32.totalorder %s86, 1
    %p755 = por %p753, %p754
    %p756 = scmp.ne.s32.totalorder %s747, %s748
    %p757 = scmp.eq.s32.totalorder %s86, 0
    %p758 = por %p756, %p757
    %p759 = scmp.ne.s32.totalorder %s747, %s748
    %p760 = scmp.eq.s32.totalorder %s87, 1
    %p761 = por %p759, %p760
    %p763 = scmp.ne.s32.totalorder %s748, %s762
    %p764 = scmp.eq.s32.totalorder %s87, 0
    %p765 = por %p763, %p764
    %s767 = sadd.s32 %s766, 1
    %p770 = scmp.eq.s32.totalorder %s81, 1
    %p771 = scmp.ne.s32.totalorder %s766, %s768
    %p772 = scmp.eq.s32.totalorder %s81, 0
    %p773 = por %p771, %p772
    %p774 = scmp.ne.s32.totalorder %s766, %s768
    %p775 = scmp.eq.s32.totalorder %s86, 1
    %p776 = por %p774, %p775
    %p777 = scmp.ne.s32.totalorder %s768, %s769
    %p778 = scmp.eq.s32.totalorder %s86, 0
    %p779 = por %p777, %p778
    %p780 = scmp.ne.s32.totalorder %s768, %s769
    %p781 = scmp.eq.s32.totalorder %s87, 1
    %p782 = por %p780, %p781
    %p784 = scmp.ne.s32.totalorder %s769, %s783
    %p785 = scmp.eq.s32.totalorder %s87, 0
    %p786 = por %p784, %p785
    %s788 = sadd.s32 %s787, 1
    %p791 = scmp.eq.s32.totalorder %s81, 1
    %p792 = scmp.ne.s32.totalorder %s787, %s789
    %p793 = scmp.eq.s32.totalorder %s81, 0
    %p794 = por %p792, %p793
    %p795 = scmp.ne.s32.totalorder %s787, %s789
    %p796 = scmp.eq.s32.totalorder %s86, 1
    %p797 = por %p795, %p796
    %p798 = scmp.ne.s32.totalorder %s789, %s790
    %p799 = scmp.eq.s32.totalorder %s86, 0
    %p800 = por %p798, %p799
    %p801 = scmp.ne.s32.totalorder %s789, %s790
    %p802 = scmp.eq.s32.totalorder %s87, 1
    %p803 = por %p801, %p802
    %p805 = scmp.ne.s32.totalorder %s790, %s804
    %p806 = scmp.eq.s32.totalorder %s87, 0
    %p807 = por %p805, %p806
    %s809 = sadd.s32 %s808, 1
    %p812 = scmp.eq.s32.totalorder %s81, 1
    %p813 = scmp.ne.s32.totalorder %s808, %s810
    %p814 = scmp.eq.s32.totalorder %s81, 0
    %p815 = por %p813, %p814
    %p816 = scmp.ne.s32.totalorder %s808, %s810
    %p817 = scmp.eq.s32.totalorder %s86, 1
    %p818 = por %p816, %p817
    %p819 = scmp.ne.s32.totalorder %s810, %s811
    %p820 = scmp.eq.s32.totalorder %s86, 0
    %p821 = por %p819, %p820
    %p822 = scmp.ne.s32.totalorder %s810, %s811
    %p823 = scmp.eq.s32.totalorder %s87, 1
    %p824 = por %p822, %p823
    %p826 = scmp.ne.s32.totalorder %s811, %s825
    %p827 = scmp.eq.s32.totalorder %s87, 0
    %p828 = por %p826, %p827
    %s830 = sadd.s32 %s829, 1
    %p833 = scmp.eq.s32.totalorder %s81, 1
    %p834 = scmp.ne.s32.totalorder %s829, %s831
    %p835 = scmp.eq.s32.totalorder %s81, 0
    %p836 = por %p834, %p835
    %p837 = scmp.ne.s32.totalorder %s829, %s831
    %p838 = scmp.eq.s32.totalorder %s86, 1
    %p839 = por %p837, %p838
    %p840 = scmp.ne.s32.totalorder %s831, %s832
    %p841 = scmp.eq.s32.totalorder %s86, 0
    %p842 = por %p840, %p841
    %p843 = scmp.ne.s32.totalorder %s831, %s832
    %p844 = scmp.eq.s32.totalorder %s87, 1
    %p845 = por %p843, %p844
    %p847 = scmp.ne.s32.totalorder %s832, %s846
    %p848 = scmp.eq.s32.totalorder %s87, 0
    %p849 = por %p847, %p848
    %s851 = sadd.s32 %s850, 1
    %p854 = scmp.eq.s32.totalorder %s81, 1
    %p855 = scmp.ne.s32.totalorder %s850, %s852
    %p856 = scmp.eq.s32.totalorder %s81, 0
    %p857 = por %p855, %p856
    %p858 = scmp.ne.s32.totalorder %s850, %s852
    %p859 = scmp.eq.s32.totalorder %s86, 1
    %p860 = por %p858, %p859
    %p861 = scmp.ne.s32.totalorder %s852, %s853
    %p862 = scmp.eq.s32.totalorder %s86, 0
    %p863 = por %p861, %p862
    %p864 = scmp.ne.s32.totalorder %s852, %s853
    %p865 = scmp.eq.s32.totalorder %s87, 1
    %p866 = por %p864, %p865
    %p868 = scmp.ne.s32.totalorder %s853, %s867
    %p869 = scmp.eq.s32.totalorder %s87, 0
    %p870 = por %p868, %p869
    %s871 = ssub.s32 %s81, %s88
    %p872 = scmp.eq.s32.totalorder %s871, 0
    %s874 = sadd.s32 %s873, 1
    %s875 = scalar_select %p872, %s873, %s874
    %p878 = pneg %p872
    %p879 = scmp.eq.s32.totalorder %s81, 1
    %p880 = por %p878, %p879
    %p881 = scmp.ne.s32.totalorder %s873, %s876
    %p882 = scmp.eq.s32.totalorder %s81, 0
    %p883 = por %p881, %p882
    %p884 = scmp.ne.s32.totalorder %s873, %s876
    %p885 = scmp.eq.s32.totalorder %s86, 1
    %p886 = por %p884, %p885
    %p887 = scmp.ne.s32.totalorder %s876, %s877
    %p888 = scmp.eq.s32.totalorder %s86, 0
    %p889 = por %p887, %p888
    %p890 = scmp.ne.s32.totalorder %s876, %s877
    %p891 = scmp.eq.s32.totalorder %s87, 1
    %p892 = por %p890, %p891
    %p894 = scmp.ne.s32.totalorder %s877, %s893
    %p895 = scmp.eq.s32.totalorder %s87, 0
    %p896 = por %p894, %p895
    %p897 = scmp.le.s32.totalorder 1, %s81
    %p898 = scmp.lt.s32.totalorder %s81, 3
    %p899 = pnand %p897, %p898
    %p900 = pneg %p899
    // Predicated region
    $region9: #{vit_hugging_forward.2} parent=5 // pred_check
      _
    $region10: #{vit_hugging_forward.2} parent=5 // pred_check_branch
      %902 = sbr.rel (%p899) target = $region12
    $region11: #{vit_hugging_forward.2} parent=5 // pred_region
      %s903 = ssub.s32 %s81, 1
      // Predicated region
      $region13: #{vit_hugging_forward.2} parent=11 // pred_check
        %p904 = pneg %p128
      $region14: #{vit_hugging_forward.2} parent=11 // pred_check_branch
        %906 = sbr.rel (%p904) target = $region16
      $region15: #{vit_hugging_forward.2} parent=11 // pred_region
        _
      $region16: #{vit_hugging_forward.2} parent=11 // pred_fallthru
        _
      // Predicated region
      $region17: #{vit_hugging_forward.2} parent=11 // pred_check
        %p907 = pneg %p149
      $region18: #{vit_hugging_forward.2} parent=11 // pred_check_branch
        %909 = sbr.rel (%p907) target = $region20
      $region19: #{vit_hugging_forward.2} parent=11 // pred_region
        _
      $region20: #{vit_hugging_forward.2} parent=11 // pred_fallthru
        _
      // Predicated region
      $region21: #{vit_hugging_forward.2} parent=11 // pred_check
        %p910 = pneg %p170
      $region22: #{vit_hugging_forward.2} parent=11 // pred_check_branch
        %912 = sbr.rel (%p910) target = $region24
      $region23: #{vit_hugging_forward.2} parent=11 // pred_region
        _
      $region24: #{vit_hugging_forward.2} parent=11 // pred_fallthru
        _
      // Predicated region
      $region25: #{vit_hugging_forward.2} parent=11 // pred_check
        %p913 = pneg %p191
      $region26: #{vit_hugging_forward.2} parent=11 // pred_check_branch
        %915 = sbr.rel (%p913) target = $region28
      $region27: #{vit_hugging_forward.2} parent=11 // pred_region
        _
      $region28: #{vit_hugging_forward.2} parent=11 // pred_fallthru
        _
      // Predicated region
      $region29: #{vit_hugging_forward.2} parent=11 // pred_check
        %p916 = pneg %p212
      $region30: #{vit_hugging_forward.2} parent=11 // pred_check_branch
        %918 = sbr.rel (%p916) target = $region32
      $region31: #{vit_hugging_forward.2} parent=11 // pred_region
        _
      $region32: #{vit_hugging_forward.2} parent=11 // pred_fallthru
        _
      // Predicated region
      $region33: #{vit_hugging_forward.2} parent=11 // pred_check
        %p919 = pneg %p233
      $region34: #{vit_hugging_forward.2} parent=11 // pred_check_branch
        %921 = sbr.rel (%p919) target = $region36
      $region35: #{vit_hugging_forward.2} parent=11 // pred_region
        _
      $region36: #{vit_hugging_forward.2} parent=11 // pred_fallthru
        _
      // Predicated region
      $region37: #{vit_hugging_forward.2} parent=11 // pred_check
        %p922 = pneg %p254
      $region38: #{vit_hugging_forward.2} parent=11 // pred_check_branch
        %924 = sbr.rel (%p922) target = $region40
      $region39: #{vit_hugging_forward.2} parent=11 // pred_region
        _
      $region40: #{vit_hugging_forward.2} parent=11 // pred_fallthru
        _
      // Predicated region
      $region41: #{vit_hugging_forward.2} parent=11 // pred_check
        %p925 = pneg %p275
      $region42: #{vit_hugging_forward.2} parent=11 // pred_check_branch
        %927 = sbr.rel (%p925) target = $region44
      $region43: #{vit_hugging_forward.2} parent=11 // pred_region
        _
      $region44: #{vit_hugging_forward.2} parent=11 // pred_fallthru
        _
      // Predicated region
      $region45: #{vit_hugging_forward.2} parent=11 // pred_check
        %p928 = pneg %p296
      $region46: #{vit_hugging_forward.2} parent=11 // pred_check_branch
        %930 = sbr.rel (%p928) target = $region48
      $region47: #{vit_hugging_forward.2} parent=11 // pred_region
        _
      $region48: #{vit_hugging_forward.2} parent=11 // pred_fallthru
        _
      // Predicated region
      $region49: #{vit_hugging_forward.2} parent=11 // pred_check
        %p931 = pneg %p317
      $region50: #{vit_hugging_forward.2} parent=11 // pred_check_branch
        %933 = sbr.rel (%p931) target = $region52
      $region51: #{vit_hugging_forward.2} parent=11 // pred_region
        _
      $region52: #{vit_hugging_forward.2} parent=11 // pred_fallthru
        _
      // Predicated region
      $region53: #{vit_hugging_forward.2} parent=11 // pred_check
        %p934 = pneg %p338
      $region54: #{vit_hugging_forward.2} parent=11 // pred_check_branch
        %936 = sbr.rel (%p934) target = $region56
      $region55: #{vit_hugging_forward.2} parent=11 // pred_region
        _
      $region56: #{vit_hugging_forward.2} parent=11 // pred_fallthru
        _
      // Predicated region
      $region57: #{vit_hugging_forward.2} parent=11 // pred_check
        %p937 = pneg %p359
      $region58: #{vit_hugging_forward.2} parent=11 // pred_check_branch
        %939 = sbr.rel (%p937) target = $region60
      $region59: #{vit_hugging_forward.2} parent=11 // pred_region
        _
      $region60: #{vit_hugging_forward.2} parent=11 // pred_fallthru
        _
      // Predicated region
      $region61: #{vit_hugging_forward.2} parent=11 // pred_check
        %p940 = pneg %p380
      $region62: #{vit_hugging_forward.2} parent=11 // pred_check_branch
        %942 = sbr.rel (%p940) target = $region64
      $region63: #{vit_hugging_forward.2} parent=11 // pred_region
        _
      $region64: #{vit_hugging_forward.2} parent=11 // pred_fallthru
        _
      // Predicated region
      $region65: #{vit_hugging_forward.2} parent=11 // pred_check
        %p943 = pneg %p401
      $region66: #{vit_hugging_forward.2} parent=11 // pred_check_branch
        %945 = sbr.rel (%p943) target = $region68
      $region67: #{vit_hugging_forward.2} parent=11 // pred_region
        _
      $region68: #{vit_hugging_forward.2} parent=11 // pred_fallthru
        _
      // Predicated region
      $region69: #{vit_hugging_forward.2} parent=11 // pred_check
        %p946 = pneg %p422
      $region70: #{vit_hugging_forward.2} parent=11 // pred_check_branch
        %948 = sbr.rel (%p946) target = $region72
      $region71: #{vit_hugging_forward.2} parent=11 // pred_region
        _
      $region72: #{vit_hugging_forward.2} parent=11 // pred_fallthru
        _
      // Predicated region
      $region73: #{vit_hugging_forward.2} parent=11 // pred_check
        %p949 = pneg %p443
      $region74: #{vit_hugging_forward.2} parent=11 // pred_check_branch
        %951 = sbr.rel (%p949) target = $region76
      $region75: #{vit_hugging_forward.2} parent=11 // pred_region
        _
      $region76: #{vit_hugging_forward.2} parent=11 // pred_fallthru
        _
      // Predicated region
      $region77: #{vit_hugging_forward.2} parent=11 // pred_check
        %p952 = pneg %p464
      $region78: #{vit_hugging_forward.2} parent=11 // pred_check_branch
        %954 = sbr.rel (%p952) target = $region80
      $region79: #{vit_hugging_forward.2} parent=11 // pred_region
        _
      $region80: #{vit_hugging_forward.2} parent=11 // pred_fallthru
        _
      // Predicated region
      $region81: #{vit_hugging_forward.2} parent=11 // pred_check
        %p955 = pneg %p485
      $region82: #{vit_hugging_forward.2} parent=11 // pred_check_branch
        %957 = sbr.rel (%p955) target = $region84
      $region83: #{vit_hugging_forward.2} parent=11 // pred_region
        _
      $region84: #{vit_hugging_forward.2} parent=11 // pred_fallthru
        _
      // Predicated region
      $region85: #{vit_hugging_forward.2} parent=11 // pred_check
        %p958 = pneg %p506
      $region86: #{vit_hugging_forward.2} parent=11 // pred_check_branch
        %960 = sbr.rel (%p958) target = $region88
      $region87: #{vit_hugging_forward.2} parent=11 // pred_region
        _
      $region88: #{vit_hugging_forward.2} parent=11 // pred_fallthru
        _
      // Predicated region
      $region89: #{vit_hugging_forward.2} parent=11 // pred_check
        %p961 = pneg %p527
      $region90: #{vit_hugging_forward.2} parent=11 // pred_check_branch
        %963 = sbr.rel (%p961) target = $region92
      $region91: #{vit_hugging_forward.2} parent=11 // pred_region
        _
      $region92: #{vit_hugging_forward.2} parent=11 // pred_fallthru
        _
      // Predicated region
      $region93: #{vit_hugging_forward.2} parent=11 // pred_check
        %p964 = pneg %p548
      $region94: #{vit_hugging_forward.2} parent=11 // pred_check_branch
        %966 = sbr.rel (%p964) target = $region96
      $region95: #{vit_hugging_forward.2} parent=11 // pred_region
        _
      $region96: #{vit_hugging_forward.2} parent=11 // pred_fallthru
        _
      // Predicated region
      $region97: #{vit_hugging_forward.2} parent=11 // pred_check
        %p967 = pneg %p569
      $region98: #{vit_hugging_forward.2} parent=11 // pred_check_branch
        %969 = sbr.rel (%p967) target = $region100
      $region99: #{vit_hugging_forward.2} parent=11 // pred_region
        _
      $region100: #{vit_hugging_forward.2} parent=11 // pred_fallthru
        _
      // Predicated region
      $region101: #{vit_hugging_forward.2} parent=11 // pred_check
        %p970 = pneg %p590
      $region102: #{vit_hugging_forward.2} parent=11 // pred_check_branch
        %972 = sbr.rel (%p970) target = $region104
      $region103: #{vit_hugging_forward.2} parent=11 // pred_region
        _
      $region104: #{vit_hugging_forward.2} parent=11 // pred_fallthru
        _
      // Predicated region
      $region105: #{vit_hugging_forward.2} parent=11 // pred_check
        %p973 = pneg %p611
      $region106: #{vit_hugging_forward.2} parent=11 // pred_check_branch
        %975 = sbr.rel (%p973) target = $region108
      $region107: #{vit_hugging_forward.2} parent=11 // pred_region
        _
      $region108: #{vit_hugging_forward.2} parent=11 // pred_fallthru
        _
      // Predicated region
      $region109: #{vit_hugging_forward.2} parent=11 // pred_check
        %p976 = pneg %p632
      $region110: #{vit_hugging_forward.2} parent=11 // pred_check_branch
        %978 = sbr.rel (%p976) target = $region112
      $region111: #{vit_hugging_forward.2} parent=11 // pred_region
        _
      $region112: #{vit_hugging_forward.2} parent=11 // pred_fallthru
        _
      // Predicated region
      $region113: #{vit_hugging_forward.2} parent=11 // pred_check
        %p979 = pneg %p653
      $region114: #{vit_hugging_forward.2} parent=11 // pred_check_branch
        %981 = sbr.rel (%p979) target = $region116
      $region115: #{vit_hugging_forward.2} parent=11 // pred_region
        _
      $region116: #{vit_hugging_forward.2} parent=11 // pred_fallthru
        _
      // Predicated region
      $region117: #{vit_hugging_forward.2} parent=11 // pred_check
        %p982 = pneg %p674
      $region118: #{vit_hugging_forward.2} parent=11 // pred_check_branch
        %984 = sbr.rel (%p982) target = $region120
      $region119: #{vit_hugging_forward.2} parent=11 // pred_region
        _
      $region120: #{vit_hugging_forward.2} parent=11 // pred_fallthru
        _
      // Predicated region
      $region121: #{vit_hugging_forward.2} parent=11 // pred_check
        %p985 = pneg %p695
      $region122: #{vit_hugging_forward.2} parent=11 // pred_check_branch
        %987 = sbr.rel (%p985) target = $region124
      $region123: #{vit_hugging_forward.2} parent=11 // pred_region
        _
      $region124: #{vit_hugging_forward.2} parent=11 // pred_fallthru
        _
      // Predicated region
      $region125: #{vit_hugging_forward.2} parent=11 // pred_check
        %p988 = pneg %p716
      $region126: #{vit_hugging_forward.2} parent=11 // pred_check_branch
        %990 = sbr.rel (%p988) target = $region128
      $region127: #{vit_hugging_forward.2} parent=11 // pred_region
        _
      $region128: #{vit_hugging_forward.2} parent=11 // pred_fallthru
        _
      // Predicated region
      $region129: #{vit_hugging_forward.2} parent=11 // pred_check
        %p991 = pneg %p737
      $region130: #{vit_hugging_forward.2} parent=11 // pred_check_branch
        %993 = sbr.rel (%p991) target = $region132
      $region131: #{vit_hugging_forward.2} parent=11 // pred_region
        _
      $region132: #{vit_hugging_forward.2} parent=11 // pred_fallthru
        _
      // Predicated region
      $region133: #{vit_hugging_forward.2} parent=11 // pred_check
        %p994 = pneg %p758
      $region134: #{vit_hugging_forward.2} parent=11 // pred_check_branch
        %996 = sbr.rel (%p994) target = $region136
      $region135: #{vit_hugging_forward.2} parent=11 // pred_region
        _
      $region136: #{vit_hugging_forward.2} parent=11 // pred_fallthru
        _
      // Predicated region
      $region137: #{vit_hugging_forward.2} parent=11 // pred_check
        %p997 = pneg %p779
      $region138: #{vit_hugging_forward.2} parent=11 // pred_check_branch
        %999 = sbr.rel (%p997) target = $region140
      $region139: #{vit_hugging_forward.2} parent=11 // pred_region
        _
      $region140: #{vit_hugging_forward.2} parent=11 // pred_fallthru
        _
      // Predicated region
      $region141: #{vit_hugging_forward.2} parent=11 // pred_check
        %p1000 = pneg %p800
      $region142: #{vit_hugging_forward.2} parent=11 // pred_check_branch
        %1002 = sbr.rel (%p1000) target = $region144
      $region143: #{vit_hugging_forward.2} parent=11 // pred_region
        _
      $region144: #{vit_hugging_forward.2} parent=11 // pred_fallthru
        _
      // Predicated region
      $region145: #{vit_hugging_forward.2} parent=11 // pred_check
        %p1003 = pneg %p821
      $region146: #{vit_hugging_forward.2} parent=11 // pred_check_branch
        %1005 = sbr.rel (%p1003) target = $region148
      $region147: #{vit_hugging_forward.2} parent=11 // pred_region
        _
      $region148: #{vit_hugging_forward.2} parent=11 // pred_fallthru
        _
      // Predicated region
      $region149: #{vit_hugging_forward.2} parent=11 // pred_check
        %p1006 = pneg %p842
      $region150: #{vit_hugging_forward.2} parent=11 // pred_check_branch
        %1008 = sbr.rel (%p1006) target = $region152
      $region151: #{vit_hugging_forward.2} parent=11 // pred_region
        _
      $region152: #{vit_hugging_forward.2} parent=11 // pred_fallthru
        _
      // Predicated region
      $region153: #{vit_hugging_forward.2} parent=11 // pred_check
        %p1009 = pneg %p863
      $region154: #{vit_hugging_forward.2} parent=11 // pred_check_branch
        %1011 = sbr.rel (%p1009) target = $region156
      $region155: #{vit_hugging_forward.2} parent=11 // pred_region
        _
      $region156: #{vit_hugging_forward.2} parent=11 // pred_fallthru
        _
    $region12: #{vit_hugging_forward.2} parent=5 // pred_fallthru
      _
    %p1012 = scmp.lt.s32.totalorder %s81, 2
    // Predicated region
    $region157: #{vit_hugging_forward.2} parent=5 // pred_check
      %p1013 = pneg %p1012
    $region158: #{vit_hugging_forward.2} parent=5 // pred_check_branch
      %1015 = sbr.rel (%p1013) target = $region160
    $region159: #{vit_hugging_forward.2} parent=5 // pred_region
      // Predicated region
      $region161: #{vit_hugging_forward.2} parent=159 // pred_check
        %p1016 = pneg %p101
      $region162: #{vit_hugging_forward.2} parent=159 // pred_check_branch
        %1018 = sbr.rel (%p1016) target = $region164
      $region163: #{vit_hugging_forward.2} parent=159 // pred_region
        %p1019 = scmp.lt.s32.totalorder %s81, 1
        %s1020 = scalar_select %p1019, %s81, 1
        %s1021 = smul.addr %s1020, 2
        %s1022 = smul.addr %s1021, 8
        %s1023 = scalar_lea.vmem %s1, %s1022
      $region164: #{vit_hugging_forward.2} parent=159 // pred_fallthru
        _
    $region160: #{vit_hugging_forward.2} parent=5 // pred_fallthru
      _
    %p1024 = scmp.le.s32.totalorder 1, %s81
    %p1025 = scmp.lt.s32.totalorder %s81, 3
    %p1026 = pnand %p1024, %p1025
    %p1027 = pneg %p1026
    // Predicated region
    $region165: #{vit_hugging_forward.2} parent=5 // pred_check
      _
    $region166: #{vit_hugging_forward.2} parent=5 // pred_check_branch
      %1029 = sbr.rel (%p1026) target = $region168
    $region167: #{vit_hugging_forward.2} parent=5 // pred_region
      %s1030 = ssub.s32 %s81, 1
      %p1031 = scmp.lt.s32.totalorder %s86, 1
      %s1032 = scalar_select %p1031, %s86, 1
      %s1033 = smul.addr %s1032, 2
      %s1034 = smul.addr %s1033, 8
      %s1035 = scalar_lea.vmem %s1, %s1034
      %p1036 = pneg %p107
      %p1037 = pneg %p104
      %p1038 = pneg %p128
      %p1039 = pneg %p125
      %p1040 = pneg %p149
      %p1041 = pneg %p146
      %p1042 = pneg %p170
      %p1043 = pneg %p167
      %p1044 = pneg %p191
      %p1045 = pneg %p188
      %p1046 = pneg %p212
      %p1047 = pneg %p209
      %p1048 = pneg %p233
      %p1049 = pneg %p230
      %p1050 = pneg %p254
      %p1051 = pneg %p251
      %p1052 = pneg %p275
      %p1053 = pneg %p272
      %p1054 = pneg %p296
      %p1055 = pneg %p293
      %p1056 = pneg %p317
      %p1057 = pneg %p314
      %p1058 = pneg %p338
      %p1059 = pneg %p335
      %p1060 = pneg %p359
      %p1061 = pneg %p356
      %p1062 = pneg %p380
      %p1063 = pneg %p377
      %p1064 = pneg %p401
      %p1065 = pneg %p398
      %p1066 = pneg %p422
      %p1067 = pneg %p419
      %p1068 = pneg %p443
      %p1069 = pneg %p440
      %p1070 = pneg %p464
      %p1071 = pneg %p461
      %p1072 = pneg %p485
      %p1073 = pneg %p482
      %p1074 = pneg %p506
      %p1075 = pneg %p503
      %p1076 = pneg %p527
      %p1077 = pneg %p524
      %p1078 = pneg %p548
      %p1079 = pneg %p545
      %p1080 = pneg %p569
      %p1081 = pneg %p566
      %p1082 = pneg %p590
      %p1083 = pneg %p587
      %p1084 = pneg %p611
      %p1085 = pneg %p608
      %p1086 = pneg %p632
      %p1087 = pneg %p629
      %p1088 = pneg %p653
      %p1089 = pneg %p650
      %p1090 = pneg %p674
      %p1091 = pneg %p671
      %p1092 = pneg %p695
      %p1093 = pneg %p692
      %p1094 = pneg %p716
      %p1095 = pneg %p713
      %p1096 = pneg %p737
      %p1097 = pneg %p734
      %p1098 = pneg %p758
      %p1099 = pneg %p755
      %p1100 = pneg %p779
      %p1101 = pneg %p776
      %p1102 = pneg %p800
      %p1103 = pneg %p797
      %p1104 = pneg %p821
      %p1105 = pneg %p818
      %p1106 = pneg %p842
      %p1107 = pneg %p839
      %p1108 = pneg %p863
      %p1109 = pneg %p860
      %p1110 = pneg %p889
      %p1111 = pneg %p886
      %p1112 = scmp.lt.s32.totalorder %s86, 1
      %s1113 = scalar_select %p1112, %s86, 1
      %s1114 = scalar_lea.vmem %s75, %s1113
      %p1115 = scmp.lt.s32.totalorder %s86, 1
      %s1116 = scalar_select %p1115, %s86, 1
      %s1117 = smul.addr %s1116, 2
      %s1118 = smul.addr %s1117, 8
      %s1119 = scalar_lea.vmem %s1, %s1118
      %p1120 = scmp.lt.s32.totalorder %s86, 1
      %s1121 = scalar_select %p1120, %s86, 1
      %s1122 = scalar_lea.vmem %s75, %s1121
      %v1123 = vld [vmem:[%s1119] sm:$0xff]
      %v1124 = vld [vmem:[%s1119 + $0x8] sm:$0xff]
      %v1125 = vld [vmem:[%s3] sm:$0xff]
      %v1126 = vld [vmem:[%s3 + $0x8] sm:$0xff]
      %v1127 = vld [vmem:[%s3 + $0x10] sm:$0xff]
      %v1128 = vld [vmem:[%s3 + $0x18] sm:$0xff]
      %v1129 = vld [vmem:[%s3 + $0x20] sm:$0xff]
      %v1130 = vld [vmem:[%s3 + $0x28] sm:$0xff]
      %v1131 = vld [vmem:[%s3 + $0x30] sm:$0xff]
      %v1132 = vld [vmem:[%s3 + $0x38] sm:$0xff]
      %v1133 = vld [vmem:[%s5] sm:$0x1]
      %v1135 = vperm.slane %v1133, 0
      %vm1137 = vcmask 523264
      %v1139 = vsel %vm1137, %v1123, 0
      %v1142 = vsel %vm1137, %v1124, 0
      %1144 = vmatpush.msra.mxu0 0.0
      %1145 = vmatpush.msra.mxu0 0.0
      %1146 = vmatpush.msra.mxu0 0.0
      %1147 = vmatpush.msra.mxu0 0.0
      %1148 = vmatpush.msra.mxu0 0.0
      %1149 = vmatpush.msra.mxu0 0.0
      %1150 = vmatpush.msra.mxu0 0.0
      %1151 = vmatpush.msra.mxu0 0.0
      %1152 = vmatpush.msra.mxu0 %v1132
      %1153 = vmatpush.msra.mxu0 %v1131
      %1154 = vmatpush.msra.mxu0 %v1130
      %1155 = vmatpush.msra.mxu0 %v1129
      %1156 = vmatpush.msra.mxu0 %v1128
      %1157 = vmatpush.msra.mxu0 %v1127
      %1158 = vmatpush.msra.mxu0 %v1126
      %1159 = vmatpush.msra.mxu0 %v1125
      %1160 = vmatmul.f32.gmra.mxu0 %v1139
      %v1161 = vpop.f32.mrf.mxu0
      %v1162 = vadd.f32 %v1135, %v1161
      %1163 = vmatmul.f32.gmra.mxu0 %v1142
      %v1164 = vpop.f32.mrf.mxu0
      %v1165 = vadd.f32 %v1135, %v1164
      %1166 = vdwg.mxu0
      %v1167 = vld [vmem:[%s7] sm:$0x1]
      %v1168 = vld [vmem:[%s9] sm:$0x1]
      %v1169 = vadd.f32 %v1167, %v1168
      %vm1170 = vcmask 516096
      %1171 = vst.msk [vmem:[#allocation2] sm:$0x1] %vm1170, %v1169
      %v1172 = vld [vmem:[%s9 + $0x1] sm:$0xff]
      %v1173 = vld [vmem:[%s9 + $0x9] sm:$0xff]
      %v1174 = vadd.f32 %v1162, %v1172
      %v1175 = vadd.f32 %v1165, %v1173
      %1176 = vst.msk [vmem:[#allocation2 + $0x1] sm:$0xff] %vm1137, %v1174
      %1177 = vst.msk [vmem:[#allocation2 + $0x9] sm:$0xff] %vm1137, %v1175
      %v1178 = vld [vmem:[#allocation2] sm:$0xff]
      %v1179 = vld [vmem:[#allocation2 + $0x8] sm:$0xff]
      %v1180 = vld [vmem:[#allocation2 + $0x10] sm:$0x1]
      %v1181 = vld [vmem:[%s11] sm:$0x1]
      %v1182 = vld [vmem:[%s13] sm:$0x1]
      %v1183 = vsel %vm1137, %v1178, 0.0
      %1184 = vadd.xlane.f32.xlu0 %v1183
      %v1185 = vpop.xlane.xlu0 %1184
      %v1186 = vsel %vm1137, %v1179, 0.0
      %1187 = vadd.xlane.f32.xlu0 %v1186
      %v1188 = vpop.xlane.xlu0 %1187
      %v1189 = vsel %vm1170, %v1180, 0.0
      %1190 = vadd.xlane.f32.xlu0 %v1189
      %v1191 = vpop.xlane.xlu0 %1190
      %v1192 = vrcp.pop 64.0
      %v1193 = vmul.f32 64.0, %v1192
      %v1194 = vsub.f32 1.0, %v1193
      %v1195 = vmul.f32 %v1192, %v1194
      %v1196 = vadd.f32 %v1192, %v1195
      %vm1197 = vweird.f32 %v1192
      %v1198 = vsel %vm1197, %v1192, %v1196
      %v1199 = vmul.f32 %v1185, %v1198
      %v1200 = vmul.f32 %v1188, %v1198
      %v1201 = vmul.f32 %v1191, %v1198
      %v1202 = vsub.f32 %v1178, %v1199
      %v1203 = vsub.f32 %v1179, %v1200
      %v1204 = vsub.f32 %v1180, %v1201
      %v1205 = vmul.f32 %v1202, %v1202
      %v1206 = vmul.f32 %v1203, %v1203
      %v1207 = vmul.f32 %v1204, %v1204
      %v1208 = vsel %vm1137, %v1205, 0.0
      %1209 = vadd.xlane.f32.xlu0 %v1208
      %v1210 = vpop.xlane.xlu0 %1209
      %v1211 = vsel %vm1137, %v1206, 0.0
      %1212 = vadd.xlane.f32.xlu0 %v1211
      %v1213 = vpop.xlane.xlu0 %1212
      %v1214 = vsel %vm1170, %v1207, 0.0
      %1215 = vadd.xlane.f32.xlu0 %v1214
      %v1216 = vpop.xlane.xlu0 %1215
      %v1217 = vmul.f32 %v1210, %v1198
      %v1218 = vmul.f32 %v1213, %v1198
      %v1219 = vmul.f32 %v1216, %v1198
      %v1220 = vadd.f32 %v1217, 1e-12
      %v1221 = vadd.f32 %v1218, 1e-12
      %v1222 = vadd.f32 %v1219, 1e-12
      %v1223 = vrsqrt.pop %v1220
      %v1224 = vmul.f32 %v1223, %v1220
      %v1225 = vmul.f32 %v1224, %v1223
      %v1226 = vmul.f32 0.5, %v1225
      %v1227 = vsub.f32 1.5, %v1226
      %v1228 = vmul.f32 %v1223, %v1227
      %vm1229 = vweird.f32 %v1220
      %vm1230 = vweird.f32 %v1223
      %vm1231 = vmor %vm1229, %vm1230
      %v1232 = vsel %vm1231, %v1223, %v1228
      %v1233 = vrsqrt.pop %v1221
      %v1234 = vmul.f32 %v1233, %v1221
      %v1235 = vmul.f32 %v1234, %v1233
      %v1236 = vmul.f32 0.5, %v1235
      %v1237 = vsub.f32 1.5, %v1236
      %v1238 = vmul.f32 %v1233, %v1237
      %vm1239 = vweird.f32 %v1221
      %vm1240 = vweird.f32 %v1233
      %vm1241 = vmor %vm1239, %vm1240
      %v1242 = vsel %vm1241, %v1233, %v1238
      %v1243 = vrsqrt.pop %v1222
      %v1244 = vmul.f32 %v1243, %v1222
      %v1245 = vmul.f32 %v1244, %v1243
      %v1246 = vmul.f32 0.5, %v1245
      %v1247 = vsub.f32 1.5, %v1246
      %v1248 = vmul.f32 %v1243, %v1247
      %vm1249 = vweird.f32 %v1222
      %vm1250 = vweird.f32 %v1243
      %vm1251 = vmor %vm1249, %vm1250
      %v1252 = vsel %vm1251, %v1243, %v1248
      %v1253 = vmul.f32 %v1202, %v1232
      %v1254 = vmul.f32 %v1203, %v1242
      %v1255 = vmul.f32 %v1204, %v1252
      %v1257 = vperm.slane %v1181, 0
      %v1259 = vmul.f32 %v1253, %v1257
      %v1260 = vmul.f32 %v1254, %v1257
      %v1261 = vmul.f32 %v1255, %v1257
      %v1263 = vperm.slane %v1182, 0
      %v1265 = vadd.f32 %v1259, %v1263
      %v1266 = vadd.f32 %v1260, %v1263
      %v1267 = vadd.f32 %v1261, %v1263
      %v1268 = vld [vmem:[%s15] sm:$0xff]
      %v1269 = vld [vmem:[%s15 + $0x8] sm:$0xff]
      %v1270 = vld [vmem:[%s15 + $0x10] sm:$0xff]
      %v1271 = vld [vmem:[%s15 + $0x18] sm:$0xff]
      %v1272 = vld [vmem:[%s15 + $0x20] sm:$0xff]
      %v1273 = vld [vmem:[%s15 + $0x28] sm:$0xff]
      %v1274 = vld [vmem:[%s15 + $0x30] sm:$0xff]
      %v1275 = vld [vmem:[%s15 + $0x38] sm:$0xff]
      %v1276 = vld [vmem:[%s17] sm:$0x1]
      %v1278 = vperm.slane %v1276, 0
      %v1281 = vsel %vm1137, %v1265, 0
      %v1284 = vsel %vm1137, %v1266, 0
      %v1287 = vsel %vm1137, %v1267, 0
      %1289 = vmatpush.msra.mxu0 0.0
      %1290 = vmatpush.msra.mxu0 0.0
      %1291 = vmatpush.msra.mxu0 0.0
      %1292 = vmatpush.msra.mxu0 0.0
      %1293 = vmatpush.msra.mxu0 0.0
      %1294 = vmatpush.msra.mxu0 0.0
      %1295 = vmatpush.msra.mxu0 0.0
      %1296 = vmatpush.msra.mxu0 0.0
      %1297 = vmatpush.msra.mxu0 %v1275
      %1298 = vmatpush.msra.mxu0 %v1274
      %1299 = vmatpush.msra.mxu0 %v1273
      %1300 = vmatpush.msra.mxu0 %v1272
      %1301 = vmatpush.msra.mxu0 %v1271
      %1302 = vmatpush.msra.mxu0 %v1270
      %1303 = vmatpush.msra.mxu0 %v1269
      %1304 = vmatpush.msra.mxu0 %v1268
      %1305 = vmatmul.f32.gmra.mxu0 %v1281
      %v1306 = vpop.f32.mrf.mxu0
      %v1307 = vadd.f32 %v1278, %v1306
      %1308 = vmatmul.f32.gmra.mxu0 %v1284
      %v1309 = vpop.f32.mrf.mxu0
      %v1310 = vadd.f32 %v1278, %v1309
      %1311 = vmatmul.f32.gmra.mxu0 %v1287
      %v1312 = vpop.f32.mrf.mxu0
      %v1313 = vadd.f32 %v1278, %v1312
      %1314 = vdwg.mxu0
      %v1315 = vld [vmem:[%s19] sm:$0xff]
      %v1316 = vld [vmem:[%s19 + $0x8] sm:$0xff]
      %v1317 = vld [vmem:[%s19 + $0x10] sm:$0xff]
      %v1318 = vld [vmem:[%s19 + $0x18] sm:$0xff]
      %v1319 = vld [vmem:[%s19 + $0x20] sm:$0xff]
      %v1320 = vld [vmem:[%s19 + $0x28] sm:$0xff]
      %v1321 = vld [vmem:[%s19 + $0x30] sm:$0xff]
      %v1322 = vld [vmem:[%s19 + $0x38] sm:$0xff]
      %v1323 = vld [vmem:[%s21] sm:$0x1]
      %v1325 = vperm.slane %v1323, 0
      %1327 = vmatpush.msra.mxu0 0.0
      %1328 = vmatpush.msra.mxu0 0.0
      %1329 = vmatpush.msra.mxu0 0.0
      %1330 = vmatpush.msra.mxu0 0.0
      %1331 = vmatpush.msra.mxu0 0.0
      %1332 = vmatpush.msra.mxu0 0.0
      %1333 = vmatpush.msra.mxu0 0.0
      %1334 = vmatpush.msra.mxu0 0.0
      %1335 = vmatpush.msra.mxu0 %v1322
      %1336 = vmatpush.msra.mxu0 %v1321
      %1337 = vmatpush.msra.mxu0 %v1320
      %1338 = vmatpush.msra.mxu0 %v1319
      %1339 = vmatpush.msra.mxu0 %v1318
      %1340 = vmatpush.msra.mxu0 %v1317
      %1341 = vmatpush.msra.mxu0 %v1316
      %1342 = vmatpush.msra.mxu0 %v1315
      %1343 = vmatmul.f32.gmra.mxu0 %v1281
      %v1344 = vpop.f32.mrf.mxu0
      %v1345 = vadd.f32 %v1325, %v1344
      %1346 = vmatmul.f32.gmra.mxu0 %v1284
      %v1347 = vpop.f32.mrf.mxu0
      %v1348 = vadd.f32 %v1325, %v1347
      %1349 = vmatmul.f32.gmra.mxu0 %v1287
      %v1350 = vpop.f32.mrf.mxu0
      %v1351 = vadd.f32 %v1325, %v1350
      %1352 = vdwg.mxu0
      %v1353 = vld [vmem:[%s23] sm:$0xff]
      %v1354 = vld [vmem:[%s23 + $0x8] sm:$0xff]
      %v1355 = vld [vmem:[%s23 + $0x10] sm:$0xff]
      %v1356 = vld [vmem:[%s23 + $0x18] sm:$0xff]
      %v1357 = vld [vmem:[%s23 + $0x20] sm:$0xff]
      %v1358 = vld [vmem:[%s23 + $0x28] sm:$0xff]
      %v1359 = vld [vmem:[%s23 + $0x30] sm:$0xff]
      %v1360 = vld [vmem:[%s23 + $0x38] sm:$0xff]
      %v1361 = vld [vmem:[%s25] sm:$0x1]
      %v1363 = vperm.slane %v1361, 0
      %1365 = vmatpush.msra.mxu0 0.0
      %1366 = vmatpush.msra.mxu0 0.0
      %1367 = vmatpush.msra.mxu0 0.0
      %1368 = vmatpush.msra.mxu0 0.0
      %1369 = vmatpush.msra.mxu0 0.0
      %1370 = vmatpush.msra.mxu0 0.0
      %1371 = vmatpush.msra.mxu0 0.0
      %1372 = vmatpush.msra.mxu0 0.0
      %1373 = vmatpush.msra.mxu0 %v1360
      %1374 = vmatpush.msra.mxu0 %v1359
      %1375 = vmatpush.msra.mxu0 %v1358
      %1376 = vmatpush.msra.mxu0 %v1357
      %1377 = vmatpush.msra.mxu0 %v1356
      %1378 = vmatpush.msra.mxu0 %v1355
      %1379 = vmatpush.msra.mxu0 %v1354
      %1380 = vmatpush.msra.mxu0 %v1353
      %1381 = vmatmul.f32.gmra.mxu0 %v1281
      %v1382 = vpop.f32.mrf.mxu0
      %v1383 = vadd.f32 %v1363, %v1382
      %1384 = vmatmul.f32.gmra.mxu0 %v1284
      %v1385 = vpop.f32.mrf.mxu0
      %v1386 = vadd.f32 %v1363, %v1385
      %1387 = vmatmul.f32.gmra.mxu0 %v1287
      %v1388 = vpop.f32.mrf.mxu0
      %v1389 = vadd.f32 %v1363, %v1388
      %1390 = vdwg.mxu0
      %vm1391 = vcmask 130048
      %v1393 = vsel %vm1391, %v1307, 0
      %v1396 = vsel %vm1391, %v1310, 0
      %v1399 = vsel %vm1391, %v1313, 0
      %v1402 = vsel %vm1391, %v1345, 0
      %v1405 = vsel %vm1391, %v1348, 0
      %v1408 = vsel %vm1391, %v1351, 0
      %1410 = vmatpush.xpose.msra.mxu0 0.0
      %1411 = vmatpush.xpose.msra.mxu0 0.0
      %1412 = vmatpush.xpose.msra.mxu0 0.0
      %1413 = vmatpush.xpose.msra.mxu0 0.0
      %1414 = vmatpush.xpose.msra.mxu0 0.0
      %1415 = vmatpush.xpose.msra.mxu0 0.0
      %1416 = vmatpush.xpose.msra.mxu0 0.0
      %1417 = vmatpush.xpose.msra.mxu0 0.0
      %1418 = vmatpush.xpose.msra.mxu0 0.0
      %1419 = vmatpush.xpose.msra.mxu0 0.0
      %1420 = vmatpush.xpose.msra.mxu0 0.0
      %1421 = vmatpush.xpose.msra.mxu0 0.0
      %1422 = vmatpush.xpose.msra.mxu0 0.0
      %1423 = vmatpush.xpose.msra.mxu0 %v1408
      %1424 = vmatpush.xpose.msra.mxu0 %v1405
      %1425 = vmatpush.xpose.msra.mxu0 %v1402
      %1426 = vmatmul.f32.gmra.mxu0 %v1393
      %v1427 = vpop.f32.mrf.mxu0
      %v1428 = vadd.f32 0.0, %v1427
      %1429 = vmatmul.f32.gmra.mxu0 %v1396
      %v1430 = vpop.f32.mrf.mxu0
      %v1431 = vadd.f32 0.0, %v1430
      %1432 = vmatmul.f32.gmra.mxu0 %v1399
      %v1433 = vpop.f32.mrf.mxu0
      %v1434 = vadd.f32 0.0, %v1433
      %1435 = vdwg.mxu0
      %vm1436 = vcmask 138240
      %v1437 = vsel %vm1436, %v1428, -inf
      %1438 = vmax.xlane.f32.xlu0 %v1437
      %v1439 = vpop.xlane.xlu0 %1438
      %v1440 = vsel %vm1436, %v1431, -inf
      %1441 = vmax.xlane.f32.xlu0 %v1440
      %v1442 = vpop.xlane.xlu0 %1441
      %vm1443 = vcmask 131072
      %v1444 = vsel %vm1443, %v1434, -inf
      %1445 = vmax.xlane.f32.xlu0 %v1444
      %v1446 = vpop.xlane.xlu0 %1445
      %v1447 = vsub.f32 %v1428, %v1439
      %v1448 = vsub.f32 %v1431, %v1442
      %v1449 = vsub.f32 %v1434, %v1446
      %v1450 = vmul.f32 %v1447, 1.442695
      %v1451 = vpow.pop %v1450
      %v1452 = vmul.f32 %v1448, 1.442695
      %v1453 = vpow.pop %v1452
      %v1454 = vmul.f32 %v1449, 1.442695
      %v1455 = vpow.pop %v1454
      %v1456 = vsel %vm1436, %v1451, 0.0
      %1457 = vadd.xlane.f32.xlu0 %v1456
      %v1458 = vpop.xlane.xlu0 %1457
      %v1459 = vsel %vm1436, %v1453, 0.0
      %1460 = vadd.xlane.f32.xlu0 %v1459
      %v1461 = vpop.xlane.xlu0 %1460
      %v1462 = vsel %vm1443, %v1455, 0.0
      %1463 = vadd.xlane.f32.xlu0 %v1462
      %v1464 = vpop.xlane.xlu0 %1463
      %v1465 = vrcp.pop %v1458
      %v1466 = vrcp.pop %v1461
      %v1467 = vrcp.pop %v1464
      %v1468 = vmul.f32 %v1451, %v1465
      %v1469 = vmul.f32 %v1453, %v1466
      %v1470 = vmul.f32 %v1455, %v1467
      %v1472 = vsel %vm1436, %v1468, 0
      %v1475 = vsel %vm1436, %v1469, 0
      %v1478 = vsel %vm1436, %v1470, 0
      %vm1480 = vcmask 1040384
      %v1482 = vsel %vm1480, %v1389, 0
      %1484 = vmatpush.msra.mxu0 0.0
      %1485 = vmatpush.msra.mxu0 0.0
      %1486 = vmatpush.msra.mxu0 0.0
      %1487 = vmatpush.msra.mxu0 0.0
      %1488 = vmatpush.msra.mxu0 0.0
      %1489 = vmatpush.msra.mxu0 0.0
      %1490 = vmatpush.msra.mxu0 0.0
      %1491 = vmatpush.msra.mxu0 0.0
      %1492 = vmatpush.msra.mxu0 0.0
      %1493 = vmatpush.msra.mxu0 0.0
      %1494 = vmatpush.msra.mxu0 0.0
      %1495 = vmatpush.msra.mxu0 0.0
      %1496 = vmatpush.msra.mxu0 0.0
      %1497 = vmatpush.msra.mxu0 %v1482
      %1498 = vmatpush.msra.mxu0 %v1386
      %1499 = vmatpush.msra.mxu0 %v1383
      %1500 = vmatmul.f32.gmra.mxu0 %v1472
      %v1501 = vpop.f32.mrf.mxu0
      %v1502 = vadd.f32 0.0, %v1501
      %1503 = vmatmul.f32.gmra.mxu0 %v1475
      %v1504 = vpop.f32.mrf.mxu0
      %v1505 = vadd.f32 0.0, %v1504
      %1506 = vmatmul.f32.gmra.mxu0 %v1478
      %v1507 = vpop.f32.mrf.mxu0
      %v1508 = vadd.f32 0.0, %v1507
      %1509 = vdwg.mxu0
      %v1510 = vld [vmem:[%s27] sm:$0xff]
      %v1511 = vld [vmem:[%s27 + $0x8] sm:$0xff]
      %s1512 = scalar_lea.vmem %s15, 64
      %v1513 = vld [vmem:[%s1512] sm:$0xff]
      %v1514 = vld [vmem:[%s1512 + $0x8] sm:$0xff]
      %v1515 = vld [vmem:[%s1512 + $0x10] sm:$0xff]
      %v1516 = vld [vmem:[%s1512 + $0x18] sm:$0xff]
      %v1517 = vld [vmem:[%s1512 + $0x20] sm:$0xff]
      %v1518 = vld [vmem:[%s1512 + $0x28] sm:$0xff]
      %v1519 = vld [vmem:[%s1512 + $0x30] sm:$0xff]
      %v1520 = vld [vmem:[%s1512 + $0x38] sm:$0xff]
      %s1521 = scalar_lea.vmem %s17, 1
      %v1522 = vld [vmem:[%s1521] sm:$0x1]
      %v1524 = vperm.slane %v1522, 0
      %1526 = vmatpush.msra.mxu0 0.0
      %1527 = vmatpush.msra.mxu0 0.0
      %1528 = vmatpush.msra.mxu0 0.0
      %1529 = vmatpush.msra.mxu0 0.0
      %1530 = vmatpush.msra.mxu0 0.0
      %1531 = vmatpush.msra.mxu0 0.0
      %1532 = vmatpush.msra.mxu0 0.0
      %1533 = vmatpush.msra.mxu0 0.0
      %1534 = vmatpush.msra.mxu0 %v1520
      %1535 = vmatpush.msra.mxu0 %v1519
      %1536 = vmatpush.msra.mxu0 %v1518
      %1537 = vmatpush.msra.mxu0 %v1517
      %1538 = vmatpush.msra.mxu0 %v1516
      %1539 = vmatpush.msra.mxu0 %v1515
      %1540 = vmatpush.msra.mxu0 %v1514
      %1541 = vmatpush.msra.mxu0 %v1513
      %1542 = vmatmul.f32.gmra.mxu0 %v1281
      %v1543 = vpop.f32.mrf.mxu0
      %v1544 = vadd.f32 %v1524, %v1543
      %1545 = vmatmul.f32.gmra.mxu0 %v1284
      %v1546 = vpop.f32.mrf.mxu0
      %v1547 = vadd.f32 %v1524, %v1546
      %1548 = vmatmul.f32.gmra.mxu0 %v1287
      %v1549 = vpop.f32.mrf.mxu0
      %v1550 = vadd.f32 %v1524, %v1549
      %1551 = vdwg.mxu0
      %s1552 = scalar_lea.vmem %s19, 64
      %v1553 = vld [vmem:[%s1552] sm:$0xff]
      %v1554 = vld [vmem:[%s1552 + $0x8] sm:$0xff]
      %v1555 = vld [vmem:[%s1552 + $0x10] sm:$0xff]
      %v1556 = vld [vmem:[%s1552 + $0x18] sm:$0xff]
      %v1557 = vld [vmem:[%s1552 + $0x20] sm:$0xff]
      %v1558 = vld [vmem:[%s1552 + $0x28] sm:$0xff]
      %v1559 = vld [vmem:[%s1552 + $0x30] sm:$0xff]
      %v1560 = vld [vmem:[%s1552 + $0x38] sm:$0xff]
      %s1561 = scalar_lea.vmem %s21, 1
      %v1562 = vld [vmem:[%s1561] sm:$0x1]
      %v1564 = vperm.slane %v1562, 0
      %1566 = vmatpush.msra.mxu0 0.0
      %1567 = vmatpush.msra.mxu0 0.0
      %1568 = vmatpush.msra.mxu0 0.0
      %1569 = vmatpush.msra.mxu0 0.0
      %1570 = vmatpush.msra.mxu0 0.0
      %1571 = vmatpush.msra.mxu0 0.0
      %1572 = vmatpush.msra.mxu0 0.0
      %1573 = vmatpush.msra.mxu0 0.0
      %1574 = vmatpush.msra.mxu0 %v1560
      %1575 = vmatpush.msra.mxu0 %v1559
      %1576 = vmatpush.msra.mxu0 %v1558
      %1577 = vmatpush.msra.mxu0 %v1557
      %1578 = vmatpush.msra.mxu0 %v1556
      %1579 = vmatpush.msra.mxu0 %v1555
      %1580 = vmatpush.msra.mxu0 %v1554
      %1581 = vmatpush.msra.mxu0 %v1553
      %1582 = vmatmul.f32.gmra.mxu0 %v1281
      %v1583 = vpop.f32.mrf.mxu0
      %v1584 = vadd.f32 %v1564, %v1583
      %1585 = vmatmul.f32.gmra.mxu0 %v1284
      %v1586 = vpop.f32.mrf.mxu0
      %v1587 = vadd.f32 %v1564, %v1586
      %1588 = vmatmul.f32.gmra.mxu0 %v1287
      %v1589 = vpop.f32.mrf.mxu0
      %v1590 = vadd.f32 %v1564, %v1589
      %1591 = vdwg.mxu0
      %s1592 = scalar_lea.vmem %s23, 64
      %v1593 = vld [vmem:[%s1592] sm:$0xff]
      %v1594 = vld [vmem:[%s1592 + $0x8] sm:$0xff]
      %v1595 = vld [vmem:[%s1592 + $0x10] sm:$0xff]
      %v1596 = vld [vmem:[%s1592 + $0x18] sm:$0xff]
      %v1597 = vld [vmem:[%s1592 + $0x20] sm:$0xff]
      %v1598 = vld [vmem:[%s1592 + $0x28] sm:$0xff]
      %v1599 = vld [vmem:[%s1592 + $0x30] sm:$0xff]
      %v1600 = vld [vmem:[%s1592 + $0x38] sm:$0xff]
      %s1601 = scalar_lea.vmem %s25, 1
      %v1602 = vld [vmem:[%s1601] sm:$0x1]
      %v1604 = vperm.slane %v1602, 0
      %1606 = vmatpush.msra.mxu0 0.0
      %1607 = vmatpush.msra.mxu0 0.0
      %1608 = vmatpush.msra.mxu0 0.0
      %1609 = vmatpush.msra.mxu0 0.0
      %1610 = vmatpush.msra.mxu0 0.0
      %1611 = vmatpush.msra.mxu0 0.0
      %1612 = vmatpush.msra.mxu0 0.0
      %1613 = vmatpush.msra.mxu0 0.0
      %1614 = vmatpush.msra.mxu0 %v1600
      %1615 = vmatpush.msra.mxu0 %v1599
      %1616 = vmatpush.msra.mxu0 %v1598
      %1617 = vmatpush.msra.mxu0 %v1597
      %1618 = vmatpush.msra.mxu0 %v1596
      %1619 = vmatpush.msra.mxu0 %v1595
      %1620 = vmatpush.msra.mxu0 %v1594
      %1621 = vmatpush.msra.mxu0 %v1593
      %1622 = vmatmul.f32.gmra.mxu0 %v1281
      %v1623 = vpop.f32.mrf.mxu0
      %v1624 = vadd.f32 %v1604, %v1623
      %1625 = vmatmul.f32.gmra.mxu0 %v1284
      %v1626 = vpop.f32.mrf.mxu0
      %v1627 = vadd.f32 %v1604, %v1626
      %1628 = vmatmul.f32.gmra.mxu0 %v1287
      %v1629 = vpop.f32.mrf.mxu0
      %v1630 = vadd.f32 %v1604, %v1629
      %1631 = vdwg.mxu0
      %v1633 = vsel %vm1391, %v1544, 0
      %v1636 = vsel %vm1391, %v1547, 0
      %v1639 = vsel %vm1391, %v1550, 0
      %v1642 = vsel %vm1391, %v1584, 0
      %v1645 = vsel %vm1391, %v1587, 0
      %v1648 = vsel %vm1391, %v1590, 0
      %1650 = vmatpush.xpose.msra.mxu0 0.0
      %1651 = vmatpush.xpose.msra.mxu0 0.0
      %1652 = vmatpush.xpose.msra.mxu0 0.0
      %1653 = vmatpush.xpose.msra.mxu0 0.0
      %1654 = vmatpush.xpose.msra.mxu0 0.0
      %1655 = vmatpush.xpose.msra.mxu0 0.0
      %1656 = vmatpush.xpose.msra.mxu0 0.0
      %1657 = vmatpush.xpose.msra.mxu0 0.0
      %1658 = vmatpush.xpose.msra.mxu0 0.0
      %1659 = vmatpush.xpose.msra.mxu0 0.0
      %1660 = vmatpush.xpose.msra.mxu0 0.0
      %1661 = vmatpush.xpose.msra.mxu0 0.0
      %1662 = vmatpush.xpose.msra.mxu0 0.0
      %1663 = vmatpush.xpose.msra.mxu0 %v1648
      %1664 = vmatpush.xpose.msra.mxu0 %v1645
      %1665 = vmatpush.xpose.msra.mxu0 %v1642
      %1666 = vmatmul.f32.gmra.mxu0 %v1633
      %v1667 = vpop.f32.mrf.mxu0
      %v1668 = vadd.f32 0.0, %v1667
      %1669 = vmatmul.f32.gmra.mxu0 %v1636
      %v1670 = vpop.f32.mrf.mxu0
      %v1671 = vadd.f32 0.0, %v1670
      %1672 = vmatmul.f32.gmra.mxu0 %v1639
      %v1673 = vpop.f32.mrf.mxu0
      %v1674 = vadd.f32 0.0, %v1673
      %1675 = vdwg.mxu0
      %v1676 = vsel %vm1436, %v1668, -inf
      %1677 = vmax.xlane.f32.xlu0 %v1676
      %v1678 = vpop.xlane.xlu0 %1677
      %v1679 = vsel %vm1436, %v1671, -inf
      %1680 = vmax.xlane.f32.xlu0 %v1679
      %v1681 = vpop.xlane.xlu0 %1680
      %v1682 = vsel %vm1443, %v1674, -inf
      %1683 = vmax.xlane.f32.xlu0 %v1682
      %v1684 = vpop.xlane.xlu0 %1683
      %v1685 = vsub.f32 %v1668, %v1678
      %v1686 = vsub.f32 %v1671, %v1681
      %v1687 = vsub.f32 %v1674, %v1684
      %v1688 = vmul.f32 %v1685, 1.442695
      %v1689 = vpow.pop %v1688
      %v1690 = vmul.f32 %v1686, 1.442695
      %v1691 = vpow.pop %v1690
      %v1692 = vmul.f32 %v1687, 1.442695
      %v1693 = vpow.pop %v1692
      %v1694 = vsel %vm1436, %v1689, 0.0
      %1695 = vadd.xlane.f32.xlu0 %v1694
      %v1696 = vpop.xlane.xlu0 %1695
      %v1697 = vsel %vm1436, %v1691, 0.0
      %1698 = vadd.xlane.f32.xlu0 %v1697
      %v1699 = vpop.xlane.xlu0 %1698
      %v1700 = vsel %vm1443, %v1693, 0.0
      %1701 = vadd.xlane.f32.xlu0 %v1700
      %v1702 = vpop.xlane.xlu0 %1701
      %v1703 = vrcp.pop %v1696
      %v1704 = vrcp.pop %v1699
      %v1705 = vrcp.pop %v1702
      %v1706 = vmul.f32 %v1689, %v1703
      %v1707 = vmul.f32 %v1691, %v1704
      %v1708 = vmul.f32 %v1693, %v1705
      %v1710 = vsel %vm1436, %v1706, 0
      %v1713 = vsel %vm1436, %v1707, 0
      %v1716 = vsel %vm1436, %v1708, 0
      %v1719 = vsel %vm1480, %v1630, 0
      %1721 = vmatpush.msra.mxu0 0.0
      %1722 = vmatpush.msra.mxu0 0.0
      %1723 = vmatpush.msra.mxu0 0.0
      %1724 = vmatpush.msra.mxu0 0.0
      %1725 = vmatpush.msra.mxu0 0.0
      %1726 = vmatpush.msra.mxu0 0.0
      %1727 = vmatpush.msra.mxu0 0.0
      %1728 = vmatpush.msra.mxu0 0.0
      %1729 = vmatpush.msra.mxu0 0.0
      %1730 = vmatpush.msra.mxu0 0.0
      %1731 = vmatpush.msra.mxu0 0.0
      %1732 = vmatpush.msra.mxu0 0.0
      %1733 = vmatpush.msra.mxu0 0.0
      %1734 = vmatpush.msra.mxu0 %v1719
      %1735 = vmatpush.msra.mxu0 %v1627
      %1736 = vmatpush.msra.mxu0 %v1624
      %1737 = vmatmul.f32.gmra.mxu0 %v1710
      %v1738 = vpop.f32.mrf.mxu0
      %v1739 = vadd.f32 0.0, %v1738
      %1740 = vmatmul.f32.gmra.mxu0 %v1713
      %v1741 = vpop.f32.mrf.mxu0
      %v1742 = vadd.f32 0.0, %v1741
      %1743 = vmatmul.f32.gmra.mxu0 %v1716
      %v1744 = vpop.f32.mrf.mxu0
      %v1745 = vadd.f32 0.0, %v1744
      %1746 = vdwg.mxu0
      %s1747 = scalar_lea.vmem %s27, 16
      %v1748 = vld [vmem:[%s1747] sm:$0xff]
      %v1749 = vld [vmem:[%s1747 + $0x8] sm:$0xff]
      %v1751 = vsel %vm1391, %v1739, 0
      %v1754 = vsel %vm1391, %v1742, 0
      %v1757 = vsel %vm1391, %v1745, 0
      %1759 = vmatpush.msra.mxu0 0.0
      %1760 = vmatpush.msra.mxu0 0.0
      %1761 = vmatpush.msra.mxu0 0.0
      %1762 = vmatpush.msra.mxu0 0.0
      %1763 = vmatpush.msra.mxu0 0.0
      %1764 = vmatpush.msra.mxu0 0.0
      %1765 = vmatpush.msra.mxu0 0.0
      %1766 = vmatpush.msra.mxu0 0.0
      %1767 = vmatpush.msra.mxu0 0.0
      %1768 = vmatpush.msra.mxu0 0.0
      %1769 = vmatpush.msra.mxu0 0.0
      %1770 = vmatpush.msra.mxu0 0.0
      %1771 = vmatpush.msra.mxu0 0.0
      %1772 = vmatpush.msra.mxu0 0.0
      %1773 = vmatpush.msra.mxu0 %v1749
      %1774 = vmatpush.msra.mxu0 %v1748
      %1775 = vmatmul.f32.gmra.mxu0 %v1751
      %v1776 = vpop.f32.mrf.mxu0
      %v1777 = vadd.f32 0.0, %v1776
      %1778 = vmatmul.f32.gmra.mxu0 %v1754
      %v1779 = vpop.f32.mrf.mxu0
      %v1780 = vadd.f32 0.0, %v1779
      %1781 = vmatmul.f32.gmra.mxu0 %v1757
      %v1782 = vpop.f32.mrf.mxu0
      %v1783 = vadd.f32 0.0, %v1782
      %1784 = vdwg.mxu0
      %v1786 = vsel %vm1391, %v1502, 0
      %v1789 = vsel %vm1391, %v1505, 0
      %v1792 = vsel %vm1391, %v1508, 0
      %1794 = vmatpush.msra.mxu0 0.0
      %1795 = vmatpush.msra.mxu0 0.0
      %1796 = vmatpush.msra.mxu0 0.0
      %1797 = vmatpush.msra.mxu0 0.0
      %1798 = vmatpush.msra.mxu0 0.0
      %1799 = vmatpush.msra.mxu0 0.0
      %1800 = vmatpush.msra.mxu0 0.0
      %1801 = vmatpush.msra.mxu0 0.0
      %1802 = vmatpush.msra.mxu0 0.0
      %1803 = vmatpush.msra.mxu0 0.0
      %1804 = vmatpush.msra.mxu0 0.0
      %1805 = vmatpush.msra.mxu0 0.0
      %1806 = vmatpush.msra.mxu0 0.0
      %1807 = vmatpush.msra.mxu0 0.0
      %1808 = vmatpush.msra.mxu0 %v1511
      %1809 = vmatpush.msra.mxu0 %v1510
      %1810 = vmatmul.f32.gmra.mxu0 %v1786
      %v1811 = vpop.f32.mrf.mxu0
      %v1812 = vadd.f32 %v1777, %v1811
      %1813 = vmatmul.f32.gmra.mxu0 %v1789
      %v1814 = vpop.f32.mrf.mxu0
      %v1815 = vadd.f32 %v1780, %v1814
      %1816 = vmatmul.f32.gmra.mxu0 %v1792
      %v1817 = vpop.f32.mrf.mxu0
      %v1818 = vadd.f32 %v1783, %v1817
      %1819 = vdwg.mxu0
      %s1820 = scalar_lea.vmem %s15, 128
      %v1821 = vld [vmem:[%s1820] sm:$0xff]
      %v1822 = vld [vmem:[%s1820 + $0x8] sm:$0xff]
      %v1823 = vld [vmem:[%s1820 + $0x10] sm:$0xff]
      %v1824 = vld [vmem:[%s1820 + $0x18] sm:$0xff]
      %v1825 = vld [vmem:[%s1820 + $0x20] sm:$0xff]
      %v1826 = vld [vmem:[%s1820 + $0x28] sm:$0xff]
      %v1827 = vld [vmem:[%s1820 + $0x30] sm:$0xff]
      %v1828 = vld [vmem:[%s1820 + $0x38] sm:$0xff]
      %s1829 = scalar_lea.vmem %s17, 2
      %v1830 = vld [vmem:[%s1829] sm:$0x1]
      %v1832 = vperm.slane %v1830, 0
      %1834 = vmatpush.msra.mxu0 0.0
      %1835 = vmatpush.msra.mxu0 0.0
      %1836 = vmatpush.msra.mxu0 0.0
      %1837 = vmatpush.msra.mxu0 0.0
      %1838 = vmatpush.msra.mxu0 0.0
      %1839 = vmatpush.msra.mxu0 0.0
      %1840 = vmatpush.msra.mxu0 0.0
      %1841 = vmatpush.msra.mxu0 0.0
      %1842 = vmatpush.msra.mxu0 %v1828
      %1843 = vmatpush.msra.mxu0 %v1827
      %1844 = vmatpush.msra.mxu0 %v1826
      %1845 = vmatpush.msra.mxu0 %v1825
      %1846 = vmatpush.msra.mxu0 %v1824
      %1847 = vmatpush.msra.mxu0 %v1823
      %1848 = vmatpush.msra.mxu0 %v1822
      %1849 = vmatpush.msra.mxu0 %v1821
      %1850 = vmatmul.f32.gmra.mxu0 %v1281
      %v1851 = vpop.f32.mrf.mxu0
      %v1852 = vadd.f32 %v1832, %v1851
      %1853 = vmatmul.f32.gmra.mxu0 %v1284
      %v1854 = vpop.f32.mrf.mxu0
      %v1855 = vadd.f32 %v1832, %v1854
      %1856 = vmatmul.f32.gmra.mxu0 %v1287
      %v1857 = vpop.f32.mrf.mxu0
      %v1858 = vadd.f32 %v1832, %v1857
      %1859 = vdwg.mxu0
      %s1860 = scalar_lea.vmem %s19, 128
      %v1861 = vld [vmem:[%s1860] sm:$0xff]
      %v1862 = vld [vmem:[%s1860 + $0x8] sm:$0xff]
      %v1863 = vld [vmem:[%s1860 + $0x10] sm:$0xff]
      %v1864 = vld [vmem:[%s1860 + $0x18] sm:$0xff]
      %v1865 = vld [vmem:[%s1860 + $0x20] sm:$0xff]
      %v1866 = vld [vmem:[%s1860 + $0x28] sm:$0xff]
      %v1867 = vld [vmem:[%s1860 + $0x30] sm:$0xff]
      %v1868 = vld [vmem:[%s1860 + $0x38] sm:$0xff]
      %s1869 = scalar_lea.vmem %s21, 2
      %v1870 = vld [vmem:[%s1869] sm:$0x1]
      %v1872 = vperm.slane %v1870, 0
      %1874 = vmatpush.msra.mxu0 0.0
      %1875 = vmatpush.msra.mxu0 0.0
      %1876 = vmatpush.msra.mxu0 0.0
      %1877 = vmatpush.msra.mxu0 0.0
      %1878 = vmatpush.msra.mxu0 0.0
      %1879 = vmatpush.msra.mxu0 0.0
      %1880 = vmatpush.msra.mxu0 0.0
      %1881 = vmatpush.msra.mxu0 0.0
      %1882 = vmatpush.msra.mxu0 %v1868
      %1883 = vmatpush.msra.mxu0 %v1867
      %1884 = vmatpush.msra.mxu0 %v1866
      %1885 = vmatpush.msra.mxu0 %v1865
      %1886 = vmatpush.msra.mxu0 %v1864
      %1887 = vmatpush.msra.mxu0 %v1863
      %1888 = vmatpush.msra.mxu0 %v1862
      %1889 = vmatpush.msra.mxu0 %v1861
      %1890 = vmatmul.f32.gmra.mxu0 %v1281
      %v1891 = vpop.f32.mrf.mxu0
      %v1892 = vadd.f32 %v1872, %v1891
      %1893 = vmatmul.f32.gmra.mxu0 %v1284
      %v1894 = vpop.f32.mrf.mxu0
      %v1895 = vadd.f32 %v1872, %v1894
      %1896 = vmatmul.f32.gmra.mxu0 %v1287
      %v1897 = vpop.f32.mrf.mxu0
      %v1898 = vadd.f32 %v1872, %v1897
      %1899 = vdwg.mxu0
      %s1900 = scalar_lea.vmem %s23, 128
      %v1901 = vld [vmem:[%s1900] sm:$0xff]
      %v1902 = vld [vmem:[%s1900 + $0x8] sm:$0xff]
      %v1903 = vld [vmem:[%s1900 + $0x10] sm:$0xff]
      %v1904 = vld [vmem:[%s1900 + $0x18] sm:$0xff]
      %v1905 = vld [vmem:[%s1900 + $0x20] sm:$0xff]
      %v1906 = vld [vmem:[%s1900 + $0x28] sm:$0xff]
      %v1907 = vld [vmem:[%s1900 + $0x30] sm:$0xff]
      %v1908 = vld [vmem:[%s1900 + $0x38] sm:$0xff]
      %s1909 = scalar_lea.vmem %s25, 2
      %v1910 = vld [vmem:[%s1909] sm:$0x1]
      %v1912 = vperm.slane %v1910, 0
      %1914 = vmatpush.msra.mxu0 0.0
      %1915 = vmatpush.msra.mxu0 0.0
      %1916 = vmatpush.msra.mxu0 0.0
      %1917 = vmatpush.msra.mxu0 0.0
      %1918 = vmatpush.msra.mxu0 0.0
      %1919 = vmatpush.msra.mxu0 0.0
      %1920 = vmatpush.msra.mxu0 0.0
      %1921 = vmatpush.msra.mxu0 0.0
      %1922 = vmatpush.msra.mxu0 %v1908
      %1923 = vmatpush.msra.mxu0 %v1907
      %1924 = vmatpush.msra.mxu0 %v1906
      %1925 = vmatpush.msra.mxu0 %v1905
      %1926 = vmatpush.msra.mxu0 %v1904
      %1927 = vmatpush.msra.mxu0 %v1903
      %1928 = vmatpush.msra.mxu0 %v1902
      %1929 = vmatpush.msra.mxu0 %v1901
      %1930 = vmatmul.f32.gmra.mxu0 %v1281
      %v1931 = vpop.f32.mrf.mxu0
      %v1932 = vadd.f32 %v1912, %v1931
      %1933 = vmatmul.f32.gmra.mxu0 %v1284
      %v1934 = vpop.f32.mrf.mxu0
      %v1935 = vadd.f32 %v1912, %v1934
      %1936 = vmatmul.f32.gmra.mxu0 %v1287
      %v1937 = vpop.f32.mrf.mxu0
      %v1938 = vadd.f32 %v1912, %v1937
      %1939 = vdwg.mxu0
      %v1941 = vsel %vm1391, %v1852, 0
      %v1944 = vsel %vm1391, %v1855, 0
      %v1947 = vsel %vm1391, %v1858, 0
      %v1950 = vsel %vm1391, %v1892, 0
      %v1953 = vsel %vm1391, %v1895, 0
      %v1956 = vsel %vm1391, %v1898, 0
      %1958 = vmatpush.xpose.msra.mxu0 0.0
      %1959 = vmatpush.xpose.msra.mxu0 0.0
      %1960 = vmatpush.xpose.msra.mxu0 0.0
      %1961 = vmatpush.xpose.msra.mxu0 0.0
      %1962 = vmatpush.xpose.msra.mxu0 0.0
      %1963 = vmatpush.xpose.msra.mxu0 0.0
      %1964 = vmatpush.xpose.msra.mxu0 0.0
      %1965 = vmatpush.xpose.msra.mxu0 0.0
      %1966 = vmatpush.xpose.msra.mxu0 0.0
      %1967 = vmatpush.xpose.msra.mxu0 0.0
      %1968 = vmatpush.xpose.msra.mxu0 0.0
      %1969 = vmatpush.xpose.msra.mxu0 0.0
      %1970 = vmatpush.xpose.msra.mxu0 0.0
      %1971 = vmatpush.xpose.msra.mxu0 %v1956
      %1972 = vmatpush.xpose.msra.mxu0 %v1953
      %1973 = vmatpush.xpose.msra.mxu0 %v1950
      %1974 = vmatmul.f32.gmra.mxu0 %v1941
      %v1975 = vpop.f32.mrf.mxu0
      %v1976 = vadd.f32 0.0, %v1975
      %1977 = vmatmul.f32.gmra.mxu0 %v1944
      %v1978 = vpop.f32.mrf.mxu0
      %v1979 = vadd.f32 0.0, %v1978
      %1980 = vmatmul.f32.gmra.mxu0 %v1947
      %v1981 = vpop.f32.mrf.mxu0
      %v1982 = vadd.f32 0.0, %v1981
      %1983 = vdwg.mxu0
      %v1984 = vsel %vm1436, %v1976, -inf
      %1985 = vmax.xlane.f32.xlu0 %v1984
      %v1986 = vpop.xlane.xlu0 %1985
      %v1987 = vsel %vm1436, %v1979, -inf
      %1988 = vmax.xlane.f32.xlu0 %v1987
      %v1989 = vpop.xlane.xlu0 %1988
      %v1990 = vsel %vm1443, %v1982, -inf
      %1991 = vmax.xlane.f32.xlu0 %v1990
      %v1992 = vpop.xlane.xlu0 %1991
      %v1993 = vsub.f32 %v1976, %v1986
      %v1994 = vsub.f32 %v1979, %v1989
      %v1995 = vsub.f32 %v1982, %v1992
      %v1996 = vmul.f32 %v1993, 1.442695
      %v1997 = vpow.pop %v1996
      %v1998 = vmul.f32 %v1994, 1.442695
      %v1999 = vpow.pop %v1998
      %v2000 = vmul.f32 %v1995, 1.442695
      %v2001 = vpow.pop %v2000
      %v2002 = vsel %vm1436, %v1997, 0.0
      %2003 = vadd.xlane.f32.xlu0 %v2002
      %v2004 = vpop.xlane.xlu0 %2003
      %v2005 = vsel %vm1436, %v1999, 0.0
      %2006 = vadd.xlane.f32.xlu0 %v2005
      %v2007 = vpop.xlane.xlu0 %2006
      %v2008 = vsel %vm1443, %v2001, 0.0
      %2009 = vadd.xlane.f32.xlu0 %v2008
      %v2010 = vpop.xlane.xlu0 %2009
      %v2011 = vrcp.pop %v2004
      %v2012 = vrcp.pop %v2007
      %v2013 = vrcp.pop %v2010
      %v2014 = vmul.f32 %v1997, %v2011
      %v2015 = vmul.f32 %v1999, %v2012
      %v2016 = vmul.f32 %v2001, %v2013
      %v2018 = vsel %vm1436, %v2014, 0
      %v2021 = vsel %vm1436, %v2015, 0
      %v2024 = vsel %vm1436, %v2016, 0
      %v2027 = vsel %vm1480, %v1938, 0
      %2029 = vmatpush.msra.mxu0 0.0
      %2030 = vmatpush.msra.mxu0 0.0
      %2031 = vmatpush.msra.mxu0 0.0
      %2032 = vmatpush.msra.mxu0 0.0
      %2033 = vmatpush.msra.mxu0 0.0
      %2034 = vmatpush.msra.mxu0 0.0
      %2035 = vmatpush.msra.mxu0 0.0
      %2036 = vmatpush.msra.mxu0 0.0
      %2037 = vmatpush.msra.mxu0 0.0
      %2038 = vmatpush.msra.mxu0 0.0
      %2039 = vmatpush.msra.mxu0 0.0
      %2040 = vmatpush.msra.mxu0 0.0
      %2041 = vmatpush.msra.mxu0 0.0
      %2042 = vmatpush.msra.mxu0 %v2027
      %2043 = vmatpush.msra.mxu0 %v1935
      %2044 = vmatpush.msra.mxu0 %v1932
      %2045 = vmatmul.f32.gmra.mxu0 %v2018
      %v2046 = vpop.f32.mrf.mxu0
      %v2047 = vadd.f32 0.0, %v2046
      %2048 = vmatmul.f32.gmra.mxu0 %v2021
      %v2049 = vpop.f32.mrf.mxu0
      %v2050 = vadd.f32 0.0, %v2049
      %2051 = vmatmul.f32.gmra.mxu0 %v2024
      %v2052 = vpop.f32.mrf.mxu0
      %v2053 = vadd.f32 0.0, %v2052
      %2054 = vdwg.mxu0
      %s2055 = scalar_lea.vmem %s27, 32
      %v2056 = vld [vmem:[%s2055] sm:$0xff]
      %v2057 = vld [vmem:[%s2055 + $0x8] sm:$0xff]
      %v2059 = vsel %vm1391, %v2047, 0
      %v2062 = vsel %vm1391, %v2050, 0
      %v2065 = vsel %vm1391, %v2053, 0
      %2067 = vmatpush.msra.mxu0 0.0
      %2068 = vmatpush.msra.mxu0 0.0
      %2069 = vmatpush.msra.mxu0 0.0
      %2070 = vmatpush.msra.mxu0 0.0
      %2071 = vmatpush.msra.mxu0 0.0
      %2072 = vmatpush.msra.mxu0 0.0
      %2073 = vmatpush.msra.mxu0 0.0
      %2074 = vmatpush.msra.mxu0 0.0
      %2075 = vmatpush.msra.mxu0 0.0
      %2076 = vmatpush.msra.mxu0 0.0
      %2077 = vmatpush.msra.mxu0 0.0
      %2078 = vmatpush.msra.mxu0 0.0
      %2079 = vmatpush.msra.mxu0 0.0
      %2080 = vmatpush.msra.mxu0 0.0
      %2081 = vmatpush.msra.mxu0 %v2057
      %2082 = vmatpush.msra.mxu0 %v2056
      %2083 = vmatmul.f32.gmra.mxu0 %v2059
      %v2084 = vpop.f32.mrf.mxu0
      %v2085 = vadd.f32 0.0, %v2084
      %2086 = vmatmul.f32.gmra.mxu0 %v2062
      %v2087 = vpop.f32.mrf.mxu0
      %v2088 = vadd.f32 0.0, %v2087
      %2089 = vmatmul.f32.gmra.mxu0 %v2065
      %v2090 = vpop.f32.mrf.mxu0
      %v2091 = vadd.f32 0.0, %v2090
      %2092 = vdwg.mxu0
      %v2093 = vadd.f32 %v1812, %v2085
      %v2094 = vadd.f32 %v1815, %v2088
      %v2095 = vadd.f32 %v1818, %v2091
      %s2096 = scalar_lea.vmem %s15, 192
      %v2097 = vld [vmem:[%s2096] sm:$0xff]
      %v2098 = vld [vmem:[%s2096 + $0x8] sm:$0xff]
      %v2099 = vld [vmem:[%s2096 + $0x10] sm:$0xff]
      %v2100 = vld [vmem:[%s2096 + $0x18] sm:$0xff]
      %v2101 = vld [vmem:[%s2096 + $0x20] sm:$0xff]
      %v2102 = vld [vmem:[%s2096 + $0x28] sm:$0xff]
      %v2103 = vld [vmem:[%s2096 + $0x30] sm:$0xff]
      %v2104 = vld [vmem:[%s2096 + $0x38] sm:$0xff]
      %s2105 = scalar_lea.vmem %s17, 3
      %v2106 = vld [vmem:[%s2105] sm:$0x1]
      %v2108 = vperm.slane %v2106, 0
      %2110 = vmatpush.msra.mxu0 0.0
      %2111 = vmatpush.msra.mxu0 0.0
      %2112 = vmatpush.msra.mxu0 0.0
      %2113 = vmatpush.msra.mxu0 0.0
      %2114 = vmatpush.msra.mxu0 0.0
      %2115 = vmatpush.msra.mxu0 0.0
      %2116 = vmatpush.msra.mxu0 0.0
      %2117 = vmatpush.msra.mxu0 0.0
      %2118 = vmatpush.msra.mxu0 %v2104
      %2119 = vmatpush.msra.mxu0 %v2103
      %2120 = vmatpush.msra.mxu0 %v2102
      %2121 = vmatpush.msra.mxu0 %v2101
      %2122 = vmatpush.msra.mxu0 %v2100
      %2123 = vmatpush.msra.mxu0 %v2099
      %2124 = vmatpush.msra.mxu0 %v2098
      %2125 = vmatpush.msra.mxu0 %v2097
      %2126 = vmatmul.f32.gmra.mxu0 %v1281
      %v2127 = vpop.f32.mrf.mxu0
      %v2128 = vadd.f32 %v2108, %v2127
      %2129 = vmatmul.f32.gmra.mxu0 %v1284
      %v2130 = vpop.f32.mrf.mxu0
      %v2131 = vadd.f32 %v2108, %v2130
      %2132 = vmatmul.f32.gmra.mxu0 %v1287
      %v2133 = vpop.f32.mrf.mxu0
      %v2134 = vadd.f32 %v2108, %v2133
      %2135 = vdwg.mxu0
      %s2136 = scalar_lea.vmem %s19, 192
      %v2137 = vld [vmem:[%s2136] sm:$0xff]
      %v2138 = vld [vmem:[%s2136 + $0x8] sm:$0xff]
      %v2139 = vld [vmem:[%s2136 + $0x10] sm:$0xff]
      %v2140 = vld [vmem:[%s2136 + $0x18] sm:$0xff]
      %v2141 = vld [vmem:[%s2136 + $0x20] sm:$0xff]
      %v2142 = vld [vmem:[%s2136 + $0x28] sm:$0xff]
      %v2143 = vld [vmem:[%s2136 + $0x30] sm:$0xff]
      %v2144 = vld [vmem:[%s2136 + $0x38] sm:$0xff]
      %s2145 = scalar_lea.vmem %s21, 3
      %v2146 = vld [vmem:[%s2145] sm:$0x1]
      %v2148 = vperm.slane %v2146, 0
      %2150 = vmatpush.msra.mxu0 0.0
      %2151 = vmatpush.msra.mxu0 0.0
      %2152 = vmatpush.msra.mxu0 0.0
      %2153 = vmatpush.msra.mxu0 0.0
      %2154 = vmatpush.msra.mxu0 0.0
      %2155 = vmatpush.msra.mxu0 0.0
      %2156 = vmatpush.msra.mxu0 0.0
      %2157 = vmatpush.msra.mxu0 0.0
      %2158 = vmatpush.msra.mxu0 %v2144
      %2159 = vmatpush.msra.mxu0 %v2143
      %2160 = vmatpush.msra.mxu0 %v2142
      %2161 = vmatpush.msra.mxu0 %v2141
      %2162 = vmatpush.msra.mxu0 %v2140
      %2163 = vmatpush.msra.mxu0 %v2139
      %2164 = vmatpush.msra.mxu0 %v2138
      %2165 = vmatpush.msra.mxu0 %v2137
      %2166 = vmatmul.f32.gmra.mxu0 %v1281
      %v2167 = vpop.f32.mrf.mxu0
      %v2168 = vadd.f32 %v2148, %v2167
      %2169 = vmatmul.f32.gmra.mxu0 %v1284
      %v2170 = vpop.f32.mrf.mxu0
      %v2171 = vadd.f32 %v2148, %v2170
      %2172 = vmatmul.f32.gmra.mxu0 %v1287
      %v2173 = vpop.f32.mrf.mxu0
      %v2174 = vadd.f32 %v2148, %v2173
      %2175 = vdwg.mxu0
      %s2176 = scalar_lea.vmem %s23, 192
      %v2177 = vld [vmem:[%s2176] sm:$0xff]
      %v2178 = vld [vmem:[%s2176 + $0x8] sm:$0xff]
      %v2179 = vld [vmem:[%s2176 + $0x10] sm:$0xff]
      %v2180 = vld [vmem:[%s2176 + $0x18] sm:$0xff]
      %v2181 = vld [vmem:[%s2176 + $0x20] sm:$0xff]
      %v2182 = vld [vmem:[%s2176 + $0x28] sm:$0xff]
      %v2183 = vld [vmem:[%s2176 + $0x30] sm:$0xff]
      %v2184 = vld [vmem:[%s2176 + $0x38] sm:$0xff]
      %s2185 = scalar_lea.vmem %s25, 3
      %v2186 = vld [vmem:[%s2185] sm:$0x1]
      %v2188 = vperm.slane %v2186, 0
      %2190 = vmatpush.msra.mxu0 0.0
      %2191 = vmatpush.msra.mxu0 0.0
      %2192 = vmatpush.msra.mxu0 0.0
      %2193 = vmatpush.msra.mxu0 0.0
      %2194 = vmatpush.msra.mxu0 0.0
      %2195 = vmatpush.msra.mxu0 0.0
      %2196 = vmatpush.msra.mxu0 0.0
      %2197 = vmatpush.msra.mxu0 0.0
      %2198 = vmatpush.msra.mxu0 %v2184
      %2199 = vmatpush.msra.mxu0 %v2183
      %2200 = vmatpush.msra.mxu0 %v2182
      %2201 = vmatpush.msra.mxu0 %v2181
      %2202 = vmatpush.msra.mxu0 %v2180
      %2203 = vmatpush.msra.mxu0 %v2179
      %2204 = vmatpush.msra.mxu0 %v2178
      %2205 = vmatpush.msra.mxu0 %v2177
      %2206 = vmatmul.f32.gmra.mxu0 %v1281
      %v2207 = vpop.f32.mrf.mxu0
      %v2208 = vadd.f32 %v2188, %v2207
      %2209 = vmatmul.f32.gmra.mxu0 %v1284
      %v2210 = vpop.f32.mrf.mxu0
      %v2211 = vadd.f32 %v2188, %v2210
      %2212 = vmatmul.f32.gmra.mxu0 %v1287
      %v2213 = vpop.f32.mrf.mxu0
      %v2214 = vadd.f32 %v2188, %v2213
      %2215 = vdwg.mxu0
      %v2217 = vsel %vm1391, %v2128, 0
      %v2220 = vsel %vm1391, %v2131, 0
      %v2223 = vsel %vm1391, %v2134, 0
      %v2226 = vsel %vm1391, %v2168, 0
      %v2229 = vsel %vm1391, %v2171, 0
      %v2232 = vsel %vm1391, %v2174, 0
      %2234 = vmatpush.xpose.msra.mxu0 0.0
      %2235 = vmatpush.xpose.msra.mxu0 0.0
      %2236 = vmatpush.xpose.msra.mxu0 0.0
      %2237 = vmatpush.xpose.msra.mxu0 0.0
      %2238 = vmatpush.xpose.msra.mxu0 0.0
      %2239 = vmatpush.xpose.msra.mxu0 0.0
      %2240 = vmatpush.xpose.msra.mxu0 0.0
      %2241 = vmatpush.xpose.msra.mxu0 0.0
      %2242 = vmatpush.xpose.msra.mxu0 0.0
      %2243 = vmatpush.xpose.msra.mxu0 0.0
      %2244 = vmatpush.xpose.msra.mxu0 0.0
      %2245 = vmatpush.xpose.msra.mxu0 0.0
      %2246 = vmatpush.xpose.msra.mxu0 0.0
      %2247 = vmatpush.xpose.msra.mxu0 %v2232
      %2248 = vmatpush.xpose.msra.mxu0 %v2229
      %2249 = vmatpush.xpose.msra.mxu0 %v2226
      %2250 = vmatmul.f32.gmra.mxu0 %v2217
      %v2251 = vpop.f32.mrf.mxu0
      %v2252 = vadd.f32 0.0, %v2251
      %2253 = vmatmul.f32.gmra.mxu0 %v2220
      %v2254 = vpop.f32.mrf.mxu0
      %v2255 = vadd.f32 0.0, %v2254
      %2256 = vmatmul.f32.gmra.mxu0 %v2223
      %v2257 = vpop.f32.mrf.mxu0
      %v2258 = vadd.f32 0.0, %v2257
      %2259 = vdwg.mxu0
      %v2260 = vsel %vm1436, %v2252, -inf
      %2261 = vmax.xlane.f32.xlu0 %v2260
      %v2262 = vpop.xlane.xlu0 %2261
      %v2263 = vsel %vm1436, %v2255, -inf
      %2264 = vmax.xlane.f32.xlu0 %v2263
      %v2265 = vpop.xlane.xlu0 %2264
      %v2266 = vsel %vm1443, %v2258, -inf
      %2267 = vmax.xlane.f32.xlu0 %v2266
      %v2268 = vpop.xlane.xlu0 %2267
      %v2269 = vsub.f32 %v2252, %v2262
      %v2270 = vsub.f32 %v2255, %v2265
      %v2271 = vsub.f32 %v2258, %v2268
      %v2272 = vmul.f32 %v2269, 1.442695
      %v2273 = vpow.pop %v2272
      %v2274 = vmul.f32 %v2270, 1.442695
      %v2275 = vpow.pop %v2274
      %v2276 = vmul.f32 %v2271, 1.442695
      %v2277 = vpow.pop %v2276
      %v2278 = vsel %vm1436, %v2273, 0.0
      %2279 = vadd.xlane.f32.xlu0 %v2278
      %v2280 = vpop.xlane.xlu0 %2279
      %v2281 = vsel %vm1436, %v2275, 0.0
      %2282 = vadd.xlane.f32.xlu0 %v2281
      %v2283 = vpop.xlane.xlu0 %2282
      %v2284 = vsel %vm1443, %v2277, 0.0
      %2285 = vadd.xlane.f32.xlu0 %v2284
      %v2286 = vpop.xlane.xlu0 %2285
      %v2287 = vrcp.pop %v2280
      %v2288 = vrcp.pop %v2283
      %v2289 = vrcp.pop %v2286
      %v2290 = vmul.f32 %v2273, %v2287
      %v2291 = vmul.f32 %v2275, %v2288
      %v2292 = vmul.f32 %v2277, %v2289
      %v2294 = vsel %vm1436, %v2290, 0
      %v2297 = vsel %vm1436, %v2291, 0
      %v2300 = vsel %vm1436, %v2292, 0
      %v2303 = vsel %vm1480, %v2214, 0
      %2305 = vmatpush.msra.mxu0 0.0
      %2306 = vmatpush.msra.mxu0 0.0
      %2307 = vmatpush.msra.mxu0 0.0
      %2308 = vmatpush.msra.mxu0 0.0
      %2309 = vmatpush.msra.mxu0 0.0
      %2310 = vmatpush.msra.mxu0 0.0
      %2311 = vmatpush.msra.mxu0 0.0
      %2312 = vmatpush.msra.mxu0 0.0
      %2313 = vmatpush.msra.mxu0 0.0
      %2314 = vmatpush.msra.mxu0 0.0
      %2315 = vmatpush.msra.mxu0 0.0
      %2316 = vmatpush.msra.mxu0 0.0
      %2317 = vmatpush.msra.mxu0 0.0
      %2318 = vmatpush.msra.mxu0 %v2303
      %2319 = vmatpush.msra.mxu0 %v2211
      %2320 = vmatpush.msra.mxu0 %v2208
      %2321 = vmatmul.f32.gmra.mxu0 %v2294
      %v2322 = vpop.f32.mrf.mxu0
      %v2323 = vadd.f32 0.0, %v2322
      %2324 = vmatmul.f32.gmra.mxu0 %v2297
      %v2325 = vpop.f32.mrf.mxu0
      %v2326 = vadd.f32 0.0, %v2325
      %2327 = vmatmul.f32.gmra.mxu0 %v2300
      %v2328 = vpop.f32.mrf.mxu0
      %v2329 = vadd.f32 0.0, %v2328
      %2330 = vdwg.mxu0
      %s2331 = scalar_lea.vmem %s27, 48
      %v2332 = vld [vmem:[%s2331] sm:$0xff]
      %v2333 = vld [vmem:[%s2331 + $0x8] sm:$0xff]
      %v2335 = vsel %vm1391, %v2323, 0
      %v2338 = vsel %vm1391, %v2326, 0
      %v2341 = vsel %vm1391, %v2329, 0
      %2343 = vmatpush.msra.mxu0 0.0
      %2344 = vmatpush.msra.mxu0 0.0
      %2345 = vmatpush.msra.mxu0 0.0
      %2346 = vmatpush.msra.mxu0 0.0
      %2347 = vmatpush.msra.mxu0 0.0
      %2348 = vmatpush.msra.mxu0 0.0
      %2349 = vmatpush.msra.mxu0 0.0
      %2350 = vmatpush.msra.mxu0 0.0
      %2351 = vmatpush.msra.mxu0 0.0
      %2352 = vmatpush.msra.mxu0 0.0
      %2353 = vmatpush.msra.mxu0 0.0
      %2354 = vmatpush.msra.mxu0 0.0
      %2355 = vmatpush.msra.mxu0 0.0
      %2356 = vmatpush.msra.mxu0 0.0
      %2357 = vmatpush.msra.mxu0 %v2333
      %2358 = vmatpush.msra.mxu0 %v2332
      %2359 = vmatmul.f32.gmra.mxu0 %v2335
      %v2360 = vpop.f32.mrf.mxu0
      %v2361 = vadd.f32 0.0, %v2360
      %2362 = vmatmul.f32.gmra.mxu0 %v2338
      %v2363 = vpop.f32.mrf.mxu0
      %v2364 = vadd.f32 0.0, %v2363
      %2365 = vmatmul.f32.gmra.mxu0 %v2341
      %v2366 = vpop.f32.mrf.mxu0
      %v2367 = vadd.f32 0.0, %v2366
      %2368 = vdwg.mxu0
      %v2369 = vadd.f32 %v2093, %v2361
      %v2370 = vadd.f32 %v2094, %v2364
      %v2371 = vadd.f32 %v2095, %v2367
      %v2372 = vadd.f32 %v1178, %v2369
      %v2373 = vadd.f32 %v1179, %v2370
      %v2374 = vadd.f32 %v1180, %v2371
      %v2375 = vld [vmem:[%s29] sm:$0x1]
      %v2377 = vperm.slane %v2375, 0
      %v2379 = vadd.f32 %v2372, %v2377
      %v2380 = vadd.f32 %v2373, %v2377
      %v2381 = vadd.f32 %v2374, %v2377
      %v2382 = vld [vmem:[%s31] sm:$0x1]
      %v2383 = vld [vmem:[%s33] sm:$0x1]
      %v2384 = vsel %vm1137, %v2379, 0.0
      %2385 = vadd.xlane.f32.xlu0 %v2384
      %v2386 = vpop.xlane.xlu0 %2385
      %v2387 = vsel %vm1137, %v2380, 0.0
      %2388 = vadd.xlane.f32.xlu0 %v2387
      %v2389 = vpop.xlane.xlu0 %2388
      %v2390 = vsel %vm1170, %v2381, 0.0
      %2391 = vadd.xlane.f32.xlu0 %v2390
      %v2392 = vpop.xlane.xlu0 %2391
      %v2393 = vmul.f32 %v2386, %v1198
      %v2394 = vmul.f32 %v2389, %v1198
      %v2395 = vmul.f32 %v2392, %v1198
      %v2396 = vsub.f32 %v2379, %v2393
      %v2397 = vsub.f32 %v2380, %v2394
      %v2398 = vsub.f32 %v2381, %v2395
      %v2399 = vmul.f32 %v2396, %v2396
      %v2400 = vmul.f32 %v2397, %v2397
      %v2401 = vmul.f32 %v2398, %v2398
      %v2402 = vsel %vm1137, %v2399, 0.0
      %2403 = vadd.xlane.f32.xlu0 %v2402
      %v2404 = vpop.xlane.xlu0 %2403
      %v2405 = vsel %vm1137, %v2400, 0.0
      %2406 = vadd.xlane.f32.xlu0 %v2405
      %v2407 = vpop.xlane.xlu0 %2406
      %v2408 = vsel %vm1170, %v2401, 0.0
      %2409 = vadd.xlane.f32.xlu0 %v2408
      %v2410 = vpop.xlane.xlu0 %2409
      %v2411 = vmul.f32 %v2404, %v1198
      %v2412 = vmul.f32 %v2407, %v1198
      %v2413 = vmul.f32 %v2410, %v1198
      %v2414 = vadd.f32 %v2411, 1e-12
      %v2415 = vadd.f32 %v2412, 1e-12
      %v2416 = vadd.f32 %v2413, 1e-12
      %v2417 = vrsqrt.pop %v2414
      %v2418 = vmul.f32 %v2417, %v2414
      %v2419 = vmul.f32 %v2418, %v2417
      %v2420 = vmul.f32 0.5, %v2419
      %v2421 = vsub.f32 1.5, %v2420
      %v2422 = vmul.f32 %v2417, %v2421
      %vm2423 = vweird.f32 %v2414
      %vm2424 = vweird.f32 %v2417
      %vm2425 = vmor %vm2423, %vm2424
      %v2426 = vsel %vm2425, %v2417, %v2422
      %v2427 = vrsqrt.pop %v2415
      %v2428 = vmul.f32 %v2427, %v2415
      %v2429 = vmul.f32 %v2428, %v2427
      %v2430 = vmul.f32 0.5, %v2429
      %v2431 = vsub.f32 1.5, %v2430
      %v2432 = vmul.f32 %v2427, %v2431
      %vm2433 = vweird.f32 %v2415
      %vm2434 = vweird.f32 %v2427
      %vm2435 = vmor %vm2433, %vm2434
      %v2436 = vsel %vm2435, %v2427, %v2432
      %v2437 = vrsqrt.pop %v2416
      %v2438 = vmul.f32 %v2437, %v2416
      %v2439 = vmul.f32 %v2438, %v2437
      %v2440 = vmul.f32 0.5, %v2439
      %v2441 = vsub.f32 1.5, %v2440
      %v2442 = vmul.f32 %v2437, %v2441
      %vm2443 = vweird.f32 %v2416
      %vm2444 = vweird.f32 %v2437
      %vm2445 = vmor %vm2443, %vm2444
      %v2446 = vsel %vm2445, %v2437, %v2442
      %v2447 = vmul.f32 %v2396, %v2426
      %v2448 = vmul.f32 %v2397, %v2436
      %v2449 = vmul.f32 %v2398, %v2446
      %v2451 = vperm.slane %v2382, 0
      %v2453 = vmul.f32 %v2447, %v2451
      %v2454 = vmul.f32 %v2448, %v2451
      %v2455 = vmul.f32 %v2449, %v2451
      %v2457 = vperm.slane %v2383, 0
      %v2459 = vadd.f32 %v2453, %v2457
      %v2460 = vadd.f32 %v2454, %v2457
      %v2461 = vadd.f32 %v2455, %v2457
      %v2462 = vld [vmem:[%s35] sm:$0xff]
      %v2463 = vld [vmem:[%s35 + $0x8] sm:$0xff]
      %v2464 = vld [vmem:[%s35 + $0x10] sm:$0xff]
      %v2465 = vld [vmem:[%s35 + $0x18] sm:$0xff]
      %v2466 = vld [vmem:[%s35 + $0x20] sm:$0xff]
      %v2467 = vld [vmem:[%s35 + $0x28] sm:$0xff]
      %v2468 = vld [vmem:[%s35 + $0x30] sm:$0xff]
      %v2469 = vld [vmem:[%s35 + $0x38] sm:$0xff]
      %v2470 = vld [vmem:[%s35 + $0x40] sm:$0xff]
      %v2471 = vld [vmem:[%s35 + $0x48] sm:$0xff]
      %v2472 = vld [vmem:[%s35 + $0x50] sm:$0xff]
      %v2473 = vld [vmem:[%s35 + $0x58] sm:$0xff]
      %v2474 = vld [vmem:[%s35 + $0x60] sm:$0xff]
      %v2475 = vld [vmem:[%s35 + $0x68] sm:$0xff]
      %v2476 = vld [vmem:[%s35 + $0x70] sm:$0xff]
      %v2477 = vld [vmem:[%s35 + $0x78] sm:$0xff]
      %v2478 = vld [vmem:[%s37] sm:$0x3]
      %v2480 = vperm.slane %v2478, 0
      %v2481 = vperm.slane %v2478, 1
      %v2485 = vsel %vm1137, %v2459, 0
      %v2488 = vsel %vm1137, %v2460, 0
      %v2491 = vsel %vm1137, %v2461, 0
      %2493 = vmatpush.msra.mxu0 0.0
      %2494 = vmatpush.msra.mxu0 0.0
      %2495 = vmatpush.msra.mxu0 0.0
      %2496 = vmatpush.msra.mxu0 0.0
      %2497 = vmatpush.msra.mxu0 0.0
      %2498 = vmatpush.msra.mxu0 0.0
      %2499 = vmatpush.msra.mxu0 0.0
      %2500 = vmatpush.msra.mxu0 0.0
      %2501 = vmatpush.msra.mxu0 %v2476
      %2502 = vmatpush.msra.mxu0 %v2474
      %2503 = vmatpush.msra.mxu0 %v2472
      %2504 = vmatpush.msra.mxu0 %v2470
      %2505 = vmatpush.msra.mxu0 %v2468
      %2506 = vmatpush.msra.mxu0 %v2466
      %2507 = vmatpush.msra.mxu0 %v2464
      %2508 = vmatpush.msra.mxu0 %v2462
      %2509 = vmatmul.f32.gmra.mxu0 %v2485
      %v2510 = vpop.f32.mrf.mxu0
      %v2511 = vadd.f32 %v2480, %v2510
      %2512 = vmatmul.f32.gmra.mxu0 %v2488
      %v2513 = vpop.f32.mrf.mxu0
      %v2514 = vadd.f32 %v2480, %v2513
      %2515 = vmatmul.f32.gmra.mxu0 %v2491
      %v2516 = vpop.f32.mrf.mxu0
      %v2517 = vadd.f32 %v2480, %v2516
      %2518 = vdwg.mxu0
      %2519 = vmatpush.msra.mxu0 0.0
      %2520 = vmatpush.msra.mxu0 0.0
      %2521 = vmatpush.msra.mxu0 0.0
      %2522 = vmatpush.msra.mxu0 0.0
      %2523 = vmatpush.msra.mxu0 0.0
      %2524 = vmatpush.msra.mxu0 0.0
      %2525 = vmatpush.msra.mxu0 0.0
      %2526 = vmatpush.msra.mxu0 0.0
      %2527 = vmatpush.msra.mxu0 %v2477
      %2528 = vmatpush.msra.mxu0 %v2475
      %2529 = vmatpush.msra.mxu0 %v2473
      %2530 = vmatpush.msra.mxu0 %v2471
      %2531 = vmatpush.msra.mxu0 %v2469
      %2532 = vmatpush.msra.mxu0 %v2467
      %2533 = vmatpush.msra.mxu0 %v2465
      %2534 = vmatpush.msra.mxu0 %v2463
      %2535 = vmatmul.f32.gmra.mxu0 %v2485
      %v2536 = vpop.f32.mrf.mxu0
      %v2537 = vadd.f32 %v2481, %v2536
      %2538 = vmatmul.f32.gmra.mxu0 %v2488
      %v2539 = vpop.f32.mrf.mxu0
      %v2540 = vadd.f32 %v2481, %v2539
      %2541 = vmatmul.f32.gmra.mxu0 %v2491
      %v2542 = vpop.f32.mrf.mxu0
      %v2543 = vadd.f32 %v2481, %v2542
      %2544 = vdwg.mxu0
      %v2545 = vmul.f32 %v2511, 0.5
      %v2546 = vmul.f32 %v2537, 0.5
      %v2547 = vmul.f32 %v2514, 0.5
      %v2548 = vmul.f32 %v2540, 0.5
      %v2549 = vmul.f32 %v2517, 0.5
      %v2550 = vmul.f32 %v2543, 0.5
      %v2551 = vmul.f32 %v2511, 0.70710677
      %v2552 = vmul.f32 %v2537, 0.70710677
      %v2553 = vmul.f32 %v2514, 0.70710677
      %v2554 = vmul.f32 %v2540, 0.70710677
      %v2555 = vmul.f32 %v2517, 0.70710677
      %v2556 = vmul.f32 %v2543, 0.70710677
      %v2557 = vmul.f32 %v2551, %v2551
      %v2558 = vmin.f32 16.0, %v2557
      %v2559 = vmul.f32 %v2558, 2.1237322e-06
      %v2560 = vadd.f32 %v2559, 0.00028619796
      %v2561 = vmul.f32 %v2558, %v2560
      %v2562 = vadd.f32 %v2561, 0.0036580483
      %v2563 = vmul.f32 %v2558, %v2562
      %v2564 = vadd.f32 %v2563, 0.05243302
      %v2565 = vmul.f32 %v2558, %v2564
      %v2566 = vadd.f32 %v2565, 0.18741608
      %v2567 = vmul.f32 %v2558, %v2566
      %v2568 = vadd.f32 %v2567, 1.1283791
      %v2569 = vmul.f32 %v2551, %v2568
      %v2570 = vmul.f32 %v2558, 3.8918573e-05
      %v2571 = vadd.f32 %v2570, 0.001143296
      %v2572 = vmul.f32 %v2558, %v2571
      %v2573 = vadd.f32 %v2572, 0.014752088
      %v2574 = vmul.f32 %v2558, %v2573
      %v2575 = vadd.f32 %v2574, 0.112945676
      %v2576 = vmul.f32 %v2558, %v2575
      %v2577 = vadd.f32 %v2576, 0.4994258
      %v2578 = vmul.f32 %v2558, %v2577
      %v2579 = vadd.f32 %v2578, 1.0
      %v2580 = vrcp.pop %v2579
      %v2581 = vmul.f32 %v2579, %v2580
      %v2582 = vsub.f32 1.0, %v2581
      %v2583 = vmul.f32 %v2580, %v2582
      %v2584 = vadd.f32 %v2580, %v2583
      %vm2585 = vweird.f32 %v2579
      %vm2586 = vweird.f32 %v2580
      %vm2587 = vmor %vm2585, %vm2586
      %v2588 = vsel %vm2587, %v2580, %v2584
      %v2589 = vand.u32 2147483647, %v2579
      %vm2590 = vcmp.eq.f32.partialorder %v2589, 8.507059e+37
      %v2591 = vand.u32 %v2579, 2147483648
      %v2592 = vor.u32 1.1754944e-38, %v2591
      %v2593 = vsel %vm2590, %v2592, %v2588
      %v2594 = vmul.f32 %v2569, %v2593
      %v2595 = vmin.f32 %v2594, 1.0
      %v2596 = vmax.f32 %v2595, -1.0
      %v2597 = vmul.f32 %v2552, %v2552
      %v2598 = vmin.f32 16.0, %v2597
      %v2599 = vmul.f32 %v2598, 2.1237322e-06
      %v2600 = vadd.f32 %v2599, 0.00028619796
      %v2601 = vmul.f32 %v2598, %v2600
      %v2602 = vadd.f32 %v2601, 0.0036580483
      %v2603 = vmul.f32 %v2598, %v2602
      %v2604 = vadd.f32 %v2603, 0.05243302
      %v2605 = vmul.f32 %v2598, %v2604
      %v2606 = vadd.f32 %v2605, 0.18741608
      %v2607 = vmul.f32 %v2598, %v2606
      %v2608 = vadd.f32 %v2607, 1.1283791
      %v2609 = vmul.f32 %v2552, %v2608
      %v2610 = vmul.f32 %v2598, 3.8918573e-05
      %v2611 = vadd.f32 %v2610, 0.001143296
      %v2612 = vmul.f32 %v2598, %v2611
      %v2613 = vadd.f32 %v2612, 0.014752088
      %v2614 = vmul.f32 %v2598, %v2613
      %v2615 = vadd.f32 %v2614, 0.112945676
      %v2616 = vmul.f32 %v2598, %v2615
      %v2617 = vadd.f32 %v2616, 0.4994258
      %v2618 = vmul.f32 %v2598, %v2617
      %v2619 = vadd.f32 %v2618, 1.0
      %v2620 = vrcp.pop %v2619
      %v2621 = vmul.f32 %v2619, %v2620
      %v2622 = vsub.f32 1.0, %v2621
      %v2623 = vmul.f32 %v2620, %v2622
      %v2624 = vadd.f32 %v2620, %v2623
      %vm2625 = vweird.f32 %v2619
      %vm2626 = vweird.f32 %v2620
      %vm2627 = vmor %vm2625, %vm2626
      %v2628 = vsel %vm2627, %v2620, %v2624
      %v2629 = vand.u32 2147483647, %v2619
      %vm2630 = vcmp.eq.f32.partialorder %v2629, 8.507059e+37
      %v2631 = vand.u32 %v2619, 2147483648
      %v2632 = vor.u32 1.1754944e-38, %v2631
      %v2633 = vsel %vm2630, %v2632, %v2628
      %v2634 = vmul.f32 %v2609, %v2633
      %v2635 = vmin.f32 %v2634, 1.0
      %v2636 = vmax.f32 %v2635, -1.0
      %v2637 = vmul.f32 %v2553, %v2553
      %v2638 = vmin.f32 16.0, %v2637
      %v2639 = vmul.f32 %v2638, 2.1237322e-06
      %v2640 = vadd.f32 %v2639, 0.00028619796
      %v2641 = vmul.f32 %v2638, %v2640
      %v2642 = vadd.f32 %v2641, 0.0036580483
      %v2643 = vmul.f32 %v2638, %v2642
      %v2644 = vadd.f32 %v2643, 0.05243302
      %v2645 = vmul.f32 %v2638, %v2644
      %v2646 = vadd.f32 %v2645, 0.18741608
      %v2647 = vmul.f32 %v2638, %v2646
      %v2648 = vadd.f32 %v2647, 1.1283791
      %v2649 = vmul.f32 %v2553, %v2648
      %v2650 = vmul.f32 %v2638, 3.8918573e-05
      %v2651 = vadd.f32 %v2650, 0.001143296
      %v2652 = vmul.f32 %v2638, %v2651
      %v2653 = vadd.f32 %v2652, 0.014752088
      %v2654 = vmul.f32 %v2638, %v2653
      %v2655 = vadd.f32 %v2654, 0.112945676
      %v2656 = vmul.f32 %v2638, %v2655
      %v2657 = vadd.f32 %v2656, 0.4994258
      %v2658 = vmul.f32 %v2638, %v2657
      %v2659 = vadd.f32 %v2658, 1.0
      %v2660 = vrcp.pop %v2659
      %v2661 = vmul.f32 %v2659, %v2660
      %v2662 = vsub.f32 1.0, %v2661
      %v2663 = vmul.f32 %v2660, %v2662
      %v2664 = vadd.f32 %v2660, %v2663
      %vm2665 = vweird.f32 %v2659
      %vm2666 = vweird.f32 %v2660
      %vm2667 = vmor %vm2665, %vm2666
      %v2668 = vsel %vm2667, %v2660, %v2664
      %v2669 = vand.u32 2147483647, %v2659
      %vm2670 = vcmp.eq.f32.partialorder %v2669, 8.507059e+37
      %v2671 = vand.u32 %v2659, 2147483648
      %v2672 = vor.u32 1.1754944e-38, %v2671
      %v2673 = vsel %vm2670, %v2672, %v2668
      %v2674 = vmul.f32 %v2649, %v2673
      %v2675 = vmin.f32 %v2674, 1.0
      %v2676 = vmax.f32 %v2675, -1.0
      %v2677 = vmul.f32 %v2554, %v2554
      %v2678 = vmin.f32 16.0, %v2677
      %v2679 = vmul.f32 %v2678, 2.1237322e-06
      %v2680 = vadd.f32 %v2679, 0.00028619796
      %v2681 = vmul.f32 %v2678, %v2680
      %v2682 = vadd.f32 %v2681, 0.0036580483
      %v2683 = vmul.f32 %v2678, %v2682
      %v2684 = vadd.f32 %v2683, 0.05243302
      %v2685 = vmul.f32 %v2678, %v2684
      %v2686 = vadd.f32 %v2685, 0.18741608
      %v2687 = vmul.f32 %v2678, %v2686
      %v2688 = vadd.f32 %v2687, 1.1283791
      %v2689 = vmul.f32 %v2554, %v2688
      %v2690 = vmul.f32 %v2678, 3.8918573e-05
      %v2691 = vadd.f32 %v2690, 0.001143296
      %v2692 = vmul.f32 %v2678, %v2691
      %v2693 = vadd.f32 %v2692, 0.014752088
      %v2694 = vmul.f32 %v2678, %v2693
      %v2695 = vadd.f32 %v2694, 0.112945676
      %v2696 = vmul.f32 %v2678, %v2695
      %v2697 = vadd.f32 %v2696, 0.4994258
      %v2698 = vmul.f32 %v2678, %v2697
      %v2699 = vadd.f32 %v2698, 1.0
      %v2700 = vrcp.pop %v2699
      %v2701 = vmul.f32 %v2699, %v2700
      %v2702 = vsub.f32 1.0, %v2701
      %v2703 = vmul.f32 %v2700, %v2702
      %v2704 = vadd.f32 %v2700, %v2703
      %vm2705 = vweird.f32 %v2699
      %vm2706 = vweird.f32 %v2700
      %vm2707 = vmor %vm2705, %vm2706
      %v2708 = vsel %vm2707, %v2700, %v2704
      %v2709 = vand.u32 2147483647, %v2699
      %vm2710 = vcmp.eq.f32.partialorder %v2709, 8.507059e+37
      %v2711 = vand.u32 %v2699, 2147483648
      %v2712 = vor.u32 1.1754944e-38, %v2711
      %v2713 = vsel %vm2710, %v2712, %v2708
      %v2714 = vmul.f32 %v2689, %v2713
      %v2715 = vmin.f32 %v2714, 1.0
      %v2716 = vmax.f32 %v2715, -1.0
      %v2717 = vmul.f32 %v2555, %v2555
      %v2718 = vmin.f32 16.0, %v2717
      %v2719 = vmul.f32 %v2718, 2.1237322e-06
      %v2720 = vadd.f32 %v2719, 0.00028619796
      %v2721 = vmul.f32 %v2718, %v2720
      %v2722 = vadd.f32 %v2721, 0.0036580483
      %v2723 = vmul.f32 %v2718, %v2722
      %v2724 = vadd.f32 %v2723, 0.05243302
      %v2725 = vmul.f32 %v2718, %v2724
      %v2726 = vadd.f32 %v2725, 0.18741608
      %v2727 = vmul.f32 %v2718, %v2726
      %v2728 = vadd.f32 %v2727, 1.1283791
      %v2729 = vmul.f32 %v2555, %v2728
      %v2730 = vmul.f32 %v2718, 3.8918573e-05
      %v2731 = vadd.f32 %v2730, 0.001143296
      %v2732 = vmul.f32 %v2718, %v2731
      %v2733 = vadd.f32 %v2732, 0.014752088
      %v2734 = vmul.f32 %v2718, %v2733
      %v2735 = vadd.f32 %v2734, 0.112945676
      %v2736 = vmul.f32 %v2718, %v2735
      %v2737 = vadd.f32 %v2736, 0.4994258
      %v2738 = vmul.f32 %v2718, %v2737
      %v2739 = vadd.f32 %v2738, 1.0
      %v2740 = vrcp.pop %v2739
      %v2741 = vmul.f32 %v2739, %v2740
      %v2742 = vsub.f32 1.0, %v2741
      %v2743 = vmul.f32 %v2740, %v2742
      %v2744 = vadd.f32 %v2740, %v2743
      %vm2745 = vweird.f32 %v2739
      %vm2746 = vweird.f32 %v2740
      %vm2747 = vmor %vm2745, %vm2746
      %v2748 = vsel %vm2747, %v2740, %v2744
      %v2749 = vand.u32 2147483647, %v2739
      %vm2750 = vcmp.eq.f32.partialorder %v2749, 8.507059e+37
      %v2751 = vand.u32 %v2739, 2147483648
      %v2752 = vor.u32 1.1754944e-38, %v2751
      %v2753 = vsel %vm2750, %v2752, %v2748
      %v2754 = vmul.f32 %v2729, %v2753
      %v2755 = vmin.f32 %v2754, 1.0
      %v2756 = vmax.f32 %v2755, -1.0
      %v2757 = vmul.f32 %v2556, %v2556
      %v2758 = vmin.f32 16.0, %v2757
      %v2759 = vmul.f32 %v2758, 2.1237322e-06
      %v2760 = vadd.f32 %v2759, 0.00028619796
      %v2761 = vmul.f32 %v2758, %v2760
      %v2762 = vadd.f32 %v2761, 0.0036580483
      %v2763 = vmul.f32 %v2758, %v2762
      %v2764 = vadd.f32 %v2763, 0.05243302
      %v2765 = vmul.f32 %v2758, %v2764
      %v2766 = vadd.f32 %v2765, 0.18741608
      %v2767 = vmul.f32 %v2758, %v2766
      %v2768 = vadd.f32 %v2767, 1.1283791
      %v2769 = vmul.f32 %v2556, %v2768
      %v2770 = vmul.f32 %v2758, 3.8918573e-05
      %v2771 = vadd.f32 %v2770, 0.001143296
      %v2772 = vmul.f32 %v2758, %v2771
      %v2773 = vadd.f32 %v2772, 0.014752088
      %v2774 = vmul.f32 %v2758, %v2773
      %v2775 = vadd.f32 %v2774, 0.112945676
      %v2776 = vmul.f32 %v2758, %v2775
      %v2777 = vadd.f32 %v2776, 0.4994258
      %v2778 = vmul.f32 %v2758, %v2777
      %v2779 = vadd.f32 %v2778, 1.0
      %v2780 = vrcp.pop %v2779
      %v2781 = vmul.f32 %v2779, %v2780
      %v2782 = vsub.f32 1.0, %v2781
      %v2783 = vmul.f32 %v2780, %v2782
      %v2784 = vadd.f32 %v2780, %v2783
      %vm2785 = vweird.f32 %v2779
      %vm2786 = vweird.f32 %v2780
      %vm2787 = vmor %vm2785, %vm2786
      %v2788 = vsel %vm2787, %v2780, %v2784
      %v2789 = vand.u32 2147483647, %v2779
      %vm2790 = vcmp.eq.f32.partialorder %v2789, 8.507059e+37
      %v2791 = vand.u32 %v2779, 2147483648
      %v2792 = vor.u32 1.1754944e-38, %v2791
      %v2793 = vsel %vm2790, %v2792, %v2788
      %v2794 = vmul.f32 %v2769, %v2793
      %v2795 = vmin.f32 %v2794, 1.0
      %v2796 = vmax.f32 %v2795, -1.0
      %v2797 = vadd.f32 %v2596, 1.0
      %v2798 = vadd.f32 %v2636, 1.0
      %v2799 = vadd.f32 %v2676, 1.0
      %v2800 = vadd.f32 %v2716, 1.0
      %v2801 = vadd.f32 %v2756, 1.0
      %v2802 = vadd.f32 %v2796, 1.0
      %v2803 = vmul.f32 %v2545, %v2797
      %v2804 = vmul.f32 %v2546, %v2798
      %v2805 = vmul.f32 %v2547, %v2799
      %v2806 = vmul.f32 %v2548, %v2800
      %v2807 = vmul.f32 %v2549, %v2801
      %v2808 = vmul.f32 %v2550, %v2802
      %v2809 = vld [vmem:[%s39] sm:$0xff]
      %v2810 = vld [vmem:[%s39 + $0x8] sm:$0xff]
      %v2811 = vld [vmem:[%s39 + $0x10] sm:$0xff]
      %v2812 = vld [vmem:[%s39 + $0x18] sm:$0xff]
      %v2813 = vld [vmem:[%s39 + $0x20] sm:$0xff]
      %v2814 = vld [vmem:[%s39 + $0x28] sm:$0xff]
      %v2815 = vld [vmem:[%s39 + $0x30] sm:$0xff]
      %v2816 = vld [vmem:[%s39 + $0x38] sm:$0xff]
      %v2817 = vld [vmem:[%s39 + $0x40] sm:$0xff]
      %v2818 = vld [vmem:[%s39 + $0x48] sm:$0xff]
      %v2819 = vld [vmem:[%s39 + $0x50] sm:$0xff]
      %v2820 = vld [vmem:[%s39 + $0x58] sm:$0xff]
      %v2821 = vld [vmem:[%s39 + $0x60] sm:$0xff]
      %v2822 = vld [vmem:[%s39 + $0x68] sm:$0xff]
      %v2823 = vld [vmem:[%s39 + $0x70] sm:$0xff]
      %v2824 = vld [vmem:[%s39 + $0x78] sm:$0xff]
      %v2825 = vld [vmem:[%s39 + $0x80] sm:$0xff]
      %v2826 = vld [vmem:[%s39 + $0x88] sm:$0xff]
      %v2827 = vld [vmem:[%s39 + $0x90] sm:$0xff]
      %v2828 = vld [vmem:[%s39 + $0x98] sm:$0xff]
      %v2829 = vld [vmem:[%s39 + $0xa0] sm:$0xff]
      %v2830 = vld [vmem:[%s39 + $0xa8] sm:$0xff]
      %v2831 = vld [vmem:[%s39 + $0xb0] sm:$0xff]
      %v2832 = vld [vmem:[%s39 + $0xb8] sm:$0xff]
      %v2833 = vld [vmem:[%s39 + $0xc0] sm:$0xff]
      %v2834 = vld [vmem:[%s39 + $0xc8] sm:$0xff]
      %v2835 = vld [vmem:[%s39 + $0xd0] sm:$0xff]
      %v2836 = vld [vmem:[%s39 + $0xd8] sm:$0xff]
      %v2837 = vld [vmem:[%s39 + $0xe0] sm:$0xff]
      %v2838 = vld [vmem:[%s39 + $0xe8] sm:$0xff]
      %v2839 = vld [vmem:[%s39 + $0xf0] sm:$0xff]
      %v2840 = vld [vmem:[%s39 + $0xf8] sm:$0xff]
      %v2841 = vld [vmem:[%s41] sm:$0x1]
      %v2843 = vperm.slane %v2841, 0
      %2845 = vmatpush.msra.mxu0 %v2824
      %2846 = vmatpush.msra.mxu0 %v2823
      %2847 = vmatpush.msra.mxu0 %v2822
      %2848 = vmatpush.msra.mxu0 %v2821
      %2849 = vmatpush.msra.mxu0 %v2820
      %2850 = vmatpush.msra.mxu0 %v2819
      %2851 = vmatpush.msra.mxu0 %v2818
      %2852 = vmatpush.msra.mxu0 %v2817
      %2853 = vmatpush.msra.mxu0 %v2816
      %2854 = vmatpush.msra.mxu0 %v2815
      %2855 = vmatpush.msra.mxu0 %v2814
      %2856 = vmatpush.msra.mxu0 %v2813
      %2857 = vmatpush.msra.mxu0 %v2812
      %2858 = vmatpush.msra.mxu0 %v2811
      %2859 = vmatpush.msra.mxu0 %v2810
      %2860 = vmatpush.msra.mxu0 %v2809
      %2861 = vmatmul.f32.gmra.mxu0 %v2803
      %v2862 = vpop.f32.mrf.mxu0
      %v2863 = vadd.f32 %v2843, %v2862
      %2864 = vmatmul.f32.gmra.mxu0 %v2805
      %v2865 = vpop.f32.mrf.mxu0
      %v2866 = vadd.f32 %v2843, %v2865
      %2867 = vmatmul.f32.gmra.mxu0 %v2807
      %v2868 = vpop.f32.mrf.mxu0
      %v2869 = vadd.f32 %v2843, %v2868
      %2870 = vdwg.mxu0
      %2871 = vmatpush.msra.mxu0 %v2840
      %2872 = vmatpush.msra.mxu0 %v2839
      %2873 = vmatpush.msra.mxu0 %v2838
      %2874 = vmatpush.msra.mxu0 %v2837
      %2875 = vmatpush.msra.mxu0 %v2836
      %2876 = vmatpush.msra.mxu0 %v2835
      %2877 = vmatpush.msra.mxu0 %v2834
      %2878 = vmatpush.msra.mxu0 %v2833
      %2879 = vmatpush.msra.mxu0 %v2832
      %2880 = vmatpush.msra.mxu0 %v2831
      %2881 = vmatpush.msra.mxu0 %v2830
      %2882 = vmatpush.msra.mxu0 %v2829
      %2883 = vmatpush.msra.mxu0 %v2828
      %2884 = vmatpush.msra.mxu0 %v2827
      %2885 = vmatpush.msra.mxu0 %v2826
      %2886 = vmatpush.msra.mxu0 %v2825
      %2887 = vmatmul.f32.gmra.mxu0 %v2804
      %v2888 = vpop.f32.mrf.mxu0
      %v2889 = vadd.f32 %v2863, %v2888
      %2890 = vmatmul.f32.gmra.mxu0 %v2806
      %v2891 = vpop.f32.mrf.mxu0
      %v2892 = vadd.f32 %v2866, %v2891
      %2893 = vmatmul.f32.gmra.mxu0 %v2808
      %v2894 = vpop.f32.mrf.mxu0
      %v2895 = vadd.f32 %v2869, %v2894
      %2896 = vdwg.mxu0
      %v2897 = vadd.f32 %v2379, %v2889
      %v2898 = vadd.f32 %v2380, %v2892
      %v2899 = vadd.f32 %v2381, %v2895
      %v2900 = vld [vmem:[%s43] sm:$0x1]
      %v2901 = vld [vmem:[%s45] sm:$0x1]
      %v2902 = vsel %vm1137, %v2897, 0.0
      %2903 = vadd.xlane.f32.xlu0 %v2902
      %v2904 = vpop.xlane.xlu0 %2903
      %v2905 = vsel %vm1137, %v2898, 0.0
      %2906 = vadd.xlane.f32.xlu0 %v2905
      %v2907 = vpop.xlane.xlu0 %2906
      %v2908 = vsel %vm1170, %v2899, 0.0
      %2909 = vadd.xlane.f32.xlu0 %v2908
      %v2910 = vpop.xlane.xlu0 %2909
      %v2911 = vmul.f32 %v2904, %v1198
      %v2912 = vmul.f32 %v2907, %v1198
      %v2913 = vmul.f32 %v2910, %v1198
      %v2914 = vsub.f32 %v2897, %v2911
      %v2915 = vsub.f32 %v2898, %v2912
      %v2916 = vsub.f32 %v2899, %v2913
      %v2917 = vmul.f32 %v2914, %v2914
      %v2918 = vmul.f32 %v2915, %v2915
      %v2919 = vmul.f32 %v2916, %v2916
      %v2920 = vsel %vm1137, %v2917, 0.0
      %2921 = vadd.xlane.f32.xlu0 %v2920
      %v2922 = vpop.xlane.xlu0 %2921
      %v2923 = vsel %vm1137, %v2918, 0.0
      %2924 = vadd.xlane.f32.xlu0 %v2923
      %v2925 = vpop.xlane.xlu0 %2924
      %v2926 = vsel %vm1170, %v2919, 0.0
      %2927 = vadd.xlane.f32.xlu0 %v2926
      %v2928 = vpop.xlane.xlu0 %2927
      %v2929 = vmul.f32 %v2922, %v1198
      %v2930 = vmul.f32 %v2925, %v1198
      %v2931 = vmul.f32 %v2928, %v1198
      %v2932 = vadd.f32 %v2929, 1e-12
      %v2933 = vadd.f32 %v2930, 1e-12
      %v2934 = vadd.f32 %v2931, 1e-12
      %v2935 = vrsqrt.pop %v2932
      %v2936 = vmul.f32 %v2935, %v2932
      %v2937 = vmul.f32 %v2936, %v2935
      %v2938 = vmul.f32 0.5, %v2937
      %v2939 = vsub.f32 1.5, %v2938
      %v2940 = vmul.f32 %v2935, %v2939
      %vm2941 = vweird.f32 %v2932
      %vm2942 = vweird.f32 %v2935
      %vm2943 = vmor %vm2941, %vm2942
      %v2944 = vsel %vm2943, %v2935, %v2940
      %v2945 = vrsqrt.pop %v2933
      %v2946 = vmul.f32 %v2945, %v2933
      %v2947 = vmul.f32 %v2946, %v2945
      %v2948 = vmul.f32 0.5, %v2947
      %v2949 = vsub.f32 1.5, %v2948
      %v2950 = vmul.f32 %v2945, %v2949
      %vm2951 = vweird.f32 %v2933
      %vm2952 = vweird.f32 %v2945
      %vm2953 = vmor %vm2951, %vm2952
      %v2954 = vsel %vm2953, %v2945, %v2950
      %v2955 = vrsqrt.pop %v2934
      %v2956 = vmul.f32 %v2955, %v2934
      %v2957 = vmul.f32 %v2956, %v2955
      %v2958 = vmul.f32 0.5, %v2957
      %v2959 = vsub.f32 1.5, %v2958
      %v2960 = vmul.f32 %v2955, %v2959
      %vm2961 = vweird.f32 %v2934
      %vm2962 = vweird.f32 %v2955
      %vm2963 = vmor %vm2961, %vm2962
      %v2964 = vsel %vm2963, %v2955, %v2960
      %v2965 = vmul.f32 %v2914, %v2944
      %v2966 = vmul.f32 %v2915, %v2954
      %v2967 = vmul.f32 %v2916, %v2964
      %v2969 = vperm.slane %v2900, 0
      %v2971 = vmul.f32 %v2965, %v2969
      %v2972 = vmul.f32 %v2966, %v2969
      %v2973 = vmul.f32 %v2967, %v2969
      %v2975 = vperm.slane %v2901, 0
      %v2977 = vadd.f32 %v2971, %v2975
      %v2978 = vadd.f32 %v2972, %v2975
      %v2979 = vadd.f32 %v2973, %v2975
      %v2980 = vld [vmem:[%s47] sm:$0xff]
      %v2981 = vld [vmem:[%s47 + $0x8] sm:$0xff]
      %v2982 = vld [vmem:[%s47 + $0x10] sm:$0xff]
      %v2983 = vld [vmem:[%s47 + $0x18] sm:$0xff]
      %v2984 = vld [vmem:[%s47 + $0x20] sm:$0xff]
      %v2985 = vld [vmem:[%s47 + $0x28] sm:$0xff]
      %v2986 = vld [vmem:[%s47 + $0x30] sm:$0xff]
      %v2987 = vld [vmem:[%s47 + $0x38] sm:$0xff]
      %v2988 = vld [vmem:[%s49] sm:$0x1]
      %v2990 = vperm.slane %v2988, 0
      %v2993 = vsel %vm1137, %v2977, 0
      %v2996 = vsel %vm1137, %v2978, 0
      %v2999 = vsel %vm1137, %v2979, 0
      %3001 = vmatpush.msra.mxu0 0.0
      %3002 = vmatpush.msra.mxu0 0.0
      %3003 = vmatpush.msra.mxu0 0.0
      %3004 = vmatpush.msra.mxu0 0.0
      %3005 = vmatpush.msra.mxu0 0.0
      %3006 = vmatpush.msra.mxu0 0.0
      %3007 = vmatpush.msra.mxu0 0.0
      %3008 = vmatpush.msra.mxu0 0.0
      %3009 = vmatpush.msra.mxu0 %v2987
      %3010 = vmatpush.msra.mxu0 %v2986
      %3011 = vmatpush.msra.mxu0 %v2985
      %3012 = vmatpush.msra.mxu0 %v2984
      %3013 = vmatpush.msra.mxu0 %v2983
      %3014 = vmatpush.msra.mxu0 %v2982
      %3015 = vmatpush.msra.mxu0 %v2981
      %3016 = vmatpush.msra.mxu0 %v2980
      %3017 = vmatmul.f32.gmra.mxu0 %v2993
      %v3018 = vpop.f32.mrf.mxu0
      %v3019 = vadd.f32 %v2990, %v3018
      %3020 = vmatmul.f32.gmra.mxu0 %v2996
      %v3021 = vpop.f32.mrf.mxu0
      %v3022 = vadd.f32 %v2990, %v3021
      %3023 = vmatmul.f32.gmra.mxu0 %v2999
      %v3024 = vpop.f32.mrf.mxu0
      %v3025 = vadd.f32 %v2990, %v3024
      %3026 = vdwg.mxu0
      %v3027 = vld [vmem:[%s51] sm:$0xff]
      %v3028 = vld [vmem:[%s51 + $0x8] sm:$0xff]
      %v3029 = vld [vmem:[%s51 + $0x10] sm:$0xff]
      %v3030 = vld [vmem:[%s51 + $0x18] sm:$0xff]
      %v3031 = vld [vmem:[%s51 + $0x20] sm:$0xff]
      %v3032 = vld [vmem:[%s51 + $0x28] sm:$0xff]
      %v3033 = vld [vmem:[%s51 + $0x30] sm:$0xff]
      %v3034 = vld [vmem:[%s51 + $0x38] sm:$0xff]
      %v3035 = vld [vmem:[%s53] sm:$0x1]
      %v3037 = vperm.slane %v3035, 0
      %3039 = vmatpush.msra.mxu0 0.0
      %3040 = vmatpush.msra.mxu0 0.0
      %3041 = vmatpush.msra.mxu0 0.0
      %3042 = vmatpush.msra.mxu0 0.0
      %3043 = vmatpush.msra.mxu0 0.0
      %3044 = vmatpush.msra.mxu0 0.0
      %3045 = vmatpush.msra.mxu0 0.0
      %3046 = vmatpush.msra.mxu0 0.0
      %3047 = vmatpush.msra.mxu0 %v3034
      %3048 = vmatpush.msra.mxu0 %v3033
      %3049 = vmatpush.msra.mxu0 %v3032
      %3050 = vmatpush.msra.mxu0 %v3031
      %3051 = vmatpush.msra.mxu0 %v3030
      %3052 = vmatpush.msra.mxu0 %v3029
      %3053 = vmatpush.msra.mxu0 %v3028
      %3054 = vmatpush.msra.mxu0 %v3027
      %3055 = vmatmul.f32.gmra.mxu0 %v2993
      %v3056 = vpop.f32.mrf.mxu0
      %v3057 = vadd.f32 %v3037, %v3056
      %3058 = vmatmul.f32.gmra.mxu0 %v2996
      %v3059 = vpop.f32.mrf.mxu0
      %v3060 = vadd.f32 %v3037, %v3059
      %3061 = vmatmul.f32.gmra.mxu0 %v2999
      %v3062 = vpop.f32.mrf.mxu0
      %v3063 = vadd.f32 %v3037, %v3062
      %3064 = vdwg.mxu0
      %v3065 = vld [vmem:[%s55] sm:$0xff]
      %v3066 = vld [vmem:[%s55 + $0x8] sm:$0xff]
      %v3067 = vld [vmem:[%s55 + $0x10] sm:$0xff]
      %v3068 = vld [vmem:[%s55 + $0x18] sm:$0xff]
      %v3069 = vld [vmem:[%s55 + $0x20] sm:$0xff]
      %v3070 = vld [vmem:[%s55 + $0x28] sm:$0xff]
      %v3071 = vld [vmem:[%s55 + $0x30] sm:$0xff]
      %v3072 = vld [vmem:[%s55 + $0x38] sm:$0xff]
      %v3073 = vld [vmem:[%s57] sm:$0x1]
      %v3075 = vperm.slane %v3073, 0
      %3077 = vmatpush.msra.mxu0 0.0
      %3078 = vmatpush.msra.mxu0 0.0
      %3079 = vmatpush.msra.mxu0 0.0
      %3080 = vmatpush.msra.mxu0 0.0
      %3081 = vmatpush.msra.mxu0 0.0
      %3082 = vmatpush.msra.mxu0 0.0
      %3083 = vmatpush.msra.mxu0 0.0
      %3084 = vmatpush.msra.mxu0 0.0
      %3085 = vmatpush.msra.mxu0 %v3072
      %3086 = vmatpush.msra.mxu0 %v3071
      %3087 = vmatpush.msra.mxu0 %v3070
      %3088 = vmatpush.msra.mxu0 %v3069
      %3089 = vmatpush.msra.mxu0 %v3068
      %3090 = vmatpush.msra.mxu0 %v3067
      %3091 = vmatpush.msra.mxu0 %v3066
      %3092 = vmatpush.msra.mxu0 %v3065
      %3093 = vmatmul.f32.gmra.mxu0 %v2993
      %v3094 = vpop.f32.mrf.mxu0
      %v3095 = vadd.f32 %v3075, %v3094
      %3096 = vmatmul.f32.gmra.mxu0 %v2996
      %v3097 = vpop.f32.mrf.mxu0
      %v3098 = vadd.f32 %v3075, %v3097
      %3099 = vmatmul.f32.gmra.mxu0 %v2999
      %v3100 = vpop.f32.mrf.mxu0
      %v3101 = vadd.f32 %v3075, %v3100
      %3102 = vdwg.mxu0
      %v3104 = vsel %vm1391, %v3019, 0
      %v3107 = vsel %vm1391, %v3022, 0
      %v3110 = vsel %vm1391, %v3025, 0
      %v3113 = vsel %vm1391, %v3057, 0
      %v3116 = vsel %vm1391, %v3060, 0
      %v3119 = vsel %vm1391, %v3063, 0
      %3121 = vmatpush.xpose.msra.mxu0 0.0
      %3122 = vmatpush.xpose.msra.mxu0 0.0
      %3123 = vmatpush.xpose.msra.mxu0 0.0
      %3124 = vmatpush.xpose.msra.mxu0 0.0
      %3125 = vmatpush.xpose.msra.mxu0 0.0
      %3126 = vmatpush.xpose.msra.mxu0 0.0
      %3127 = vmatpush.xpose.msra.mxu0 0.0
      %3128 = vmatpush.xpose.msra.mxu0 0.0
      %3129 = vmatpush.xpose.msra.mxu0 0.0
      %3130 = vmatpush.xpose.msra.mxu0 0.0
      %3131 = vmatpush.xpose.msra.mxu0 0.0
      %3132 = vmatpush.xpose.msra.mxu0 0.0
      %3133 = vmatpush.xpose.msra.mxu0 0.0
      %3134 = vmatpush.xpose.msra.mxu0 %v3119
      %3135 = vmatpush.xpose.msra.mxu0 %v3116
      %3136 = vmatpush.xpose.msra.mxu0 %v3113
      %3137 = vmatmul.f32.gmra.mxu0 %v3104
      %v3138 = vpop.f32.mrf.mxu0
      %v3139 = vadd.f32 0.0, %v3138
      %3140 = vmatmul.f32.gmra.mxu0 %v3107
      %v3141 = vpop.f32.mrf.mxu0
      %v3142 = vadd.f32 0.0, %v3141
      %3143 = vmatmul.f32.gmra.mxu0 %v3110
      %v3144 = vpop.f32.mrf.mxu0
      %v3145 = vadd.f32 0.0, %v3144
      %3146 = vdwg.mxu0
      %v3147 = vsel %vm1436, %v3139, -inf
      %3148 = vmax.xlane.f32.xlu0 %v3147
      %v3149 = vpop.xlane.xlu0 %3148
      %v3150 = vsel %vm1436, %v3142, -inf
      %3151 = vmax.xlane.f32.xlu0 %v3150
      %v3152 = vpop.xlane.xlu0 %3151
      %v3153 = vsel %vm1443, %v3145, -inf
      %3154 = vmax.xlane.f32.xlu0 %v3153
      %v3155 = vpop.xlane.xlu0 %3154
      %v3156 = vsub.f32 %v3139, %v3149
      %v3157 = vsub.f32 %v3142, %v3152
      %v3158 = vsub.f32 %v3145, %v3155
      %v3159 = vmul.f32 %v3156, 1.442695
      %v3160 = vpow.pop %v3159
      %v3161 = vmul.f32 %v3157, 1.442695
      %v3162 = vpow.pop %v3161
      %v3163 = vmul.f32 %v3158, 1.442695
      %v3164 = vpow.pop %v3163
      %v3165 = vsel %vm1436, %v3160, 0.0
      %3166 = vadd.xlane.f32.xlu0 %v3165
      %v3167 = vpop.xlane.xlu0 %3166
      %v3168 = vsel %vm1436, %v3162, 0.0
      %3169 = vadd.xlane.f32.xlu0 %v3168
      %v3170 = vpop.xlane.xlu0 %3169
      %v3171 = vsel %vm1443, %v3164, 0.0
      %3172 = vadd.xlane.f32.xlu0 %v3171
      %v3173 = vpop.xlane.xlu0 %3172
      %v3174 = vrcp.pop %v3167
      %v3175 = vrcp.pop %v3170
      %v3176 = vrcp.pop %v3173
      %v3177 = vmul.f32 %v3160, %v3174
      %v3178 = vmul.f32 %v3162, %v3175
      %v3179 = vmul.f32 %v3164, %v3176
      %v3181 = vsel %vm1436, %v3177, 0
      %v3184 = vsel %vm1436, %v3178, 0
      %v3187 = vsel %vm1436, %v3179, 0
      %v3190 = vsel %vm1480, %v3101, 0
      %3192 = vmatpush.msra.mxu0 0.0
      %3193 = vmatpush.msra.mxu0 0.0
      %3194 = vmatpush.msra.mxu0 0.0
      %3195 = vmatpush.msra.mxu0 0.0
      %3196 = vmatpush.msra.mxu0 0.0
      %3197 = vmatpush.msra.mxu0 0.0
      %3198 = vmatpush.msra.mxu0 0.0
      %3199 = vmatpush.msra.mxu0 0.0
      %3200 = vmatpush.msra.mxu0 0.0
      %3201 = vmatpush.msra.mxu0 0.0
      %3202 = vmatpush.msra.mxu0 0.0
      %3203 = vmatpush.msra.mxu0 0.0
      %3204 = vmatpush.msra.mxu0 0.0
      %3205 = vmatpush.msra.mxu0 %v3190
      %3206 = vmatpush.msra.mxu0 %v3098
      %3207 = vmatpush.msra.mxu0 %v3095
      %3208 = vmatmul.f32.gmra.mxu0 %v3181
      %v3209 = vpop.f32.mrf.mxu0
      %v3210 = vadd.f32 0.0, %v3209
      %3211 = vmatmul.f32.gmra.mxu0 %v3184
      %v3212 = vpop.f32.mrf.mxu0
      %v3213 = vadd.f32 0.0, %v3212
      %3214 = vmatmul.f32.gmra.mxu0 %v3187
      %v3215 = vpop.f32.mrf.mxu0
      %v3216 = vadd.f32 0.0, %v3215
      %3217 = vdwg.mxu0
      %v3218 = vld [vmem:[%s59] sm:$0xff]
      %v3219 = vld [vmem:[%s59 + $0x8] sm:$0xff]
      %s3220 = scalar_lea.vmem %s47, 64
      %v3221 = vld [vmem:[%s3220] sm:$0xff]
      %v3222 = vld [vmem:[%s3220 + $0x8] sm:$0xff]
      %v3223 = vld [vmem:[%s3220 + $0x10] sm:$0xff]
      %v3224 = vld [vmem:[%s3220 + $0x18] sm:$0xff]
      %v3225 = vld [vmem:[%s3220 + $0x20] sm:$0xff]
      %v3226 = vld [vmem:[%s3220 + $0x28] sm:$0xff]
      %v3227 = vld [vmem:[%s3220 + $0x30] sm:$0xff]
      %v3228 = vld [vmem:[%s3220 + $0x38] sm:$0xff]
      %s3229 = scalar_lea.vmem %s49, 1
      %v3230 = vld [vmem:[%s3229] sm:$0x1]
      %v3232 = vperm.slane %v3230, 0
      %3234 = vmatpush.msra.mxu0 0.0
      %3235 = vmatpush.msra.mxu0 0.0
      %3236 = vmatpush.msra.mxu0 0.0
      %3237 = vmatpush.msra.mxu0 0.0
      %3238 = vmatpush.msra.mxu0 0.0
      %3239 = vmatpush.msra.mxu0 0.0
      %3240 = vmatpush.msra.mxu0 0.0
      %3241 = vmatpush.msra.mxu0 0.0
      %3242 = vmatpush.msra.mxu0 %v3228
      %3243 = vmatpush.msra.mxu0 %v3227
      %3244 = vmatpush.msra.mxu0 %v3226
      %3245 = vmatpush.msra.mxu0 %v3225
      %3246 = vmatpush.msra.mxu0 %v3224
      %3247 = vmatpush.msra.mxu0 %v3223
      %3248 = vmatpush.msra.mxu0 %v3222
      %3249 = vmatpush.msra.mxu0 %v3221
      %3250 = vmatmul.f32.gmra.mxu0 %v2993
      %v3251 = vpop.f32.mrf.mxu0
      %v3252 = vadd.f32 %v3232, %v3251
      %3253 = vmatmul.f32.gmra.mxu0 %v2996
      %v3254 = vpop.f32.mrf.mxu0
      %v3255 = vadd.f32 %v3232, %v3254
      %3256 = vmatmul.f32.gmra.mxu0 %v2999
      %v3257 = vpop.f32.mrf.mxu0
      %v3258 = vadd.f32 %v3232, %v3257
      %3259 = vdwg.mxu0
      %s3260 = scalar_lea.vmem %s51, 64
      %v3261 = vld [vmem:[%s3260] sm:$0xff]
      %v3262 = vld [vmem:[%s3260 + $0x8] sm:$0xff]
      %v3263 = vld [vmem:[%s3260 + $0x10] sm:$0xff]
      %v3264 = vld [vmem:[%s3260 + $0x18] sm:$0xff]
      %v3265 = vld [vmem:[%s3260 + $0x20] sm:$0xff]
      %v3266 = vld [vmem:[%s3260 + $0x28] sm:$0xff]
      %v3267 = vld [vmem:[%s3260 + $0x30] sm:$0xff]
      %v3268 = vld [vmem:[%s3260 + $0x38] sm:$0xff]
      %s3269 = scalar_lea.vmem %s53, 1
      %v3270 = vld [vmem:[%s3269] sm:$0x1]
      %v3272 = vperm.slane %v3270, 0
      %3274 = vmatpush.msra.mxu0 0.0
      %3275 = vmatpush.msra.mxu0 0.0
      %3276 = vmatpush.msra.mxu0 0.0
      %3277 = vmatpush.msra.mxu0 0.0
      %3278 = vmatpush.msra.mxu0 0.0
      %3279 = vmatpush.msra.mxu0 0.0
      %3280 = vmatpush.msra.mxu0 0.0
      %3281 = vmatpush.msra.mxu0 0.0
      %3282 = vmatpush.msra.mxu0 %v3268
      %3283 = vmatpush.msra.mxu0 %v3267
      %3284 = vmatpush.msra.mxu0 %v3266
      %3285 = vmatpush.msra.mxu0 %v3265
      %3286 = vmatpush.msra.mxu0 %v3264
      %3287 = vmatpush.msra.mxu0 %v3263
      %3288 = vmatpush.msra.mxu0 %v3262
      %3289 = vmatpush.msra.mxu0 %v3261
      %3290 = vmatmul.f32.gmra.mxu0 %v2993
      %v3291 = vpop.f32.mrf.mxu0
      %v3292 = vadd.f32 %v3272, %v3291
      %3293 = vmatmul.f32.gmra.mxu0 %v2996
      %v3294 = vpop.f32.mrf.mxu0
      %v3295 = vadd.f32 %v3272, %v3294
      %3296 = vmatmul.f32.gmra.mxu0 %v2999
      %v3297 = vpop.f32.mrf.mxu0
      %v3298 = vadd.f32 %v3272, %v3297
      %3299 = vdwg.mxu0
      %s3300 = scalar_lea.vmem %s55, 64
      %v3301 = vld [vmem:[%s3300] sm:$0xff]
      %v3302 = vld [vmem:[%s3300 + $0x8] sm:$0xff]
      %v3303 = vld [vmem:[%s3300 + $0x10] sm:$0xff]
      %v3304 = vld [vmem:[%s3300 + $0x18] sm:$0xff]
      %v3305 = vld [vmem:[%s3300 + $0x20] sm:$0xff]
      %v3306 = vld [vmem:[%s3300 + $0x28] sm:$0xff]
      %v3307 = vld [vmem:[%s3300 + $0x30] sm:$0xff]
      %v3308 = vld [vmem:[%s3300 + $0x38] sm:$0xff]
      %s3309 = scalar_lea.vmem %s57, 1
      %v3310 = vld [vmem:[%s3309] sm:$0x1]
      %v3312 = vperm.slane %v3310, 0
      %3314 = vmatpush.msra.mxu0 0.0
      %3315 = vmatpush.msra.mxu0 0.0
      %3316 = vmatpush.msra.mxu0 0.0
      %3317 = vmatpush.msra.mxu0 0.0
      %3318 = vmatpush.msra.mxu0 0.0
      %3319 = vmatpush.msra.mxu0 0.0
      %3320 = vmatpush.msra.mxu0 0.0
      %3321 = vmatpush.msra.mxu0 0.0
      %3322 = vmatpush.msra.mxu0 %v3308
      %3323 = vmatpush.msra.mxu0 %v3307
      %3324 = vmatpush.msra.mxu0 %v3306
      %3325 = vmatpush.msra.mxu0 %v3305
      %3326 = vmatpush.msra.mxu0 %v3304
      %3327 = vmatpush.msra.mxu0 %v3303
      %3328 = vmatpush.msra.mxu0 %v3302
      %3329 = vmatpush.msra.mxu0 %v3301
      %3330 = vmatmul.f32.gmra.mxu0 %v2993
      %v3331 = vpop.f32.mrf.mxu0
      %v3332 = vadd.f32 %v3312, %v3331
      %3333 = vmatmul.f32.gmra.mxu0 %v2996
      %v3334 = vpop.f32.mrf.mxu0
      %v3335 = vadd.f32 %v3312, %v3334
      %3336 = vmatmul.f32.gmra.mxu0 %v2999
      %v3337 = vpop.f32.mrf.mxu0
      %v3338 = vadd.f32 %v3312, %v3337
      %3339 = vdwg.mxu0
      %v3341 = vsel %vm1391, %v3252, 0
      %v3344 = vsel %vm1391, %v3255, 0
      %v3347 = vsel %vm1391, %v3258, 0
      %v3350 = vsel %vm1391, %v3292, 0
      %v3353 = vsel %vm1391, %v3295, 0
      %v3356 = vsel %vm1391, %v3298, 0
      %3358 = vmatpush.xpose.msra.mxu0 0.0
      %3359 = vmatpush.xpose.msra.mxu0 0.0
      %3360 = vmatpush.xpose.msra.mxu0 0.0
      %3361 = vmatpush.xpose.msra.mxu0 0.0
      %3362 = vmatpush.xpose.msra.mxu0 0.0
      %3363 = vmatpush.xpose.msra.mxu0 0.0
      %3364 = vmatpush.xpose.msra.mxu0 0.0
      %3365 = vmatpush.xpose.msra.mxu0 0.0
      %3366 = vmatpush.xpose.msra.mxu0 0.0
      %3367 = vmatpush.xpose.msra.mxu0 0.0
      %3368 = vmatpush.xpose.msra.mxu0 0.0
      %3369 = vmatpush.xpose.msra.mxu0 0.0
      %3370 = vmatpush.xpose.msra.mxu0 0.0
      %3371 = vmatpush.xpose.msra.mxu0 %v3356
      %3372 = vmatpush.xpose.msra.mxu0 %v3353
      %3373 = vmatpush.xpose.msra.mxu0 %v3350
      %3374 = vmatmul.f32.gmra.mxu0 %v3341
      %v3375 = vpop.f32.mrf.mxu0
      %v3376 = vadd.f32 0.0, %v3375
      %3377 = vmatmul.f32.gmra.mxu0 %v3344
      %v3378 = vpop.f32.mrf.mxu0
      %v3379 = vadd.f32 0.0, %v3378
      %3380 = vmatmul.f32.gmra.mxu0 %v3347
      %v3381 = vpop.f32.mrf.mxu0
      %v3382 = vadd.f32 0.0, %v3381
      %3383 = vdwg.mxu0
      %v3384 = vsel %vm1436, %v3376, -inf
      %3385 = vmax.xlane.f32.xlu0 %v3384
      %v3386 = vpop.xlane.xlu0 %3385
      %v3387 = vsel %vm1436, %v3379, -inf
      %3388 = vmax.xlane.f32.xlu0 %v3387
      %v3389 = vpop.xlane.xlu0 %3388
      %v3390 = vsel %vm1443, %v3382, -inf
      %3391 = vmax.xlane.f32.xlu0 %v3390
      %v3392 = vpop.xlane.xlu0 %3391
      %v3393 = vsub.f32 %v3376, %v3386
      %v3394 = vsub.f32 %v3379, %v3389
      %v3395 = vsub.f32 %v3382, %v3392
      %v3396 = vmul.f32 %v3393, 1.442695
      %v3397 = vpow.pop %v3396
      %v3398 = vmul.f32 %v3394, 1.442695
      %v3399 = vpow.pop %v3398
      %v3400 = vmul.f32 %v3395, 1.442695
      %v3401 = vpow.pop %v3400
      %v3402 = vsel %vm1436, %v3397, 0.0
      %3403 = vadd.xlane.f32.xlu0 %v3402
      %v3404 = vpop.xlane.xlu0 %3403
      %v3405 = vsel %vm1436, %v3399, 0.0
      %3406 = vadd.xlane.f32.xlu0 %v3405
      %v3407 = vpop.xlane.xlu0 %3406
      %v3408 = vsel %vm1443, %v3401, 0.0
      %3409 = vadd.xlane.f32.xlu0 %v3408
      %v3410 = vpop.xlane.xlu0 %3409
      %v3411 = vrcp.pop %v3404
      %v3412 = vrcp.pop %v3407
      %v3413 = vrcp.pop %v3410
      %v3414 = vmul.f32 %v3397, %v3411
      %v3415 = vmul.f32 %v3399, %v3412
      %v3416 = vmul.f32 %v3401, %v3413
      %v3418 = vsel %vm1436, %v3414, 0
      %v3421 = vsel %vm1436, %v3415, 0
      %v3424 = vsel %vm1436, %v3416, 0
      %v3427 = vsel %vm1480, %v3338, 0
      %3429 = vmatpush.msra.mxu0 0.0
      %3430 = vmatpush.msra.mxu0 0.0
      %3431 = vmatpush.msra.mxu0 0.0
      %3432 = vmatpush.msra.mxu0 0.0
      %3433 = vmatpush.msra.mxu0 0.0
      %3434 = vmatpush.msra.mxu0 0.0
      %3435 = vmatpush.msra.mxu0 0.0
      %3436 = vmatpush.msra.mxu0 0.0
      %3437 = vmatpush.msra.mxu0 0.0
      %3438 = vmatpush.msra.mxu0 0.0
      %3439 = vmatpush.msra.mxu0 0.0
      %3440 = vmatpush.msra.mxu0 0.0
      %3441 = vmatpush.msra.mxu0 0.0
      %3442 = vmatpush.msra.mxu0 %v3427
      %3443 = vmatpush.msra.mxu0 %v3335
      %3444 = vmatpush.msra.mxu0 %v3332
      %3445 = vmatmul.f32.gmra.mxu0 %v3418
      %v3446 = vpop.f32.mrf.mxu0
      %v3447 = vadd.f32 0.0, %v3446
      %3448 = vmatmul.f32.gmra.mxu0 %v3421
      %v3449 = vpop.f32.mrf.mxu0
      %v3450 = vadd.f32 0.0, %v3449
      %3451 = vmatmul.f32.gmra.mxu0 %v3424
      %v3452 = vpop.f32.mrf.mxu0
      %v3453 = vadd.f32 0.0, %v3452
      %3454 = vdwg.mxu0
      %s3455 = scalar_lea.vmem %s59, 16
      %v3456 = vld [vmem:[%s3455] sm:$0xff]
      %v3457 = vld [vmem:[%s3455 + $0x8] sm:$0xff]
      %v3459 = vsel %vm1391, %v3447, 0
      %v3462 = vsel %vm1391, %v3450, 0
      %v3465 = vsel %vm1391, %v3453, 0
      %3467 = vmatpush.msra.mxu0 0.0
      %3468 = vmatpush.msra.mxu0 0.0
      %3469 = vmatpush.msra.mxu0 0.0
      %3470 = vmatpush.msra.mxu0 0.0
      %3471 = vmatpush.msra.mxu0 0.0
      %3472 = vmatpush.msra.mxu0 0.0
      %3473 = vmatpush.msra.mxu0 0.0
      %3474 = vmatpush.msra.mxu0 0.0
      %3475 = vmatpush.msra.mxu0 0.0
      %3476 = vmatpush.msra.mxu0 0.0
      %3477 = vmatpush.msra.mxu0 0.0
      %3478 = vmatpush.msra.mxu0 0.0
      %3479 = vmatpush.msra.mxu0 0.0
      %3480 = vmatpush.msra.mxu0 0.0
      %3481 = vmatpush.msra.mxu0 %v3457
      %3482 = vmatpush.msra.mxu0 %v3456
      %3483 = vmatmul.f32.gmra.mxu0 %v3459
      %v3484 = vpop.f32.mrf.mxu0
      %v3485 = vadd.f32 0.0, %v3484
      %3486 = vmatmul.f32.gmra.mxu0 %v3462
      %v3487 = vpop.f32.mrf.mxu0
      %v3488 = vadd.f32 0.0, %v3487
      %3489 = vmatmul.f32.gmra.mxu0 %v3465
      %v3490 = vpop.f32.mrf.mxu0
      %v3491 = vadd.f32 0.0, %v3490
      %3492 = vdwg.mxu0
      %v3494 = vsel %vm1391, %v3210, 0
      %v3497 = vsel %vm1391, %v3213, 0
      %v3500 = vsel %vm1391, %v3216, 0
      %3502 = vmatpush.msra.mxu0 0.0
      %3503 = vmatpush.msra.mxu0 0.0
      %3504 = vmatpush.msra.mxu0 0.0
      %3505 = vmatpush.msra.mxu0 0.0
      %3506 = vmatpush.msra.mxu0 0.0
      %3507 = vmatpush.msra.mxu0 0.0
      %3508 = vmatpush.msra.mxu0 0.0
      %3509 = vmatpush.msra.mxu0 0.0
      %3510 = vmatpush.msra.mxu0 0.0
      %3511 = vmatpush.msra.mxu0 0.0
      %3512 = vmatpush.msra.mxu0 0.0
      %3513 = vmatpush.msra.mxu0 0.0
      %3514 = vmatpush.msra.mxu0 0.0
      %3515 = vmatpush.msra.mxu0 0.0
      %3516 = vmatpush.msra.mxu0 %v3219
      %3517 = vmatpush.msra.mxu0 %v3218
      %3518 = vmatmul.f32.gmra.mxu0 %v3494
      %v3519 = vpop.f32.mrf.mxu0
      %v3520 = vadd.f32 %v3485, %v3519
      %3521 = vmatmul.f32.gmra.mxu0 %v3497
      %v3522 = vpop.f32.mrf.mxu0
      %v3523 = vadd.f32 %v3488, %v3522
      %3524 = vmatmul.f32.gmra.mxu0 %v3500
      %v3525 = vpop.f32.mrf.mxu0
      %v3526 = vadd.f32 %v3491, %v3525
      %3527 = vdwg.mxu0
      %s3528 = scalar_lea.vmem %s47, 128
      %v3529 = vld [vmem:[%s3528] sm:$0xff]
      %v3530 = vld [vmem:[%s3528 + $0x8] sm:$0xff]
      %v3531 = vld [vmem:[%s3528 + $0x10] sm:$0xff]
      %v3532 = vld [vmem:[%s3528 + $0x18] sm:$0xff]
      %v3533 = vld [vmem:[%s3528 + $0x20] sm:$0xff]
      %v3534 = vld [vmem:[%s3528 + $0x28] sm:$0xff]
      %v3535 = vld [vmem:[%s3528 + $0x30] sm:$0xff]
      %v3536 = vld [vmem:[%s3528 + $0x38] sm:$0xff]
      %s3537 = scalar_lea.vmem %s49, 2
      %v3538 = vld [vmem:[%s3537] sm:$0x1]
      %v3540 = vperm.slane %v3538, 0
      %3542 = vmatpush.msra.mxu0 0.0
      %3543 = vmatpush.msra.mxu0 0.0
      %3544 = vmatpush.msra.mxu0 0.0
      %3545 = vmatpush.msra.mxu0 0.0
      %3546 = vmatpush.msra.mxu0 0.0
      %3547 = vmatpush.msra.mxu0 0.0
      %3548 = vmatpush.msra.mxu0 0.0
      %3549 = vmatpush.msra.mxu0 0.0
      %3550 = vmatpush.msra.mxu0 %v3536
      %3551 = vmatpush.msra.mxu0 %v3535
      %3552 = vmatpush.msra.mxu0 %v3534
      %3553 = vmatpush.msra.mxu0 %v3533
      %3554 = vmatpush.msra.mxu0 %v3532
      %3555 = vmatpush.msra.mxu0 %v3531
      %3556 = vmatpush.msra.mxu0 %v3530
      %3557 = vmatpush.msra.mxu0 %v3529
      %3558 = vmatmul.f32.gmra.mxu0 %v2993
      %v3559 = vpop.f32.mrf.mxu0
      %v3560 = vadd.f32 %v3540, %v3559
      %3561 = vmatmul.f32.gmra.mxu0 %v2996
      %v3562 = vpop.f32.mrf.mxu0
      %v3563 = vadd.f32 %v3540, %v3562
      %3564 = vmatmul.f32.gmra.mxu0 %v2999
      %v3565 = vpop.f32.mrf.mxu0
      %v3566 = vadd.f32 %v3540, %v3565
      %3567 = vdwg.mxu0
      %s3568 = scalar_lea.vmem %s51, 128
      %v3569 = vld [vmem:[%s3568] sm:$0xff]
      %v3570 = vld [vmem:[%s3568 + $0x8] sm:$0xff]
      %v3571 = vld [vmem:[%s3568 + $0x10] sm:$0xff]
      %v3572 = vld [vmem:[%s3568 + $0x18] sm:$0xff]
      %v3573 = vld [vmem:[%s3568 + $0x20] sm:$0xff]
      %v3574 = vld [vmem:[%s3568 + $0x28] sm:$0xff]
      %v3575 = vld [vmem:[%s3568 + $0x30] sm:$0xff]
      %v3576 = vld [vmem:[%s3568 + $0x38] sm:$0xff]
      %s3577 = scalar_lea.vmem %s53, 2
      %v3578 = vld [vmem:[%s3577] sm:$0x1]
      %v3580 = vperm.slane %v3578, 0
      %3582 = vmatpush.msra.mxu0 0.0
      %3583 = vmatpush.msra.mxu0 0.0
      %3584 = vmatpush.msra.mxu0 0.0
      %3585 = vmatpush.msra.mxu0 0.0
      %3586 = vmatpush.msra.mxu0 0.0
      %3587 = vmatpush.msra.mxu0 0.0
      %3588 = vmatpush.msra.mxu0 0.0
      %3589 = vmatpush.msra.mxu0 0.0
      %3590 = vmatpush.msra.mxu0 %v3576
      %3591 = vmatpush.msra.mxu0 %v3575
      %3592 = vmatpush.msra.mxu0 %v3574
      %3593 = vmatpush.msra.mxu0 %v3573
      %3594 = vmatpush.msra.mxu0 %v3572
      %3595 = vmatpush.msra.mxu0 %v3571
      %3596 = vmatpush.msra.mxu0 %v3570
      %3597 = vmatpush.msra.mxu0 %v3569
      %3598 = vmatmul.f32.gmra.mxu0 %v2993
      %v3599 = vpop.f32.mrf.mxu0
      %v3600 = vadd.f32 %v3580, %v3599
      %3601 = vmatmul.f32.gmra.mxu0 %v2996
      %v3602 = vpop.f32.mrf.mxu0
      %v3603 = vadd.f32 %v3580, %v3602
      %3604 = vmatmul.f32.gmra.mxu0 %v2999
      %v3605 = vpop.f32.mrf.mxu0
      %v3606 = vadd.f32 %v3580, %v3605
      %3607 = vdwg.mxu0
      %s3608 = scalar_lea.vmem %s55, 128
      %v3609 = vld [vmem:[%s3608] sm:$0xff]
      %v3610 = vld [vmem:[%s3608 + $0x8] sm:$0xff]
      %v3611 = vld [vmem:[%s3608 + $0x10] sm:$0xff]
      %v3612 = vld [vmem:[%s3608 + $0x18] sm:$0xff]
      %v3613 = vld [vmem:[%s3608 + $0x20] sm:$0xff]
      %v3614 = vld [vmem:[%s3608 + $0x28] sm:$0xff]
      %v3615 = vld [vmem:[%s3608 + $0x30] sm:$0xff]
      %v3616 = vld [vmem:[%s3608 + $0x38] sm:$0xff]
      %s3617 = scalar_lea.vmem %s57, 2
      %v3618 = vld [vmem:[%s3617] sm:$0x1]
      %v3620 = vperm.slane %v3618, 0
      %3622 = vmatpush.msra.mxu0 0.0
      %3623 = vmatpush.msra.mxu0 0.0
      %3624 = vmatpush.msra.mxu0 0.0
      %3625 = vmatpush.msra.mxu0 0.0
      %3626 = vmatpush.msra.mxu0 0.0
      %3627 = vmatpush.msra.mxu0 0.0
      %3628 = vmatpush.msra.mxu0 0.0
      %3629 = vmatpush.msra.mxu0 0.0
      %3630 = vmatpush.msra.mxu0 %v3616
      %3631 = vmatpush.msra.mxu0 %v3615
      %3632 = vmatpush.msra.mxu0 %v3614
      %3633 = vmatpush.msra.mxu0 %v3613
      %3634 = vmatpush.msra.mxu0 %v3612
      %3635 = vmatpush.msra.mxu0 %v3611
      %3636 = vmatpush.msra.mxu0 %v3610
      %3637 = vmatpush.msra.mxu0 %v3609
      %3638 = vmatmul.f32.gmra.mxu0 %v2993
      %v3639 = vpop.f32.mrf.mxu0
      %v3640 = vadd.f32 %v3620, %v3639
      %3641 = vmatmul.f32.gmra.mxu0 %v2996
      %v3642 = vpop.f32.mrf.mxu0
      %v3643 = vadd.f32 %v3620, %v3642
      %3644 = vmatmul.f32.gmra.mxu0 %v2999
      %v3645 = vpop.f32.mrf.mxu0
      %v3646 = vadd.f32 %v3620, %v3645
      %3647 = vdwg.mxu0
      %v3649 = vsel %vm1391, %v3560, 0
      %v3652 = vsel %vm1391, %v3563, 0
      %v3655 = vsel %vm1391, %v3566, 0
      %v3658 = vsel %vm1391, %v3600, 0
      %v3661 = vsel %vm1391, %v3603, 0
      %v3664 = vsel %vm1391, %v3606, 0
      %3666 = vmatpush.xpose.msra.mxu0 0.0
      %3667 = vmatpush.xpose.msra.mxu0 0.0
      %3668 = vmatpush.xpose.msra.mxu0 0.0
      %3669 = vmatpush.xpose.msra.mxu0 0.0
      %3670 = vmatpush.xpose.msra.mxu0 0.0
      %3671 = vmatpush.xpose.msra.mxu0 0.0
      %3672 = vmatpush.xpose.msra.mxu0 0.0
      %3673 = vmatpush.xpose.msra.mxu0 0.0
      %3674 = vmatpush.xpose.msra.mxu0 0.0
      %3675 = vmatpush.xpose.msra.mxu0 0.0
      %3676 = vmatpush.xpose.msra.mxu0 0.0
      %3677 = vmatpush.xpose.msra.mxu0 0.0
      %3678 = vmatpush.xpose.msra.mxu0 0.0
      %3679 = vmatpush.xpose.msra.mxu0 %v3664
      %3680 = vmatpush.xpose.msra.mxu0 %v3661
      %3681 = vmatpush.xpose.msra.mxu0 %v3658
      %3682 = vmatmul.f32.gmra.mxu0 %v3649
      %v3683 = vpop.f32.mrf.mxu0
      %v3684 = vadd.f32 0.0, %v3683
      %3685 = vmatmul.f32.gmra.mxu0 %v3652
      %v3686 = vpop.f32.mrf.mxu0
      %v3687 = vadd.f32 0.0, %v3686
      %3688 = vmatmul.f32.gmra.mxu0 %v3655
      %v3689 = vpop.f32.mrf.mxu0
      %v3690 = vadd.f32 0.0, %v3689
      %3691 = vdwg.mxu0
      %v3692 = vsel %vm1436, %v3684, -inf
      %3693 = vmax.xlane.f32.xlu0 %v3692
      %v3694 = vpop.xlane.xlu0 %3693
      %v3695 = vsel %vm1436, %v3687, -inf
      %3696 = vmax.xlane.f32.xlu0 %v3695
      %v3697 = vpop.xlane.xlu0 %3696
      %v3698 = vsel %vm1443, %v3690, -inf
      %3699 = vmax.xlane.f32.xlu0 %v3698
      %v3700 = vpop.xlane.xlu0 %3699
      %v3701 = vsub.f32 %v3684, %v3694
      %v3702 = vsub.f32 %v3687, %v3697
      %v3703 = vsub.f32 %v3690, %v3700
      %v3704 = vmul.f32 %v3701, 1.442695
      %v3705 = vpow.pop %v3704
      %v3706 = vmul.f32 %v3702, 1.442695
      %v3707 = vpow.pop %v3706
      %v3708 = vmul.f32 %v3703, 1.442695
      %v3709 = vpow.pop %v3708
      %v3710 = vsel %vm1436, %v3705, 0.0
      %3711 = vadd.xlane.f32.xlu0 %v3710
      %v3712 = vpop.xlane.xlu0 %3711
      %v3713 = vsel %vm1436, %v3707, 0.0
      %3714 = vadd.xlane.f32.xlu0 %v3713
      %v3715 = vpop.xlane.xlu0 %3714
      %v3716 = vsel %vm1443, %v3709, 0.0
      %3717 = vadd.xlane.f32.xlu0 %v3716
      %v3718 = vpop.xlane.xlu0 %3717
      %v3719 = vrcp.pop %v3712
      %v3720 = vrcp.pop %v3715
      %v3721 = vrcp.pop %v3718
      %v3722 = vmul.f32 %v3705, %v3719
      %v3723 = vmul.f32 %v3707, %v3720
      %v3724 = vmul.f32 %v3709, %v3721
      %v3726 = vsel %vm1436, %v3722, 0
      %v3729 = vsel %vm1436, %v3723, 0
      %v3732 = vsel %vm1436, %v3724, 0
      %v3735 = vsel %vm1480, %v3646, 0
      %3737 = vmatpush.msra.mxu0 0.0
      %3738 = vmatpush.msra.mxu0 0.0
      %3739 = vmatpush.msra.mxu0 0.0
      %3740 = vmatpush.msra.mxu0 0.0
      %3741 = vmatpush.msra.mxu0 0.0
      %3742 = vmatpush.msra.mxu0 0.0
      %3743 = vmatpush.msra.mxu0 0.0
      %3744 = vmatpush.msra.mxu0 0.0
      %3745 = vmatpush.msra.mxu0 0.0
      %3746 = vmatpush.msra.mxu0 0.0
      %3747 = vmatpush.msra.mxu0 0.0
      %3748 = vmatpush.msra.mxu0 0.0
      %3749 = vmatpush.msra.mxu0 0.0
      %3750 = vmatpush.msra.mxu0 %v3735
      %3751 = vmatpush.msra.mxu0 %v3643
      %3752 = vmatpush.msra.mxu0 %v3640
      %3753 = vmatmul.f32.gmra.mxu0 %v3726
      %v3754 = vpop.f32.mrf.mxu0
      %v3755 = vadd.f32 0.0, %v3754
      %3756 = vmatmul.f32.gmra.mxu0 %v3729
      %v3757 = vpop.f32.mrf.mxu0
      %v3758 = vadd.f32 0.0, %v3757
      %3759 = vmatmul.f32.gmra.mxu0 %v3732
      %v3760 = vpop.f32.mrf.mxu0
      %v3761 = vadd.f32 0.0, %v3760
      %3762 = vdwg.mxu0
      %s3763 = scalar_lea.vmem %s59, 32
      %v3764 = vld [vmem:[%s3763] sm:$0xff]
      %v3765 = vld [vmem:[%s3763 + $0x8] sm:$0xff]
      %v3767 = vsel %vm1391, %v3755, 0
      %v3770 = vsel %vm1391, %v3758, 0
      %v3773 = vsel %vm1391, %v3761, 0
      %3775 = vmatpush.msra.mxu0 0.0
      %3776 = vmatpush.msra.mxu0 0.0
      %3777 = vmatpush.msra.mxu0 0.0
      %3778 = vmatpush.msra.mxu0 0.0
      %3779 = vmatpush.msra.mxu0 0.0
      %3780 = vmatpush.msra.mxu0 0.0
      %3781 = vmatpush.msra.mxu0 0.0
      %3782 = vmatpush.msra.mxu0 0.0
      %3783 = vmatpush.msra.mxu0 0.0
      %3784 = vmatpush.msra.mxu0 0.0
      %3785 = vmatpush.msra.mxu0 0.0
      %3786 = vmatpush.msra.mxu0 0.0
      %3787 = vmatpush.msra.mxu0 0.0
      %3788 = vmatpush.msra.mxu0 0.0
      %3789 = vmatpush.msra.mxu0 %v3765
      %3790 = vmatpush.msra.mxu0 %v3764
      %3791 = vmatmul.f32.gmra.mxu0 %v3767
      %v3792 = vpop.f32.mrf.mxu0
      %v3793 = vadd.f32 0.0, %v3792
      %3794 = vmatmul.f32.gmra.mxu0 %v3770
      %v3795 = vpop.f32.mrf.mxu0
      %v3796 = vadd.f32 0.0, %v3795
      %3797 = vmatmul.f32.gmra.mxu0 %v3773
      %v3798 = vpop.f32.mrf.mxu0
      %v3799 = vadd.f32 0.0, %v3798
      %3800 = vdwg.mxu0
      %v3801 = vadd.f32 %v3520, %v3793
      %v3802 = vadd.f32 %v3523, %v3796
      %v3803 = vadd.f32 %v3526, %v3799
      %s3804 = scalar_lea.vmem %s47, 192
      %v3805 = vld [vmem:[%s3804] sm:$0xff]
      %v3806 = vld [vmem:[%s3804 + $0x8] sm:$0xff]
      %v3807 = vld [vmem:[%s3804 + $0x10] sm:$0xff]
      %v3808 = vld [vmem:[%s3804 + $0x18] sm:$0xff]
      %v3809 = vld [vmem:[%s3804 + $0x20] sm:$0xff]
      %v3810 = vld [vmem:[%s3804 + $0x28] sm:$0xff]
      %v3811 = vld [vmem:[%s3804 + $0x30] sm:$0xff]
      %v3812 = vld [vmem:[%s3804 + $0x38] sm:$0xff]
      %s3813 = scalar_lea.vmem %s49, 3
      %v3814 = vld [vmem:[%s3813] sm:$0x1]
      %v3816 = vperm.slane %v3814, 0
      %3818 = vmatpush.msra.mxu0 0.0
      %3819 = vmatpush.msra.mxu0 0.0
      %3820 = vmatpush.msra.mxu0 0.0
      %3821 = vmatpush.msra.mxu0 0.0
      %3822 = vmatpush.msra.mxu0 0.0
      %3823 = vmatpush.msra.mxu0 0.0
      %3824 = vmatpush.msra.mxu0 0.0
      %3825 = vmatpush.msra.mxu0 0.0
      %3826 = vmatpush.msra.mxu0 %v3812
      %3827 = vmatpush.msra.mxu0 %v3811
      %3828 = vmatpush.msra.mxu0 %v3810
      %3829 = vmatpush.msra.mxu0 %v3809
      %3830 = vmatpush.msra.mxu0 %v3808
      %3831 = vmatpush.msra.mxu0 %v3807
      %3832 = vmatpush.msra.mxu0 %v3806
      %3833 = vmatpush.msra.mxu0 %v3805
      %3834 = vmatmul.f32.gmra.mxu0 %v2993
      %v3835 = vpop.f32.mrf.mxu0
      %v3836 = vadd.f32 %v3816, %v3835
      %3837 = vmatmul.f32.gmra.mxu0 %v2996
      %v3838 = vpop.f32.mrf.mxu0
      %v3839 = vadd.f32 %v3816, %v3838
      %3840 = vmatmul.f32.gmra.mxu0 %v2999
      %v3841 = vpop.f32.mrf.mxu0
      %v3842 = vadd.f32 %v3816, %v3841
      %3843 = vdwg.mxu0
      %s3844 = scalar_lea.vmem %s51, 192
      %v3845 = vld [vmem:[%s3844] sm:$0xff]
      %v3846 = vld [vmem:[%s3844 + $0x8] sm:$0xff]
      %v3847 = vld [vmem:[%s3844 + $0x10] sm:$0xff]
      %v3848 = vld [vmem:[%s3844 + $0x18] sm:$0xff]
      %v3849 = vld [vmem:[%s3844 + $0x20] sm:$0xff]
      %v3850 = vld [vmem:[%s3844 + $0x28] sm:$0xff]
      %v3851 = vld [vmem:[%s3844 + $0x30] sm:$0xff]
      %v3852 = vld [vmem:[%s3844 + $0x38] sm:$0xff]
      %s3853 = scalar_lea.vmem %s53, 3
      %v3854 = vld [vmem:[%s3853] sm:$0x1]
      %v3856 = vperm.slane %v3854, 0
      %3858 = vmatpush.msra.mxu0 0.0
      %3859 = vmatpush.msra.mxu0 0.0
      %3860 = vmatpush.msra.mxu0 0.0
      %3861 = vmatpush.msra.mxu0 0.0
      %3862 = vmatpush.msra.mxu0 0.0
      %3863 = vmatpush.msra.mxu0 0.0
      %3864 = vmatpush.msra.mxu0 0.0
      %3865 = vmatpush.msra.mxu0 0.0
      %3866 = vmatpush.msra.mxu0 %v3852
      %3867 = vmatpush.msra.mxu0 %v3851
      %3868 = vmatpush.msra.mxu0 %v3850
      %3869 = vmatpush.msra.mxu0 %v3849
      %3870 = vmatpush.msra.mxu0 %v3848
      %3871 = vmatpush.msra.mxu0 %v3847
      %3872 = vmatpush.msra.mxu0 %v3846
      %3873 = vmatpush.msra.mxu0 %v3845
      %3874 = vmatmul.f32.gmra.mxu0 %v2993
      %v3875 = vpop.f32.mrf.mxu0
      %v3876 = vadd.f32 %v3856, %v3875
      %3877 = vmatmul.f32.gmra.mxu0 %v2996
      %v3878 = vpop.f32.mrf.mxu0
      %v3879 = vadd.f32 %v3856, %v3878
      %3880 = vmatmul.f32.gmra.mxu0 %v2999
      %v3881 = vpop.f32.mrf.mxu0
      %v3882 = vadd.f32 %v3856, %v3881
      %3883 = vdwg.mxu0
      %s3884 = scalar_lea.vmem %s55, 192
      %v3885 = vld [vmem:[%s3884] sm:$0xff]
      %v3886 = vld [vmem:[%s3884 + $0x8] sm:$0xff]
      %v3887 = vld [vmem:[%s3884 + $0x10] sm:$0xff]
      %v3888 = vld [vmem:[%s3884 + $0x18] sm:$0xff]
      %v3889 = vld [vmem:[%s3884 + $0x20] sm:$0xff]
      %v3890 = vld [vmem:[%s3884 + $0x28] sm:$0xff]
      %v3891 = vld [vmem:[%s3884 + $0x30] sm:$0xff]
      %v3892 = vld [vmem:[%s3884 + $0x38] sm:$0xff]
      %s3893 = scalar_lea.vmem %s57, 3
      %v3894 = vld [vmem:[%s3893] sm:$0x1]
      %v3896 = vperm.slane %v3894, 0
      %3898 = vmatpush.msra.mxu0 0.0
      %3899 = vmatpush.msra.mxu0 0.0
      %3900 = vmatpush.msra.mxu0 0.0
      %3901 = vmatpush.msra.mxu0 0.0
      %3902 = vmatpush.msra.mxu0 0.0
      %3903 = vmatpush.msra.mxu0 0.0
      %3904 = vmatpush.msra.mxu0 0.0
      %3905 = vmatpush.msra.mxu0 0.0
      %3906 = vmatpush.msra.mxu0 %v3892
      %3907 = vmatpush.msra.mxu0 %v3891
      %3908 = vmatpush.msra.mxu0 %v3890
      %3909 = vmatpush.msra.mxu0 %v3889
      %3910 = vmatpush.msra.mxu0 %v3888
      %3911 = vmatpush.msra.mxu0 %v3887
      %3912 = vmatpush.msra.mxu0 %v3886
      %3913 = vmatpush.msra.mxu0 %v3885
      %3914 = vmatmul.f32.gmra.mxu0 %v2993
      %v3915 = vpop.f32.mrf.mxu0
      %v3916 = vadd.f32 %v3896, %v3915
      %3917 = vmatmul.f32.gmra.mxu0 %v2996
      %v3918 = vpop.f32.mrf.mxu0
      %v3919 = vadd.f32 %v3896, %v3918
      %3920 = vmatmul.f32.gmra.mxu0 %v2999
      %v3921 = vpop.f32.mrf.mxu0
      %v3922 = vadd.f32 %v3896, %v3921
      %3923 = vdwg.mxu0
      %v3925 = vsel %vm1391, %v3836, 0
      %v3928 = vsel %vm1391, %v3839, 0
      %v3931 = vsel %vm1391, %v3842, 0
      %v3934 = vsel %vm1391, %v3876, 0
      %v3937 = vsel %vm1391, %v3879, 0
      %v3940 = vsel %vm1391, %v3882, 0
      %3942 = vmatpush.xpose.msra.mxu0 0.0
      %3943 = vmatpush.xpose.msra.mxu0 0.0
      %3944 = vmatpush.xpose.msra.mxu0 0.0
      %3945 = vmatpush.xpose.msra.mxu0 0.0
      %3946 = vmatpush.xpose.msra.mxu0 0.0
      %3947 = vmatpush.xpose.msra.mxu0 0.0
      %3948 = vmatpush.xpose.msra.mxu0 0.0
      %3949 = vmatpush.xpose.msra.mxu0 0.0
      %3950 = vmatpush.xpose.msra.mxu0 0.0
      %3951 = vmatpush.xpose.msra.mxu0 0.0
      %3952 = vmatpush.xpose.msra.mxu0 0.0
      %3953 = vmatpush.xpose.msra.mxu0 0.0
      %3954 = vmatpush.xpose.msra.mxu0 0.0
      %3955 = vmatpush.xpose.msra.mxu0 %v3940
      %3956 = vmatpush.xpose.msra.mxu0 %v3937
      %3957 = vmatpush.xpose.msra.mxu0 %v3934
      %3958 = vmatmul.f32.gmra.mxu0 %v3925
      %v3959 = vpop.f32.mrf.mxu0
      %v3960 = vadd.f32 0.0, %v3959
      %3961 = vmatmul.f32.gmra.mxu0 %v3928
      %v3962 = vpop.f32.mrf.mxu0
      %v3963 = vadd.f32 0.0, %v3962
      %3964 = vmatmul.f32.gmra.mxu0 %v3931
      %v3965 = vpop.f32.mrf.mxu0
      %v3966 = vadd.f32 0.0, %v3965
      %3967 = vdwg.mxu0
      %v3968 = vsel %vm1436, %v3960, -inf
      %3969 = vmax.xlane.f32.xlu0 %v3968
      %v3970 = vpop.xlane.xlu0 %3969
      %v3971 = vsel %vm1436, %v3963, -inf
      %3972 = vmax.xlane.f32.xlu0 %v3971
      %v3973 = vpop.xlane.xlu0 %3972
      %v3974 = vsel %vm1443, %v3966, -inf
      %3975 = vmax.xlane.f32.xlu0 %v3974
      %v3976 = vpop.xlane.xlu0 %3975
      %v3977 = vsub.f32 %v3960, %v3970
      %v3978 = vsub.f32 %v3963, %v3973
      %v3979 = vsub.f32 %v3966, %v3976
      %v3980 = vmul.f32 %v3977, 1.442695
      %v3981 = vpow.pop %v3980
      %v3982 = vmul.f32 %v3978, 1.442695
      %v3983 = vpow.pop %v3982
      %v3984 = vmul.f32 %v3979, 1.442695
      %v3985 = vpow.pop %v3984
      %v3986 = vsel %vm1436, %v3981, 0.0
      %3987 = vadd.xlane.f32.xlu0 %v3986
      %v3988 = vpop.xlane.xlu0 %3987
      %v3989 = vsel %vm1436, %v3983, 0.0
      %3990 = vadd.xlane.f32.xlu0 %v3989
      %v3991 = vpop.xlane.xlu0 %3990
      %v3992 = vsel %vm1443, %v3985, 0.0
      %3993 = vadd.xlane.f32.xlu0 %v3992
      %v3994 = vpop.xlane.xlu0 %3993
      %v3995 = vrcp.pop %v3988
      %v3996 = vrcp.pop %v3991
      %v3997 = vrcp.pop %v3994
      %v3998 = vmul.f32 %v3981, %v3995
      %v3999 = vmul.f32 %v3983, %v3996
      %v4000 = vmul.f32 %v3985, %v3997
      %v4002 = vsel %vm1436, %v3998, 0
      %v4005 = vsel %vm1436, %v3999, 0
      %v4008 = vsel %vm1436, %v4000, 0
      %v4011 = vsel %vm1480, %v3922, 0
      %4013 = vmatpush.msra.mxu0 0.0
      %4014 = vmatpush.msra.mxu0 0.0
      %4015 = vmatpush.msra.mxu0 0.0
      %4016 = vmatpush.msra.mxu0 0.0
      %4017 = vmatpush.msra.mxu0 0.0
      %4018 = vmatpush.msra.mxu0 0.0
      %4019 = vmatpush.msra.mxu0 0.0
      %4020 = vmatpush.msra.mxu0 0.0
      %4021 = vmatpush.msra.mxu0 0.0
      %4022 = vmatpush.msra.mxu0 0.0
      %4023 = vmatpush.msra.mxu0 0.0
      %4024 = vmatpush.msra.mxu0 0.0
      %4025 = vmatpush.msra.mxu0 0.0
      %4026 = vmatpush.msra.mxu0 %v4011
      %4027 = vmatpush.msra.mxu0 %v3919
      %4028 = vmatpush.msra.mxu0 %v3916
      %4029 = vmatmul.f32.gmra.mxu0 %v4002
      %v4030 = vpop.f32.mrf.mxu0
      %v4031 = vadd.f32 0.0, %v4030
      %4032 = vmatmul.f32.gmra.mxu0 %v4005
      %v4033 = vpop.f32.mrf.mxu0
      %v4034 = vadd.f32 0.0, %v4033
      %4035 = vmatmul.f32.gmra.mxu0 %v4008
      %v4036 = vpop.f32.mrf.mxu0
      %v4037 = vadd.f32 0.0, %v4036
      %4038 = vdwg.mxu0
      %s4039 = scalar_lea.vmem %s59, 48
      %v4040 = vld [vmem:[%s4039] sm:$0xff]
      %v4041 = vld [vmem:[%s4039 + $0x8] sm:$0xff]
      %v4043 = vsel %vm1391, %v4031, 0
      %v4046 = vsel %vm1391, %v4034, 0
      %v4049 = vsel %vm1391, %v4037, 0
      %4051 = vmatpush.msra.mxu0 0.0
      %4052 = vmatpush.msra.mxu0 0.0
      %4053 = vmatpush.msra.mxu0 0.0
      %4054 = vmatpush.msra.mxu0 0.0
      %4055 = vmatpush.msra.mxu0 0.0
      %4056 = vmatpush.msra.mxu0 0.0
      %4057 = vmatpush.msra.mxu0 0.0
      %4058 = vmatpush.msra.mxu0 0.0
      %4059 = vmatpush.msra.mxu0 0.0
      %4060 = vmatpush.msra.mxu0 0.0
      %4061 = vmatpush.msra.mxu0 0.0
      %4062 = vmatpush.msra.mxu0 0.0
      %4063 = vmatpush.msra.mxu0 0.0
      %4064 = vmatpush.msra.mxu0 0.0
      %4065 = vmatpush.msra.mxu0 %v4041
      %4066 = vmatpush.msra.mxu0 %v4040
      %4067 = vmatmul.f32.gmra.mxu0 %v4043
      %v4068 = vpop.f32.mrf.mxu0
      %v4069 = vadd.f32 0.0, %v4068
      %4070 = vmatmul.f32.gmra.mxu0 %v4046
      %v4071 = vpop.f32.mrf.mxu0
      %v4072 = vadd.f32 0.0, %v4071
      %4073 = vmatmul.f32.gmra.mxu0 %v4049
      %v4074 = vpop.f32.mrf.mxu0
      %v4075 = vadd.f32 0.0, %v4074
      %4076 = vdwg.mxu0
      %v4077 = vadd.f32 %v3801, %v4069
      %v4078 = vadd.f32 %v3802, %v4072
      %v4079 = vadd.f32 %v3803, %v4075
      %v4080 = vadd.f32 %v2897, %v4077
      %v4081 = vadd.f32 %v2898, %v4078
      %v4082 = vadd.f32 %v2899, %v4079
      %v4083 = vld [vmem:[%s61] sm:$0x1]
      %v4085 = vperm.slane %v4083, 0
      %v4087 = vadd.f32 %v4080, %v4085
      %v4088 = vadd.f32 %v4081, %v4085
      %v4089 = vadd.f32 %v4082, %v4085
      %v4090 = vld [vmem:[%s63] sm:$0x1]
      %v4091 = vld [vmem:[%s65] sm:$0x1]
      %v4092 = vsel %vm1137, %v4087, 0.0
      %4093 = vadd.xlane.f32.xlu0 %v4092
      %v4094 = vpop.xlane.xlu0 %4093
      %v4095 = vsel %vm1137, %v4088, 0.0
      %4096 = vadd.xlane.f32.xlu0 %v4095
      %v4097 = vpop.xlane.xlu0 %4096
      %v4098 = vsel %vm1170, %v4089, 0.0
      %4099 = vadd.xlane.f32.xlu0 %v4098
      %v4100 = vpop.xlane.xlu0 %4099
      %v4101 = vmul.f32 %v4094, %v1198
      %v4102 = vmul.f32 %v4097, %v1198
      %v4103 = vmul.f32 %v4100, %v1198
      %v4104 = vsub.f32 %v4087, %v4101
      %v4105 = vsub.f32 %v4088, %v4102
      %v4106 = vsub.f32 %v4089, %v4103
      %v4107 = vmul.f32 %v4104, %v4104
      %v4108 = vmul.f32 %v4105, %v4105
      %v4109 = vmul.f32 %v4106, %v4106
      %v4110 = vsel %vm1137, %v4107, 0.0
      %4111 = vadd.xlane.f32.xlu0 %v4110
      %v4112 = vpop.xlane.xlu0 %4111
      %v4113 = vsel %vm1137, %v4108, 0.0
      %4114 = vadd.xlane.f32.xlu0 %v4113
      %v4115 = vpop.xlane.xlu0 %4114
      %v4116 = vsel %vm1170, %v4109, 0.0
      %4117 = vadd.xlane.f32.xlu0 %v4116
      %v4118 = vpop.xlane.xlu0 %4117
      %v4119 = vmul.f32 %v4112, %v1198
      %v4120 = vmul.f32 %v4115, %v1198
      %v4121 = vmul.f32 %v4118, %v1198
      %v4122 = vadd.f32 %v4119, 1e-12
      %v4123 = vadd.f32 %v4120, 1e-12
      %v4124 = vadd.f32 %v4121, 1e-12
      %v4125 = vrsqrt.pop %v4122
      %v4126 = vmul.f32 %v4125, %v4122
      %v4127 = vmul.f32 %v4126, %v4125
      %v4128 = vmul.f32 0.5, %v4127
      %v4129 = vsub.f32 1.5, %v4128
      %v4130 = vmul.f32 %v4125, %v4129
      %vm4131 = vweird.f32 %v4122
      %vm4132 = vweird.f32 %v4125
      %vm4133 = vmor %vm4131, %vm4132
      %v4134 = vsel %vm4133, %v4125, %v4130
      %v4135 = vrsqrt.pop %v4123
      %v4136 = vmul.f32 %v4135, %v4123
      %v4137 = vmul.f32 %v4136, %v4135
      %v4138 = vmul.f32 0.5, %v4137
      %v4139 = vsub.f32 1.5, %v4138
      %v4140 = vmul.f32 %v4135, %v4139
      %vm4141 = vweird.f32 %v4123
      %vm4142 = vweird.f32 %v4135
      %vm4143 = vmor %vm4141, %vm4142
      %v4144 = vsel %vm4143, %v4135, %v4140
      %v4145 = vrsqrt.pop %v4124
      %v4146 = vmul.f32 %v4145, %v4124
      %v4147 = vmul.f32 %v4146, %v4145
      %v4148 = vmul.f32 0.5, %v4147
      %v4149 = vsub.f32 1.5, %v4148
      %v4150 = vmul.f32 %v4145, %v4149
      %vm4151 = vweird.f32 %v4124
      %vm4152 = vweird.f32 %v4145
      %vm4153 = vmor %vm4151, %vm4152
      %v4154 = vsel %vm4153, %v4145, %v4150
      %v4155 = vmul.f32 %v4104, %v4134
      %v4156 = vmul.f32 %v4105, %v4144
      %v4157 = vmul.f32 %v4106, %v4154
      %v4159 = vperm.slane %v4090, 0
      %v4161 = vmul.f32 %v4155, %v4159
      %v4162 = vmul.f32 %v4156, %v4159
      %v4163 = vmul.f32 %v4157, %v4159
      %v4165 = vperm.slane %v4091, 0
      %v4167 = vadd.f32 %v4161, %v4165
      %v4168 = vadd.f32 %v4162, %v4165
      %v4169 = vadd.f32 %v4163, %v4165
      %v4170 = vld [vmem:[%s67] sm:$0xff]
      %v4171 = vld [vmem:[%s67 + $0x8] sm:$0xff]
      %v4172 = vld [vmem:[%s67 + $0x10] sm:$0xff]
      %v4173 = vld [vmem:[%s67 + $0x18] sm:$0xff]
      %v4174 = vld [vmem:[%s67 + $0x20] sm:$0xff]
      %v4175 = vld [vmem:[%s67 + $0x28] sm:$0xff]
      %v4176 = vld [vmem:[%s67 + $0x30] sm:$0xff]
      %v4177 = vld [vmem:[%s67 + $0x38] sm:$0xff]
      %v4178 = vld [vmem:[%s67 + $0x40] sm:$0xff]
      %v4179 = vld [vmem:[%s67 + $0x48] sm:$0xff]
      %v4180 = vld [vmem:[%s67 + $0x50] sm:$0xff]
      %v4181 = vld [vmem:[%s67 + $0x58] sm:$0xff]
      %v4182 = vld [vmem:[%s67 + $0x60] sm:$0xff]
      %v4183 = vld [vmem:[%s67 + $0x68] sm:$0xff]
      %v4184 = vld [vmem:[%s67 + $0x70] sm:$0xff]
      %v4185 = vld [vmem:[%s67 + $0x78] sm:$0xff]
      %v4186 = vld [vmem:[%s69] sm:$0x3]
      %v4188 = vperm.slane %v4186, 0
      %v4189 = vperm.slane %v4186, 1
      %v4193 = vsel %vm1137, %v4167, 0
      %v4196 = vsel %vm1137, %v4168, 0
      %v4199 = vsel %vm1137, %v4169, 0
      %4201 = vmatpush.msra.mxu0 0.0
      %4202 = vmatpush.msra.mxu0 0.0
      %4203 = vmatpush.msra.mxu0 0.0
      %4204 = vmatpush.msra.mxu0 0.0
      %4205 = vmatpush.msra.mxu0 0.0
      %4206 = vmatpush.msra.mxu0 0.0
      %4207 = vmatpush.msra.mxu0 0.0
      %4208 = vmatpush.msra.mxu0 0.0
      %4209 = vmatpush.msra.mxu0 %v4184
      %4210 = vmatpush.msra.mxu0 %v4182
      %4211 = vmatpush.msra.mxu0 %v4180
      %4212 = vmatpush.msra.mxu0 %v4178
      %4213 = vmatpush.msra.mxu0 %v4176
      %4214 = vmatpush.msra.mxu0 %v4174
      %4215 = vmatpush.msra.mxu0 %v4172
      %4216 = vmatpush.msra.mxu0 %v4170
      %4217 = vmatmul.f32.gmra.mxu0 %v4193
      %v4218 = vpop.f32.mrf.mxu0
      %v4219 = vadd.f32 %v4188, %v4218
      %4220 = vmatmul.f32.gmra.mxu0 %v4196
      %v4221 = vpop.f32.mrf.mxu0
      %v4222 = vadd.f32 %v4188, %v4221
      %4223 = vmatmul.f32.gmra.mxu0 %v4199
      %v4224 = vpop.f32.mrf.mxu0
      %v4225 = vadd.f32 %v4188, %v4224
      %4226 = vdwg.mxu0
      %4227 = vmatpush.msra.mxu0 0.0
      %4228 = vmatpush.msra.mxu0 0.0
      %4229 = vmatpush.msra.mxu0 0.0
      %4230 = vmatpush.msra.mxu0 0.0
      %4231 = vmatpush.msra.mxu0 0.0
      %4232 = vmatpush.msra.mxu0 0.0
      %4233 = vmatpush.msra.mxu0 0.0
      %4234 = vmatpush.msra.mxu0 0.0
      %4235 = vmatpush.msra.mxu0 %v4185
      %4236 = vmatpush.msra.mxu0 %v4183
      %4237 = vmatpush.msra.mxu0 %v4181
      %4238 = vmatpush.msra.mxu0 %v4179
      %4239 = vmatpush.msra.mxu0 %v4177
      %4240 = vmatpush.msra.mxu0 %v4175
      %4241 = vmatpush.msra.mxu0 %v4173
      %4242 = vmatpush.msra.mxu0 %v4171
      %4243 = vmatmul.f32.gmra.mxu0 %v4193
      %v4244 = vpop.f32.mrf.mxu0
      %v4245 = vadd.f32 %v4189, %v4244
      %4246 = vmatmul.f32.gmra.mxu0 %v4196
      %v4247 = vpop.f32.mrf.mxu0
      %v4248 = vadd.f32 %v4189, %v4247
      %4249 = vmatmul.f32.gmra.mxu0 %v4199
      %v4250 = vpop.f32.mrf.mxu0
      %v4251 = vadd.f32 %v4189, %v4250
      %4252 = vdwg.mxu0
      %v4253 = vmul.f32 %v4219, 0.5
      %v4254 = vmul.f32 %v4245, 0.5
      %v4255 = vmul.f32 %v4222, 0.5
      %v4256 = vmul.f32 %v4248, 0.5
      %v4257 = vmul.f32 %v4225, 0.5
      %v4258 = vmul.f32 %v4251, 0.5
      %v4259 = vmul.f32 %v4219, 0.70710677
      %v4260 = vmul.f32 %v4245, 0.70710677
      %v4261 = vmul.f32 %v4222, 0.70710677
      %v4262 = vmul.f32 %v4248, 0.70710677
      %v4263 = vmul.f32 %v4225, 0.70710677
      %v4264 = vmul.f32 %v4251, 0.70710677
      %v4265 = vmul.f32 %v4259, %v4259
      %v4266 = vmin.f32 16.0, %v4265
      %v4267 = vmul.f32 %v4266, 2.1237322e-06
      %v4268 = vadd.f32 %v4267, 0.00028619796
      %v4269 = vmul.f32 %v4266, %v4268
      %v4270 = vadd.f32 %v4269, 0.0036580483
      %v4271 = vmul.f32 %v4266, %v4270
      %v4272 = vadd.f32 %v4271, 0.05243302
      %v4273 = vmul.f32 %v4266, %v4272
      %v4274 = vadd.f32 %v4273, 0.18741608
      %v4275 = vmul.f32 %v4266, %v4274
      %v4276 = vadd.f32 %v4275, 1.1283791
      %v4277 = vmul.f32 %v4259, %v4276
      %v4278 = vmul.f32 %v4266, 3.8918573e-05
      %v4279 = vadd.f32 %v4278, 0.001143296
      %v4280 = vmul.f32 %v4266, %v4279
      %v4281 = vadd.f32 %v4280, 0.014752088
      %v4282 = vmul.f32 %v4266, %v4281
      %v4283 = vadd.f32 %v4282, 0.112945676
      %v4284 = vmul.f32 %v4266, %v4283
      %v4285 = vadd.f32 %v4284, 0.4994258
      %v4286 = vmul.f32 %v4266, %v4285
      %v4287 = vadd.f32 %v4286, 1.0
      %v4288 = vrcp.pop %v4287
      %v4289 = vmul.f32 %v4287, %v4288
      %v4290 = vsub.f32 1.0, %v4289
      %v4291 = vmul.f32 %v4288, %v4290
      %v4292 = vadd.f32 %v4288, %v4291
      %vm4293 = vweird.f32 %v4287
      %vm4294 = vweird.f32 %v4288
      %vm4295 = vmor %vm4293, %vm4294
      %v4296 = vsel %vm4295, %v4288, %v4292
      %v4297 = vand.u32 2147483647, %v4287
      %vm4298 = vcmp.eq.f32.partialorder %v4297, 8.507059e+37
      %v4299 = vand.u32 %v4287, 2147483648
      %v4300 = vor.u32 1.1754944e-38, %v4299
      %v4301 = vsel %vm4298, %v4300, %v4296
      %v4302 = vmul.f32 %v4277, %v4301
      %v4303 = vmin.f32 %v4302, 1.0
      %v4304 = vmax.f32 %v4303, -1.0
      %v4305 = vmul.f32 %v4260, %v4260
      %v4306 = vmin.f32 16.0, %v4305
      %v4307 = vmul.f32 %v4306, 2.1237322e-06
      %v4308 = vadd.f32 %v4307, 0.00028619796
      %v4309 = vmul.f32 %v4306, %v4308
      %v4310 = vadd.f32 %v4309, 0.0036580483
      %v4311 = vmul.f32 %v4306, %v4310
      %v4312 = vadd.f32 %v4311, 0.05243302
      %v4313 = vmul.f32 %v4306, %v4312
      %v4314 = vadd.f32 %v4313, 0.18741608
      %v4315 = vmul.f32 %v4306, %v4314
      %v4316 = vadd.f32 %v4315, 1.1283791
      %v4317 = vmul.f32 %v4260, %v4316
      %v4318 = vmul.f32 %v4306, 3.8918573e-05
      %v4319 = vadd.f32 %v4318, 0.001143296
      %v4320 = vmul.f32 %v4306, %v4319
      %v4321 = vadd.f32 %v4320, 0.014752088
      %v4322 = vmul.f32 %v4306, %v4321
      %v4323 = vadd.f32 %v4322, 0.112945676
      %v4324 = vmul.f32 %v4306, %v4323
      %v4325 = vadd.f32 %v4324, 0.4994258
      %v4326 = vmul.f32 %v4306, %v4325
      %v4327 = vadd.f32 %v4326, 1.0
      %v4328 = vrcp.pop %v4327
      %v4329 = vmul.f32 %v4327, %v4328
      %v4330 = vsub.f32 1.0, %v4329
      %v4331 = vmul.f32 %v4328, %v4330
      %v4332 = vadd.f32 %v4328, %v4331
      %vm4333 = vweird.f32 %v4327
      %vm4334 = vweird.f32 %v4328
      %vm4335 = vmor %vm4333, %vm4334
      %v4336 = vsel %vm4335, %v4328, %v4332
      %v4337 = vand.u32 2147483647, %v4327
      %vm4338 = vcmp.eq.f32.partialorder %v4337, 8.507059e+37
      %v4339 = vand.u32 %v4327, 2147483648
      %v4340 = vor.u32 1.1754944e-38, %v4339
      %v4341 = vsel %vm4338, %v4340, %v4336
      %v4342 = vmul.f32 %v4317, %v4341
      %v4343 = vmin.f32 %v4342, 1.0
      %v4344 = vmax.f32 %v4343, -1.0
      %v4345 = vmul.f32 %v4261, %v4261
      %v4346 = vmin.f32 16.0, %v4345
      %v4347 = vmul.f32 %v4346, 2.1237322e-06
      %v4348 = vadd.f32 %v4347, 0.00028619796
      %v4349 = vmul.f32 %v4346, %v4348
      %v4350 = vadd.f32 %v4349, 0.0036580483
      %v4351 = vmul.f32 %v4346, %v4350
      %v4352 = vadd.f32 %v4351, 0.05243302
      %v4353 = vmul.f32 %v4346, %v4352
      %v4354 = vadd.f32 %v4353, 0.18741608
      %v4355 = vmul.f32 %v4346, %v4354
      %v4356 = vadd.f32 %v4355, 1.1283791
      %v4357 = vmul.f32 %v4261, %v4356
      %v4358 = vmul.f32 %v4346, 3.8918573e-05
      %v4359 = vadd.f32 %v4358, 0.001143296
      %v4360 = vmul.f32 %v4346, %v4359
      %v4361 = vadd.f32 %v4360, 0.014752088
      %v4362 = vmul.f32 %v4346, %v4361
      %v4363 = vadd.f32 %v4362, 0.112945676
      %v4364 = vmul.f32 %v4346, %v4363
      %v4365 = vadd.f32 %v4364, 0.4994258
      %v4366 = vmul.f32 %v4346, %v4365
      %v4367 = vadd.f32 %v4366, 1.0
      %v4368 = vrcp.pop %v4367
      %v4369 = vmul.f32 %v4367, %v4368
      %v4370 = vsub.f32 1.0, %v4369
      %v4371 = vmul.f32 %v4368, %v4370
      %v4372 = vadd.f32 %v4368, %v4371
      %vm4373 = vweird.f32 %v4367
      %vm4374 = vweird.f32 %v4368
      %vm4375 = vmor %vm4373, %vm4374
      %v4376 = vsel %vm4375, %v4368, %v4372
      %v4377 = vand.u32 2147483647, %v4367
      %vm4378 = vcmp.eq.f32.partialorder %v4377, 8.507059e+37
      %v4379 = vand.u32 %v4367, 2147483648
      %v4380 = vor.u32 1.1754944e-38, %v4379
      %v4381 = vsel %vm4378, %v4380, %v4376
      %v4382 = vmul.f32 %v4357, %v4381
      %v4383 = vmin.f32 %v4382, 1.0
      %v4384 = vmax.f32 %v4383, -1.0
      %v4385 = vmul.f32 %v4262, %v4262
      %v4386 = vmin.f32 16.0, %v4385
      %v4387 = vmul.f32 %v4386, 2.1237322e-06
      %v4388 = vadd.f32 %v4387, 0.00028619796
      %v4389 = vmul.f32 %v4386, %v4388
      %v4390 = vadd.f32 %v4389, 0.0036580483
      %v4391 = vmul.f32 %v4386, %v4390
      %v4392 = vadd.f32 %v4391, 0.05243302
      %v4393 = vmul.f32 %v4386, %v4392
      %v4394 = vadd.f32 %v4393, 0.18741608
      %v4395 = vmul.f32 %v4386, %v4394
      %v4396 = vadd.f32 %v4395, 1.1283791
      %v4397 = vmul.f32 %v4262, %v4396
      %v4398 = vmul.f32 %v4386, 3.8918573e-05
      %v4399 = vadd.f32 %v4398, 0.001143296
      %v4400 = vmul.f32 %v4386, %v4399
      %v4401 = vadd.f32 %v4400, 0.014752088
      %v4402 = vmul.f32 %v4386, %v4401
      %v4403 = vadd.f32 %v4402, 0.112945676
      %v4404 = vmul.f32 %v4386, %v4403
      %v4405 = vadd.f32 %v4404, 0.4994258
      %v4406 = vmul.f32 %v4386, %v4405
      %v4407 = vadd.f32 %v4406, 1.0
      %v4408 = vrcp.pop %v4407
      %v4409 = vmul.f32 %v4407, %v4408
      %v4410 = vsub.f32 1.0, %v4409
      %v4411 = vmul.f32 %v4408, %v4410
      %v4412 = vadd.f32 %v4408, %v4411
      %vm4413 = vweird.f32 %v4407
      %vm4414 = vweird.f32 %v4408
      %vm4415 = vmor %vm4413, %vm4414
      %v4416 = vsel %vm4415, %v4408, %v4412
      %v4417 = vand.u32 2147483647, %v4407
      %vm4418 = vcmp.eq.f32.partialorder %v4417, 8.507059e+37
      %v4419 = vand.u32 %v4407, 2147483648
      %v4420 = vor.u32 1.1754944e-38, %v4419
      %v4421 = vsel %vm4418, %v4420, %v4416
      %v4422 = vmul.f32 %v4397, %v4421
      %v4423 = vmin.f32 %v4422, 1.0
      %v4424 = vmax.f32 %v4423, -1.0
      %v4425 = vmul.f32 %v4263, %v4263
      %v4426 = vmin.f32 16.0, %v4425
      %v4427 = vmul.f32 %v4426, 2.1237322e-06
      %v4428 = vadd.f32 %v4427, 0.00028619796
      %v4429 = vmul.f32 %v4426, %v4428
      %v4430 = vadd.f32 %v4429, 0.0036580483
      %v4431 = vmul.f32 %v4426, %v4430
      %v4432 = vadd.f32 %v4431, 0.05243302
      %v4433 = vmul.f32 %v4426, %v4432
      %v4434 = vadd.f32 %v4433, 0.18741608
      %v4435 = vmul.f32 %v4426, %v4434
      %v4436 = vadd.f32 %v4435, 1.1283791
      %v4437 = vmul.f32 %v4263, %v4436
      %v4438 = vmul.f32 %v4426, 3.8918573e-05
      %v4439 = vadd.f32 %v4438, 0.001143296
      %v4440 = vmul.f32 %v4426, %v4439
      %v4441 = vadd.f32 %v4440, 0.014752088
      %v4442 = vmul.f32 %v4426, %v4441
      %v4443 = vadd.f32 %v4442, 0.112945676
      %v4444 = vmul.f32 %v4426, %v4443
      %v4445 = vadd.f32 %v4444, 0.4994258
      %v4446 = vmul.f32 %v4426, %v4445
      %v4447 = vadd.f32 %v4446, 1.0
      %v4448 = vrcp.pop %v4447
      %v4449 = vmul.f32 %v4447, %v4448
      %v4450 = vsub.f32 1.0, %v4449
      %v4451 = vmul.f32 %v4448, %v4450
      %v4452 = vadd.f32 %v4448, %v4451
      %vm4453 = vweird.f32 %v4447
      %vm4454 = vweird.f32 %v4448
      %vm4455 = vmor %vm4453, %vm4454
      %v4456 = vsel %vm4455, %v4448, %v4452
      %v4457 = vand.u32 2147483647, %v4447
      %vm4458 = vcmp.eq.f32.partialorder %v4457, 8.507059e+37
      %v4459 = vand.u32 %v4447, 2147483648
      %v4460 = vor.u32 1.1754944e-38, %v4459
      %v4461 = vsel %vm4458, %v4460, %v4456
      %v4462 = vmul.f32 %v4437, %v4461
      %v4463 = vmin.f32 %v4462, 1.0
      %v4464 = vmax.f32 %v4463, -1.0
      %v4465 = vmul.f32 %v4264, %v4264
      %v4466 = vmin.f32 16.0, %v4465
      %v4467 = vmul.f32 %v4466, 2.1237322e-06
      %v4468 = vadd.f32 %v4467, 0.00028619796
      %v4469 = vmul.f32 %v4466, %v4468
      %v4470 = vadd.f32 %v4469, 0.0036580483
      %v4471 = vmul.f32 %v4466, %v4470
      %v4472 = vadd.f32 %v4471, 0.05243302
      %v4473 = vmul.f32 %v4466, %v4472
      %v4474 = vadd.f32 %v4473, 0.18741608
      %v4475 = vmul.f32 %v4466, %v4474
      %v4476 = vadd.f32 %v4475, 1.1283791
      %v4477 = vmul.f32 %v4264, %v4476
      %v4478 = vmul.f32 %v4466, 3.8918573e-05
      %v4479 = vadd.f32 %v4478, 0.001143296
      %v4480 = vmul.f32 %v4466, %v4479
      %v4481 = vadd.f32 %v4480, 0.014752088
      %v4482 = vmul.f32 %v4466, %v4481
      %v4483 = vadd.f32 %v4482, 0.112945676
      %v4484 = vmul.f32 %v4466, %v4483
      %v4485 = vadd.f32 %v4484, 0.4994258
      %v4486 = vmul.f32 %v4466, %v4485
      %v4487 = vadd.f32 %v4486, 1.0
      %v4488 = vrcp.pop %v4487
      %v4489 = vmul.f32 %v4487, %v4488
      %v4490 = vsub.f32 1.0, %v4489
      %v4491 = vmul.f32 %v4488, %v4490
      %v4492 = vadd.f32 %v4488, %v4491
      %vm4493 = vweird.f32 %v4487
      %vm4494 = vweird.f32 %v4488
      %vm4495 = vmor %vm4493, %vm4494
      %v4496 = vsel %vm4495, %v4488, %v4492
      %v4497 = vand.u32 2147483647, %v4487
      %vm4498 = vcmp.eq.f32.partialorder %v4497, 8.507059e+37
      %v4499 = vand.u32 %v4487, 2147483648
      %v4500 = vor.u32 1.1754944e-38, %v4499
      %v4501 = vsel %vm4498, %v4500, %v4496
      %v4502 = vmul.f32 %v4477, %v4501
      %v4503 = vmin.f32 %v4502, 1.0
      %v4504 = vmax.f32 %v4503, -1.0
      %v4505 = vadd.f32 %v4304, 1.0
      %v4506 = vadd.f32 %v4344, 1.0
      %v4507 = vadd.f32 %v4384, 1.0
      %v4508 = vadd.f32 %v4424, 1.0
      %v4509 = vadd.f32 %v4464, 1.0
      %v4510 = vadd.f32 %v4504, 1.0
      %v4511 = vmul.f32 %v4253, %v4505
      %v4512 = vmul.f32 %v4254, %v4506
      %v4513 = vmul.f32 %v4255, %v4507
      %v4514 = vmul.f32 %v4256, %v4508
      %v4515 = vmul.f32 %v4257, %v4509
      %v4516 = vmul.f32 %v4258, %v4510
      %v4517 = vld [vmem:[%s71] sm:$0xff]
      %v4518 = vld [vmem:[%s71 + $0x8] sm:$0xff]
      %v4519 = vld [vmem:[%s71 + $0x10] sm:$0xff]
      %v4520 = vld [vmem:[%s71 + $0x18] sm:$0xff]
      %v4521 = vld [vmem:[%s71 + $0x20] sm:$0xff]
      %v4522 = vld [vmem:[%s71 + $0x28] sm:$0xff]
      %v4523 = vld [vmem:[%s71 + $0x30] sm:$0xff]
      %v4524 = vld [vmem:[%s71 + $0x38] sm:$0xff]
      %v4525 = vld [vmem:[%s71 + $0x40] sm:$0xff]
      %v4526 = vld [vmem:[%s71 + $0x48] sm:$0xff]
      %v4527 = vld [vmem:[%s71 + $0x50] sm:$0xff]
      %v4528 = vld [vmem:[%s71 + $0x58] sm:$0xff]
      %v4529 = vld [vmem:[%s71 + $0x60] sm:$0xff]
      %v4530 = vld [vmem:[%s71 + $0x68] sm:$0xff]
      %v4531 = vld [vmem:[%s71 + $0x70] sm:$0xff]
      %v4532 = vld [vmem:[%s71 + $0x78] sm:$0xff]
      %v4533 = vld [vmem:[%s71 + $0x80] sm:$0xff]
      %v4534 = vld [vmem:[%s71 + $0x88] sm:$0xff]
      %v4535 = vld [vmem:[%s71 + $0x90] sm:$0xff]
      %v4536 = vld [vmem:[%s71 + $0x98] sm:$0xff]
      %v4537 = vld [vmem:[%s71 + $0xa0] sm:$0xff]
      %v4538 = vld [vmem:[%s71 + $0xa8] sm:$0xff]
      %v4539 = vld [vmem:[%s71 + $0xb0] sm:$0xff]
      %v4540 = vld [vmem:[%s71 + $0xb8] sm:$0xff]
      %v4541 = vld [vmem:[%s71 + $0xc0] sm:$0xff]
      %v4542 = vld [vmem:[%s71 + $0xc8] sm:$0xff]
      %v4543 = vld [vmem:[%s71 + $0xd0] sm:$0xff]
      %v4544 = vld [vmem:[%s71 + $0xd8] sm:$0xff]
      %v4545 = vld [vmem:[%s71 + $0xe0] sm:$0xff]
      %v4546 = vld [vmem:[%s71 + $0xe8] sm:$0xff]
      %v4547 = vld [vmem:[%s71 + $0xf0] sm:$0xff]
      %v4548 = vld [vmem:[%s71 + $0xf8] sm:$0xff]
      %v4549 = vld [vmem:[%s73] sm:$0x1]
      %v4551 = vperm.slane %v4549, 0
      %4553 = vmatpush.msra.mxu0 %v4532
      %4554 = vmatpush.msra.mxu0 %v4531
      %4555 = vmatpush.msra.mxu0 %v4530
      %4556 = vmatpush.msra.mxu0 %v4529
      %4557 = vmatpush.msra.mxu0 %v4528
      %4558 = vmatpush.msra.mxu0 %v4527
      %4559 = vmatpush.msra.mxu0 %v4526
      %4560 = vmatpush.msra.mxu0 %v4525
      %4561 = vmatpush.msra.mxu0 %v4524
      %4562 = vmatpush.msra.mxu0 %v4523
      %4563 = vmatpush.msra.mxu0 %v4522
      %4564 = vmatpush.msra.mxu0 %v4521
      %4565 = vmatpush.msra.mxu0 %v4520
      %4566 = vmatpush.msra.mxu0 %v4519
      %4567 = vmatpush.msra.mxu0 %v4518
      %4568 = vmatpush.msra.mxu0 %v4517
      %4569 = vmatmul.f32.gmra.mxu0 %v4511
      %v4570 = vpop.f32.mrf.mxu0
      %v4571 = vadd.f32 %v4551, %v4570
      %4572 = vmatmul.f32.gmra.mxu0 %v4513
      %v4573 = vpop.f32.mrf.mxu0
      %4574 = vmatmul.f32.gmra.mxu0 %v4515
      %v4575 = vpop.f32.mrf.mxu0
      %4576 = vdwg.mxu0
      %4577 = vmatpush.msra.mxu0 %v4548
      %4578 = vmatpush.msra.mxu0 %v4547
      %4579 = vmatpush.msra.mxu0 %v4546
      %4580 = vmatpush.msra.mxu0 %v4545
      %4581 = vmatpush.msra.mxu0 %v4544
      %4582 = vmatpush.msra.mxu0 %v4543
      %4583 = vmatpush.msra.mxu0 %v4542
      %4584 = vmatpush.msra.mxu0 %v4541
      %4585 = vmatpush.msra.mxu0 %v4540
      %4586 = vmatpush.msra.mxu0 %v4539
      %4587 = vmatpush.msra.mxu0 %v4538
      %4588 = vmatpush.msra.mxu0 %v4537
      %4589 = vmatpush.msra.mxu0 %v4536
      %4590 = vmatpush.msra.mxu0 %v4535
      %4591 = vmatpush.msra.mxu0 %v4534
      %4592 = vmatpush.msra.mxu0 %v4533
      %4593 = vmatmul.f32.gmra.mxu0 %v4512
      %v4594 = vpop.f32.mrf.mxu0
      %v4595 = vadd.f32 %v4571, %v4594
      %4596 = vmatmul.f32.gmra.mxu0 %v4514
      %v4597 = vpop.f32.mrf.mxu0
      %4598 = vmatmul.f32.gmra.mxu0 %v4516
      %v4599 = vpop.f32.mrf.mxu0
      %4600 = vdwg.mxu0
      %v4601 = vadd.f32 %v4087, %v4595
      %4602 = vst.msk [vmem:[%s1122] sm:$0x1] %vm1170, %v4601
      %p4603 = scmp.lt.s32.totalorder %s86, 1
      %s4604 = scalar_select %p4603, %s86, 1
      %s4605 = scalar_lea.vmem %s75, %s4604
      // Predicated region
      $region169: #{vit_hugging_forward.2} parent=167 // pred_check
        %p4606 = pneg %p886
      $region170: #{vit_hugging_forward.2} parent=167 // pred_check_branch
        %4608 = sbr.rel (%p4606) target = $region172
      $region171: #{vit_hugging_forward.2} parent=167 // pred_region
        _
      $region172: #{vit_hugging_forward.2} parent=167 // pred_fallthru
        _
    $region168: #{vit_hugging_forward.2} parent=5 // pred_fallthru
      _
    %p4609 = scmp.le.s32.totalorder 2, %s81
    // Predicated region
    $region173: #{vit_hugging_forward.2} parent=5 // pred_check
      %p4610 = pneg %p4609
    $region174: #{vit_hugging_forward.2} parent=5 // pred_check_branch
      %4612 = sbr.rel (%p4610) target = $region176
    $region175: #{vit_hugging_forward.2} parent=5 // pred_region
      %s4613 = ssub.s32 %s81, 2
      // Predicated region
      $region177: #{vit_hugging_forward.2} parent=175 // pred_check
        %p4614 = pneg %p892
      $region178: #{vit_hugging_forward.2} parent=175 // pred_check_branch
        %4616 = sbr.rel (%p4614) target = $region180
      $region179: #{vit_hugging_forward.2} parent=175 // pred_region
        %p4617 = scmp.lt.s32.totalorder %s87, 1
        %s4618 = scalar_select %p4617, %s87, 1
        %s4619 = scalar_lea.vmem %s75, %s4618
      $region180: #{vit_hugging_forward.2} parent=175 // pred_fallthru
        _
    $region176: #{vit_hugging_forward.2} parent=5 // pred_fallthru
      _
  $region6: #{vit_hugging_forward.2} parent=0 // loop_footer
    %s85 = sadd.s32 1, %s81
  $region7: #{vit_hugging_forward.2} parent=0 // loop_footer_branch
    %80 = sbr.rel target = $region3
  $region8: #{vit_hugging_forward.2} parent=0 // loop_exit
    _

</llo_original>
